<compile_context>
chip_gen: v5e
topology: v5e:2x2
jax: 0.10.0
libtpu: 0.0.40
codegen_flags: <defaults>
</compile_context>

<pallas_src>
import functools

import jax
import jax.numpy as jnp
import numpy as np
from jax.experimental import pallas as pl
from jax.experimental.pallas import tpu as pltpu

EPS = 1e-5


def _conv_stage_kernel(inp_ref, w_ref, scale_ref, shift_ref, valid_ref,
                       y_ref, stats_ref, *scratch, H, Wp, fuse_bn_relu):
    """One image: [optional bn+relu] -> 3x3 'same' conv -> partial BN stats.

    "Wide" layout: rows m = i*Wp + j with j in [0, Wp); columns j >= W are
    zero/junk padding.  For a zero-framed flat buffer
        B = [zeros(Wp+1), wide_image, zeros(Wp+1)]
    the 3x3 'same' conv of the valid columns is exactly
        conv_wide[m] = sum_{kh,kw} B[m + kh*Wp + kw] @ Wk[kh,kw]
    (the zeroed junk columns act as left/right padding under flat wrap).

    inp_ref   : (1, LB, C) framed x   (stage 1)  OR  (1, M, C) wide y1 (stage 2)
    w_ref     : (9, C, Cout) bf16 taps, order t = kh*3 + kw
    scale/shift: (1, C) f32 folded affine of the *previous* BN (stage 2 only)
    valid_ref : (M, 1) f32, 1.0 for wide columns j < W else 0.0
    y_ref     : (1, M, Cout) bf16 conv output (wide layout, junk cols unmasked)
    stats_ref : (1, 2, Cout) f32 per-image [sum, sum_sq] over valid pixels
    scratch   : stage 2 only -- (LB, C) bf16 framed buffer for relu(bn1(y1))
    """
    C = inp_ref.shape[-1]
    M = H * Wp
    LEAD = Wp + 1
    valid = valid_ref[...]                                    # (M, 1) f32

    if fuse_bn_relu:
        pad_ref = scratch[0]
        LB = pad_ref.shape[0]
        z = inp_ref[0].astype(jnp.float32) * scale_ref[...] + shift_ref[...]
        z = (jnp.maximum(z, 0.0) * valid).astype(jnp.bfloat16)
        # Zero frame (2*(Wp+1) rows) + one interior store.  Redone every grid
        # step so the kernel stays correct when the "parallel" axis is sharded
        # across TensorCores with independent scratch.
        pad_ref[0:LEAD, :] = jnp.zeros((LEAD, C), jnp.bfloat16)
        pad_ref[LEAD + M:LB, :] = jnp.zeros((LB - LEAD - M, C), jnp.bfloat16)
        pad_ref[LEAD:LEAD + M, :] = z

        def tap(off):
            return pad_ref[off:off + M, :]
    else:
        # Stage 1: x arrives pre-framed from the wrapper -> slice it directly,
        # no in-kernel padding copy.
        def tap(off):
            return inp_ref[0, off:off + M, :]

    # 9 shift-and-accumulate tap matmuls (K = C), f32 accumulation.  On v7x the
    # MRB accumulates in place; on v5e/v6e the adds ride the VPU slot.
    acc = jnp.dot(tap(0), w_ref[0], preferred_element_type=jnp.float32)
    for t in range(1, 9):
        kh, kw = divmod(t, 3)
        acc = acc + jnp.dot(tap(kh * Wp + kw), w_ref[t],
                            preferred_element_type=jnp.float32)

    y_ref[0] = acc.astype(y_ref.dtype)

    # One-pass BN partial statistics over valid pixels only.
    # TODO(synk): interleave the stats reduction with the tap matmuls in row
    # bands so it stays hidden under MXU time (minor).
    am = acc * valid
    s = jnp.sum(am, axis=0, keepdims=True)
    ss = jnp.sum(am * am, axis=0, keepdims=True)
    stats_ref[0] = jnp.concatenate([s, ss], axis=0)           # (2, Cout)


def _finalize_kernel(y2_ref, xb_ref, scale_ref, shift_ref, o_ref, *, M, LEAD):
    """out = relu(bn2(y2) + residual) for one image (bf16 streaming output)."""
    y = y2_ref[0].astype(jnp.float32) * scale_ref[...] + shift_ref[...]
    res = xb_ref[0, LEAD:LEAD + M, :].astype(jnp.float32)
    o_ref[0] = jnp.maximum(y + res, 0.0).astype(o_ref.dtype)


def _conv_stage(inp, w_taps, scale, shift, valid, *, H, Wp, fuse_bn_relu):
    N, R, C = inp.shape                 # R = LB (stage 1) or M (stage 2)
    Cout = w_taps.shape[-1]
    M = H * Wp
    LB = M + 2 * (Wp + 1)
    kernel = functools.partial(_conv_stage_kernel, H=H, Wp=Wp,
                               fuse_bn_relu=fuse_bn_relu)
    return pl.pallas_call(
        kernel,
        grid=(N,),
        in_specs=[
            pl.BlockSpec((1, R, C), lambda n: (n, 0, 0)),
            pl.BlockSpec((9, C, Cout), lambda n: (0, 0, 0)),
            pl.BlockSpec((1, C), lambda n: (0, 0)),
            pl.BlockSpec((1, C), lambda n: (0, 0)),
            pl.BlockSpec((M, 1), lambda n: (0, 0)),
        ],
        out_specs=[
            pl.BlockSpec((1, M, Cout), lambda n: (n, 0, 0)),
            pl.BlockSpec((1, 2, Cout), lambda n: (n, 0, 0)),
        ],
        out_shape=[
            jax.ShapeDtypeStruct((N, M, Cout), jnp.bfloat16),
            jax.ShapeDtypeStruct((N, 2, Cout), jnp.float32),
        ],
        scratch_shapes=(
            [pltpu.VMEM((LB, C), jnp.bfloat16)] if fuse_bn_relu else []),
        compiler_params=pltpu.CompilerParams(
            dimension_semantics=("parallel",)),
        # TODO(synk): add a second (row-band) grid axis for deeper megacore
        # sharding / smaller per-step working sets on v7x.
    )(inp, w_taps, scale, shift, valid)


def _finalize(y2, x_framed, scale, shift, *, M, LEAD):
    N, _, C = y2.shape
    LB = x_framed.shape[1]
    return pl.pallas_call(
        functools.partial(_finalize_kernel, M=M, LEAD=LEAD),
        grid=(N,),
        in_specs=[
            pl.BlockSpec((1, M, C), lambda n: (n, 0, 0)),
            pl.BlockSpec((1, LB, C), lambda n: (n, 0, 0)),
            pl.BlockSpec((1, C), lambda n: (0, 0)),
            pl.BlockSpec((1, C), lambda n: (0, 0)),
        ],
        out_specs=pl.BlockSpec((1, M, C), lambda n: (n, 0, 0)),
        out_shape=jax.ShapeDtypeStruct((N, M, C), jnp.bfloat16),
        compiler_params=pltpu.CompilerParams(
            dimension_semantics=("parallel",)),
    )(y2, x_framed, scale, shift)


def _bn_scale_shift(stats, gamma, beta, count):
    """Fold global batch stats (merged per-image partials) + affine into a
    per-channel scale/shift so that bn(v) = v*scale + shift.

    Note: one-pass E[x^2]-E[x]^2 in f32 (fine at these sizes); a shifted /
    Welford-style merge would be safer for very large N*H*W per channel.
    Stats come from the f32 conv accumulator while normalization is applied to
    the bf16-rounded activations -- a tolerance-level mismatch by design."""
    s = jnp.sum(stats[:, 0, :], axis=0)
    ss = jnp.sum(stats[:, 1, :], axis=0)
    mean = s / count
    var = jnp.maximum(ss / count - mean * mean, 0.0)      # biased variance
    inv = jax.lax.rsqrt(var + EPS)
    scale = gamma.astype(jnp.float32) * inv
    shift = beta.astype(jnp.float32) - mean * scale
    return scale.reshape(1, -1), shift.reshape(1, -1)


def _prep_conv_weight(w_oihw):
    # (Cout, Cin, 3, 3) -> (3, 3, Cin, Cout) -> (9, Cin, Cout), t = kh*3 + kw.
    w = jnp.transpose(w_oihw, (2, 3, 1, 0))
    return w.reshape(9, w.shape[2], w.shape[3]).astype(jnp.bfloat16)


@jax.jit
def basic_block_forward(x_nchw, params):
    # TODO(synk): stride>1 / downsample branch of BasicBlock is not implemented
    # (module defaults: stride=1, downsample=None -> identity shortcut).
    w1, g1, b1, w2, g2, b2 = params
    N, C, H, W = x_nchw.shape
    Cout = w1.shape[0]
    assert w1.shape[1] == C and Cout == C, "identity block requires inplanes == planes"

    Wp = W + 2
    M = H * Wp
    LEAD = Wp + 1
    LB = M + 2 * LEAD
    count = jnp.float32(N * H * W)

    # Single XLA layout pass at the PyTorch boundary: NCHW -> NHWC bf16, two
    # zero "junk" columns appended per row (wide layout), plus a (Wp+1)-row
    # zero frame at both ends of the flat buffer.  This framed x feeds conv1
    # directly and also serves as the stage-3 residual.
    x_l = jnp.transpose(x_nchw, (0, 2, 3, 1)).astype(jnp.bfloat16)
    x_wide = jnp.pad(x_l, ((0, 0), (0, 0), (0, 2), (0, 0))).reshape(N, M, C)
    x_framed = jnp.pad(x_wide, ((0, 0), (LEAD, LB - LEAD - M), (0, 0)))

    # Column-validity mask (1.0 for wide column j < W): zeroes the junk columns
    # after bn1+relu and excludes them from BN statistics.
    valid = jnp.asarray(
        (np.arange(M) % Wp < W).astype(np.float32).reshape(M, 1))

    w1k = _prep_conv_weight(w1)
    w2k = _prep_conv_weight(w2)
    ones = jnp.ones((1, C), jnp.float32)
    zeros = jnp.zeros((1, C), jnp.float32)

    # Stage 1: y1 = conv1(x), plus one-pass partial sums for BN1.
    y1, st1 = _conv_stage(x_framed, w1k, ones, zeros, valid,
                          H=H, Wp=Wp, fuse_bn_relu=False)
    a1, c1 = _bn_scale_shift(st1, g1, b1, count)

    # Stage 2: y2 = conv2(relu(bn1(y1))), plus partial sums for BN2.
    y2, st2 = _conv_stage(y1, w2k, a1, c1, valid,
                          H=H, Wp=Wp, fuse_bn_relu=True)
    a2, c2 = _bn_scale_shift(st2, g2, b2, count)

    # Stage 3: out = relu(bn2(y2) + x), streamed out in bf16.
    out_flat = _finalize(y2, x_framed, a2, c2, M=M, LEAD=LEAD)

    out = out_flat.reshape(N, H, Wp, C)[:, :, :W, :]
    return jnp.transpose(out, (0, 3, 1, 2)).astype(x_nchw.dtype)


def basic_block_reference(x, w1, g1, b1, w2, g2, b2):
    # Pure-JAX f32 reference mirroring the PyTorch forward (training-mode BN).
    def conv(x, w):
        return jax.lax.conv_general_dilated(
            x, w, (1, 1), ((1, 1), (1, 1)),
            dimension_numbers=("NCHW", "OIHW", "NCHW"),
            precision=jax.lax.Precision.HIGHEST)

    def bn(x, g, b):
        mean = x.mean(axis=(0, 2, 3), keepdims=True)
        var = ((x - mean) ** 2).mean(axis=(0, 2, 3), keepdims=True)
        return ((x - mean) * jax.lax.rsqrt(var + EPS) * g.reshape(1, -1, 1, 1)
                + b.reshape(1, -1, 1, 1))

    out = jnp.maximum(bn(conv(x, w1), g1, b1), 0.0)
    out = bn(conv(out, w2), g2, b2) + x
    return jnp.maximum(out, 0.0)


if __name__ == "__main__":
    key = jax.random.PRNGKey(0)
    ks = jax.random.split(key, 7)
    N, C, H, W = 2, 4, 16, 16  # inplanes = planes = 4, stride = 1

    x = jax.random.normal(ks[0], (N, C, H, W), jnp.float32)
    w1 = jax.random.normal(ks[1], (C, C, 3, 3), jnp.float32) * 0.2
    w2 = jax.random.normal(ks[2], (C, C, 3, 3), jnp.float32) * 0.2
    g1 = 1.0 + 0.1 * jax.random.normal(ks[3], (C,), jnp.float32)
    b1 = 0.1 * jax.random.normal(ks[4], (C,), jnp.float32)
    g2 = 1.0 + 0.1 * jax.random.normal(ks[5], (C,), jnp.float32)
    b2 = 0.1 * jax.random.normal(ks[6], (C,), jnp.float32)

    out = basic_block_forward(x, (w1, g1, b1, w2, g2, b2))
    out = jax.block_until_ready(out)

    ref = basic_block_reference(x, w1, g1, b1, w2, g2, b2)
    np.testing.assert_allclose(np.asarray(out), np.asarray(ref), rtol=2e-2, atol=2e-2)
    assert out.shape == (N, C, H, W)
    print("KERNEL_OK")
</pallas_src>

<mosaic_0001>
module attributes {stable_mosaic.version = 11 : i64} {
  func.func @_conv_stage_kernel(%arg0: i32, %arg1: memref<1x326x4xbf16, #tpu.memory_space<vmem>>, %arg2: memref<9x4x4xbf16, #tpu.memory_space<vmem>>, %arg3: memref<1x4xf32, #tpu.memory_space<vmem>>, %arg4: memref<1x4xf32, #tpu.memory_space<vmem>>, %arg5: memref<288x1xf32, #tpu.memory_space<vmem>>, %arg6: memref<1x288x4xbf16, #tpu.memory_space<vmem>>, %arg7: memref<1x2x4xf32, #tpu.memory_space<vmem>>) attributes {dimension_semantics = [#tpu.dimension_semantics<parallel>], iteration_bounds = array<i64: 2>, scalar_prefetch = 0 : i64, scratch_operands = 0 : i64, tpu.core_type = #tpu.core_type<tc>, window_params = [{transform_indices = @transform_0, window_bounds = array<i64: 1, 326, 4>}, {pipeline_mode = #tpu.pipeline_mode<synchronous>, transform_indices = @transform_1, window_bounds = array<i64: 9, 4, 4>}, {pipeline_mode = #tpu.pipeline_mode<synchronous>, transform_indices = @transform_2, window_bounds = array<i64: 1, 4>}, {pipeline_mode = #tpu.pipeline_mode<synchronous>, transform_indices = @transform_3, window_bounds = array<i64: 1, 4>}, {pipeline_mode = #tpu.pipeline_mode<synchronous>, transform_indices = @transform_4, window_bounds = array<i64: 288, 1>}, {transform_indices = @transform_5, window_bounds = array<i64: 1, 288, 4>}, {transform_indices = @transform_6, window_bounds = array<i64: 1, 2, 4>}]} {
    %c0 = arith.constant 0 : index
    %c0_0 = arith.constant 0 : index
    %0 = vector.load %arg5[%c0, %c0_0] : memref<288x1xf32, #tpu.memory_space<vmem>>, vector<288x1xf32>
    %c0_1 = arith.constant 0 : index
    %c0_2 = arith.constant 0 : index
    %c0_3 = arith.constant 0 : index
    %1 = vector.load %arg1[%c0_1, %c0_2, %c0_3] : memref<1x326x4xbf16, #tpu.memory_space<vmem>>, vector<1x288x4xbf16>
    %2 = vector.shape_cast %1 : vector<1x288x4xbf16> to vector<288x4xbf16>
    %c0_4 = arith.constant 0 : index
    %c0_5 = arith.constant 0 : index
    %c0_6 = arith.constant 0 : index
    %3 = vector.load %arg2[%c0_4, %c0_5, %c0_6] : memref<9x4x4xbf16, #tpu.memory_space<vmem>>, vector<1x4x4xbf16>
    %4 = vector.shape_cast %3 : vector<1x4x4xbf16> to vector<4x4xbf16>
    %cst = arith.constant dense<0.000000e+00> : vector<288x4xf32>
    %5 = tpu.matmul %2, %4, %cst {dimension_numbers = #tpu.dot_dimension_numbers<[1], [0], [0], [1], [0, 0, 1, 1], [], []>} : vector<288x4xbf16>, vector<4x4xbf16>, vector<288x4xf32> -> vector<288x4xf32>
    %c0_7 = arith.constant 0 : index
    %c1 = arith.constant 1 : index
    %c0_8 = arith.constant 0 : index
    %6 = vector.load %arg1[%c0_7, %c1, %c0_8] : memref<1x326x4xbf16, #tpu.memory_space<vmem>>, vector<1x288x4xbf16>
    %7 = vector.shape_cast %6 : vector<1x288x4xbf16> to vector<288x4xbf16>
    %c1_9 = arith.constant 1 : index
    %c0_10 = arith.constant 0 : index
    %c0_11 = arith.constant 0 : index
    %8 = vector.load %arg2[%c1_9, %c0_10, %c0_11] : memref<9x4x4xbf16, #tpu.memory_space<vmem>>, vector<1x4x4xbf16>
    %9 = vector.shape_cast %8 : vector<1x4x4xbf16> to vector<4x4xbf16>
    %cst_12 = arith.constant dense<0.000000e+00> : vector<288x4xf32>
    %10 = tpu.matmul %7, %9, %cst_12 {dimension_numbers = #tpu.dot_dimension_numbers<[1], [0], [0], [1], [0, 0, 1, 1], [], []>} : vector<288x4xbf16>, vector<4x4xbf16>, vector<288x4xf32> -> vector<288x4xf32>
    %11 = arith.addf %5, %10 : vector<288x4xf32>
    %c0_13 = arith.constant 0 : index
    %c2 = arith.constant 2 : index
    %c0_14 = arith.constant 0 : index
    %12 = vector.load %arg1[%c0_13, %c2, %c0_14] : memref<1x326x4xbf16, #tpu.memory_space<vmem>>, vector<1x288x4xbf16>
    %13 = vector.shape_cast %12 : vector<1x288x4xbf16> to vector<288x4xbf16>
    %c2_15 = arith.constant 2 : index
    %c0_16 = arith.constant 0 : index
    %c0_17 = arith.constant 0 : index
    %14 = vector.load %arg2[%c2_15, %c0_16, %c0_17] : memref<9x4x4xbf16, #tpu.memory_space<vmem>>, vector<1x4x4xbf16>
    %15 = vector.shape_cast %14 : vector<1x4x4xbf16> to vector<4x4xbf16>
    %cst_18 = arith.constant dense<0.000000e+00> : vector<288x4xf32>
    %16 = tpu.matmul %13, %15, %cst_18 {dimension_numbers = #tpu.dot_dimension_numbers<[1], [0], [0], [1], [0, 0, 1, 1], [], []>} : vector<288x4xbf16>, vector<4x4xbf16>, vector<288x4xf32> -> vector<288x4xf32>
    %17 = arith.addf %11, %16 : vector<288x4xf32>
    %c0_19 = arith.constant 0 : index
    %c18 = arith.constant 18 : index
    %c0_20 = arith.constant 0 : index
    %18 = vector.load %arg1[%c0_19, %c18, %c0_20] : memref<1x326x4xbf16, #tpu.memory_space<vmem>>, vector<1x288x4xbf16>
    %19 = vector.shape_cast %18 : vector<1x288x4xbf16> to vector<288x4xbf16>
    %c3 = arith.constant 3 : index
    %c0_21 = arith.constant 0 : index
    %c0_22 = arith.constant 0 : index
    %20 = vector.load %arg2[%c3, %c0_21, %c0_22] : memref<9x4x4xbf16, #tpu.memory_space<vmem>>, vector<1x4x4xbf16>
    %21 = vector.shape_cast %20 : vector<1x4x4xbf16> to vector<4x4xbf16>
    %cst_23 = arith.constant dense<0.000000e+00> : vector<288x4xf32>
    %22 = tpu.matmul %19, %21, %cst_23 {dimension_numbers = #tpu.dot_dimension_numbers<[1], [0], [0], [1], [0, 0, 1, 1], [], []>} : vector<288x4xbf16>, vector<4x4xbf16>, vector<288x4xf32> -> vector<288x4xf32>
    %23 = arith.addf %17, %22 : vector<288x4xf32>
    %c0_24 = arith.constant 0 : index
    %c19 = arith.constant 19 : index
    %c0_25 = arith.constant 0 : index
    %24 = vector.load %arg1[%c0_24, %c19, %c0_25] : memref<1x326x4xbf16, #tpu.memory_space<vmem>>, vector<1x288x4xbf16>
    %25 = vector.shape_cast %24 : vector<1x288x4xbf16> to vector<288x4xbf16>
    %c4 = arith.constant 4 : index
    %c0_26 = arith.constant 0 : index
    %c0_27 = arith.constant 0 : index
    %26 = vector.load %arg2[%c4, %c0_26, %c0_27] : memref<9x4x4xbf16, #tpu.memory_space<vmem>>, vector<1x4x4xbf16>
    %27 = vector.shape_cast %26 : vector<1x4x4xbf16> to vector<4x4xbf16>
    %cst_28 = arith.constant dense<0.000000e+00> : vector<288x4xf32>
    %28 = tpu.matmul %25, %27, %cst_28 {dimension_numbers = #tpu.dot_dimension_numbers<[1], [0], [0], [1], [0, 0, 1, 1], [], []>} : vector<288x4xbf16>, vector<4x4xbf16>, vector<288x4xf32> -> vector<288x4xf32>
    %29 = arith.addf %23, %28 : vector<288x4xf32>
    %c0_29 = arith.constant 0 : index
    %c20 = arith.constant 20 : index
    %c0_30 = arith.constant 0 : index
    %30 = vector.load %arg1[%c0_29, %c20, %c0_30] : memref<1x326x4xbf16, #tpu.memory_space<vmem>>, vector<1x288x4xbf16>
    %31 = vector.shape_cast %30 : vector<1x288x4xbf16> to vector<288x4xbf16>
    %c5 = arith.constant 5 : index
    %c0_31 = arith.constant 0 : index
    %c0_32 = arith.constant 0 : index
    %32 = vector.load %arg2[%c5, %c0_31, %c0_32] : memref<9x4x4xbf16, #tpu.memory_space<vmem>>, vector<1x4x4xbf16>
    %33 = vector.shape_cast %32 : vector<1x4x4xbf16> to vector<4x4xbf16>
    %cst_33 = arith.constant dense<0.000000e+00> : vector<288x4xf32>
    %34 = tpu.matmul %31, %33, %cst_33 {dimension_numbers = #tpu.dot_dimension_numbers<[1], [0], [0], [1], [0, 0, 1, 1], [], []>} : vector<288x4xbf16>, vector<4x4xbf16>, vector<288x4xf32> -> vector<288x4xf32>
    %35 = arith.addf %29, %34 : vector<288x4xf32>
    %c0_34 = arith.constant 0 : index
    %c36 = arith.constant 36 : index
    %c0_35 = arith.constant 0 : index
    %36 = vector.load %arg1[%c0_34, %c36, %c0_35] : memref<1x326x4xbf16, #tpu.memory_space<vmem>>, vector<1x288x4xbf16>
    %37 = vector.shape_cast %36 : vector<1x288x4xbf16> to vector<288x4xbf16>
    %c6 = arith.constant 6 : index
    %c0_36 = arith.constant 0 : index
    %c0_37 = arith.constant 0 : index
    %38 = vector.load %arg2[%c6, %c0_36, %c0_37] : memref<9x4x4xbf16, #tpu.memory_space<vmem>>, vector<1x4x4xbf16>
    %39 = vector.shape_cast %38 : vector<1x4x4xbf16> to vector<4x4xbf16>
    %cst_38 = arith.constant dense<0.000000e+00> : vector<288x4xf32>
    %40 = tpu.matmul %37, %39, %cst_38 {dimension_numbers = #tpu.dot_dimension_numbers<[1], [0], [0], [1], [0, 0, 1, 1], [], []>} : vector<288x4xbf16>, vector<4x4xbf16>, vector<288x4xf32> -> vector<288x4xf32>
    %41 = arith.addf %35, %40 : vector<288x4xf32>
    %c0_39 = arith.constant 0 : index
    %c37 = arith.constant 37 : index
    %c0_40 = arith.constant 0 : index
    %42 = vector.load %arg1[%c0_39, %c37, %c0_40] : memref<1x326x4xbf16, #tpu.memory_space<vmem>>, vector<1x288x4xbf16>
    %43 = vector.shape_cast %42 : vector<1x288x4xbf16> to vector<288x4xbf16>
    %c7 = arith.constant 7 : index
    %c0_41 = arith.constant 0 : index
    %c0_42 = arith.constant 0 : index
    %44 = vector.load %arg2[%c7, %c0_41, %c0_42] : memref<9x4x4xbf16, #tpu.memory_space<vmem>>, vector<1x4x4xbf16>
    %45 = vector.shape_cast %44 : vector<1x4x4xbf16> to vector<4x4xbf16>
    %cst_43 = arith.constant dense<0.000000e+00> : vector<288x4xf32>
    %46 = tpu.matmul %43, %45, %cst_43 {dimension_numbers = #tpu.dot_dimension_numbers<[1], [0], [0], [1], [0, 0, 1, 1], [], []>} : vector<288x4xbf16>, vector<4x4xbf16>, vector<288x4xf32> -> vector<288x4xf32>
    %47 = arith.addf %41, %46 : vector<288x4xf32>
    %c0_44 = arith.constant 0 : index
    %c38 = arith.constant 38 : index
    %c0_45 = arith.constant 0 : index
    %48 = vector.load %arg1[%c0_44, %c38, %c0_45] : memref<1x326x4xbf16, #tpu.memory_space<vmem>>, vector<1x288x4xbf16>
    %49 = vector.shape_cast %48 : vector<1x288x4xbf16> to vector<288x4xbf16>
    %c8 = arith.constant 8 : index
    %c0_46 = arith.constant 0 : index
    %c0_47 = arith.constant 0 : index
    %50 = vector.load %arg2[%c8, %c0_46, %c0_47] : memref<9x4x4xbf16, #tpu.memory_space<vmem>>, vector<1x4x4xbf16>
    %51 = vector.shape_cast %50 : vector<1x4x4xbf16> to vector<4x4xbf16>
    %cst_48 = arith.constant dense<0.000000e+00> : vector<288x4xf32>
    %52 = tpu.matmul %49, %51, %cst_48 {dimension_numbers = #tpu.dot_dimension_numbers<[1], [0], [0], [1], [0, 0, 1, 1], [], []>} : vector<288x4xbf16>, vector<4x4xbf16>, vector<288x4xf32> -> vector<288x4xf32>
    %53 = arith.addf %47, %52 : vector<288x4xf32>
    %54 = arith.truncf %53 : vector<288x4xf32> to vector<288x4xbf16>
    %c0_49 = arith.constant 0 : index
    %c0_50 = arith.constant 0 : index
    %c0_51 = arith.constant 0 : index
    %55 = vector.load %arg6[%c0_49, %c0_50, %c0_51] : memref<1x288x4xbf16, #tpu.memory_space<vmem>>, vector<1x288x4xbf16>
    %56 = vector.shape_cast %55 : vector<1x288x4xbf16> to vector<288x4xbf16>
    %57 = vector.shape_cast %54 : vector<288x4xbf16> to vector<1x288x4xbf16>
    tpu.vector_store %arg6[%c0_49, %c0_50, %c0_51], %57 {strides = array<i32>} : memref<1x288x4xbf16, #tpu.memory_space<vmem>>, vector<1x288x4xbf16>,
    %58 = vector.broadcast %0 : vector<288x1xf32> to vector<288x4xf32>
    %59 = arith.mulf %53, %58 : vector<288x4xf32>
    %cst_52 = arith.constant dense<0.000000e+00> : vector<4xf32>
    %60 = vector.multi_reduction <add>, %59, %cst_52 [0] : vector<288x4xf32> to vector<4xf32>
    %61 = vector.shape_cast %60 : vector<4xf32> to vector<1x4xf32>
    %62 = arith.mulf %59, %59 : vector<288x4xf32>
    %cst_53 = arith.constant dense<0.000000e+00> : vector<4xf32>
    %63 = vector.multi_reduction <add>, %62, %cst_53 [0] : vector<288x4xf32> to vector<4xf32>
    %64 = vector.shape_cast %63 : vector<4xf32> to vector<1x4xf32>
    %65 = tpu.concatenate %61, %64 in 0 : vector<1x4xf32>, vector<1x4xf32> -> vector<2x4xf32>
    %c0_54 = arith.constant 0 : index
    %c0_55 = arith.constant 0 : index
    %c0_56 = arith.constant 0 : index
    %66 = vector.load %arg7[%c0_54, %c0_55, %c0_56] : memref<1x2x4xf32, #tpu.memory_space<vmem>>, vector<1x2x4xf32>
    %67 = vector.shape_cast %66 : vector<1x2x4xf32> to vector<2x4xf32>
    %68 = vector.shape_cast %65 : vector<2x4xf32> to vector<1x2x4xf32>
    tpu.vector_store %arg7[%c0_54, %c0_55, %c0_56], %68 {strides = array<i32>} : memref<1x2x4xf32, #tpu.memory_space<vmem>>, vector<1x2x4xf32>,
    return
  }
  func.func @transform_0(%arg0: i32) -> (i32, i32, i32) {
    %c0_i32 = arith.constant 0 : i32
    %c0_i32_0 = arith.constant 0 : i32
    %c0_i32_1 = arith.constant 0 : i32
    return %arg0, %c0_i32, %c0_i32_0 : i32, i32, i32
  }
  func.func @transform_1(%arg0: i32) -> (i32, i32, i32) {
    %c0_i32 = arith.constant 0 : i32
    %c0_i32_0 = arith.constant 0 : i32
    %c0_i32_1 = arith.constant 0 : i32
    %c0_i32_2 = arith.constant 0 : i32
    return %c0_i32, %c0_i32_0, %c0_i32_1 : i32, i32, i32
  }
  func.func @transform_2(%arg0: i32) -> (i32, i32) {
    %c0_i32 = arith.constant 0 : i32
    %c0_i32_0 = arith.constant 0 : i32
    %c0_i32_1 = arith.constant 0 : i32
    return %c0_i32, %c0_i32_0 : i32, i32
  }
  func.func @transform_3(%arg0: i32) -> (i32, i32) {
    %c0_i32 = arith.constant 0 : i32
    %c0_i32_0 = arith.constant 0 : i32
    %c0_i32_1 = arith.constant 0 : i32
    return %c0_i32, %c0_i32_0 : i32, i32
  }
  func.func @transform_4(%arg0: i32) -> (i32, i32) {
    %c0_i32 = arith.constant 0 : i32
    %c0_i32_0 = arith.constant 0 : i32
    %c0_i32_1 = arith.constant 0 : i32
    return %c0_i32, %c0_i32_0 : i32, i32
  }
  func.func @transform_5(%arg0: i32) -> (i32, i32, i32) {
    %c0_i32 = arith.constant 0 : i32
    %c0_i32_0 = arith.constant 0 : i32
    %c0_i32_1 = arith.constant 0 : i32
    return %arg0, %c0_i32, %c0_i32_0 : i32, i32, i32
  }
  func.func @transform_6(%arg0: i32) -> (i32, i32, i32) {
    %c0_i32 = arith.constant 0 : i32
    %c0_i32_0 = arith.constant 0 : i32
    %c0_i32_1 = arith.constant 0 : i32
    return %arg0, %c0_i32, %c0_i32_0 : i32, i32, i32
  }
}

module attributes {stable_mosaic.version = 11 : i64} {
  func.func @_conv_stage_kernel(%arg0: i32, %arg1: memref<1x288x4xbf16, #tpu.memory_space<vmem>>, %arg2: memref<9x4x4xbf16, #tpu.memory_space<vmem>>, %arg3: memref<1x4xf32, #tpu.memory_space<vmem>>, %arg4: memref<1x4xf32, #tpu.memory_space<vmem>>, %arg5: memref<288x1xf32, #tpu.memory_space<vmem>>, %arg6: memref<1x288x4xbf16, #tpu.memory_space<vmem>>, %arg7: memref<1x2x4xf32, #tpu.memory_space<vmem>>, %arg8: memref<326x4xbf16, #tpu.memory_space<vmem>>) attributes {dimension_semantics = [#tpu.dimension_semantics<parallel>], iteration_bounds = array<i64: 2>, scalar_prefetch = 0 : i64, scratch_operands = 1 : i64, tpu.core_type = #tpu.core_type<tc>, window_params = [{transform_indices = @transform_0, window_bounds = array<i64: 1, 288, 4>}, {pipeline_mode = #tpu.pipeline_mode<synchronous>, transform_indices = @transform_1, window_bounds = array<i64: 9, 4, 4>}, {pipeline_mode = #tpu.pipeline_mode<synchronous>, transform_indices = @transform_2, window_bounds = array<i64: 1, 4>}, {pipeline_mode = #tpu.pipeline_mode<synchronous>, transform_indices = @transform_3, window_bounds = array<i64: 1, 4>}, {pipeline_mode = #tpu.pipeline_mode<synchronous>, transform_indices = @transform_4, window_bounds = array<i64: 288, 1>}, {transform_indices = @transform_5, window_bounds = array<i64: 1, 288, 4>}, {transform_indices = @transform_6, window_bounds = array<i64: 1, 2, 4>}]} {
    %c0 = arith.constant 0 : index
    %c0_0 = arith.constant 0 : index
    %0 = vector.load %arg5[%c0, %c0_0] : memref<288x1xf32, #tpu.memory_space<vmem>>, vector<288x1xf32>
    %c0_1 = arith.constant 0 : index
    %c0_2 = arith.constant 0 : index
    %c0_3 = arith.constant 0 : index
    %1 = vector.load %arg1[%c0_1, %c0_2, %c0_3] : memref<1x288x4xbf16, #tpu.memory_space<vmem>>, vector<1x288x4xbf16>
    %2 = vector.shape_cast %1 : vector<1x288x4xbf16> to vector<288x4xbf16>
    %3 = arith.extf %2 : vector<288x4xbf16> to vector<288x4xf32>
    %c0_4 = arith.constant 0 : index
    %c0_5 = arith.constant 0 : index
    %4 = vector.load %arg3[%c0_4, %c0_5] : memref<1x4xf32, #tpu.memory_space<vmem>>, vector<1x4xf32>
    %5 = vector.broadcast %4 : vector<1x4xf32> to vector<288x4xf32>
    %6 = arith.mulf %3, %5 : vector<288x4xf32>
    %c0_6 = arith.constant 0 : index
    %c0_7 = arith.constant 0 : index
    %7 = vector.load %arg4[%c0_6, %c0_7] : memref<1x4xf32, #tpu.memory_space<vmem>>, vector<1x4xf32>
    %8 = vector.broadcast %7 : vector<1x4xf32> to vector<288x4xf32>
    %9 = arith.addf %6, %8 : vector<288x4xf32>
    %cst = arith.constant 0.000000e+00 : f32
    %10 = vector.broadcast %cst : f32 to vector<288x4xf32>
    %11 = arith.maximumf %9, %10 : vector<288x4xf32>
    %12 = vector.broadcast %0 : vector<288x1xf32> to vector<288x4xf32>
    %13 = arith.mulf %11, %12 : vector<288x4xf32>
    %14 = arith.truncf %13 : vector<288x4xf32> to vector<288x4xbf16>
    %cst_8 = arith.constant 0.000000e+00 : bf16
    %15 = vector.broadcast %cst_8 : bf16 to vector<19x4xbf16>
    %c0_9 = arith.constant 0 : index
    %c0_10 = arith.constant 0 : index
    %16 = vector.load %arg8[%c0_9, %c0_10] : memref<326x4xbf16, #tpu.memory_space<vmem>>, vector<19x4xbf16>
    tpu.vector_store %arg8[%c0_9, %c0_10], %15 {strides = array<i32>} : memref<326x4xbf16, #tpu.memory_space<vmem>>, vector<19x4xbf16>,
    %cst_11 = arith.constant 0.000000e+00 : bf16
    %17 = vector.broadcast %cst_11 : bf16 to vector<19x4xbf16>
    %c307 = arith.constant 307 : index
    %c0_12 = arith.constant 0 : index
    %18 = vector.load %arg8[%c307, %c0_12] : memref<326x4xbf16, #tpu.memory_space<vmem>>, vector<19x4xbf16>
    tpu.vector_store %arg8[%c307, %c0_12], %17 {strides = array<i32>} : memref<326x4xbf16, #tpu.memory_space<vmem>>, vector<19x4xbf16>,
    %c19 = arith.constant 19 : index
    %c0_13 = arith.constant 0 : index
    %19 = vector.load %arg8[%c19, %c0_13] : memref<326x4xbf16, #tpu.memory_space<vmem>>, vector<288x4xbf16>
    tpu.vector_store %arg8[%c19, %c0_13], %14 {strides = array<i32>} : memref<326x4xbf16, #tpu.memory_space<vmem>>, vector<288x4xbf16>,
    %c0_14 = arith.constant 0 : index
    %c0_15 = arith.constant 0 : index
    %20 = vector.load %arg8[%c0_14, %c0_15] : memref<326x4xbf16, #tpu.memory_space<vmem>>, vector<288x4xbf16>
    %c0_16 = arith.constant 0 : index
    %c0_17 = arith.constant 0 : index
    %c0_18 = arith.constant 0 : index
    %21 = vector.load %arg2[%c0_16, %c0_17, %c0_18] : memref<9x4x4xbf16, #tpu.memory_space<vmem>>, vector<1x4x4xbf16>
    %22 = vector.shape_cast %21 : vector<1x4x4xbf16> to vector<4x4xbf16>
    %cst_19 = arith.constant dense<0.000000e+00> : vector<288x4xf32>
    %23 = tpu.matmul %20, %22, %cst_19 {dimension_numbers = #tpu.dot_dimension_numbers<[1], [0], [0], [1], [0, 0, 1, 1], [], []>} : vector<288x4xbf16>, vector<4x4xbf16>, vector<288x4xf32> -> vector<288x4xf32>
    %c1 = arith.constant 1 : index
    %c0_20 = arith.constant 0 : index
    %24 = vector.load %arg8[%c1, %c0_20] : memref<326x4xbf16, #tpu.memory_space<vmem>>, vector<288x4xbf16>
    %c1_21 = arith.constant 1 : index
    %c0_22 = arith.constant 0 : index
    %c0_23 = arith.constant 0 : index
    %25 = vector.load %arg2[%c1_21, %c0_22, %c0_23] : memref<9x4x4xbf16, #tpu.memory_space<vmem>>, vector<1x4x4xbf16>
    %26 = vector.shape_cast %25 : vector<1x4x4xbf16> to vector<4x4xbf16>
    %cst_24 = arith.constant dense<0.000000e+00> : vector<288x4xf32>
    %27 = tpu.matmul %24, %26, %cst_24 {dimension_numbers = #tpu.dot_dimension_numbers<[1], [0], [0], [1], [0, 0, 1, 1], [], []>} : vector<288x4xbf16>, vector<4x4xbf16>, vector<288x4xf32> -> vector<288x4xf32>
    %28 = arith.addf %23, %27 : vector<288x4xf32>
    %c2 = arith.constant 2 : index
    %c0_25 = arith.constant 0 : index
    %29 = vector.load %arg8[%c2, %c0_25] : memref<326x4xbf16, #tpu.memory_space<vmem>>, vector<288x4xbf16>
    %c2_26 = arith.constant 2 : index
    %c0_27 = arith.constant 0 : index
    %c0_28 = arith.constant 0 : index
    %30 = vector.load %arg2[%c2_26, %c0_27, %c0_28] : memref<9x4x4xbf16, #tpu.memory_space<vmem>>, vector<1x4x4xbf16>
    %31 = vector.shape_cast %30 : vector<1x4x4xbf16> to vector<4x4xbf16>
    %cst_29 = arith.constant dense<0.000000e+00> : vector<288x4xf32>
    %32 = tpu.matmul %29, %31, %cst_29 {dimension_numbers = #tpu.dot_dimension_numbers<[1], [0], [0], [1], [0, 0, 1, 1], [], []>} : vector<288x4xbf16>, vector<4x4xbf16>, vector<288x4xf32> -> vector<288x4xf32>
    %33 = arith.addf %28, %32 : vector<288x4xf32>
    %c18 = arith.constant 18 : index
    %c0_30 = arith.constant 0 : index
    %34 = vector.load %arg8[%c18, %c0_30] : memref<326x4xbf16, #tpu.memory_space<vmem>>, vector<288x4xbf16>
    %c3 = arith.constant 3 : index
    %c0_31 = arith.constant 0 : index
    %c0_32 = arith.constant 0 : index
    %35 = vector.load %arg2[%c3, %c0_31, %c0_32] : memref<9x4x4xbf16, #tpu.memory_space<vmem>>, vector<1x4x4xbf16>
    %36 = vector.shape_cast %35 : vector<1x4x4xbf16> to vector<4x4xbf16>
    %cst_33 = arith.constant dense<0.000000e+00> : vector<288x4xf32>
    %37 = tpu.matmul %34, %36, %cst_33 {dimension_numbers = #tpu.dot_dimension_numbers<[1], [0], [0], [1], [0, 0, 1, 1], [], []>} : vector<288x4xbf16>, vector<4x4xbf16>, vector<288x4xf32> -> vector<288x4xf32>
    %38 = arith.addf %33, %37 : vector<288x4xf32>
    %c19_34 = arith.constant 19 : index
    %c0_35 = arith.constant 0 : index
    %39 = vector.load %arg8[%c19_34, %c0_35] : memref<326x4xbf16, #tpu.memory_space<vmem>>, vector<288x4xbf16>
    %c4 = arith.constant 4 : index
    %c0_36 = arith.constant 0 : index
    %c0_37 = arith.constant 0 : index
    %40 = vector.load %arg2[%c4, %c0_36, %c0_37] : memref<9x4x4xbf16, #tpu.memory_space<vmem>>, vector<1x4x4xbf16>
    %41 = vector.shape_cast %40 : vector<1x4x4xbf16> to vector<4x4xbf16>
    %cst_38 = arith.constant dense<0.000000e+00> : vector<288x4xf32>
    %42 = tpu.matmul %39, %41, %cst_38 {dimension_numbers = #tpu.dot_dimension_numbers<[1], [0], [0], [1], [0, 0, 1, 1], [], []>} : vector<288x4xbf16>, vector<4x4xbf16>, vector<288x4xf32> -> vector<288x4xf32>
    %43 = arith.addf %38, %42 : vector<288x4xf32>
    %c20 = arith.constant 20 : index
    %c0_39 = arith.constant 0 : index
    %44 = vector.load %arg8[%c20, %c0_39] : memref<326x4xbf16, #tpu.memory_space<vmem>>, vector<288x4xbf16>
    %c5 = arith.constant 5 : index
    %c0_40 = arith.constant 0 : index
    %c0_41 = arith.constant 0 : index
    %45 = vector.load %arg2[%c5, %c0_40, %c0_41] : memref<9x4x4xbf16, #tpu.memory_space<vmem>>, vector<1x4x4xbf16>
    %46 = vector.shape_cast %45 : vector<1x4x4xbf16> to vector<4x4xbf16>
    %cst_42 = arith.constant dense<0.000000e+00> : vector<288x4xf32>
    %47 = tpu.matmul %44, %46, %cst_42 {dimension_numbers = #tpu.dot_dimension_numbers<[1], [0], [0], [1], [0, 0, 1, 1], [], []>} : vector<288x4xbf16>, vector<4x4xbf16>, vector<288x4xf32> -> vector<288x4xf32>
    %48 = arith.addf %43, %47 : vector<288x4xf32>
    %c36 = arith.constant 36 : index
    %c0_43 = arith.constant 0 : index
    %49 = vector.load %arg8[%c36, %c0_43] : memref<326x4xbf16, #tpu.memory_space<vmem>>, vector<288x4xbf16>
    %c6 = arith.constant 6 : index
    %c0_44 = arith.constant 0 : index
    %c0_45 = arith.constant 0 : index
    %50 = vector.load %arg2[%c6, %c0_44, %c0_45] : memref<9x4x4xbf16, #tpu.memory_space<vmem>>, vector<1x4x4xbf16>
    %51 = vector.shape_cast %50 : vector<1x4x4xbf16> to vector<4x4xbf16>
    %cst_46 = arith.constant dense<0.000000e+00> : vector<288x4xf32>
    %52 = tpu.matmul %49, %51, %cst_46 {dimension_numbers = #tpu.dot_dimension_numbers<[1], [0], [0], [1], [0, 0, 1, 1], [], []>} : vector<288x4xbf16>, vector<4x4xbf16>, vector<288x4xf32> -> vector<288x4xf32>
    %53 = arith.addf %48, %52 : vector<288x4xf32>
    %c37 = arith.constant 37 : index
    %c0_47 = arith.constant 0 : index
    %54 = vector.load %arg8[%c37, %c0_47] : memref<326x4xbf16, #tpu.memory_space<vmem>>, vector<288x4xbf16>
    %c7 = arith.constant 7 : index
    %c0_48 = arith.constant 0 : index
    %c0_49 = arith.constant 0 : index
    %55 = vector.load %arg2[%c7, %c0_48, %c0_49] : memref<9x4x4xbf16, #tpu.memory_space<vmem>>, vector<1x4x4xbf16>
    %56 = vector.shape_cast %55 : vector<1x4x4xbf16> to vector<4x4xbf16>
    %cst_50 = arith.constant dense<0.000000e+00> : vector<288x4xf32>
    %57 = tpu.matmul %54, %56, %cst_50 {dimension_numbers = #tpu.dot_dimension_numbers<[1], [0], [0], [1], [0, 0, 1, 1], [], []>} : vector<288x4xbf16>, vector<4x4xbf16>, vector<288x4xf32> -> vector<288x4xf32>
    %58 = arith.addf %53, %57 : vector<288x4xf32>
    %c38 = arith.constant 38 : index
    %c0_51 = arith.constant 0 : index
    %59 = vector.load %arg8[%c38, %c0_51] : memref<326x4xbf16, #tpu.memory_space<vmem>>, vector<288x4xbf16>
    %c8 = arith.constant 8 : index
    %c0_52 = arith.constant 0 : index
    %c0_53 = arith.constant 0 : index
    %60 = vector.load %arg2[%c8, %c0_52, %c0_53] : memref<9x4x4xbf16, #tpu.memory_space<vmem>>, vector<1x4x4xbf16>
    %61 = vector.shape_cast %60 : vector<1x4x4xbf16> to vector<4x4xbf16>
    %cst_54 = arith.constant dense<0.000000e+00> : vector<288x4xf32>
    %62 = tpu.matmul %59, %61, %cst_54 {dimension_numbers = #tpu.dot_dimension_numbers<[1], [0], [0], [1], [0, 0, 1, 1], [], []>} : vector<288x4xbf16>, vector<4x4xbf16>, vector<288x4xf32> -> vector<288x4xf32>
    %63 = arith.addf %58, %62 : vector<288x4xf32>
    %64 = arith.truncf %63 : vector<288x4xf32> to vector<288x4xbf16>
    %c0_55 = arith.constant 0 : index
    %c0_56 = arith.constant 0 : index
    %c0_57 = arith.constant 0 : index
    %65 = vector.load %arg6[%c0_55, %c0_56, %c0_57] : memref<1x288x4xbf16, #tpu.memory_space<vmem>>, vector<1x288x4xbf16>
    %66 = vector.shape_cast %65 : vector<1x288x4xbf16> to vector<288x4xbf16>
    %67 = vector.shape_cast %64 : vector<288x4xbf16> to vector<1x288x4xbf16>
    tpu.vector_store %arg6[%c0_55, %c0_56, %c0_57], %67 {strides = array<i32>} : memref<1x288x4xbf16, #tpu.memory_space<vmem>>, vector<1x288x4xbf16>,
    %68 = vector.broadcast %0 : vector<288x1xf32> to vector<288x4xf32>
    %69 = arith.mulf %63, %68 : vector<288x4xf32>
    %cst_58 = arith.constant dense<0.000000e+00> : vector<4xf32>
    %70 = vector.multi_reduction <add>, %69, %cst_58 [0] : vector<288x4xf32> to vector<4xf32>
    %71 = vector.shape_cast %70 : vector<4xf32> to vector<1x4xf32>
    %72 = arith.mulf %69, %69 : vector<288x4xf32>
    %cst_59 = arith.constant dense<0.000000e+00> : vector<4xf32>
    %73 = vector.multi_reduction <add>, %72, %cst_59 [0] : vector<288x4xf32> to vector<4xf32>
    %74 = vector.shape_cast %73 : vector<4xf32> to vector<1x4xf32>
    %75 = tpu.concatenate %71, %74 in 0 : vector<1x4xf32>, vector<1x4xf32> -> vector<2x4xf32>
    %c0_60 = arith.constant 0 : index
    %c0_61 = arith.constant 0 : index
    %c0_62 = arith.constant 0 : index
    %76 = vector.load %arg7[%c0_60, %c0_61, %c0_62] : memref<1x2x4xf32, #tpu.memory_space<vmem>>, vector<1x2x4xf32>
    %77 = vector.shape_cast %76 : vector<1x2x4xf32> to vector<2x4xf32>
    %78 = vector.shape_cast %75 : vector<2x4xf32> to vector<1x2x4xf32>
    tpu.vector_store %arg7[%c0_60, %c0_61, %c0_62], %78 {strides = array<i32>} : memref<1x2x4xf32, #tpu.memory_space<vmem>>, vector<1x2x4xf32>,
    return
  }
  func.func @transform_0(%arg0: i32) -> (i32, i32, i32) {
    %c0_i32 = arith.constant 0 : i32
    %c0_i32_0 = arith.constant 0 : i32
    %c0_i32_1 = arith.constant 0 : i32
    return %arg0, %c0_i32, %c0_i32_0 : i32, i32, i32
  }
  func.func @transform_1(%arg0: i32) -> (i32, i32, i32) {
    %c0_i32 = arith.constant 0 : i32
    %c0_i32_0 = arith.constant 0 : i32
    %c0_i32_1 = arith.constant 0 : i32
    %c0_i32_2 = arith.constant 0 : i32
    return %c0_i32, %c0_i32_0, %c0_i32_1 : i32, i32, i32
  }
  func.func @transform_2(%arg0: i32) -> (i32, i32) {
    %c0_i32 = arith.constant 0 : i32
    %c0_i32_0 = arith.constant 0 : i32
    %c0_i32_1 = arith.constant 0 : i32
    return %c0_i32, %c0_i32_0 : i32, i32
  }
  func.func @transform_3(%arg0: i32) -> (i32, i32) {
    %c0_i32 = arith.constant 0 : i32
    %c0_i32_0 = arith.constant 0 : i32
    %c0_i32_1 = arith.constant 0 : i32
    return %c0_i32, %c0_i32_0 : i32, i32
  }
  func.func @transform_4(%arg0: i32) -> (i32, i32) {
    %c0_i32 = arith.constant 0 : i32
    %c0_i32_0 = arith.constant 0 : i32
    %c0_i32_1 = arith.constant 0 : i32
    return %c0_i32, %c0_i32_0 : i32, i32
  }
  func.func @transform_5(%arg0: i32) -> (i32, i32, i32) {
    %c0_i32 = arith.constant 0 : i32
    %c0_i32_0 = arith.constant 0 : i32
    %c0_i32_1 = arith.constant 0 : i32
    return %arg0, %c0_i32, %c0_i32_0 : i32, i32, i32
  }
  func.func @transform_6(%arg0: i32) -> (i32, i32, i32) {
    %c0_i32 = arith.constant 0 : i32
    %c0_i32_0 = arith.constant 0 : i32
    %c0_i32_1 = arith.constant 0 : i32
    return %arg0, %c0_i32, %c0_i32_0 : i32, i32, i32
  }
}

module attributes {stable_mosaic.version = 11 : i64} {
  func.func @_finalize_kernel(%arg0: i32, %arg1: memref<1x288x4xbf16, #tpu.memory_space<vmem>>, %arg2: memref<1x326x4xbf16, #tpu.memory_space<vmem>>, %arg3: memref<1x4xf32, #tpu.memory_space<vmem>>, %arg4: memref<1x4xf32, #tpu.memory_space<vmem>>, %arg5: memref<1x288x4xbf16, #tpu.memory_space<vmem>>) attributes {dimension_semantics = [#tpu.dimension_semantics<parallel>], iteration_bounds = array<i64: 2>, scalar_prefetch = 0 : i64, scratch_operands = 0 : i64, tpu.core_type = #tpu.core_type<tc>, window_params = [{transform_indices = @transform_0, window_bounds = array<i64: 1, 288, 4>}, {transform_indices = @transform_1, window_bounds = array<i64: 1, 326, 4>}, {pipeline_mode = #tpu.pipeline_mode<synchronous>, transform_indices = @transform_2, window_bounds = array<i64: 1, 4>}, {pipeline_mode = #tpu.pipeline_mode<synchronous>, transform_indices = @transform_3, window_bounds = array<i64: 1, 4>}, {transform_indices = @transform_4, window_bounds = array<i64: 1, 288, 4>}]} {
    %c0 = arith.constant 0 : index
    %c0_0 = arith.constant 0 : index
    %c0_1 = arith.constant 0 : index
    %0 = vector.load %arg1[%c0, %c0_0, %c0_1] : memref<1x288x4xbf16, #tpu.memory_space<vmem>>, vector<1x288x4xbf16>
    %1 = vector.shape_cast %0 : vector<1x288x4xbf16> to vector<288x4xbf16>
    %2 = arith.extf %1 : vector<288x4xbf16> to vector<288x4xf32>
    %c0_2 = arith.constant 0 : index
    %c0_3 = arith.constant 0 : index
    %3 = vector.load %arg3[%c0_2, %c0_3] : memref<1x4xf32, #tpu.memory_space<vmem>>, vector<1x4xf32>
    %4 = vector.broadcast %3 : vector<1x4xf32> to vector<288x4xf32>
    %5 = arith.mulf %2, %4 : vector<288x4xf32>
    %c0_4 = arith.constant 0 : index
    %c0_5 = arith.constant 0 : index
    %6 = vector.load %arg4[%c0_4, %c0_5] : memref<1x4xf32, #tpu.memory_space<vmem>>, vector<1x4xf32>
    %7 = vector.broadcast %6 : vector<1x4xf32> to vector<288x4xf32>
    %8 = arith.addf %5, %7 : vector<288x4xf32>
    %c0_6 = arith.constant 0 : index
    %c19 = arith.constant 19 : index
    %c0_7 = arith.constant 0 : index
    %9 = vector.load %arg2[%c0_6, %c19, %c0_7] : memref<1x326x4xbf16, #tpu.memory_space<vmem>>, vector<1x288x4xbf16>
    %10 = vector.shape_cast %9 : vector<1x288x4xbf16> to vector<288x4xbf16>
    %11 = arith.extf %10 : vector<288x4xbf16> to vector<288x4xf32>
    %12 = arith.addf %8, %11 : vector<288x4xf32>
    %cst = arith.constant 0.000000e+00 : f32
    %13 = vector.broadcast %cst : f32 to vector<288x4xf32>
    %14 = arith.maximumf %12, %13 : vector<288x4xf32>
    %15 = arith.truncf %14 : vector<288x4xf32> to vector<288x4xbf16>
    %c0_8 = arith.constant 0 : index
    %c0_9 = arith.constant 0 : index
    %c0_10 = arith.constant 0 : index
    %16 = vector.load %arg5[%c0_8, %c0_9, %c0_10] : memref<1x288x4xbf16, #tpu.memory_space<vmem>>, vector<1x288x4xbf16>
    %17 = vector.shape_cast %16 : vector<1x288x4xbf16> to vector<288x4xbf16>
    %18 = vector.shape_cast %15 : vector<288x4xbf16> to vector<1x288x4xbf16>
    tpu.vector_store %arg5[%c0_8, %c0_9, %c0_10], %18 {strides = array<i32>} : memref<1x288x4xbf16, #tpu.memory_space<vmem>>, vector<1x288x4xbf16>,
    return
  }
  func.func @transform_0(%arg0: i32) -> (i32, i32, i32) {
    %c0_i32 = arith.constant 0 : i32
    %c0_i32_0 = arith.constant 0 : i32
    %c0_i32_1 = arith.constant 0 : i32
    return %arg0, %c0_i32, %c0_i32_0 : i32, i32, i32
  }
  func.func @transform_1(%arg0: i32) -> (i32, i32, i32) {
    %c0_i32 = arith.constant 0 : i32
    %c0_i32_0 = arith.constant 0 : i32
    %c0_i32_1 = arith.constant 0 : i32
    return %arg0, %c0_i32, %c0_i32_0 : i32, i32, i32
  }
  func.func @transform_2(%arg0: i32) -> (i32, i32) {
    %c0_i32 = arith.constant 0 : i32
    %c0_i32_0 = arith.constant 0 : i32
    %c0_i32_1 = arith.constant 0 : i32
    return %c0_i32, %c0_i32_0 : i32, i32
  }
  func.func @transform_3(%arg0: i32) -> (i32, i32) {
    %c0_i32 = arith.constant 0 : i32
    %c0_i32_0 = arith.constant 0 : i32
    %c0_i32_1 = arith.constant 0 : i32
    return %c0_i32, %c0_i32_0 : i32, i32
  }
  func.func @transform_4(%arg0: i32) -> (i32, i32, i32) {
    %c0_i32 = arith.constant 0 : i32
    %c0_i32_0 = arith.constant 0 : i32
    %c0_i32_1 = arith.constant 0 : i32
    return %arg0, %c0_i32, %c0_i32_0 : i32, i32, i32
  }
}

</mosaic_0001>

<llo_original>
// kernel: basic_block_forward.5
$region0: #{basic_block_forward.5}
  #allocation0 [shape = 'u32[]', space=smem, size = 0x4, offset = 0x4, fixed_abs, tag = 'smem constant byte address 0x4 - core index']
  #allocation1 [shape = 'u32[72,128]{1,0:T(1,128)}', space=vmem, size = 0x9000, scoped, tag = 'internal scratch']
  %s0 = inlined_call_operand.vmem [shape: bf16[2,288,4], index: 0, kind: input, shape index: {}]
  %s1 = inlined_call_operand.vmem [shape: bf16[2,326,4], index: 1, kind: input, shape index: {}]
  %s2 = inlined_call_operand.vmem [shape: f32[1,4], index: 2, kind: input, shape index: {}]
  %s3 = inlined_call_operand.vmem [shape: f32[1,4], index: 3, kind: input, shape index: {}]
  %s4 = inlined_call_operand.vmem [shape: bf16[2,288,4], index: 4, kind: output, shape index: {}]
  %s5 = sld [smem:[#allocation0]]
  $region49: #{basic_block_forward.5} parent=0
    _
  %s7 = ssub.s32 1, %s5
  %s8 = scalar_select 0, %s7, %s5
  loop: start=0, step=1, limit=4
  $region2: #{basic_block_forward.5} parent=0 // loop_pre_header
    _
  $region3: #{basic_block_forward.5} parent=0 // loop_header
    %s10 = sphi 0, %s14
    %p11 = scmp.ge.s32.totalorder %s10, 4
    %s20 = sphi 0, %s22
    %s23 = sphi 0, %s20
    %s24 = sphi 0, %s23
    %s40 = sphi 0, %s24
    %s46 = sphi 0, %s48
    %s49 = sphi 0, %s46
    %s50 = sphi 0, %s49
    %s66 = sphi 0, %s50
    %s70 = sphi 0, %s70
    %s72 = sphi 0, %s70
    %s73 = sphi 0, %s72
    %s87 = sphi 0, %s73
    %s91 = sphi 0, %s91
    %s93 = sphi 0, %s91
    %s94 = sphi 0, %s93
    %s108 = sphi 0, %s94
    %s114 = sphi 0, %s116
    %s117 = sphi 0, %s114
    %s118 = sphi 0, %s117
    %s134 = sphi 0, %s118
  $region4: #{basic_block_forward.5} parent=0 // loop_header_branch
    %13 = sbr.rel (%p11) target = $region8
  $region5: #{basic_block_forward.5} parent=0 // loop_body
    %s15 = ssub.s32 %s10, 1
    %s16 = ssub.s32 %s10, 2
    %s17 = sadd.s32 %s10, 1
    %s18 = ssub.s32 %s10, %s17
    %p19 = scmp.eq.s32.totalorder %s18, 0
    %s21 = sadd.s32 %s20, 1
    %s22 = scalar_select %p19, %s20, %s21
    %p25 = pneg %p19
    %p26 = scmp.eq.s32.totalorder %s10, 1
    %p27 = por %p25, %p26
    %p28 = scmp.ne.s32.totalorder %s20, %s23
    %p29 = scmp.eq.s32.totalorder %s10, 0
    %p30 = por %p28, %p29
    %p31 = scmp.ne.s32.totalorder %s20, %s23
    %p32 = scmp.eq.s32.totalorder %s15, 1
    %p33 = por %p31, %p32
    %p34 = scmp.ne.s32.totalorder %s23, %s24
    %p35 = scmp.eq.s32.totalorder %s15, 0
    %p36 = por %p34, %p35
    %p37 = scmp.ne.s32.totalorder %s23, %s24
    %p38 = scmp.eq.s32.totalorder %s16, 1
    %p39 = por %p37, %p38
    %p41 = scmp.ne.s32.totalorder %s24, %s40
    %p42 = scmp.eq.s32.totalorder %s16, 0
    %p43 = por %p41, %p42
    %s44 = ssub.s32 %s10, %s17
    %p45 = scmp.eq.s32.totalorder %s44, 0
    %s47 = sadd.s32 %s46, 1
    %s48 = scalar_select %p45, %s46, %s47
    %p51 = pneg %p45
    %p52 = scmp.eq.s32.totalorder %s10, 1
    %p53 = por %p51, %p52
    %p54 = scmp.ne.s32.totalorder %s46, %s49
    %p55 = scmp.eq.s32.totalorder %s10, 0
    %p56 = por %p54, %p55
    %p57 = scmp.ne.s32.totalorder %s46, %s49
    %p58 = scmp.eq.s32.totalorder %s15, 1
    %p59 = por %p57, %p58
    %p60 = scmp.ne.s32.totalorder %s49, %s50
    %p61 = scmp.eq.s32.totalorder %s15, 0
    %p62 = por %p60, %p61
    %p63 = scmp.ne.s32.totalorder %s49, %s50
    %p64 = scmp.eq.s32.totalorder %s16, 1
    %p65 = por %p63, %p64
    %p67 = scmp.ne.s32.totalorder %s50, %s66
    %p68 = scmp.eq.s32.totalorder %s16, 0
    %p69 = por %p67, %p68
    %s71 = sadd.s32 %s70, 1
    %p74 = scmp.eq.s32.totalorder %s10, 1
    %p75 = scmp.ne.s32.totalorder %s70, %s72
    %p76 = scmp.eq.s32.totalorder %s10, 0
    %p77 = por %p75, %p76
    %p78 = scmp.ne.s32.totalorder %s70, %s72
    %p79 = scmp.eq.s32.totalorder %s15, 1
    %p80 = por %p78, %p79
    %p81 = scmp.ne.s32.totalorder %s72, %s73
    %p82 = scmp.eq.s32.totalorder %s15, 0
    %p83 = por %p81, %p82
    %p84 = scmp.ne.s32.totalorder %s72, %s73
    %p85 = scmp.eq.s32.totalorder %s16, 1
    %p86 = por %p84, %p85
    %p88 = scmp.ne.s32.totalorder %s73, %s87
    %p89 = scmp.eq.s32.totalorder %s16, 0
    %p90 = por %p88, %p89
    %s92 = sadd.s32 %s91, 1
    %p95 = scmp.eq.s32.totalorder %s10, 1
    %p96 = scmp.ne.s32.totalorder %s91, %s93
    %p97 = scmp.eq.s32.totalorder %s10, 0
    %p98 = por %p96, %p97
    %p99 = scmp.ne.s32.totalorder %s91, %s93
    %p100 = scmp.eq.s32.totalorder %s15, 1
    %p101 = por %p99, %p100
    %p102 = scmp.ne.s32.totalorder %s93, %s94
    %p103 = scmp.eq.s32.totalorder %s15, 0
    %p104 = por %p102, %p103
    %p105 = scmp.ne.s32.totalorder %s93, %s94
    %p106 = scmp.eq.s32.totalorder %s16, 1
    %p107 = por %p105, %p106
    %p109 = scmp.ne.s32.totalorder %s94, %s108
    %p110 = scmp.eq.s32.totalorder %s16, 0
    %p111 = por %p109, %p110
    %s112 = ssub.s32 %s10, %s17
    %p113 = scmp.eq.s32.totalorder %s112, 0
    %s115 = sadd.s32 %s114, 1
    %s116 = scalar_select %p113, %s114, %s115
    %p119 = pneg %p113
    %p120 = scmp.eq.s32.totalorder %s10, 1
    %p121 = por %p119, %p120
    %p122 = scmp.ne.s32.totalorder %s114, %s117
    %p123 = scmp.eq.s32.totalorder %s10, 0
    %p124 = por %p122, %p123
    %p125 = scmp.ne.s32.totalorder %s114, %s117
    %p126 = scmp.eq.s32.totalorder %s15, 1
    %p127 = por %p125, %p126
    %p128 = scmp.ne.s32.totalorder %s117, %s118
    %p129 = scmp.eq.s32.totalorder %s15, 0
    %p130 = por %p128, %p129
    %p131 = scmp.ne.s32.totalorder %s117, %s118
    %p132 = scmp.eq.s32.totalorder %s16, 1
    %p133 = por %p131, %p132
    %p135 = scmp.ne.s32.totalorder %s118, %s134
    %p136 = scmp.eq.s32.totalorder %s16, 0
    %p137 = por %p135, %p136
    %p138 = scmp.le.s32.totalorder 1, %s10
    %p139 = scmp.lt.s32.totalorder %s10, 3
    %p140 = pnand %p138, %p139
    %p141 = pneg %p140
    // Predicated region
    $region9: #{basic_block_forward.5} parent=5 // pred_check
      _
    $region10: #{basic_block_forward.5} parent=5 // pred_check_branch
      %143 = sbr.rel (%p140) target = $region12
    $region11: #{basic_block_forward.5} parent=5 // pred_region
      %s144 = ssub.s32 %s10, 1
      // Predicated region
      $region13: #{basic_block_forward.5} parent=11 // pred_check
        %p145 = pneg %p83
      $region14: #{basic_block_forward.5} parent=11 // pred_check_branch
        %147 = sbr.rel (%p145) target = $region16
      $region15: #{basic_block_forward.5} parent=11 // pred_region
        _
      $region16: #{basic_block_forward.5} parent=11 // pred_fallthru
        _
      // Predicated region
      $region17: #{basic_block_forward.5} parent=11 // pred_check
        %p148 = pneg %p104
      $region18: #{basic_block_forward.5} parent=11 // pred_check_branch
        %150 = sbr.rel (%p148) target = $region20
      $region19: #{basic_block_forward.5} parent=11 // pred_region
        _
      $region20: #{basic_block_forward.5} parent=11 // pred_fallthru
        _
    $region12: #{basic_block_forward.5} parent=5 // pred_fallthru
      _
    %p151 = scmp.lt.s32.totalorder %s10, 2
    // Predicated region
    $region21: #{basic_block_forward.5} parent=5 // pred_check
      %p152 = pneg %p151
    $region22: #{basic_block_forward.5} parent=5 // pred_check_branch
      %154 = sbr.rel (%p152) target = $region24
    $region23: #{basic_block_forward.5} parent=5 // pred_region
      // Predicated region
      $region25: #{basic_block_forward.5} parent=23 // pred_check
        %p155 = pneg %p30
      $region26: #{basic_block_forward.5} parent=23 // pred_check_branch
        %157 = sbr.rel (%p155) target = $region28
      $region27: #{basic_block_forward.5} parent=23 // pred_region
        %p158 = scmp.lt.s32.totalorder %s10, 1
        %s159 = scalar_select %p158, %s10, 1
        %s160 = smul.addr %s159, 36
        %s161 = smul.addr %s160, 4
        %s162 = scalar_lea.vmem %s0, %s161
      $region28: #{basic_block_forward.5} parent=23 // pred_fallthru
        _
      // Predicated region
      $region29: #{basic_block_forward.5} parent=23 // pred_check
        %p163 = pneg %p56
      $region30: #{basic_block_forward.5} parent=23 // pred_check_branch
        %165 = sbr.rel (%p163) target = $region32
      $region31: #{basic_block_forward.5} parent=23 // pred_region
        %p166 = scmp.lt.s32.totalorder %s10, 1
        %s167 = scalar_select %p166, %s10, 1
        %s168 = smul.addr %s167, 41
        %s169 = smul.addr %s168, 4
        %s170 = scalar_lea.vmem %s1, %s169
      $region32: #{basic_block_forward.5} parent=23 // pred_fallthru
        _
    $region24: #{basic_block_forward.5} parent=5 // pred_fallthru
      _
    %p171 = scmp.le.s32.totalorder 1, %s10
    %p172 = scmp.lt.s32.totalorder %s10, 3
    %p173 = pnand %p171, %p172
    %p174 = pneg %p173
    // Predicated region
    $region33: #{basic_block_forward.5} parent=5 // pred_check
      _
    $region34: #{basic_block_forward.5} parent=5 // pred_check_branch
      %176 = sbr.rel (%p173) target = $region36
    $region35: #{basic_block_forward.5} parent=5 // pred_region
      %s177 = ssub.s32 %s10, 1
      %p178 = scmp.lt.s32.totalorder %s15, 1
      %s179 = scalar_select %p178, %s15, 1
      %s180 = smul.addr %s179, 36
      %s181 = smul.addr %s180, 4
      %s182 = scalar_lea.vmem %s0, %s181
      %p183 = pneg %p36
      %p184 = pneg %p33
      %p185 = scmp.lt.s32.totalorder %s15, 1
      %s186 = scalar_select %p185, %s15, 1
      %s187 = smul.addr %s186, 41
      %s188 = smul.addr %s187, 4
      %s189 = scalar_lea.vmem %s1, %s188
      %p190 = pneg %p62
      %p191 = pneg %p59
      %p192 = pneg %p83
      %p193 = pneg %p80
      %p194 = pneg %p104
      %p195 = pneg %p101
      %p196 = pneg %p130
      %p197 = pneg %p127
      %p198 = scmp.lt.s32.totalorder %s15, 1
      %s199 = scalar_select %p198, %s15, 1
      %s200 = smul.addr %s199, 36
      %s201 = smul.addr %s200, 4
      %s202 = scalar_lea.vmem %s4, %s201
      %p203 = scmp.lt.s32.totalorder %s15, 1
      %s204 = scalar_select %p203, %s15, 1
      %s205 = smul.addr %s204, 36
      %s206 = smul.addr %s205, 4
      %s207 = scalar_lea.vmem %s0, %s206
      %p208 = scmp.lt.s32.totalorder %s15, 1
      %s209 = scalar_select %p208, %s15, 1
      %s210 = smul.addr %s209, 41
      %s211 = smul.addr %s210, 4
      %s212 = scalar_lea.vmem %s1, %s211
      %p213 = scmp.lt.s32.totalorder %s15, 1
      %s214 = scalar_select %p213, %s15, 1
      %s215 = smul.addr %s214, 36
      %s216 = smul.addr %s215, 4
      %s217 = scalar_lea.vmem %s4, %s216
      %v218 = vld [vmem:[%s207] sm:$0xf]
      %v219 = vld [vmem:[%s207 + $0x4] sm:$0xf]
      %v220 = vld [vmem:[%s207 + $0x8] sm:$0xf]
      %v221 = vld [vmem:[%s207 + $0xc] sm:$0xf]
      %v222 = vld [vmem:[%s207 + $0x10] sm:$0xf]
      %v223 = vld [vmem:[%s207 + $0x14] sm:$0xf]
      %v224 = vld [vmem:[%s207 + $0x18] sm:$0xf]
      %v225 = vld [vmem:[%s207 + $0x1c] sm:$0xf]
      %v226 = vld [vmem:[%s207 + $0x20] sm:$0xf]
      %v227 = vld [vmem:[%s207 + $0x24] sm:$0xf]
      %v228 = vld [vmem:[%s207 + $0x28] sm:$0xf]
      %v229 = vld [vmem:[%s207 + $0x2c] sm:$0xf]
      %v230 = vld [vmem:[%s207 + $0x30] sm:$0xf]
      %v231 = vld [vmem:[%s207 + $0x34] sm:$0xf]
      %v232 = vld [vmem:[%s207 + $0x38] sm:$0xf]
      %v233 = vld [vmem:[%s207 + $0x3c] sm:$0xf]
      %v234 = vld [vmem:[%s207 + $0x40] sm:$0xf]
      %v235 = vld [vmem:[%s207 + $0x44] sm:$0xf]
      %v236 = vld [vmem:[%s207 + $0x48] sm:$0xf]
      %v237 = vld [vmem:[%s207 + $0x4c] sm:$0xf]
      %v238 = vld [vmem:[%s207 + $0x50] sm:$0xf]
      %v239 = vld [vmem:[%s207 + $0x54] sm:$0xf]
      %v240 = vld [vmem:[%s207 + $0x58] sm:$0xf]
      %v241 = vld [vmem:[%s207 + $0x5c] sm:$0xf]
      %v242 = vld [vmem:[%s207 + $0x60] sm:$0xf]
      %v243 = vld [vmem:[%s207 + $0x64] sm:$0xf]
      %v244 = vld [vmem:[%s207 + $0x68] sm:$0xf]
      %v245 = vld [vmem:[%s207 + $0x6c] sm:$0xf]
      %v246 = vld [vmem:[%s207 + $0x70] sm:$0xf]
      %v247 = vld [vmem:[%s207 + $0x74] sm:$0xf]
      %v248 = vld [vmem:[%s207 + $0x78] sm:$0xf]
      %v249 = vld [vmem:[%s207 + $0x7c] sm:$0xf]
      %v250 = vld [vmem:[%s207 + $0x80] sm:$0xf]
      %v251 = vld [vmem:[%s207 + $0x84] sm:$0xf]
      %v252 = vld [vmem:[%s207 + $0x88] sm:$0xf]
      %v253 = vld [vmem:[%s207 + $0x8c] sm:$0xf]
      %v254 = vunpack.c.l.bf16 %v218
      %v255 = vunpack.c.l.bf16 %v219
      %v256 = vunpack.c.l.bf16 %v220
      %v257 = vunpack.c.l.bf16 %v221
      %v258 = vunpack.c.l.bf16 %v222
      %v259 = vunpack.c.l.bf16 %v223
      %v260 = vunpack.c.l.bf16 %v224
      %v261 = vunpack.c.l.bf16 %v225
      %v262 = vunpack.c.l.bf16 %v226
      %v263 = vunpack.c.l.bf16 %v227
      %v264 = vunpack.c.l.bf16 %v228
      %v265 = vunpack.c.l.bf16 %v229
      %v266 = vunpack.c.l.bf16 %v230
      %v267 = vunpack.c.l.bf16 %v231
      %v268 = vunpack.c.l.bf16 %v232
      %v269 = vunpack.c.l.bf16 %v233
      %v270 = vunpack.c.l.bf16 %v234
      %v271 = vunpack.c.l.bf16 %v235
      %v272 = vunpack.c.l.bf16 %v236
      %v273 = vunpack.c.l.bf16 %v237
      %v274 = vunpack.c.l.bf16 %v238
      %v275 = vunpack.c.l.bf16 %v239
      %v276 = vunpack.c.l.bf16 %v240
      %v277 = vunpack.c.l.bf16 %v241
      %v278 = vunpack.c.l.bf16 %v242
      %v279 = vunpack.c.l.bf16 %v243
      %v280 = vunpack.c.l.bf16 %v244
      %v281 = vunpack.c.l.bf16 %v245
      %v282 = vunpack.c.l.bf16 %v246
      %v283 = vunpack.c.l.bf16 %v247
      %v284 = vunpack.c.l.bf16 %v248
      %v285 = vunpack.c.l.bf16 %v249
      %v286 = vunpack.c.l.bf16 %v250
      %v287 = vunpack.c.l.bf16 %v251
      %v288 = vunpack.c.l.bf16 %v252
      %v289 = vunpack.c.l.bf16 %v253
      %v290 = vld [vmem:[%s2] sm:$0x1]
      %v292 = vperm.slane %v290, 0
      %v294 = vmul.f32 %v254, %v292
      %v295 = vmul.f32 %v255, %v292
      %v296 = vmul.f32 %v256, %v292
      %v297 = vmul.f32 %v257, %v292
      %v298 = vmul.f32 %v258, %v292
      %v299 = vmul.f32 %v259, %v292
      %v300 = vmul.f32 %v260, %v292
      %v301 = vmul.f32 %v261, %v292
      %v302 = vmul.f32 %v262, %v292
      %v303 = vmul.f32 %v263, %v292
      %v304 = vmul.f32 %v264, %v292
      %v305 = vmul.f32 %v265, %v292
      %v306 = vmul.f32 %v266, %v292
      %v307 = vmul.f32 %v267, %v292
      %v308 = vmul.f32 %v268, %v292
      %v309 = vmul.f32 %v269, %v292
      %v310 = vmul.f32 %v270, %v292
      %v311 = vmul.f32 %v271, %v292
      %v312 = vmul.f32 %v272, %v292
      %v313 = vmul.f32 %v273, %v292
      %v314 = vmul.f32 %v274, %v292
      %v315 = vmul.f32 %v275, %v292
      %v316 = vmul.f32 %v276, %v292
      %v317 = vmul.f32 %v277, %v292
      %v318 = vmul.f32 %v278, %v292
      %v319 = vmul.f32 %v279, %v292
      %v320 = vmul.f32 %v280, %v292
      %v321 = vmul.f32 %v281, %v292
      %v322 = vmul.f32 %v282, %v292
      %v323 = vmul.f32 %v283, %v292
      %v324 = vmul.f32 %v284, %v292
      %v325 = vmul.f32 %v285, %v292
      %v326 = vmul.f32 %v286, %v292
      %v327 = vmul.f32 %v287, %v292
      %v328 = vmul.f32 %v288, %v292
      %v329 = vmul.f32 %v289, %v292
      %v330 = vld [vmem:[%s3] sm:$0x1]
      %v332 = vperm.slane %v330, 0
      %v334 = vadd.f32 %v294, %v332
      %v335 = vadd.f32 %v295, %v332
      %v336 = vadd.f32 %v296, %v332
      %v337 = vadd.f32 %v297, %v332
      %v338 = vadd.f32 %v298, %v332
      %v339 = vadd.f32 %v299, %v332
      %v340 = vadd.f32 %v300, %v332
      %v341 = vadd.f32 %v301, %v332
      %v342 = vadd.f32 %v302, %v332
      %v343 = vadd.f32 %v303, %v332
      %v344 = vadd.f32 %v304, %v332
      %v345 = vadd.f32 %v305, %v332
      %v346 = vadd.f32 %v306, %v332
      %v347 = vadd.f32 %v307, %v332
      %v348 = vadd.f32 %v308, %v332
      %v349 = vadd.f32 %v309, %v332
      %v350 = vadd.f32 %v310, %v332
      %v351 = vadd.f32 %v311, %v332
      %v352 = vadd.f32 %v312, %v332
      %v353 = vadd.f32 %v313, %v332
      %v354 = vadd.f32 %v314, %v332
      %v355 = vadd.f32 %v315, %v332
      %v356 = vadd.f32 %v316, %v332
      %v357 = vadd.f32 %v317, %v332
      %v358 = vadd.f32 %v318, %v332
      %v359 = vadd.f32 %v319, %v332
      %v360 = vadd.f32 %v320, %v332
      %v361 = vadd.f32 %v321, %v332
      %v362 = vadd.f32 %v322, %v332
      %v363 = vadd.f32 %v323, %v332
      %v364 = vadd.f32 %v324, %v332
      %v365 = vadd.f32 %v325, %v332
      %v366 = vadd.f32 %v326, %v332
      %v367 = vadd.f32 %v327, %v332
      %v368 = vadd.f32 %v328, %v332
      %v369 = vadd.f32 %v329, %v332
      %v370 = vld [vmem:[%s212 + $0x8] sm:$0xe]
      %v371 = vld [vmem:[%s212 + $0xc] sm:$0xf]
      %v372 = vld [vmem:[%s212 + $0x10] sm:$0xf]
      %v373 = vld [vmem:[%s212 + $0x14] sm:$0xf]
      %v374 = vld [vmem:[%s212 + $0x18] sm:$0xf]
      %v375 = vld [vmem:[%s212 + $0x1c] sm:$0xf]
      %v376 = vld [vmem:[%s212 + $0x20] sm:$0xf]
      %v377 = vld [vmem:[%s212 + $0x24] sm:$0xf]
      %v378 = vld [vmem:[%s212 + $0x28] sm:$0xf]
      %v379 = vld [vmem:[%s212 + $0x2c] sm:$0xf]
      %v380 = vld [vmem:[%s212 + $0x30] sm:$0xf]
      %v381 = vld [vmem:[%s212 + $0x34] sm:$0xf]
      %v382 = vld [vmem:[%s212 + $0x38] sm:$0xf]
      %v383 = vld [vmem:[%s212 + $0x3c] sm:$0xf]
      %v384 = vld [vmem:[%s212 + $0x40] sm:$0xf]
      %v385 = vld [vmem:[%s212 + $0x44] sm:$0xf]
      %v386 = vld [vmem:[%s212 + $0x48] sm:$0xf]
      %v387 = vld [vmem:[%s212 + $0x4c] sm:$0xf]
      %v388 = vld [vmem:[%s212 + $0x50] sm:$0xf]
      %v389 = vld [vmem:[%s212 + $0x54] sm:$0xf]
      %v390 = vld [vmem:[%s212 + $0x58] sm:$0xf]
      %v391 = vld [vmem:[%s212 + $0x5c] sm:$0xf]
      %v392 = vld [vmem:[%s212 + $0x60] sm:$0xf]
      %v393 = vld [vmem:[%s212 + $0x64] sm:$0xf]
      %v394 = vld [vmem:[%s212 + $0x68] sm:$0xf]
      %v395 = vld [vmem:[%s212 + $0x6c] sm:$0xf]
      %v396 = vld [vmem:[%s212 + $0x70] sm:$0xf]
      %v397 = vld [vmem:[%s212 + $0x74] sm:$0xf]
      %v398 = vld [vmem:[%s212 + $0x78] sm:$0xf]
      %v399 = vld [vmem:[%s212 + $0x7c] sm:$0xf]
      %v400 = vld [vmem:[%s212 + $0x80] sm:$0xf]
      %v401 = vld [vmem:[%s212 + $0x84] sm:$0xf]
      %v402 = vld [vmem:[%s212 + $0x88] sm:$0xf]
      %v403 = vld [vmem:[%s212 + $0x8c] sm:$0xf]
      %v404 = vld [vmem:[%s212 + $0x90] sm:$0xf]
      %v405 = vld [vmem:[%s212 + $0x94] sm:$0xf]
      %v406 = vld [vmem:[%s212 + $0x98] sm:$0x3]
      %v407 = vunpack.c.l.bf16 %v370
      %v408 = vunpack.c.l.bf16 %v371
      %v409 = vunpack.c.l.bf16 %v372
      %v410 = vunpack.c.l.bf16 %v373
      %v411 = vunpack.c.l.bf16 %v374
      %v412 = vunpack.c.l.bf16 %v375
      %v413 = vunpack.c.l.bf16 %v376
      %v414 = vunpack.c.l.bf16 %v377
      %v415 = vunpack.c.l.bf16 %v378
      %v416 = vunpack.c.l.bf16 %v379
      %v417 = vunpack.c.l.bf16 %v380
      %v418 = vunpack.c.l.bf16 %v381
      %v419 = vunpack.c.l.bf16 %v382
      %v420 = vunpack.c.l.bf16 %v383
      %v421 = vunpack.c.l.bf16 %v384
      %v422 = vunpack.c.l.bf16 %v385
      %v423 = vunpack.c.l.bf16 %v386
      %v424 = vunpack.c.l.bf16 %v387
      %v425 = vunpack.c.l.bf16 %v388
      %v426 = vunpack.c.l.bf16 %v389
      %v427 = vunpack.c.l.bf16 %v390
      %v428 = vunpack.c.l.bf16 %v391
      %v429 = vunpack.c.l.bf16 %v392
      %v430 = vunpack.c.l.bf16 %v393
      %v431 = vunpack.c.l.bf16 %v394
      %v432 = vunpack.c.l.bf16 %v395
      %v433 = vunpack.c.l.bf16 %v396
      %v434 = vunpack.c.l.bf16 %v397
      %v435 = vunpack.c.l.bf16 %v398
      %v436 = vunpack.c.l.bf16 %v399
      %v437 = vunpack.c.l.bf16 %v400
      %v438 = vunpack.c.l.bf16 %v401
      %v439 = vunpack.c.l.bf16 %v402
      %v440 = vunpack.c.l.bf16 %v403
      %v441 = vunpack.c.l.bf16 %v404
      %v442 = vunpack.c.l.bf16 %v405
      %v443 = vunpack.c.l.bf16 %v406
      %vm481 = vcmask 1044480
      %v482 = vrot.slane %v407, 3
      %v483 = vrot.slane %v408, 3
      %v484 = vsel %vm481, %v482, %v483
      %v485 = vrot.slane %v409, 3
      %v486 = vsel %vm481, %v483, %v485
      %v487 = vrot.slane %v410, 3
      %v488 = vsel %vm481, %v485, %v487
      %v489 = vrot.slane %v411, 3
      %v490 = vsel %vm481, %v487, %v489
      %v491 = vrot.slane %v412, 3
      %v492 = vsel %vm481, %v489, %v491
      %v493 = vrot.slane %v413, 3
      %v494 = vsel %vm481, %v491, %v493
      %v495 = vrot.slane %v414, 3
      %v496 = vsel %vm481, %v493, %v495
      %v497 = vrot.slane %v415, 3
      %v498 = vsel %vm481, %v495, %v497
      %v499 = vrot.slane %v416, 3
      %v500 = vsel %vm481, %v497, %v499
      %v501 = vrot.slane %v417, 3
      %v502 = vsel %vm481, %v499, %v501
      %v503 = vrot.slane %v418, 3
      %v504 = vsel %vm481, %v501, %v503
      %v505 = vrot.slane %v419, 3
      %v506 = vsel %vm481, %v503, %v505
      %v507 = vrot.slane %v420, 3
      %v508 = vsel %vm481, %v505, %v507
      %v509 = vrot.slane %v421, 3
      %v510 = vsel %vm481, %v507, %v509
      %v511 = vrot.slane %v422, 3
      %v512 = vsel %vm481, %v509, %v511
      %v513 = vrot.slane %v423, 3
      %v514 = vsel %vm481, %v511, %v513
      %v515 = vrot.slane %v424, 3
      %v516 = vsel %vm481, %v513, %v515
      %v517 = vrot.slane %v425, 3
      %v518 = vsel %vm481, %v515, %v517
      %v519 = vrot.slane %v426, 3
      %v520 = vsel %vm481, %v517, %v519
      %v521 = vrot.slane %v427, 3
      %v522 = vsel %vm481, %v519, %v521
      %v523 = vrot.slane %v428, 3
      %v524 = vsel %vm481, %v521, %v523
      %v525 = vrot.slane %v429, 3
      %v526 = vsel %vm481, %v523, %v525
      %v527 = vrot.slane %v430, 3
      %v528 = vsel %vm481, %v525, %v527
      %v529 = vrot.slane %v431, 3
      %v530 = vsel %vm481, %v527, %v529
      %v531 = vrot.slane %v432, 3
      %v532 = vsel %vm481, %v529, %v531
      %v533 = vrot.slane %v433, 3
      %v534 = vsel %vm481, %v531, %v533
      %v535 = vrot.slane %v434, 3
      %v536 = vsel %vm481, %v533, %v535
      %v537 = vrot.slane %v435, 3
      %v538 = vsel %vm481, %v535, %v537
      %v539 = vrot.slane %v436, 3
      %v540 = vsel %vm481, %v537, %v539
      %v541 = vrot.slane %v437, 3
      %v542 = vsel %vm481, %v539, %v541
      %v543 = vrot.slane %v438, 3
      %v544 = vsel %vm481, %v541, %v543
      %v545 = vrot.slane %v439, 3
      %v546 = vsel %vm481, %v543, %v545
      %v547 = vrot.slane %v440, 3
      %v548 = vsel %vm481, %v545, %v547
      %v549 = vrot.slane %v441, 3
      %v550 = vsel %vm481, %v547, %v549
      %v551 = vrot.slane %v442, 3
      %v552 = vsel %vm481, %v549, %v551
      %v553 = vrot.slane %v443, 3
      %v554 = vsel %vm481, %v551, %v553
      %v591 = vadd.f32 %v334, %v484
      %v592 = vadd.f32 %v335, %v486
      %v593 = vadd.f32 %v336, %v488
      %v594 = vadd.f32 %v337, %v490
      %v595 = vadd.f32 %v338, %v492
      %v596 = vadd.f32 %v339, %v494
      %v597 = vadd.f32 %v340, %v496
      %v598 = vadd.f32 %v341, %v498
      %v599 = vadd.f32 %v342, %v500
      %v600 = vadd.f32 %v343, %v502
      %v601 = vadd.f32 %v344, %v504
      %v602 = vadd.f32 %v345, %v506
      %v603 = vadd.f32 %v346, %v508
      %v604 = vadd.f32 %v347, %v510
      %v605 = vadd.f32 %v348, %v512
      %v606 = vadd.f32 %v349, %v514
      %v607 = vadd.f32 %v350, %v516
      %v608 = vadd.f32 %v351, %v518
      %v609 = vadd.f32 %v352, %v520
      %v610 = vadd.f32 %v353, %v522
      %v611 = vadd.f32 %v354, %v524
      %v612 = vadd.f32 %v355, %v526
      %v613 = vadd.f32 %v356, %v528
      %v614 = vadd.f32 %v357, %v530
      %v615 = vadd.f32 %v358, %v532
      %v616 = vadd.f32 %v359, %v534
      %v617 = vadd.f32 %v360, %v536
      %v618 = vadd.f32 %v361, %v538
      %v619 = vadd.f32 %v362, %v540
      %v620 = vadd.f32 %v363, %v542
      %v621 = vadd.f32 %v364, %v544
      %v622 = vadd.f32 %v365, %v546
      %v623 = vadd.f32 %v366, %v548
      %v624 = vadd.f32 %v367, %v550
      %v625 = vadd.f32 %v368, %v552
      %v626 = vadd.f32 %v369, %v554
      %v627 = vmax.f32 %v591, 0.0
      %v628 = vmax.f32 %v592, 0.0
      %v629 = vmax.f32 %v593, 0.0
      %v630 = vmax.f32 %v594, 0.0
      %v631 = vmax.f32 %v595, 0.0
      %v632 = vmax.f32 %v596, 0.0
      %v633 = vmax.f32 %v597, 0.0
      %v634 = vmax.f32 %v598, 0.0
      %v635 = vmax.f32 %v599, 0.0
      %v636 = vmax.f32 %v600, 0.0
      %v637 = vmax.f32 %v601, 0.0
      %v638 = vmax.f32 %v602, 0.0
      %v639 = vmax.f32 %v603, 0.0
      %v640 = vmax.f32 %v604, 0.0
      %v641 = vmax.f32 %v605, 0.0
      %v642 = vmax.f32 %v606, 0.0
      %v643 = vmax.f32 %v607, 0.0
      %v644 = vmax.f32 %v608, 0.0
      %v645 = vmax.f32 %v609, 0.0
      %v646 = vmax.f32 %v610, 0.0
      %v647 = vmax.f32 %v611, 0.0
      %v648 = vmax.f32 %v612, 0.0
      %v649 = vmax.f32 %v613, 0.0
      %v650 = vmax.f32 %v614, 0.0
      %v651 = vmax.f32 %v615, 0.0
      %v652 = vmax.f32 %v616, 0.0
      %v653 = vmax.f32 %v617, 0.0
      %v654 = vmax.f32 %v618, 0.0
      %v655 = vmax.f32 %v619, 0.0
      %v656 = vmax.f32 %v620, 0.0
      %v657 = vmax.f32 %v621, 0.0
      %v658 = vmax.f32 %v622, 0.0
      %v659 = vmax.f32 %v623, 0.0
      %v660 = vmax.f32 %v624, 0.0
      %v661 = vmax.f32 %v625, 0.0
      %v662 = vmax.f32 %v626, 0.0
      %v663 = vpack.c.bf16 %v627, %v627
      %v664 = vpack.c.bf16 %v628, %v628
      %v665 = vpack.c.bf16 %v629, %v629
      %v666 = vpack.c.bf16 %v630, %v630
      %v667 = vpack.c.bf16 %v631, %v631
      %v668 = vpack.c.bf16 %v632, %v632
      %v669 = vpack.c.bf16 %v633, %v633
      %v670 = vpack.c.bf16 %v634, %v634
      %v671 = vpack.c.bf16 %v635, %v635
      %v672 = vpack.c.bf16 %v636, %v636
      %v673 = vpack.c.bf16 %v637, %v637
      %v674 = vpack.c.bf16 %v638, %v638
      %v675 = vpack.c.bf16 %v639, %v639
      %v676 = vpack.c.bf16 %v640, %v640
      %v677 = vpack.c.bf16 %v641, %v641
      %v678 = vpack.c.bf16 %v642, %v642
      %v679 = vpack.c.bf16 %v643, %v643
      %v680 = vpack.c.bf16 %v644, %v644
      %v681 = vpack.c.bf16 %v645, %v645
      %v682 = vpack.c.bf16 %v646, %v646
      %v683 = vpack.c.bf16 %v647, %v647
      %v684 = vpack.c.bf16 %v648, %v648
      %v685 = vpack.c.bf16 %v649, %v649
      %v686 = vpack.c.bf16 %v650, %v650
      %v687 = vpack.c.bf16 %v651, %v651
      %v688 = vpack.c.bf16 %v652, %v652
      %v689 = vpack.c.bf16 %v653, %v653
      %v690 = vpack.c.bf16 %v654, %v654
      %v691 = vpack.c.bf16 %v655, %v655
      %v692 = vpack.c.bf16 %v656, %v656
      %v693 = vpack.c.bf16 %v657, %v657
      %v694 = vpack.c.bf16 %v658, %v658
      %v695 = vpack.c.bf16 %v659, %v659
      %v696 = vpack.c.bf16 %v660, %v660
      %v697 = vpack.c.bf16 %v661, %v661
      %v698 = vpack.c.bf16 %v662, %v662
      %vm699 = vcmask 27648
      %700 = vst.msk [vmem:[%s217] sm:$0xf] %vm699, %v663
      %701 = vst.msk [vmem:[%s217 + $0x4] sm:$0xf] %vm699, %v664
      %702 = vst.msk [vmem:[%s217 + $0x8] sm:$0xf] %vm699, %v665
      %703 = vst.msk [vmem:[%s217 + $0xc] sm:$0xf] %vm699, %v666
      %704 = vst.msk [vmem:[%s217 + $0x10] sm:$0xf] %vm699, %v667
      %705 = vst.msk [vmem:[%s217 + $0x14] sm:$0xf] %vm699, %v668
      %706 = vst.msk [vmem:[%s217 + $0x18] sm:$0xf] %vm699, %v669
      %707 = vst.msk [vmem:[%s217 + $0x1c] sm:$0xf] %vm699, %v670
      %708 = vst.msk [vmem:[%s217 + $0x20] sm:$0xf] %vm699, %v671
      %709 = vst.msk [vmem:[%s217 + $0x24] sm:$0xf] %vm699, %v672
      %710 = vst.msk [vmem:[%s217 + $0x28] sm:$0xf] %vm699, %v673
      %711 = vst.msk [vmem:[%s217 + $0x2c] sm:$0xf] %vm699, %v674
      %712 = vst.msk [vmem:[%s217 + $0x30] sm:$0xf] %vm699, %v675
      %713 = vst.msk [vmem:[%s217 + $0x34] sm:$0xf] %vm699, %v676
      %714 = vst.msk [vmem:[%s217 + $0x38] sm:$0xf] %vm699, %v677
      %715 = vst.msk [vmem:[%s217 + $0x3c] sm:$0xf] %vm699, %v678
      %716 = vst.msk [vmem:[%s217 + $0x40] sm:$0xf] %vm699, %v679
      %717 = vst.msk [vmem:[%s217 + $0x44] sm:$0xf] %vm699, %v680
      %718 = vst.msk [vmem:[%s217 + $0x48] sm:$0xf] %vm699, %v681
      %719 = vst.msk [vmem:[%s217 + $0x4c] sm:$0xf] %vm699, %v682
      %720 = vst.msk [vmem:[%s217 + $0x50] sm:$0xf] %vm699, %v683
      %721 = vst.msk [vmem:[%s217 + $0x54] sm:$0xf] %vm699, %v684
      %722 = vst.msk [vmem:[%s217 + $0x58] sm:$0xf] %vm699, %v685
      %723 = vst.msk [vmem:[%s217 + $0x5c] sm:$0xf] %vm699, %v686
      %724 = vst.msk [vmem:[%s217 + $0x60] sm:$0xf] %vm699, %v687
      %725 = vst.msk [vmem:[%s217 + $0x64] sm:$0xf] %vm699, %v688
      %726 = vst.msk [vmem:[%s217 + $0x68] sm:$0xf] %vm699, %v689
      %727 = vst.msk [vmem:[%s217 + $0x6c] sm:$0xf] %vm699, %v690
      %728 = vst.msk [vmem:[%s217 + $0x70] sm:$0xf] %vm699, %v691
      %729 = vst.msk [vmem:[%s217 + $0x74] sm:$0xf] %vm699, %v692
      %730 = vst.msk [vmem:[%s217 + $0x78] sm:$0xf] %vm699, %v693
      %731 = vst.msk [vmem:[%s217 + $0x7c] sm:$0xf] %vm699, %v694
      %732 = vst.msk [vmem:[%s217 + $0x80] sm:$0xf] %vm699, %v695
      %733 = vst.msk [vmem:[%s217 + $0x84] sm:$0xf] %vm699, %v696
      %734 = vst.msk [vmem:[%s217 + $0x88] sm:$0xf] %vm699, %v697
      %735 = vst.msk [vmem:[%s217 + $0x8c] sm:$0xf] %vm699, %v698
      %p736 = scmp.lt.s32.totalorder %s15, 1
      %s737 = scalar_select %p736, %s15, 1
      %s738 = smul.addr %s737, 36
      %s739 = smul.addr %s738, 4
      %s740 = scalar_lea.vmem %s4, %s739
      // Predicated region
      $region37: #{basic_block_forward.5} parent=35 // pred_check
        %p741 = pneg %p127
      $region38: #{basic_block_forward.5} parent=35 // pred_check_branch
        %743 = sbr.rel (%p741) target = $region40
      $region39: #{basic_block_forward.5} parent=35 // pred_region
        _
      $region40: #{basic_block_forward.5} parent=35 // pred_fallthru
        _
    $region36: #{basic_block_forward.5} parent=5 // pred_fallthru
      _
    %p744 = scmp.le.s32.totalorder 2, %s10
    // Predicated region
    $region41: #{basic_block_forward.5} parent=5 // pred_check
      %p745 = pneg %p744
    $region42: #{basic_block_forward.5} parent=5 // pred_check_branch
      %747 = sbr.rel (%p745) target = $region44
    $region43: #{basic_block_forward.5} parent=5 // pred_region
      %s748 = ssub.s32 %s10, 2
      // Predicated region
      $region45: #{basic_block_forward.5} parent=43 // pred_check
        %p749 = pneg %p133
      $region46: #{basic_block_forward.5} parent=43 // pred_check_branch
        %751 = sbr.rel (%p749) target = $region48
      $region47: #{basic_block_forward.5} parent=43 // pred_region
        %p752 = scmp.lt.s32.totalorder %s16, 1
        %s753 = scalar_select %p752, %s16, 1
        %s754 = smul.addr %s753, 36
        %s755 = smul.addr %s754, 4
        %s756 = scalar_lea.vmem %s4, %s755
      $region48: #{basic_block_forward.5} parent=43 // pred_fallthru
        _
    $region44: #{basic_block_forward.5} parent=5 // pred_fallthru
      _
  $region6: #{basic_block_forward.5} parent=0 // loop_footer
    %s14 = sadd.s32 1, %s10
  $region7: #{basic_block_forward.5} parent=0 // loop_footer_branch
    %9 = sbr.rel target = $region3
  $region8: #{basic_block_forward.5} parent=0 // loop_exit
    _

// kernel: basic_block_forward.3
$region0: #{basic_block_forward.3}
  #allocation0 [shape = 'u32[]', space=smem, size = 0x4, offset = 0x4, fixed_abs, tag = 'smem constant byte address 0x4 - core index']
  #allocation1 [shape = 'u32[72,128]{1,0:T(1,128)}', space=vmem, size = 0x9000, scoped, tag = 'internal scratch']
  %s0 = inlined_call_operand.vmem [shape: bf16[2,326,4], index: 0, kind: input, shape index: {}]
  %s1 = inlined_call_operand.vmem [shape: bf16[9,4,4], index: 1, kind: input, shape index: {}]
  %s2 = inlined_call_operand.vmem [shape: f32[1,4], index: 2, kind: input, shape index: {}]
  %s3 = inlined_call_operand.vmem [shape: f32[1,4], index: 3, kind: input, shape index: {}]
  %s4 = inlined_call_operand.vmem [shape: f32[288,1], index: 4, kind: input, shape index: {}]
  %s5 = inlined_call_operand.vmem [shape: bf16[2,288,4], index: 5, kind: output, shape index: {0}]
  %s6 = inlined_call_operand.vmem [shape: f32[2,2,4], index: 6, kind: output, shape index: {1}]
  %7 = xla_tuple %s5, %s6
  %s8 = sld [smem:[#allocation0]]
  $region61: #{basic_block_forward.3} parent=0
    _
  %s10 = ssub.s32 1, %s8
  %s11 = scalar_select 0, %s10, %s8
  loop: start=0, step=1, limit=4
  $region2: #{basic_block_forward.3} parent=0 // loop_pre_header
    _
  $region3: #{basic_block_forward.3} parent=0 // loop_header
    %s13 = sphi 0, %s17
    %p14 = scmp.ge.s32.totalorder %s13, 4
    %s23 = sphi 0, %s25
    %s26 = sphi 0, %s23
    %s27 = sphi 0, %s26
    %s43 = sphi 0, %s27
    %s47 = sphi 0, %s47
    %s49 = sphi 0, %s47
    %s50 = sphi 0, %s49
    %s64 = sphi 0, %s50
    %s68 = sphi 0, %s68
    %s70 = sphi 0, %s68
    %s71 = sphi 0, %s70
    %s85 = sphi 0, %s71
    %s89 = sphi 0, %s89
    %s91 = sphi 0, %s89
    %s92 = sphi 0, %s91
    %s106 = sphi 0, %s92
    %s110 = sphi 0, %s110
    %s112 = sphi 0, %s110
    %s113 = sphi 0, %s112
    %s127 = sphi 0, %s113
    %s133 = sphi 0, %s135
    %s136 = sphi 0, %s133
    %s137 = sphi 0, %s136
    %s153 = sphi 0, %s137
    %s159 = sphi 0, %s161
    %s162 = sphi 0, %s159
    %s163 = sphi 0, %s162
    %s179 = sphi 0, %s163
  $region4: #{basic_block_forward.3} parent=0 // loop_header_branch
    %16 = sbr.rel (%p14) target = $region8
  $region5: #{basic_block_forward.3} parent=0 // loop_body
    %s18 = ssub.s32 %s13, 1
    %s19 = ssub.s32 %s13, 2
    %s20 = sadd.s32 %s13, 1
    %s21 = ssub.s32 %s13, %s20
    %p22 = scmp.eq.s32.totalorder %s21, 0
    %s24 = sadd.s32 %s23, 1
    %s25 = scalar_select %p22, %s23, %s24
    %p28 = pneg %p22
    %p29 = scmp.eq.s32.totalorder %s13, 1
    %p30 = por %p28, %p29
    %p31 = scmp.ne.s32.totalorder %s23, %s26
    %p32 = scmp.eq.s32.totalorder %s13, 0
    %p33 = por %p31, %p32
    %p34 = scmp.ne.s32.totalorder %s23, %s26
    %p35 = scmp.eq.s32.totalorder %s18, 1
    %p36 = por %p34, %p35
    %p37 = scmp.ne.s32.totalorder %s26, %s27
    %p38 = scmp.eq.s32.totalorder %s18, 0
    %p39 = por %p37, %p38
    %p40 = scmp.ne.s32.totalorder %s26, %s27
    %p41 = scmp.eq.s32.totalorder %s19, 1
    %p42 = por %p40, %p41
    %p44 = scmp.ne.s32.totalorder %s27, %s43
    %p45 = scmp.eq.s32.totalorder %s19, 0
    %p46 = por %p44, %p45
    %s48 = sadd.s32 %s47, 1
    %p51 = scmp.eq.s32.totalorder %s13, 1
    %p52 = scmp.ne.s32.totalorder %s47, %s49
    %p53 = scmp.eq.s32.totalorder %s13, 0
    %p54 = por %p52, %p53
    %p55 = scmp.ne.s32.totalorder %s47, %s49
    %p56 = scmp.eq.s32.totalorder %s18, 1
    %p57 = por %p55, %p56
    %p58 = scmp.ne.s32.totalorder %s49, %s50
    %p59 = scmp.eq.s32.totalorder %s18, 0
    %p60 = por %p58, %p59
    %p61 = scmp.ne.s32.totalorder %s49, %s50
    %p62 = scmp.eq.s32.totalorder %s19, 1
    %p63 = por %p61, %p62
    %p65 = scmp.ne.s32.totalorder %s50, %s64
    %p66 = scmp.eq.s32.totalorder %s19, 0
    %p67 = por %p65, %p66
    %s69 = sadd.s32 %s68, 1
    %p72 = scmp.eq.s32.totalorder %s13, 1
    %p73 = scmp.ne.s32.totalorder %s68, %s70
    %p74 = scmp.eq.s32.totalorder %s13, 0
    %p75 = por %p73, %p74
    %p76 = scmp.ne.s32.totalorder %s68, %s70
    %p77 = scmp.eq.s32.totalorder %s18, 1
    %p78 = por %p76, %p77
    %p79 = scmp.ne.s32.totalorder %s70, %s71
    %p80 = scmp.eq.s32.totalorder %s18, 0
    %p81 = por %p79, %p80
    %p82 = scmp.ne.s32.totalorder %s70, %s71
    %p83 = scmp.eq.s32.totalorder %s19, 1
    %p84 = por %p82, %p83
    %p86 = scmp.ne.s32.totalorder %s71, %s85
    %p87 = scmp.eq.s32.totalorder %s19, 0
    %p88 = por %p86, %p87
    %s90 = sadd.s32 %s89, 1
    %p93 = scmp.eq.s32.totalorder %s13, 1
    %p94 = scmp.ne.s32.totalorder %s89, %s91
    %p95 = scmp.eq.s32.totalorder %s13, 0
    %p96 = por %p94, %p95
    %p97 = scmp.ne.s32.totalorder %s89, %s91
    %p98 = scmp.eq.s32.totalorder %s18, 1
    %p99 = por %p97, %p98
    %p100 = scmp.ne.s32.totalorder %s91, %s92
    %p101 = scmp.eq.s32.totalorder %s18, 0
    %p102 = por %p100, %p101
    %p103 = scmp.ne.s32.totalorder %s91, %s92
    %p104 = scmp.eq.s32.totalorder %s19, 1
    %p105 = por %p103, %p104
    %p107 = scmp.ne.s32.totalorder %s92, %s106
    %p108 = scmp.eq.s32.totalorder %s19, 0
    %p109 = por %p107, %p108
    %s111 = sadd.s32 %s110, 1
    %p114 = scmp.eq.s32.totalorder %s13, 1
    %p115 = scmp.ne.s32.totalorder %s110, %s112
    %p116 = scmp.eq.s32.totalorder %s13, 0
    %p117 = por %p115, %p116
    %p118 = scmp.ne.s32.totalorder %s110, %s112
    %p119 = scmp.eq.s32.totalorder %s18, 1
    %p120 = por %p118, %p119
    %p121 = scmp.ne.s32.totalorder %s112, %s113
    %p122 = scmp.eq.s32.totalorder %s18, 0
    %p123 = por %p121, %p122
    %p124 = scmp.ne.s32.totalorder %s112, %s113
    %p125 = scmp.eq.s32.totalorder %s19, 1
    %p126 = por %p124, %p125
    %p128 = scmp.ne.s32.totalorder %s113, %s127
    %p129 = scmp.eq.s32.totalorder %s19, 0
    %p130 = por %p128, %p129
    %s131 = ssub.s32 %s13, %s20
    %p132 = scmp.eq.s32.totalorder %s131, 0
    %s134 = sadd.s32 %s133, 1
    %s135 = scalar_select %p132, %s133, %s134
    %p138 = pneg %p132
    %p139 = scmp.eq.s32.totalorder %s13, 1
    %p140 = por %p138, %p139
    %p141 = scmp.ne.s32.totalorder %s133, %s136
    %p142 = scmp.eq.s32.totalorder %s13, 0
    %p143 = por %p141, %p142
    %p144 = scmp.ne.s32.totalorder %s133, %s136
    %p145 = scmp.eq.s32.totalorder %s18, 1
    %p146 = por %p144, %p145
    %p147 = scmp.ne.s32.totalorder %s136, %s137
    %p148 = scmp.eq.s32.totalorder %s18, 0
    %p149 = por %p147, %p148
    %p150 = scmp.ne.s32.totalorder %s136, %s137
    %p151 = scmp.eq.s32.totalorder %s19, 1
    %p152 = por %p150, %p151
    %p154 = scmp.ne.s32.totalorder %s137, %s153
    %p155 = scmp.eq.s32.totalorder %s19, 0
    %p156 = por %p154, %p155
    %s157 = ssub.s32 %s13, %s20
    %p158 = scmp.eq.s32.totalorder %s157, 0
    %s160 = sadd.s32 %s159, 1
    %s161 = scalar_select %p158, %s159, %s160
    %p164 = pneg %p158
    %p165 = scmp.eq.s32.totalorder %s13, 1
    %p166 = por %p164, %p165
    %p167 = scmp.ne.s32.totalorder %s159, %s162
    %p168 = scmp.eq.s32.totalorder %s13, 0
    %p169 = por %p167, %p168
    %p170 = scmp.ne.s32.totalorder %s159, %s162
    %p171 = scmp.eq.s32.totalorder %s18, 1
    %p172 = por %p170, %p171
    %p173 = scmp.ne.s32.totalorder %s162, %s163
    %p174 = scmp.eq.s32.totalorder %s18, 0
    %p175 = por %p173, %p174
    %p176 = scmp.ne.s32.totalorder %s162, %s163
    %p177 = scmp.eq.s32.totalorder %s19, 1
    %p178 = por %p176, %p177
    %p180 = scmp.ne.s32.totalorder %s163, %s179
    %p181 = scmp.eq.s32.totalorder %s19, 0
    %p182 = por %p180, %p181
    %p183 = scmp.le.s32.totalorder 1, %s13
    %p184 = scmp.lt.s32.totalorder %s13, 3
    %p185 = pnand %p183, %p184
    %p186 = pneg %p185
    // Predicated region
    $region9: #{basic_block_forward.3} parent=5 // pred_check
      _
    $region10: #{basic_block_forward.3} parent=5 // pred_check_branch
      %188 = sbr.rel (%p185) target = $region12
    $region11: #{basic_block_forward.3} parent=5 // pred_region
      %s189 = ssub.s32 %s13, 1
      // Predicated region
      $region13: #{basic_block_forward.3} parent=11 // pred_check
        %p190 = pneg %p60
      $region14: #{basic_block_forward.3} parent=11 // pred_check_branch
        %192 = sbr.rel (%p190) target = $region16
      $region15: #{basic_block_forward.3} parent=11 // pred_region
        _
      $region16: #{basic_block_forward.3} parent=11 // pred_fallthru
        _
      // Predicated region
      $region17: #{basic_block_forward.3} parent=11 // pred_check
        %p193 = pneg %p81
      $region18: #{basic_block_forward.3} parent=11 // pred_check_branch
        %195 = sbr.rel (%p193) target = $region20
      $region19: #{basic_block_forward.3} parent=11 // pred_region
        _
      $region20: #{basic_block_forward.3} parent=11 // pred_fallthru
        _
      // Predicated region
      $region21: #{basic_block_forward.3} parent=11 // pred_check
        %p196 = pneg %p102
      $region22: #{basic_block_forward.3} parent=11 // pred_check_branch
        %198 = sbr.rel (%p196) target = $region24
      $region23: #{basic_block_forward.3} parent=11 // pred_region
        _
      $region24: #{basic_block_forward.3} parent=11 // pred_fallthru
        _
      // Predicated region
      $region25: #{basic_block_forward.3} parent=11 // pred_check
        %p199 = pneg %p123
      $region26: #{basic_block_forward.3} parent=11 // pred_check_branch
        %201 = sbr.rel (%p199) target = $region28
      $region27: #{basic_block_forward.3} parent=11 // pred_region
        _
      $region28: #{basic_block_forward.3} parent=11 // pred_fallthru
        _
    $region12: #{basic_block_forward.3} parent=5 // pred_fallthru
      _
    %p202 = scmp.lt.s32.totalorder %s13, 2
    // Predicated region
    $region29: #{basic_block_forward.3} parent=5 // pred_check
      %p203 = pneg %p202
    $region30: #{basic_block_forward.3} parent=5 // pred_check_branch
      %205 = sbr.rel (%p203) target = $region32
    $region31: #{basic_block_forward.3} parent=5 // pred_region
      // Predicated region
      $region33: #{basic_block_forward.3} parent=31 // pred_check
        %p206 = pneg %p33
      $region34: #{basic_block_forward.3} parent=31 // pred_check_branch
        %208 = sbr.rel (%p206) target = $region36
      $region35: #{basic_block_forward.3} parent=31 // pred_region
        %p209 = scmp.lt.s32.totalorder %s13, 1
        %s210 = scalar_select %p209, %s13, 1
        %s211 = smul.addr %s210, 41
        %s212 = smul.addr %s211, 4
        %s213 = scalar_lea.vmem %s0, %s212
      $region36: #{basic_block_forward.3} parent=31 // pred_fallthru
        _
    $region32: #{basic_block_forward.3} parent=5 // pred_fallthru
      _
    %p214 = scmp.le.s32.totalorder 1, %s13
    %p215 = scmp.lt.s32.totalorder %s13, 3
    %p216 = pnand %p214, %p215
    %p217 = pneg %p216
    // Predicated region
    $region37: #{basic_block_forward.3} parent=5 // pred_check
      _
    $region38: #{basic_block_forward.3} parent=5 // pred_check_branch
      %219 = sbr.rel (%p216) target = $region40
    $region39: #{basic_block_forward.3} parent=5 // pred_region
      %s220 = ssub.s32 %s13, 1
      %p221 = scmp.lt.s32.totalorder %s18, 1
      %s222 = scalar_select %p221, %s18, 1
      %s223 = smul.addr %s222, 41
      %s224 = smul.addr %s223, 4
      %s225 = scalar_lea.vmem %s0, %s224
      %p226 = pneg %p39
      %p227 = pneg %p36
      %p228 = pneg %p60
      %p229 = pneg %p57
      %p230 = pneg %p81
      %p231 = pneg %p78
      %p232 = pneg %p102
      %p233 = pneg %p99
      %p234 = pneg %p123
      %p235 = pneg %p120
      %p236 = pneg %p149
      %p237 = pneg %p146
      %p238 = scmp.lt.s32.totalorder %s18, 1
      %s239 = scalar_select %p238, %s18, 1
      %s240 = smul.addr %s239, 36
      %s241 = smul.addr %s240, 4
      %s242 = scalar_lea.vmem %s5, %s241
      %p243 = pneg %p175
      %p244 = pneg %p172
      %p245 = scmp.lt.s32.totalorder %s18, 1
      %s246 = scalar_select %p245, %s18, 1
      %s247 = smul.addr %s246, 2
      %s248 = scalar_lea.vmem %s6, %s247
      %p249 = scmp.lt.s32.totalorder %s18, 1
      %s250 = scalar_select %p249, %s18, 1
      %s251 = smul.addr %s250, 41
      %s252 = smul.addr %s251, 4
      %s253 = scalar_lea.vmem %s0, %s252
      %p254 = scmp.lt.s32.totalorder %s18, 1
      %s255 = scalar_select %p254, %s18, 1
      %s256 = smul.addr %s255, 36
      %s257 = smul.addr %s256, 4
      %s258 = scalar_lea.vmem %s5, %s257
      %p259 = scmp.lt.s32.totalorder %s18, 1
      %s260 = scalar_select %p259, %s18, 1
      %s261 = smul.addr %s260, 2
      %s262 = scalar_lea.vmem %s6, %s261
      %v264 = vld [vmem:[%s4] sm:$0xff]
      %v265 = vld [vmem:[%s4 + $0x8] sm:$0xff]
      %v266 = vld [vmem:[%s4 + $0x10] sm:$0xff]
      %v267 = vld [vmem:[%s4 + $0x18] sm:$0xff]
      %v268 = vld [vmem:[%s4 + $0x20] sm:$0xff]
      %v269 = vld [vmem:[%s4 + $0x28] sm:$0xff]
      %v270 = vld [vmem:[%s4 + $0x30] sm:$0xff]
      %v271 = vld [vmem:[%s4 + $0x38] sm:$0xff]
      %v272 = vld [vmem:[%s4 + $0x40] sm:$0xff]
      %v273 = vld [vmem:[%s4 + $0x48] sm:$0xff]
      %v274 = vld [vmem:[%s4 + $0x50] sm:$0xff]
      %v275 = vld [vmem:[%s4 + $0x58] sm:$0xff]
      %v276 = vld [vmem:[%s4 + $0x60] sm:$0xff]
      %v277 = vld [vmem:[%s4 + $0x68] sm:$0xff]
      %v278 = vld [vmem:[%s4 + $0x70] sm:$0xff]
      %v279 = vld [vmem:[%s4 + $0x78] sm:$0xff]
      %v280 = vld [vmem:[%s4 + $0x80] sm:$0xff]
      %v281 = vld [vmem:[%s4 + $0x88] sm:$0xff]
      %v282 = vld [vmem:[%s4 + $0x90] sm:$0xff]
      %v283 = vld [vmem:[%s4 + $0x98] sm:$0xff]
      %v284 = vld [vmem:[%s4 + $0xa0] sm:$0xff]
      %v285 = vld [vmem:[%s4 + $0xa8] sm:$0xff]
      %v286 = vld [vmem:[%s4 + $0xb0] sm:$0xff]
      %v287 = vld [vmem:[%s4 + $0xb8] sm:$0xff]
      %v288 = vld [vmem:[%s4 + $0xc0] sm:$0xff]
      %v289 = vld [vmem:[%s4 + $0xc8] sm:$0xff]
      %v290 = vld [vmem:[%s4 + $0xd0] sm:$0xff]
      %v291 = vld [vmem:[%s4 + $0xd8] sm:$0xff]
      %v292 = vld [vmem:[%s4 + $0xe0] sm:$0xff]
      %v293 = vld [vmem:[%s4 + $0xe8] sm:$0xff]
      %v294 = vld [vmem:[%s4 + $0xf0] sm:$0xff]
      %v295 = vld [vmem:[%s4 + $0xf8] sm:$0xff]
      %v296 = vld [vmem:[%s4 + $0x100] sm:$0xff]
      %v297 = vld [vmem:[%s4 + $0x108] sm:$0xff]
      %v298 = vld [vmem:[%s4 + $0x110] sm:$0xff]
      %v299 = vld [vmem:[%s4 + $0x118] sm:$0xff]
      %v300 = vld [vmem:[%s253] sm:$0xf]
      %v301 = vld [vmem:[%s253 + $0x4] sm:$0xf]
      %v302 = vld [vmem:[%s253 + $0x8] sm:$0xf]
      %v303 = vld [vmem:[%s253 + $0xc] sm:$0xf]
      %v304 = vld [vmem:[%s253 + $0x10] sm:$0xf]
      %v305 = vld [vmem:[%s253 + $0x14] sm:$0xf]
      %v306 = vld [vmem:[%s253 + $0x18] sm:$0xf]
      %v307 = vld [vmem:[%s253 + $0x1c] sm:$0xf]
      %v308 = vld [vmem:[%s253 + $0x20] sm:$0xf]
      %v309 = vld [vmem:[%s253 + $0x24] sm:$0xf]
      %v310 = vld [vmem:[%s253 + $0x28] sm:$0xf]
      %v311 = vld [vmem:[%s253 + $0x2c] sm:$0xf]
      %v312 = vld [vmem:[%s253 + $0x30] sm:$0xf]
      %v313 = vld [vmem:[%s253 + $0x34] sm:$0xf]
      %v314 = vld [vmem:[%s253 + $0x38] sm:$0xf]
      %v315 = vld [vmem:[%s253 + $0x3c] sm:$0xf]
      %v316 = vld [vmem:[%s253 + $0x40] sm:$0xf]
      %v317 = vld [vmem:[%s253 + $0x44] sm:$0xf]
      %v318 = vld [vmem:[%s253 + $0x48] sm:$0xf]
      %v319 = vld [vmem:[%s253 + $0x4c] sm:$0xf]
      %v320 = vld [vmem:[%s253 + $0x50] sm:$0xf]
      %v321 = vld [vmem:[%s253 + $0x54] sm:$0xf]
      %v322 = vld [vmem:[%s253 + $0x58] sm:$0xf]
      %v323 = vld [vmem:[%s253 + $0x5c] sm:$0xf]
      %v324 = vld [vmem:[%s253 + $0x60] sm:$0xf]
      %v325 = vld [vmem:[%s253 + $0x64] sm:$0xf]
      %v326 = vld [vmem:[%s253 + $0x68] sm:$0xf]
      %v327 = vld [vmem:[%s253 + $0x6c] sm:$0xf]
      %v328 = vld [vmem:[%s253 + $0x70] sm:$0xf]
      %v329 = vld [vmem:[%s253 + $0x74] sm:$0xf]
      %v330 = vld [vmem:[%s253 + $0x78] sm:$0xf]
      %v331 = vld [vmem:[%s253 + $0x7c] sm:$0xf]
      %v332 = vld [vmem:[%s253 + $0x80] sm:$0xf]
      %v333 = vld [vmem:[%s253 + $0x84] sm:$0xf]
      %v334 = vld [vmem:[%s253 + $0x88] sm:$0xf]
      %v335 = vld [vmem:[%s253 + $0x8c] sm:$0xf]
      %v336 = vld [vmem:[%s1] sm:$0x3]
      %v337 = vld [vmem:[%s253 + $0x90] sm:$0x1]
      %s338 = scalar_lea.vmem %s1, 2
      %v339 = vld [vmem:[%s338] sm:$0x3]
      %v377 = vunpack.c.l.b16 %v300
      %v378 = vunpack.c.l.b16 %v301
      %v379 = vunpack.c.l.b16 %v302
      %v380 = vunpack.c.l.b16 %v303
      %v381 = vunpack.c.l.b16 %v304
      %v382 = vunpack.c.l.b16 %v305
      %v383 = vunpack.c.l.b16 %v306
      %v384 = vunpack.c.l.b16 %v307
      %v385 = vunpack.c.l.b16 %v308
      %v386 = vunpack.c.l.b16 %v309
      %v387 = vunpack.c.l.b16 %v310
      %v388 = vunpack.c.l.b16 %v311
      %v389 = vunpack.c.l.b16 %v312
      %v390 = vunpack.c.l.b16 %v313
      %v391 = vunpack.c.l.b16 %v314
      %v392 = vunpack.c.l.b16 %v315
      %v393 = vunpack.c.l.b16 %v316
      %v394 = vunpack.c.l.b16 %v317
      %v395 = vunpack.c.l.b16 %v318
      %v396 = vunpack.c.l.b16 %v319
      %v397 = vunpack.c.l.b16 %v320
      %v398 = vunpack.c.l.b16 %v321
      %v399 = vunpack.c.l.b16 %v322
      %v400 = vunpack.c.l.b16 %v323
      %v401 = vunpack.c.l.b16 %v324
      %v402 = vunpack.c.l.b16 %v325
      %v403 = vunpack.c.l.b16 %v326
      %v404 = vunpack.c.l.b16 %v327
      %v405 = vunpack.c.l.b16 %v328
      %v406 = vunpack.c.l.b16 %v329
      %v407 = vunpack.c.l.b16 %v330
      %v408 = vunpack.c.l.b16 %v331
      %v409 = vunpack.c.l.b16 %v332
      %v410 = vunpack.c.l.b16 %v333
      %v411 = vunpack.c.l.b16 %v334
      %v412 = vunpack.c.l.b16 %v335
      %v413 = vunpack.c.l.b16 %v337
      %v414 = vpack.c.b16 %v378, %v377
      %v415 = vpack.c.b16 %v380, %v379
      %v416 = vpack.c.b16 %v382, %v381
      %v417 = vpack.c.b16 %v384, %v383
      %v418 = vpack.c.b16 %v386, %v385
      %v419 = vpack.c.b16 %v388, %v387
      %v420 = vpack.c.b16 %v390, %v389
      %v421 = vpack.c.b16 %v392, %v391
      %v422 = vpack.c.b16 %v394, %v393
      %v423 = vpack.c.b16 %v396, %v395
      %v424 = vpack.c.b16 %v398, %v397
      %v425 = vpack.c.b16 %v400, %v399
      %v426 = vpack.c.b16 %v402, %v401
      %v427 = vpack.c.b16 %v404, %v403
      %v428 = vpack.c.b16 %v406, %v405
      %v429 = vpack.c.b16 %v408, %v407
      %v430 = vpack.c.b16 %v410, %v409
      %v431 = vpack.c.b16 %v412, %v411
      %v432 = vpack.c.b16 %v413, %v413
      %vm433 = vsmask.f32 7424
      %v435 = vshrl.u32 %v414, 16
      %v437 = vshll.u32 %v414, 16
      %v439 = vrot.slane %v437, 1
      %v440 = vor.u32 %v435, %v439
      %v442 = vshll.u32 %v415, 16
      %v444 = vrot.slane %v442, 1
      %v445 = vsel %vm433, %v440, %v444
      %v446 = vshrl.u32 %v415, 16
      %v448 = vor.u32 %v446, %v444
      %v450 = vshll.u32 %v416, 16
      %v452 = vrot.slane %v450, 1
      %v453 = vsel %vm433, %v448, %v452
      %v454 = vshrl.u32 %v416, 16
      %v456 = vor.u32 %v454, %v452
      %v458 = vshll.u32 %v417, 16
      %v460 = vrot.slane %v458, 1
      %v461 = vsel %vm433, %v456, %v460
      %v462 = vshrl.u32 %v417, 16
      %v464 = vor.u32 %v462, %v460
      %v466 = vshll.u32 %v418, 16
      %v468 = vrot.slane %v466, 1
      %v469 = vsel %vm433, %v464, %v468
      %v470 = vshrl.u32 %v418, 16
      %v472 = vor.u32 %v470, %v468
      %v474 = vshll.u32 %v419, 16
      %v476 = vrot.slane %v474, 1
      %v477 = vsel %vm433, %v472, %v476
      %v478 = vshrl.u32 %v419, 16
      %v480 = vor.u32 %v478, %v476
      %v482 = vshll.u32 %v420, 16
      %v484 = vrot.slane %v482, 1
      %v485 = vsel %vm433, %v480, %v484
      %v486 = vshrl.u32 %v420, 16
      %v488 = vor.u32 %v486, %v484
      %v490 = vshll.u32 %v421, 16
      %v492 = vrot.slane %v490, 1
      %v493 = vsel %vm433, %v488, %v492
      %v494 = vshrl.u32 %v421, 16
      %v496 = vor.u32 %v494, %v492
      %v498 = vshll.u32 %v422, 16
      %v500 = vrot.slane %v498, 1
      %v501 = vsel %vm433, %v496, %v500
      %v502 = vshrl.u32 %v422, 16
      %v504 = vor.u32 %v502, %v500
      %v506 = vshll.u32 %v423, 16
      %v508 = vrot.slane %v506, 1
      %v509 = vsel %vm433, %v504, %v508
      %v510 = vshrl.u32 %v423, 16
      %v512 = vor.u32 %v510, %v508
      %v514 = vshll.u32 %v424, 16
      %v516 = vrot.slane %v514, 1
      %v517 = vsel %vm433, %v512, %v516
      %v518 = vshrl.u32 %v424, 16
      %v520 = vor.u32 %v518, %v516
      %v522 = vshll.u32 %v425, 16
      %v524 = vrot.slane %v522, 1
      %v525 = vsel %vm433, %v520, %v524
      %v526 = vshrl.u32 %v425, 16
      %v528 = vor.u32 %v526, %v524
      %v530 = vshll.u32 %v426, 16
      %v532 = vrot.slane %v530, 1
      %v533 = vsel %vm433, %v528, %v532
      %v534 = vshrl.u32 %v426, 16
      %v536 = vor.u32 %v534, %v532
      %v538 = vshll.u32 %v427, 16
      %v540 = vrot.slane %v538, 1
      %v541 = vsel %vm433, %v536, %v540
      %v542 = vshrl.u32 %v427, 16
      %v544 = vor.u32 %v542, %v540
      %v546 = vshll.u32 %v428, 16
      %v548 = vrot.slane %v546, 1
      %v549 = vsel %vm433, %v544, %v548
      %v550 = vshrl.u32 %v428, 16
      %v552 = vor.u32 %v550, %v548
      %v554 = vshll.u32 %v429, 16
      %v556 = vrot.slane %v554, 1
      %v557 = vsel %vm433, %v552, %v556
      %v558 = vshrl.u32 %v429, 16
      %v560 = vor.u32 %v558, %v556
      %v562 = vshll.u32 %v430, 16
      %v564 = vrot.slane %v562, 1
      %v565 = vsel %vm433, %v560, %v564
      %v566 = vshrl.u32 %v430, 16
      %v568 = vor.u32 %v566, %v564
      %v570 = vshll.u32 %v431, 16
      %v572 = vrot.slane %v570, 1
      %v573 = vsel %vm433, %v568, %v572
      %v574 = vshrl.u32 %v431, 16
      %v576 = vor.u32 %v574, %v572
      %v578 = vshll.u32 %v432, 16
      %v580 = vrot.slane %v578, 1
      %v581 = vsel %vm433, %v576, %v580
      %vm582 = vcmask 31744
      %v584 = vsel %vm582, %v445, 0
      %v587 = vsel %vm582, %v453, 0
      %v590 = vsel %vm582, %v461, 0
      %v593 = vsel %vm582, %v469, 0
      %v596 = vsel %vm582, %v477, 0
      %v599 = vsel %vm582, %v485, 0
      %v602 = vsel %vm582, %v493, 0
      %v605 = vsel %vm582, %v501, 0
      %v608 = vsel %vm582, %v509, 0
      %v611 = vsel %vm582, %v517, 0
      %v614 = vsel %vm582, %v525, 0
      %v617 = vsel %vm582, %v533, 0
      %v620 = vsel %vm582, %v541, 0
      %v623 = vsel %vm582, %v549, 0
      %v626 = vsel %vm582, %v557, 0
      %v629 = vsel %vm582, %v565, 0
      %v632 = vsel %vm582, %v573, 0
      %v635 = vsel %vm582, %v581, 0
      %vm637 = vcmask 1041408
      %v639 = vsel %vm637, %v339, 0
      %641 = vmatpush.bf16.msra.mxu0 0
      %642 = vmatpush.bf16.msra.mxu0 0
      %643 = vmatpush.bf16.msra.mxu0 0
      %644 = vmatpush.bf16.msra.mxu0 0
      %645 = vmatpush.bf16.msra.mxu0 0
      %646 = vmatpush.bf16.msra.mxu0 0
      %647 = vmatpush.bf16.msra.mxu0 0
      %648 = vmatpush.bf16.msra.mxu0 %v639
      %649 = vmatmul.bf16.gmra.mxu0 %v584
      %v650 = vpop.f32.mrf.mxu0
      %v651 = vadd.f32 0.0, %v650
      %v652 = vpop.f32.mrf.mxu0
      %v653 = vadd.f32 0.0, %v652
      %654 = vmatmul.bf16.gmra.mxu0 %v587
      %v655 = vpop.f32.mrf.mxu0
      %v656 = vadd.f32 0.0, %v655
      %v657 = vpop.f32.mrf.mxu0
      %v658 = vadd.f32 0.0, %v657
      %659 = vmatmul.bf16.gmra.mxu0 %v590
      %v660 = vpop.f32.mrf.mxu0
      %v661 = vadd.f32 0.0, %v660
      %v662 = vpop.f32.mrf.mxu0
      %v663 = vadd.f32 0.0, %v662
      %664 = vmatmul.bf16.gmra.mxu0 %v593
      %v665 = vpop.f32.mrf.mxu0
      %v666 = vadd.f32 0.0, %v665
      %v667 = vpop.f32.mrf.mxu0
      %v668 = vadd.f32 0.0, %v667
      %669 = vmatmul.bf16.gmra.mxu0 %v596
      %v670 = vpop.f32.mrf.mxu0
      %v671 = vadd.f32 0.0, %v670
      %v672 = vpop.f32.mrf.mxu0
      %v673 = vadd.f32 0.0, %v672
      %674 = vmatmul.bf16.gmra.mxu0 %v599
      %v675 = vpop.f32.mrf.mxu0
      %v676 = vadd.f32 0.0, %v675
      %v677 = vpop.f32.mrf.mxu0
      %v678 = vadd.f32 0.0, %v677
      %679 = vmatmul.bf16.gmra.mxu0 %v602
      %v680 = vpop.f32.mrf.mxu0
      %v681 = vadd.f32 0.0, %v680
      %v682 = vpop.f32.mrf.mxu0
      %v683 = vadd.f32 0.0, %v682
      %684 = vmatmul.bf16.gmra.mxu0 %v605
      %v685 = vpop.f32.mrf.mxu0
      %v686 = vadd.f32 0.0, %v685
      %v687 = vpop.f32.mrf.mxu0
      %v688 = vadd.f32 0.0, %v687
      %689 = vmatmul.bf16.gmra.mxu0 %v608
      %v690 = vpop.f32.mrf.mxu0
      %v691 = vadd.f32 0.0, %v690
      %v692 = vpop.f32.mrf.mxu0
      %v693 = vadd.f32 0.0, %v692
      %694 = vmatmul.bf16.gmra.mxu0 %v611
      %v695 = vpop.f32.mrf.mxu0
      %v696 = vadd.f32 0.0, %v695
      %v697 = vpop.f32.mrf.mxu0
      %v698 = vadd.f32 0.0, %v697
      %699 = vmatmul.bf16.gmra.mxu0 %v614
      %v700 = vpop.f32.mrf.mxu0
      %v701 = vadd.f32 0.0, %v700
      %v702 = vpop.f32.mrf.mxu0
      %v703 = vadd.f32 0.0, %v702
      %704 = vmatmul.bf16.gmra.mxu0 %v617
      %v705 = vpop.f32.mrf.mxu0
      %v706 = vadd.f32 0.0, %v705
      %v707 = vpop.f32.mrf.mxu0
      %v708 = vadd.f32 0.0, %v707
      %709 = vmatmul.bf16.gmra.mxu0 %v620
      %v710 = vpop.f32.mrf.mxu0
      %v711 = vadd.f32 0.0, %v710
      %v712 = vpop.f32.mrf.mxu0
      %v713 = vadd.f32 0.0, %v712
      %714 = vmatmul.bf16.gmra.mxu0 %v623
      %v715 = vpop.f32.mrf.mxu0
      %v716 = vadd.f32 0.0, %v715
      %v717 = vpop.f32.mrf.mxu0
      %v718 = vadd.f32 0.0, %v717
      %719 = vmatmul.bf16.gmra.mxu0 %v626
      %v720 = vpop.f32.mrf.mxu0
      %v721 = vadd.f32 0.0, %v720
      %v722 = vpop.f32.mrf.mxu0
      %v723 = vadd.f32 0.0, %v722
      %724 = vmatmul.bf16.gmra.mxu0 %v629
      %v725 = vpop.f32.mrf.mxu0
      %v726 = vadd.f32 0.0, %v725
      %v727 = vpop.f32.mrf.mxu0
      %v728 = vadd.f32 0.0, %v727
      %729 = vmatmul.bf16.gmra.mxu0 %v632
      %v730 = vpop.f32.mrf.mxu0
      %v731 = vadd.f32 0.0, %v730
      %v732 = vpop.f32.mrf.mxu0
      %v733 = vadd.f32 0.0, %v732
      %734 = vmatmul.bf16.gmra.mxu0 %v635
      %v735 = vpop.f32.mrf.mxu0
      %v736 = vadd.f32 0.0, %v735
      %v737 = vpop.f32.mrf.mxu0
      %v738 = vadd.f32 0.0, %v737
      %739 = vdwg.mxu0
      %v740 = vsel %vm582, %v414, 0
      %v742 = vsel %vm582, %v415, 0
      %v744 = vsel %vm582, %v416, 0
      %v746 = vsel %vm582, %v417, 0
      %v748 = vsel %vm582, %v418, 0
      %v750 = vsel %vm582, %v419, 0
      %v752 = vsel %vm582, %v420, 0
      %v754 = vsel %vm582, %v421, 0
      %v756 = vsel %vm582, %v422, 0
      %v758 = vsel %vm582, %v423, 0
      %v760 = vsel %vm582, %v424, 0
      %v762 = vsel %vm582, %v425, 0
      %v764 = vsel %vm582, %v426, 0
      %v766 = vsel %vm582, %v427, 0
      %v768 = vsel %vm582, %v428, 0
      %v770 = vsel %vm582, %v429, 0
      %v772 = vsel %vm582, %v430, 0
      %v774 = vsel %vm582, %v431, 0
      %v777 = vsel %vm637, %v336, 0
      %779 = vmatpush.bf16.msra.mxu0 0
      %780 = vmatpush.bf16.msra.mxu0 0
      %781 = vmatpush.bf16.msra.mxu0 0
      %782 = vmatpush.bf16.msra.mxu0 0
      %783 = vmatpush.bf16.msra.mxu0 0
      %784 = vmatpush.bf16.msra.mxu0 0
      %785 = vmatpush.bf16.msra.mxu0 0
      %786 = vmatpush.bf16.msra.mxu0 %v777
      %787 = vmatmul.bf16.gmra.mxu0 %v740
      %v788 = vpop.f32.mrf.mxu0
      %v789 = vadd.f32 %v651, %v788
      %v790 = vpop.f32.mrf.mxu0
      %v791 = vadd.f32 %v653, %v790
      %792 = vmatmul.bf16.gmra.mxu0 %v742
      %v793 = vpop.f32.mrf.mxu0
      %v794 = vadd.f32 %v656, %v793
      %v795 = vpop.f32.mrf.mxu0
      %v796 = vadd.f32 %v658, %v795
      %797 = vmatmul.bf16.gmra.mxu0 %v744
      %v798 = vpop.f32.mrf.mxu0
      %v799 = vadd.f32 %v661, %v798
      %v800 = vpop.f32.mrf.mxu0
      %v801 = vadd.f32 %v663, %v800
      %802 = vmatmul.bf16.gmra.mxu0 %v746
      %v803 = vpop.f32.mrf.mxu0
      %v804 = vadd.f32 %v666, %v803
      %v805 = vpop.f32.mrf.mxu0
      %v806 = vadd.f32 %v668, %v805
      %807 = vmatmul.bf16.gmra.mxu0 %v748
      %v808 = vpop.f32.mrf.mxu0
      %v809 = vadd.f32 %v671, %v808
      %v810 = vpop.f32.mrf.mxu0
      %v811 = vadd.f32 %v673, %v810
      %812 = vmatmul.bf16.gmra.mxu0 %v750
      %v813 = vpop.f32.mrf.mxu0
      %v814 = vadd.f32 %v676, %v813
      %v815 = vpop.f32.mrf.mxu0
      %v816 = vadd.f32 %v678, %v815
      %817 = vmatmul.bf16.gmra.mxu0 %v752
      %v818 = vpop.f32.mrf.mxu0
      %v819 = vadd.f32 %v681, %v818
      %v820 = vpop.f32.mrf.mxu0
      %v821 = vadd.f32 %v683, %v820
      %822 = vmatmul.bf16.gmra.mxu0 %v754
      %v823 = vpop.f32.mrf.mxu0
      %v824 = vadd.f32 %v686, %v823
      %v825 = vpop.f32.mrf.mxu0
      %v826 = vadd.f32 %v688, %v825
      %827 = vmatmul.bf16.gmra.mxu0 %v756
      %v828 = vpop.f32.mrf.mxu0
      %v829 = vadd.f32 %v691, %v828
      %v830 = vpop.f32.mrf.mxu0
      %v831 = vadd.f32 %v693, %v830
      %832 = vmatmul.bf16.gmra.mxu0 %v758
      %v833 = vpop.f32.mrf.mxu0
      %v834 = vadd.f32 %v696, %v833
      %v835 = vpop.f32.mrf.mxu0
      %v836 = vadd.f32 %v698, %v835
      %837 = vmatmul.bf16.gmra.mxu0 %v760
      %v838 = vpop.f32.mrf.mxu0
      %v839 = vadd.f32 %v701, %v838
      %v840 = vpop.f32.mrf.mxu0
      %v841 = vadd.f32 %v703, %v840
      %842 = vmatmul.bf16.gmra.mxu0 %v762
      %v843 = vpop.f32.mrf.mxu0
      %v844 = vadd.f32 %v706, %v843
      %v845 = vpop.f32.mrf.mxu0
      %v846 = vadd.f32 %v708, %v845
      %847 = vmatmul.bf16.gmra.mxu0 %v764
      %v848 = vpop.f32.mrf.mxu0
      %v849 = vadd.f32 %v711, %v848
      %v850 = vpop.f32.mrf.mxu0
      %v851 = vadd.f32 %v713, %v850
      %852 = vmatmul.bf16.gmra.mxu0 %v766
      %v853 = vpop.f32.mrf.mxu0
      %v854 = vadd.f32 %v716, %v853
      %v855 = vpop.f32.mrf.mxu0
      %v856 = vadd.f32 %v718, %v855
      %857 = vmatmul.bf16.gmra.mxu0 %v768
      %v858 = vpop.f32.mrf.mxu0
      %v859 = vadd.f32 %v721, %v858
      %v860 = vpop.f32.mrf.mxu0
      %v861 = vadd.f32 %v723, %v860
      %862 = vmatmul.bf16.gmra.mxu0 %v770
      %v863 = vpop.f32.mrf.mxu0
      %v864 = vadd.f32 %v726, %v863
      %v865 = vpop.f32.mrf.mxu0
      %v866 = vadd.f32 %v728, %v865
      %867 = vmatmul.bf16.gmra.mxu0 %v772
      %v868 = vpop.f32.mrf.mxu0
      %v869 = vadd.f32 %v731, %v868
      %v870 = vpop.f32.mrf.mxu0
      %v871 = vadd.f32 %v733, %v870
      %872 = vmatmul.bf16.gmra.mxu0 %v774
      %v873 = vpop.f32.mrf.mxu0
      %v874 = vadd.f32 %v736, %v873
      %v875 = vpop.f32.mrf.mxu0
      %v876 = vadd.f32 %v738, %v875
      %877 = vdwg.mxu0
      %v878 = vld [vmem:[%s253] sm:$0xe]
      %s879 = scalar_lea.vmem %s1, 4
      %v880 = vld [vmem:[%s879] sm:$0x3]
      %v882 = vunpack.c.l.b16 %v878
      %v883 = vpack.c.b16 %v378, %v882
      %vm884 = vcmask 1046528
      %v885 = vrot.slane %v883, 1
      %v886 = vrot.slane %v415, 1
      %v887 = vsel %vm884, %v885, %v886
      %v888 = vrot.slane %v416, 1
      %v889 = vsel %vm884, %v886, %v888
      %v890 = vrot.slane %v417, 1
      %v891 = vsel %vm884, %v888, %v890
      %v892 = vrot.slane %v418, 1
      %v893 = vsel %vm884, %v890, %v892
      %v894 = vrot.slane %v419, 1
      %v895 = vsel %vm884, %v892, %v894
      %v896 = vrot.slane %v420, 1
      %v897 = vsel %vm884, %v894, %v896
      %v898 = vrot.slane %v421, 1
      %v899 = vsel %vm884, %v896, %v898
      %v900 = vrot.slane %v422, 1
      %v901 = vsel %vm884, %v898, %v900
      %v902 = vrot.slane %v423, 1
      %v903 = vsel %vm884, %v900, %v902
      %v904 = vrot.slane %v424, 1
      %v905 = vsel %vm884, %v902, %v904
      %v906 = vrot.slane %v425, 1
      %v907 = vsel %vm884, %v904, %v906
      %v908 = vrot.slane %v426, 1
      %v909 = vsel %vm884, %v906, %v908
      %v910 = vrot.slane %v427, 1
      %v911 = vsel %vm884, %v908, %v910
      %v912 = vrot.slane %v428, 1
      %v913 = vsel %vm884, %v910, %v912
      %v914 = vrot.slane %v429, 1
      %v915 = vsel %vm884, %v912, %v914
      %v916 = vrot.slane %v430, 1
      %v917 = vsel %vm884, %v914, %v916
      %v918 = vrot.slane %v431, 1
      %v919 = vsel %vm884, %v916, %v918
      %v920 = vrot.slane %v432, 1
      %v921 = vsel %vm884, %v918, %v920
      %v923 = vsel %vm582, %v887, 0
      %v926 = vsel %vm582, %v889, 0
      %v929 = vsel %vm582, %v891, 0
      %v932 = vsel %vm582, %v893, 0
      %v935 = vsel %vm582, %v895, 0
      %v938 = vsel %vm582, %v897, 0
      %v941 = vsel %vm582, %v899, 0
      %v944 = vsel %vm582, %v901, 0
      %v947 = vsel %vm582, %v903, 0
      %v950 = vsel %vm582, %v905, 0
      %v953 = vsel %vm582, %v907, 0
      %v956 = vsel %vm582, %v909, 0
      %v959 = vsel %vm582, %v911, 0
      %v962 = vsel %vm582, %v913, 0
      %v965 = vsel %vm582, %v915, 0
      %v968 = vsel %vm582, %v917, 0
      %v971 = vsel %vm582, %v919, 0
      %v974 = vsel %vm582, %v921, 0
      %v977 = vsel %vm637, %v880, 0
      %979 = vmatpush.bf16.msra.mxu0 0
      %980 = vmatpush.bf16.msra.mxu0 0
      %981 = vmatpush.bf16.msra.mxu0 0
      %982 = vmatpush.bf16.msra.mxu0 0
      %983 = vmatpush.bf16.msra.mxu0 0
      %984 = vmatpush.bf16.msra.mxu0 0
      %985 = vmatpush.bf16.msra.mxu0 0
      %986 = vmatpush.bf16.msra.mxu0 %v977
      %987 = vmatmul.bf16.gmra.mxu0 %v923
      %v988 = vpop.f32.mrf.mxu0
      %v989 = vadd.f32 0.0, %v988
      %v990 = vpop.f32.mrf.mxu0
      %v991 = vadd.f32 0.0, %v990
      %992 = vmatmul.bf16.gmra.mxu0 %v926
      %v993 = vpop.f32.mrf.mxu0
      %v994 = vadd.f32 0.0, %v993
      %v995 = vpop.f32.mrf.mxu0
      %v996 = vadd.f32 0.0, %v995
      %997 = vmatmul.bf16.gmra.mxu0 %v929
      %v998 = vpop.f32.mrf.mxu0
      %v999 = vadd.f32 0.0, %v998
      %v1000 = vpop.f32.mrf.mxu0
      %v1001 = vadd.f32 0.0, %v1000
      %1002 = vmatmul.bf16.gmra.mxu0 %v932
      %v1003 = vpop.f32.mrf.mxu0
      %v1004 = vadd.f32 0.0, %v1003
      %v1005 = vpop.f32.mrf.mxu0
      %v1006 = vadd.f32 0.0, %v1005
      %1007 = vmatmul.bf16.gmra.mxu0 %v935
      %v1008 = vpop.f32.mrf.mxu0
      %v1009 = vadd.f32 0.0, %v1008
      %v1010 = vpop.f32.mrf.mxu0
      %v1011 = vadd.f32 0.0, %v1010
      %1012 = vmatmul.bf16.gmra.mxu0 %v938
      %v1013 = vpop.f32.mrf.mxu0
      %v1014 = vadd.f32 0.0, %v1013
      %v1015 = vpop.f32.mrf.mxu0
      %v1016 = vadd.f32 0.0, %v1015
      %1017 = vmatmul.bf16.gmra.mxu0 %v941
      %v1018 = vpop.f32.mrf.mxu0
      %v1019 = vadd.f32 0.0, %v1018
      %v1020 = vpop.f32.mrf.mxu0
      %v1021 = vadd.f32 0.0, %v1020
      %1022 = vmatmul.bf16.gmra.mxu0 %v944
      %v1023 = vpop.f32.mrf.mxu0
      %v1024 = vadd.f32 0.0, %v1023
      %v1025 = vpop.f32.mrf.mxu0
      %v1026 = vadd.f32 0.0, %v1025
      %1027 = vmatmul.bf16.gmra.mxu0 %v947
      %v1028 = vpop.f32.mrf.mxu0
      %v1029 = vadd.f32 0.0, %v1028
      %v1030 = vpop.f32.mrf.mxu0
      %v1031 = vadd.f32 0.0, %v1030
      %1032 = vmatmul.bf16.gmra.mxu0 %v950
      %v1033 = vpop.f32.mrf.mxu0
      %v1034 = vadd.f32 0.0, %v1033
      %v1035 = vpop.f32.mrf.mxu0
      %v1036 = vadd.f32 0.0, %v1035
      %1037 = vmatmul.bf16.gmra.mxu0 %v953
      %v1038 = vpop.f32.mrf.mxu0
      %v1039 = vadd.f32 0.0, %v1038
      %v1040 = vpop.f32.mrf.mxu0
      %v1041 = vadd.f32 0.0, %v1040
      %1042 = vmatmul.bf16.gmra.mxu0 %v956
      %v1043 = vpop.f32.mrf.mxu0
      %v1044 = vadd.f32 0.0, %v1043
      %v1045 = vpop.f32.mrf.mxu0
      %v1046 = vadd.f32 0.0, %v1045
      %1047 = vmatmul.bf16.gmra.mxu0 %v959
      %v1048 = vpop.f32.mrf.mxu0
      %v1049 = vadd.f32 0.0, %v1048
      %v1050 = vpop.f32.mrf.mxu0
      %v1051 = vadd.f32 0.0, %v1050
      %1052 = vmatmul.bf16.gmra.mxu0 %v962
      %v1053 = vpop.f32.mrf.mxu0
      %v1054 = vadd.f32 0.0, %v1053
      %v1055 = vpop.f32.mrf.mxu0
      %v1056 = vadd.f32 0.0, %v1055
      %1057 = vmatmul.bf16.gmra.mxu0 %v965
      %v1058 = vpop.f32.mrf.mxu0
      %v1059 = vadd.f32 0.0, %v1058
      %v1060 = vpop.f32.mrf.mxu0
      %v1061 = vadd.f32 0.0, %v1060
      %1062 = vmatmul.bf16.gmra.mxu0 %v968
      %v1063 = vpop.f32.mrf.mxu0
      %v1064 = vadd.f32 0.0, %v1063
      %v1065 = vpop.f32.mrf.mxu0
      %v1066 = vadd.f32 0.0, %v1065
      %1067 = vmatmul.bf16.gmra.mxu0 %v971
      %v1068 = vpop.f32.mrf.mxu0
      %v1069 = vadd.f32 0.0, %v1068
      %v1070 = vpop.f32.mrf.mxu0
      %v1071 = vadd.f32 0.0, %v1070
      %1072 = vmatmul.bf16.gmra.mxu0 %v974
      %v1073 = vpop.f32.mrf.mxu0
      %v1074 = vadd.f32 0.0, %v1073
      %v1075 = vpop.f32.mrf.mxu0
      %v1076 = vadd.f32 0.0, %v1075
      %1077 = vdwg.mxu0
      %v1078 = vadd.f32 %v789, %v989
      %v1079 = vadd.f32 %v791, %v991
      %v1080 = vadd.f32 %v794, %v994
      %v1081 = vadd.f32 %v796, %v996
      %v1082 = vadd.f32 %v799, %v999
      %v1083 = vadd.f32 %v801, %v1001
      %v1084 = vadd.f32 %v804, %v1004
      %v1085 = vadd.f32 %v806, %v1006
      %v1086 = vadd.f32 %v809, %v1009
      %v1087 = vadd.f32 %v811, %v1011
      %v1088 = vadd.f32 %v814, %v1014
      %v1089 = vadd.f32 %v816, %v1016
      %v1090 = vadd.f32 %v819, %v1019
      %v1091 = vadd.f32 %v821, %v1021
      %v1092 = vadd.f32 %v824, %v1024
      %v1093 = vadd.f32 %v826, %v1026
      %v1094 = vadd.f32 %v829, %v1029
      %v1095 = vadd.f32 %v831, %v1031
      %v1096 = vadd.f32 %v834, %v1034
      %v1097 = vadd.f32 %v836, %v1036
      %v1098 = vadd.f32 %v839, %v1039
      %v1099 = vadd.f32 %v841, %v1041
      %v1100 = vadd.f32 %v844, %v1044
      %v1101 = vadd.f32 %v846, %v1046
      %v1102 = vadd.f32 %v849, %v1049
      %v1103 = vadd.f32 %v851, %v1051
      %v1104 = vadd.f32 %v854, %v1054
      %v1105 = vadd.f32 %v856, %v1056
      %v1106 = vadd.f32 %v859, %v1059
      %v1107 = vadd.f32 %v861, %v1061
      %v1108 = vadd.f32 %v864, %v1064
      %v1109 = vadd.f32 %v866, %v1066
      %v1110 = vadd.f32 %v869, %v1069
      %v1111 = vadd.f32 %v871, %v1071
      %v1112 = vadd.f32 %v874, %v1074
      %v1113 = vadd.f32 %v876, %v1076
      %v1114 = vld [vmem:[%s253 + $0x8] sm:$0xe]
      %v1115 = vld [vmem:[%s253 + $0xc] sm:$0xf]
      %v1116 = vld [vmem:[%s253 + $0x10] sm:$0xf]
      %v1117 = vld [vmem:[%s253 + $0x14] sm:$0xf]
      %v1118 = vld [vmem:[%s253 + $0x18] sm:$0xf]
      %v1119 = vld [vmem:[%s253 + $0x1c] sm:$0xf]
      %v1120 = vld [vmem:[%s253 + $0x20] sm:$0xf]
      %v1121 = vld [vmem:[%s253 + $0x24] sm:$0xf]
      %v1122 = vld [vmem:[%s253 + $0x28] sm:$0xf]
      %v1123 = vld [vmem:[%s253 + $0x2c] sm:$0xf]
      %v1124 = vld [vmem:[%s253 + $0x30] sm:$0xf]
      %v1125 = vld [vmem:[%s253 + $0x34] sm:$0xf]
      %v1126 = vld [vmem:[%s253 + $0x38] sm:$0xf]
      %v1127 = vld [vmem:[%s253 + $0x3c] sm:$0xf]
      %v1128 = vld [vmem:[%s253 + $0x40] sm:$0xf]
      %v1129 = vld [vmem:[%s253 + $0x44] sm:$0xf]
      %v1130 = vld [vmem:[%s253 + $0x48] sm:$0xf]
      %v1131 = vld [vmem:[%s253 + $0x4c] sm:$0xf]
      %v1132 = vld [vmem:[%s253 + $0x50] sm:$0xf]
      %v1133 = vld [vmem:[%s253 + $0x54] sm:$0xf]
      %v1134 = vld [vmem:[%s253 + $0x58] sm:$0xf]
      %v1135 = vld [vmem:[%s253 + $0x5c] sm:$0xf]
      %v1136 = vld [vmem:[%s253 + $0x60] sm:$0xf]
      %v1137 = vld [vmem:[%s253 + $0x64] sm:$0xf]
      %v1138 = vld [vmem:[%s253 + $0x68] sm:$0xf]
      %v1139 = vld [vmem:[%s253 + $0x6c] sm:$0xf]
      %v1140 = vld [vmem:[%s253 + $0x70] sm:$0xf]
      %v1141 = vld [vmem:[%s253 + $0x74] sm:$0xf]
      %v1142 = vld [vmem:[%s253 + $0x78] sm:$0xf]
      %v1143 = vld [vmem:[%s253 + $0x7c] sm:$0xf]
      %v1144 = vld [vmem:[%s253 + $0x80] sm:$0xf]
      %v1145 = vld [vmem:[%s253 + $0x84] sm:$0xf]
      %v1146 = vld [vmem:[%s253 + $0x88] sm:$0xf]
      %v1147 = vld [vmem:[%s253 + $0x8c] sm:$0xf]
      %v1148 = vld [vmem:[%s253 + $0x90] sm:$0xf]
      %v1149 = vld [vmem:[%s253 + $0x94] sm:$0xf]
      %v1150 = vld [vmem:[%s253 + $0x98] sm:$0x1]
      %s1151 = scalar_lea.vmem %s1, 6
      %v1152 = vld [vmem:[%s1151] sm:$0x3]
      %v1190 = vunpack.c.l.b16 %v1114
      %v1191 = vunpack.c.l.b16 %v1115
      %v1192 = vunpack.c.l.b16 %v1116
      %v1193 = vunpack.c.l.b16 %v1117
      %v1194 = vunpack.c.l.b16 %v1118
      %v1195 = vunpack.c.l.b16 %v1119
      %v1196 = vunpack.c.l.b16 %v1120
      %v1197 = vunpack.c.l.b16 %v1121
      %v1198 = vunpack.c.l.b16 %v1122
      %v1199 = vunpack.c.l.b16 %v1123
      %v1200 = vunpack.c.l.b16 %v1124
      %v1201 = vunpack.c.l.b16 %v1125
      %v1202 = vunpack.c.l.b16 %v1126
      %v1203 = vunpack.c.l.b16 %v1127
      %v1204 = vunpack.c.l.b16 %v1128
      %v1205 = vunpack.c.l.b16 %v1129
      %v1206 = vunpack.c.l.b16 %v1130
      %v1207 = vunpack.c.l.b16 %v1131
      %v1208 = vunpack.c.l.b16 %v1132
      %v1209 = vunpack.c.l.b16 %v1133
      %v1210 = vunpack.c.l.b16 %v1134
      %v1211 = vunpack.c.l.b16 %v1135
      %v1212 = vunpack.c.l.b16 %v1136
      %v1213 = vunpack.c.l.b16 %v1137
      %v1214 = vunpack.c.l.b16 %v1138
      %v1215 = vunpack.c.l.b16 %v1139
      %v1216 = vunpack.c.l.b16 %v1140
      %v1217 = vunpack.c.l.b16 %v1141
      %v1218 = vunpack.c.l.b16 %v1142
      %v1219 = vunpack.c.l.b16 %v1143
      %v1220 = vunpack.c.l.b16 %v1144
      %v1221 = vunpack.c.l.b16 %v1145
      %v1222 = vunpack.c.l.b16 %v1146
      %v1223 = vunpack.c.l.b16 %v1147
      %v1224 = vunpack.c.l.b16 %v1148
      %v1225 = vunpack.c.l.b16 %v1149
      %v1226 = vunpack.c.l.b16 %v1150
      %v1227 = vpack.c.b16 %v1191, %v1190
      %v1228 = vpack.c.b16 %v1193, %v1192
      %v1229 = vpack.c.b16 %v1195, %v1194
      %v1230 = vpack.c.b16 %v1197, %v1196
      %v1231 = vpack.c.b16 %v1199, %v1198
      %v1232 = vpack.c.b16 %v1201, %v1200
      %v1233 = vpack.c.b16 %v1203, %v1202
      %v1234 = vpack.c.b16 %v1205, %v1204
      %v1235 = vpack.c.b16 %v1207, %v1206
      %v1236 = vpack.c.b16 %v1209, %v1208
      %v1237 = vpack.c.b16 %v1211, %v1210
      %v1238 = vpack.c.b16 %v1213, %v1212
      %v1239 = vpack.c.b16 %v1215, %v1214
      %v1240 = vpack.c.b16 %v1217, %v1216
      %v1241 = vpack.c.b16 %v1219, %v1218
      %v1242 = vpack.c.b16 %v1221, %v1220
      %v1243 = vpack.c.b16 %v1223, %v1222
      %v1244 = vpack.c.b16 %v1225, %v1224
      %v1245 = vpack.c.b16 %v1226, %v1226
      %v1246 = vrot.slane %v1227, 1
      %v1247 = vrot.slane %v1228, 1
      %v1248 = vsel %vm884, %v1246, %v1247
      %v1249 = vrot.slane %v1229, 1
      %v1250 = vsel %vm884, %v1247, %v1249
      %v1251 = vrot.slane %v1230, 1
      %v1252 = vsel %vm884, %v1249, %v1251
      %v1253 = vrot.slane %v1231, 1
      %v1254 = vsel %vm884, %v1251, %v1253
      %v1255 = vrot.slane %v1232, 1
      %v1256 = vsel %vm884, %v1253, %v1255
      %v1257 = vrot.slane %v1233, 1
      %v1258 = vsel %vm884, %v1255, %v1257
      %v1259 = vrot.slane %v1234, 1
      %v1260 = vsel %vm884, %v1257, %v1259
      %v1261 = vrot.slane %v1235, 1
      %v1262 = vsel %vm884, %v1259, %v1261
      %v1263 = vrot.slane %v1236, 1
      %v1264 = vsel %vm884, %v1261, %v1263
      %v1265 = vrot.slane %v1237, 1
      %v1266 = vsel %vm884, %v1263, %v1265
      %v1267 = vrot.slane %v1238, 1
      %v1268 = vsel %vm884, %v1265, %v1267
      %v1269 = vrot.slane %v1239, 1
      %v1270 = vsel %vm884, %v1267, %v1269
      %v1271 = vrot.slane %v1240, 1
      %v1272 = vsel %vm884, %v1269, %v1271
      %v1273 = vrot.slane %v1241, 1
      %v1274 = vsel %vm884, %v1271, %v1273
      %v1275 = vrot.slane %v1242, 1
      %v1276 = vsel %vm884, %v1273, %v1275
      %v1277 = vrot.slane %v1243, 1
      %v1278 = vsel %vm884, %v1275, %v1277
      %v1279 = vrot.slane %v1244, 1
      %v1280 = vsel %vm884, %v1277, %v1279
      %v1281 = vrot.slane %v1245, 1
      %v1282 = vsel %vm884, %v1279, %v1281
      %v1284 = vsel %vm582, %v1248, 0
      %v1287 = vsel %vm582, %v1250, 0
      %v1290 = vsel %vm582, %v1252, 0
      %v1293 = vsel %vm582, %v1254, 0
      %v1296 = vsel %vm582, %v1256, 0
      %v1299 = vsel %vm582, %v1258, 0
      %v1302 = vsel %vm582, %v1260, 0
      %v1305 = vsel %vm582, %v1262, 0
      %v1308 = vsel %vm582, %v1264, 0
      %v1311 = vsel %vm582, %v1266, 0
      %v1314 = vsel %vm582, %v1268, 0
      %v1317 = vsel %vm582, %v1270, 0
      %v1320 = vsel %vm582, %v1272, 0
      %v1323 = vsel %vm582, %v1274, 0
      %v1326 = vsel %vm582, %v1276, 0
      %v1329 = vsel %vm582, %v1278, 0
      %v1332 = vsel %vm582, %v1280, 0
      %v1335 = vsel %vm582, %v1282, 0
      %v1338 = vsel %vm637, %v1152, 0
      %1340 = vmatpush.bf16.msra.mxu0 0
      %1341 = vmatpush.bf16.msra.mxu0 0
      %1342 = vmatpush.bf16.msra.mxu0 0
      %1343 = vmatpush.bf16.msra.mxu0 0
      %1344 = vmatpush.bf16.msra.mxu0 0
      %1345 = vmatpush.bf16.msra.mxu0 0
      %1346 = vmatpush.bf16.msra.mxu0 0
      %1347 = vmatpush.bf16.msra.mxu0 %v1338
      %1348 = vmatmul.bf16.gmra.mxu0 %v1284
      %v1349 = vpop.f32.mrf.mxu0
      %v1350 = vadd.f32 0.0, %v1349
      %v1351 = vpop.f32.mrf.mxu0
      %v1352 = vadd.f32 0.0, %v1351
      %1353 = vmatmul.bf16.gmra.mxu0 %v1287
      %v1354 = vpop.f32.mrf.mxu0
      %v1355 = vadd.f32 0.0, %v1354
      %v1356 = vpop.f32.mrf.mxu0
      %v1357 = vadd.f32 0.0, %v1356
      %1358 = vmatmul.bf16.gmra.mxu0 %v1290
      %v1359 = vpop.f32.mrf.mxu0
      %v1360 = vadd.f32 0.0, %v1359
      %v1361 = vpop.f32.mrf.mxu0
      %v1362 = vadd.f32 0.0, %v1361
      %1363 = vmatmul.bf16.gmra.mxu0 %v1293
      %v1364 = vpop.f32.mrf.mxu0
      %v1365 = vadd.f32 0.0, %v1364
      %v1366 = vpop.f32.mrf.mxu0
      %v1367 = vadd.f32 0.0, %v1366
      %1368 = vmatmul.bf16.gmra.mxu0 %v1296
      %v1369 = vpop.f32.mrf.mxu0
      %v1370 = vadd.f32 0.0, %v1369
      %v1371 = vpop.f32.mrf.mxu0
      %v1372 = vadd.f32 0.0, %v1371
      %1373 = vmatmul.bf16.gmra.mxu0 %v1299
      %v1374 = vpop.f32.mrf.mxu0
      %v1375 = vadd.f32 0.0, %v1374
      %v1376 = vpop.f32.mrf.mxu0
      %v1377 = vadd.f32 0.0, %v1376
      %1378 = vmatmul.bf16.gmra.mxu0 %v1302
      %v1379 = vpop.f32.mrf.mxu0
      %v1380 = vadd.f32 0.0, %v1379
      %v1381 = vpop.f32.mrf.mxu0
      %v1382 = vadd.f32 0.0, %v1381
      %1383 = vmatmul.bf16.gmra.mxu0 %v1305
      %v1384 = vpop.f32.mrf.mxu0
      %v1385 = vadd.f32 0.0, %v1384
      %v1386 = vpop.f32.mrf.mxu0
      %v1387 = vadd.f32 0.0, %v1386
      %1388 = vmatmul.bf16.gmra.mxu0 %v1308
      %v1389 = vpop.f32.mrf.mxu0
      %v1390 = vadd.f32 0.0, %v1389
      %v1391 = vpop.f32.mrf.mxu0
      %v1392 = vadd.f32 0.0, %v1391
      %1393 = vmatmul.bf16.gmra.mxu0 %v1311
      %v1394 = vpop.f32.mrf.mxu0
      %v1395 = vadd.f32 0.0, %v1394
      %v1396 = vpop.f32.mrf.mxu0
      %v1397 = vadd.f32 0.0, %v1396
      %1398 = vmatmul.bf16.gmra.mxu0 %v1314
      %v1399 = vpop.f32.mrf.mxu0
      %v1400 = vadd.f32 0.0, %v1399
      %v1401 = vpop.f32.mrf.mxu0
      %v1402 = vadd.f32 0.0, %v1401
      %1403 = vmatmul.bf16.gmra.mxu0 %v1317
      %v1404 = vpop.f32.mrf.mxu0
      %v1405 = vadd.f32 0.0, %v1404
      %v1406 = vpop.f32.mrf.mxu0
      %v1407 = vadd.f32 0.0, %v1406
      %1408 = vmatmul.bf16.gmra.mxu0 %v1320
      %v1409 = vpop.f32.mrf.mxu0
      %v1410 = vadd.f32 0.0, %v1409
      %v1411 = vpop.f32.mrf.mxu0
      %v1412 = vadd.f32 0.0, %v1411
      %1413 = vmatmul.bf16.gmra.mxu0 %v1323
      %v1414 = vpop.f32.mrf.mxu0
      %v1415 = vadd.f32 0.0, %v1414
      %v1416 = vpop.f32.mrf.mxu0
      %v1417 = vadd.f32 0.0, %v1416
      %1418 = vmatmul.bf16.gmra.mxu0 %v1326
      %v1419 = vpop.f32.mrf.mxu0
      %v1420 = vadd.f32 0.0, %v1419
      %v1421 = vpop.f32.mrf.mxu0
      %v1422 = vadd.f32 0.0, %v1421
      %1423 = vmatmul.bf16.gmra.mxu0 %v1329
      %v1424 = vpop.f32.mrf.mxu0
      %v1425 = vadd.f32 0.0, %v1424
      %v1426 = vpop.f32.mrf.mxu0
      %v1427 = vadd.f32 0.0, %v1426
      %1428 = vmatmul.bf16.gmra.mxu0 %v1332
      %v1429 = vpop.f32.mrf.mxu0
      %v1430 = vadd.f32 0.0, %v1429
      %v1431 = vpop.f32.mrf.mxu0
      %v1432 = vadd.f32 0.0, %v1431
      %1433 = vmatmul.bf16.gmra.mxu0 %v1335
      %v1434 = vpop.f32.mrf.mxu0
      %v1435 = vadd.f32 0.0, %v1434
      %v1436 = vpop.f32.mrf.mxu0
      %v1437 = vadd.f32 0.0, %v1436
      %1438 = vdwg.mxu0
      %v1439 = vadd.f32 %v1078, %v1350
      %v1440 = vadd.f32 %v1079, %v1352
      %v1441 = vadd.f32 %v1080, %v1355
      %v1442 = vadd.f32 %v1081, %v1357
      %v1443 = vadd.f32 %v1082, %v1360
      %v1444 = vadd.f32 %v1083, %v1362
      %v1445 = vadd.f32 %v1084, %v1365
      %v1446 = vadd.f32 %v1085, %v1367
      %v1447 = vadd.f32 %v1086, %v1370
      %v1448 = vadd.f32 %v1087, %v1372
      %v1449 = vadd.f32 %v1088, %v1375
      %v1450 = vadd.f32 %v1089, %v1377
      %v1451 = vadd.f32 %v1090, %v1380
      %v1452 = vadd.f32 %v1091, %v1382
      %v1453 = vadd.f32 %v1092, %v1385
      %v1454 = vadd.f32 %v1093, %v1387
      %v1455 = vadd.f32 %v1094, %v1390
      %v1456 = vadd.f32 %v1095, %v1392
      %v1457 = vadd.f32 %v1096, %v1395
      %v1458 = vadd.f32 %v1097, %v1397
      %v1459 = vadd.f32 %v1098, %v1400
      %v1460 = vadd.f32 %v1099, %v1402
      %v1461 = vadd.f32 %v1100, %v1405
      %v1462 = vadd.f32 %v1101, %v1407
      %v1463 = vadd.f32 %v1102, %v1410
      %v1464 = vadd.f32 %v1103, %v1412
      %v1465 = vadd.f32 %v1104, %v1415
      %v1466 = vadd.f32 %v1105, %v1417
      %v1467 = vadd.f32 %v1106, %v1420
      %v1468 = vadd.f32 %v1107, %v1422
      %v1469 = vadd.f32 %v1108, %v1425
      %v1470 = vadd.f32 %v1109, %v1427
      %v1471 = vadd.f32 %v1110, %v1430
      %v1472 = vadd.f32 %v1111, %v1432
      %v1473 = vadd.f32 %v1112, %v1435
      %v1474 = vadd.f32 %v1113, %v1437
      %v1475 = vld [vmem:[%s253 + $0x98] sm:$0x3]
      %s1476 = scalar_lea.vmem %s1, 8
      %v1477 = vld [vmem:[%s1476] sm:$0x3]
      %v1479 = vunpack.c.l.b16 %v1475
      %v1480 = vpack.c.b16 %v1479, %v1479
      %vm1481 = vsmask.f32 6400
      %v1483 = vshrl.u32 %v1227, 16
      %v1485 = vrot.slane %v1483, 1
      %v1486 = vshll.u32 %v1227, 16
      %v1488 = vrot.slane %v1486, 2
      %v1489 = vor.u32 %v1485, %v1488
      %v1491 = vshrl.u32 %v1228, 16
      %v1493 = vrot.slane %v1491, 1
      %v1494 = vshll.u32 %v1228, 16
      %v1496 = vrot.slane %v1494, 2
      %v1497 = vor.u32 %v1493, %v1496
      %v1498 = vsel %vm1481, %v1489, %v1497
      %v1500 = vshrl.u32 %v1229, 16
      %v1502 = vrot.slane %v1500, 1
      %v1503 = vshll.u32 %v1229, 16
      %v1505 = vrot.slane %v1503, 2
      %v1506 = vor.u32 %v1502, %v1505
      %v1507 = vsel %vm1481, %v1497, %v1506
      %v1509 = vshrl.u32 %v1230, 16
      %v1511 = vrot.slane %v1509, 1
      %v1512 = vshll.u32 %v1230, 16
      %v1514 = vrot.slane %v1512, 2
      %v1515 = vor.u32 %v1511, %v1514
      %v1516 = vsel %vm1481, %v1506, %v1515
      %v1518 = vshrl.u32 %v1231, 16
      %v1520 = vrot.slane %v1518, 1
      %v1521 = vshll.u32 %v1231, 16
      %v1523 = vrot.slane %v1521, 2
      %v1524 = vor.u32 %v1520, %v1523
      %v1525 = vsel %vm1481, %v1515, %v1524
      %v1527 = vshrl.u32 %v1232, 16
      %v1529 = vrot.slane %v1527, 1
      %v1530 = vshll.u32 %v1232, 16
      %v1532 = vrot.slane %v1530, 2
      %v1533 = vor.u32 %v1529, %v1532
      %v1534 = vsel %vm1481, %v1524, %v1533
      %v1536 = vshrl.u32 %v1233, 16
      %v1538 = vrot.slane %v1536, 1
      %v1539 = vshll.u32 %v1233, 16
      %v1541 = vrot.slane %v1539, 2
      %v1542 = vor.u32 %v1538, %v1541
      %v1543 = vsel %vm1481, %v1533, %v1542
      %v1545 = vshrl.u32 %v1234, 16
      %v1547 = vrot.slane %v1545, 1
      %v1548 = vshll.u32 %v1234, 16
      %v1550 = vrot.slane %v1548, 2
      %v1551 = vor.u32 %v1547, %v1550
      %v1552 = vsel %vm1481, %v1542, %v1551
      %v1554 = vshrl.u32 %v1235, 16
      %v1556 = vrot.slane %v1554, 1
      %v1557 = vshll.u32 %v1235, 16
      %v1559 = vrot.slane %v1557, 2
      %v1560 = vor.u32 %v1556, %v1559
      %v1561 = vsel %vm1481, %v1551, %v1560
      %v1563 = vshrl.u32 %v1236, 16
      %v1565 = vrot.slane %v1563, 1
      %v1566 = vshll.u32 %v1236, 16
      %v1568 = vrot.slane %v1566, 2
      %v1569 = vor.u32 %v1565, %v1568
      %v1570 = vsel %vm1481, %v1560, %v1569
      %v1572 = vshrl.u32 %v1237, 16
      %v1574 = vrot.slane %v1572, 1
      %v1575 = vshll.u32 %v1237, 16
      %v1577 = vrot.slane %v1575, 2
      %v1578 = vor.u32 %v1574, %v1577
      %v1579 = vsel %vm1481, %v1569, %v1578
      %v1581 = vshrl.u32 %v1238, 16
      %v1583 = vrot.slane %v1581, 1
      %v1584 = vshll.u32 %v1238, 16
      %v1586 = vrot.slane %v1584, 2
      %v1587 = vor.u32 %v1583, %v1586
      %v1588 = vsel %vm1481, %v1578, %v1587
      %v1590 = vshrl.u32 %v1239, 16
      %v1592 = vrot.slane %v1590, 1
      %v1593 = vshll.u32 %v1239, 16
      %v1595 = vrot.slane %v1593, 2
      %v1596 = vor.u32 %v1592, %v1595
      %v1597 = vsel %vm1481, %v1587, %v1596
      %v1599 = vshrl.u32 %v1240, 16
      %v1601 = vrot.slane %v1599, 1
      %v1602 = vshll.u32 %v1240, 16
      %v1604 = vrot.slane %v1602, 2
      %v1605 = vor.u32 %v1601, %v1604
      %v1606 = vsel %vm1481, %v1596, %v1605
      %v1608 = vshrl.u32 %v1241, 16
      %v1610 = vrot.slane %v1608, 1
      %v1611 = vshll.u32 %v1241, 16
      %v1613 = vrot.slane %v1611, 2
      %v1614 = vor.u32 %v1610, %v1613
      %v1615 = vsel %vm1481, %v1605, %v1614
      %v1617 = vshrl.u32 %v1242, 16
      %v1619 = vrot.slane %v1617, 1
      %v1620 = vshll.u32 %v1242, 16
      %v1622 = vrot.slane %v1620, 2
      %v1623 = vor.u32 %v1619, %v1622
      %v1624 = vsel %vm1481, %v1614, %v1623
      %v1626 = vshrl.u32 %v1243, 16
      %v1628 = vrot.slane %v1626, 1
      %v1629 = vshll.u32 %v1243, 16
      %v1631 = vrot.slane %v1629, 2
      %v1632 = vor.u32 %v1628, %v1631
      %v1633 = vsel %vm1481, %v1623, %v1632
      %v1635 = vshrl.u32 %v1244, 16
      %v1637 = vrot.slane %v1635, 1
      %v1638 = vshll.u32 %v1244, 16
      %v1640 = vrot.slane %v1638, 2
      %v1641 = vor.u32 %v1637, %v1640
      %v1642 = vsel %vm1481, %v1632, %v1641
      %v1644 = vshrl.u32 %v1480, 16
      %v1646 = vrot.slane %v1644, 1
      %v1647 = vshll.u32 %v1480, 16
      %v1649 = vrot.slane %v1647, 2
      %v1650 = vor.u32 %v1646, %v1649
      %v1651 = vsel %vm1481, %v1641, %v1650
      %v1653 = vsel %vm582, %v1498, 0
      %v1656 = vsel %vm582, %v1507, 0
      %v1659 = vsel %vm582, %v1516, 0
      %v1662 = vsel %vm582, %v1525, 0
      %v1665 = vsel %vm582, %v1534, 0
      %v1668 = vsel %vm582, %v1543, 0
      %v1671 = vsel %vm582, %v1552, 0
      %v1674 = vsel %vm582, %v1561, 0
      %v1677 = vsel %vm582, %v1570, 0
      %v1680 = vsel %vm582, %v1579, 0
      %v1683 = vsel %vm582, %v1588, 0
      %v1686 = vsel %vm582, %v1597, 0
      %v1689 = vsel %vm582, %v1606, 0
      %v1692 = vsel %vm582, %v1615, 0
      %v1695 = vsel %vm582, %v1624, 0
      %v1698 = vsel %vm582, %v1633, 0
      %v1701 = vsel %vm582, %v1642, 0
      %v1704 = vsel %vm582, %v1651, 0
      %v1707 = vsel %vm637, %v1477, 0
      %1709 = vmatpush.bf16.msra.mxu0 0
      %1710 = vmatpush.bf16.msra.mxu0 0
      %1711 = vmatpush.bf16.msra.mxu0 0
      %1712 = vmatpush.bf16.msra.mxu0 0
      %1713 = vmatpush.bf16.msra.mxu0 0
      %1714 = vmatpush.bf16.msra.mxu0 0
      %1715 = vmatpush.bf16.msra.mxu0 0
      %1716 = vmatpush.bf16.msra.mxu0 %v1707
      %1717 = vmatmul.bf16.gmra.mxu0 %v1653
      %v1718 = vpop.f32.mrf.mxu0
      %v1719 = vadd.f32 0.0, %v1718
      %v1720 = vpop.f32.mrf.mxu0
      %v1721 = vadd.f32 0.0, %v1720
      %1722 = vmatmul.bf16.gmra.mxu0 %v1656
      %v1723 = vpop.f32.mrf.mxu0
      %v1724 = vadd.f32 0.0, %v1723
      %v1725 = vpop.f32.mrf.mxu0
      %v1726 = vadd.f32 0.0, %v1725
      %1727 = vmatmul.bf16.gmra.mxu0 %v1659
      %v1728 = vpop.f32.mrf.mxu0
      %v1729 = vadd.f32 0.0, %v1728
      %v1730 = vpop.f32.mrf.mxu0
      %v1731 = vadd.f32 0.0, %v1730
      %1732 = vmatmul.bf16.gmra.mxu0 %v1662
      %v1733 = vpop.f32.mrf.mxu0
      %v1734 = vadd.f32 0.0, %v1733
      %v1735 = vpop.f32.mrf.mxu0
      %v1736 = vadd.f32 0.0, %v1735
      %1737 = vmatmul.bf16.gmra.mxu0 %v1665
      %v1738 = vpop.f32.mrf.mxu0
      %v1739 = vadd.f32 0.0, %v1738
      %v1740 = vpop.f32.mrf.mxu0
      %v1741 = vadd.f32 0.0, %v1740
      %1742 = vmatmul.bf16.gmra.mxu0 %v1668
      %v1743 = vpop.f32.mrf.mxu0
      %v1744 = vadd.f32 0.0, %v1743
      %v1745 = vpop.f32.mrf.mxu0
      %v1746 = vadd.f32 0.0, %v1745
      %1747 = vmatmul.bf16.gmra.mxu0 %v1671
      %v1748 = vpop.f32.mrf.mxu0
      %v1749 = vadd.f32 0.0, %v1748
      %v1750 = vpop.f32.mrf.mxu0
      %v1751 = vadd.f32 0.0, %v1750
      %1752 = vmatmul.bf16.gmra.mxu0 %v1674
      %v1753 = vpop.f32.mrf.mxu0
      %v1754 = vadd.f32 0.0, %v1753
      %v1755 = vpop.f32.mrf.mxu0
      %v1756 = vadd.f32 0.0, %v1755
      %1757 = vmatmul.bf16.gmra.mxu0 %v1677
      %v1758 = vpop.f32.mrf.mxu0
      %v1759 = vadd.f32 0.0, %v1758
      %v1760 = vpop.f32.mrf.mxu0
      %v1761 = vadd.f32 0.0, %v1760
      %1762 = vmatmul.bf16.gmra.mxu0 %v1680
      %v1763 = vpop.f32.mrf.mxu0
      %v1764 = vadd.f32 0.0, %v1763
      %v1765 = vpop.f32.mrf.mxu0
      %v1766 = vadd.f32 0.0, %v1765
      %1767 = vmatmul.bf16.gmra.mxu0 %v1683
      %v1768 = vpop.f32.mrf.mxu0
      %v1769 = vadd.f32 0.0, %v1768
      %v1770 = vpop.f32.mrf.mxu0
      %v1771 = vadd.f32 0.0, %v1770
      %1772 = vmatmul.bf16.gmra.mxu0 %v1686
      %v1773 = vpop.f32.mrf.mxu0
      %v1774 = vadd.f32 0.0, %v1773
      %v1775 = vpop.f32.mrf.mxu0
      %v1776 = vadd.f32 0.0, %v1775
      %1777 = vmatmul.bf16.gmra.mxu0 %v1689
      %v1778 = vpop.f32.mrf.mxu0
      %v1779 = vadd.f32 0.0, %v1778
      %v1780 = vpop.f32.mrf.mxu0
      %v1781 = vadd.f32 0.0, %v1780
      %1782 = vmatmul.bf16.gmra.mxu0 %v1692
      %v1783 = vpop.f32.mrf.mxu0
      %v1784 = vadd.f32 0.0, %v1783
      %v1785 = vpop.f32.mrf.mxu0
      %v1786 = vadd.f32 0.0, %v1785
      %1787 = vmatmul.bf16.gmra.mxu0 %v1695
      %v1788 = vpop.f32.mrf.mxu0
      %v1789 = vadd.f32 0.0, %v1788
      %v1790 = vpop.f32.mrf.mxu0
      %v1791 = vadd.f32 0.0, %v1790
      %1792 = vmatmul.bf16.gmra.mxu0 %v1698
      %v1793 = vpop.f32.mrf.mxu0
      %v1794 = vadd.f32 0.0, %v1793
      %v1795 = vpop.f32.mrf.mxu0
      %v1796 = vadd.f32 0.0, %v1795
      %1797 = vmatmul.bf16.gmra.mxu0 %v1701
      %v1798 = vpop.f32.mrf.mxu0
      %v1799 = vadd.f32 0.0, %v1798
      %v1800 = vpop.f32.mrf.mxu0
      %v1801 = vadd.f32 0.0, %v1800
      %1802 = vmatmul.bf16.gmra.mxu0 %v1704
      %v1803 = vpop.f32.mrf.mxu0
      %v1804 = vadd.f32 0.0, %v1803
      %v1805 = vpop.f32.mrf.mxu0
      %v1806 = vadd.f32 0.0, %v1805
      %1807 = vdwg.mxu0
      %v1808 = vadd.f32 %v1439, %v1719
      %v1809 = vadd.f32 %v1440, %v1721
      %v1810 = vadd.f32 %v1441, %v1724
      %v1811 = vadd.f32 %v1442, %v1726
      %v1812 = vadd.f32 %v1443, %v1729
      %v1813 = vadd.f32 %v1444, %v1731
      %v1814 = vadd.f32 %v1445, %v1734
      %v1815 = vadd.f32 %v1446, %v1736
      %v1816 = vadd.f32 %v1447, %v1739
      %v1817 = vadd.f32 %v1448, %v1741
      %v1818 = vadd.f32 %v1449, %v1744
      %v1819 = vadd.f32 %v1450, %v1746
      %v1820 = vadd.f32 %v1451, %v1749
      %v1821 = vadd.f32 %v1452, %v1751
      %v1822 = vadd.f32 %v1453, %v1754
      %v1823 = vadd.f32 %v1454, %v1756
      %v1824 = vadd.f32 %v1455, %v1759
      %v1825 = vadd.f32 %v1456, %v1761
      %v1826 = vadd.f32 %v1457, %v1764
      %v1827 = vadd.f32 %v1458, %v1766
      %v1828 = vadd.f32 %v1459, %v1769
      %v1829 = vadd.f32 %v1460, %v1771
      %v1830 = vadd.f32 %v1461, %v1774
      %v1831 = vadd.f32 %v1462, %v1776
      %v1832 = vadd.f32 %v1463, %v1779
      %v1833 = vadd.f32 %v1464, %v1781
      %v1834 = vadd.f32 %v1465, %v1784
      %v1835 = vadd.f32 %v1466, %v1786
      %v1836 = vadd.f32 %v1467, %v1789
      %v1837 = vadd.f32 %v1468, %v1791
      %v1838 = vadd.f32 %v1469, %v1794
      %v1839 = vadd.f32 %v1470, %v1796
      %v1840 = vadd.f32 %v1471, %v1799
      %v1841 = vadd.f32 %v1472, %v1801
      %v1842 = vadd.f32 %v1473, %v1804
      %v1843 = vadd.f32 %v1474, %v1806
      %v1844 = vld [vmem:[%s253 + $0x8] sm:$0xc]
      %s1845 = scalar_lea.vmem %s1, 10
      %v1846 = vld [vmem:[%s1845] sm:$0x3]
      %v1848 = vunpack.c.l.b16 %v1844
      %v1849 = vpack.c.b16 %v1191, %v1848
      %vm1850 = vcmask 1045504
      %v1851 = vrot.slane %v1849, 2
      %v1852 = vrot.slane %v1228, 2
      %v1853 = vsel %vm1850, %v1851, %v1852
      %v1854 = vrot.slane %v1229, 2
      %v1855 = vsel %vm1850, %v1852, %v1854
      %v1856 = vrot.slane %v1230, 2
      %v1857 = vsel %vm1850, %v1854, %v1856
      %v1858 = vrot.slane %v1231, 2
      %v1859 = vsel %vm1850, %v1856, %v1858
      %v1860 = vrot.slane %v1232, 2
      %v1861 = vsel %vm1850, %v1858, %v1860
      %v1862 = vrot.slane %v1233, 2
      %v1863 = vsel %vm1850, %v1860, %v1862
      %v1864 = vrot.slane %v1234, 2
      %v1865 = vsel %vm1850, %v1862, %v1864
      %v1866 = vrot.slane %v1235, 2
      %v1867 = vsel %vm1850, %v1864, %v1866
      %v1868 = vrot.slane %v1236, 2
      %v1869 = vsel %vm1850, %v1866, %v1868
      %v1870 = vrot.slane %v1237, 2
      %v1871 = vsel %vm1850, %v1868, %v1870
      %v1872 = vrot.slane %v1238, 2
      %v1873 = vsel %vm1850, %v1870, %v1872
      %v1874 = vrot.slane %v1239, 2
      %v1875 = vsel %vm1850, %v1872, %v1874
      %v1876 = vrot.slane %v1240, 2
      %v1877 = vsel %vm1850, %v1874, %v1876
      %v1878 = vrot.slane %v1241, 2
      %v1879 = vsel %vm1850, %v1876, %v1878
      %v1880 = vrot.slane %v1242, 2
      %v1881 = vsel %vm1850, %v1878, %v1880
      %v1882 = vrot.slane %v1243, 2
      %v1883 = vsel %vm1850, %v1880, %v1882
      %v1884 = vrot.slane %v1244, 2
      %v1885 = vsel %vm1850, %v1882, %v1884
      %v1886 = vrot.slane %v1480, 2
      %v1887 = vsel %vm1850, %v1884, %v1886
      %v1889 = vsel %vm582, %v1853, 0
      %v1892 = vsel %vm582, %v1855, 0
      %v1895 = vsel %vm582, %v1857, 0
      %v1898 = vsel %vm582, %v1859, 0
      %v1901 = vsel %vm582, %v1861, 0
      %v1904 = vsel %vm582, %v1863, 0
      %v1907 = vsel %vm582, %v1865, 0
      %v1910 = vsel %vm582, %v1867, 0
      %v1913 = vsel %vm582, %v1869, 0
      %v1916 = vsel %vm582, %v1871, 0
      %v1919 = vsel %vm582, %v1873, 0
      %v1922 = vsel %vm582, %v1875, 0
      %v1925 = vsel %vm582, %v1877, 0
      %v1928 = vsel %vm582, %v1879, 0
      %v1931 = vsel %vm582, %v1881, 0
      %v1934 = vsel %vm582, %v1883, 0
      %v1937 = vsel %vm582, %v1885, 0
      %v1940 = vsel %vm582, %v1887, 0
      %v1943 = vsel %vm637, %v1846, 0
      %1945 = vmatpush.bf16.msra.mxu0 0
      %1946 = vmatpush.bf16.msra.mxu0 0
      %1947 = vmatpush.bf16.msra.mxu0 0
      %1948 = vmatpush.bf16.msra.mxu0 0
      %1949 = vmatpush.bf16.msra.mxu0 0
      %1950 = vmatpush.bf16.msra.mxu0 0
      %1951 = vmatpush.bf16.msra.mxu0 0
      %1952 = vmatpush.bf16.msra.mxu0 %v1943
      %1953 = vmatmul.bf16.gmra.mxu0 %v1889
      %v1954 = vpop.f32.mrf.mxu0
      %v1955 = vadd.f32 0.0, %v1954
      %v1956 = vpop.f32.mrf.mxu0
      %v1957 = vadd.f32 0.0, %v1956
      %1958 = vmatmul.bf16.gmra.mxu0 %v1892
      %v1959 = vpop.f32.mrf.mxu0
      %v1960 = vadd.f32 0.0, %v1959
      %v1961 = vpop.f32.mrf.mxu0
      %v1962 = vadd.f32 0.0, %v1961
      %1963 = vmatmul.bf16.gmra.mxu0 %v1895
      %v1964 = vpop.f32.mrf.mxu0
      %v1965 = vadd.f32 0.0, %v1964
      %v1966 = vpop.f32.mrf.mxu0
      %v1967 = vadd.f32 0.0, %v1966
      %1968 = vmatmul.bf16.gmra.mxu0 %v1898
      %v1969 = vpop.f32.mrf.mxu0
      %v1970 = vadd.f32 0.0, %v1969
      %v1971 = vpop.f32.mrf.mxu0
      %v1972 = vadd.f32 0.0, %v1971
      %1973 = vmatmul.bf16.gmra.mxu0 %v1901
      %v1974 = vpop.f32.mrf.mxu0
      %v1975 = vadd.f32 0.0, %v1974
      %v1976 = vpop.f32.mrf.mxu0
      %v1977 = vadd.f32 0.0, %v1976
      %1978 = vmatmul.bf16.gmra.mxu0 %v1904
      %v1979 = vpop.f32.mrf.mxu0
      %v1980 = vadd.f32 0.0, %v1979
      %v1981 = vpop.f32.mrf.mxu0
      %v1982 = vadd.f32 0.0, %v1981
      %1983 = vmatmul.bf16.gmra.mxu0 %v1907
      %v1984 = vpop.f32.mrf.mxu0
      %v1985 = vadd.f32 0.0, %v1984
      %v1986 = vpop.f32.mrf.mxu0
      %v1987 = vadd.f32 0.0, %v1986
      %1988 = vmatmul.bf16.gmra.mxu0 %v1910
      %v1989 = vpop.f32.mrf.mxu0
      %v1990 = vadd.f32 0.0, %v1989
      %v1991 = vpop.f32.mrf.mxu0
      %v1992 = vadd.f32 0.0, %v1991
      %1993 = vmatmul.bf16.gmra.mxu0 %v1913
      %v1994 = vpop.f32.mrf.mxu0
      %v1995 = vadd.f32 0.0, %v1994
      %v1996 = vpop.f32.mrf.mxu0
      %v1997 = vadd.f32 0.0, %v1996
      %1998 = vmatmul.bf16.gmra.mxu0 %v1916
      %v1999 = vpop.f32.mrf.mxu0
      %v2000 = vadd.f32 0.0, %v1999
      %v2001 = vpop.f32.mrf.mxu0
      %v2002 = vadd.f32 0.0, %v2001
      %2003 = vmatmul.bf16.gmra.mxu0 %v1919
      %v2004 = vpop.f32.mrf.mxu0
      %v2005 = vadd.f32 0.0, %v2004
      %v2006 = vpop.f32.mrf.mxu0
      %v2007 = vadd.f32 0.0, %v2006
      %2008 = vmatmul.bf16.gmra.mxu0 %v1922
      %v2009 = vpop.f32.mrf.mxu0
      %v2010 = vadd.f32 0.0, %v2009
      %v2011 = vpop.f32.mrf.mxu0
      %v2012 = vadd.f32 0.0, %v2011
      %2013 = vmatmul.bf16.gmra.mxu0 %v1925
      %v2014 = vpop.f32.mrf.mxu0
      %v2015 = vadd.f32 0.0, %v2014
      %v2016 = vpop.f32.mrf.mxu0
      %v2017 = vadd.f32 0.0, %v2016
      %2018 = vmatmul.bf16.gmra.mxu0 %v1928
      %v2019 = vpop.f32.mrf.mxu0
      %v2020 = vadd.f32 0.0, %v2019
      %v2021 = vpop.f32.mrf.mxu0
      %v2022 = vadd.f32 0.0, %v2021
      %2023 = vmatmul.bf16.gmra.mxu0 %v1931
      %v2024 = vpop.f32.mrf.mxu0
      %v2025 = vadd.f32 0.0, %v2024
      %v2026 = vpop.f32.mrf.mxu0
      %v2027 = vadd.f32 0.0, %v2026
      %2028 = vmatmul.bf16.gmra.mxu0 %v1934
      %v2029 = vpop.f32.mrf.mxu0
      %v2030 = vadd.f32 0.0, %v2029
      %v2031 = vpop.f32.mrf.mxu0
      %v2032 = vadd.f32 0.0, %v2031
      %2033 = vmatmul.bf16.gmra.mxu0 %v1937
      %v2034 = vpop.f32.mrf.mxu0
      %v2035 = vadd.f32 0.0, %v2034
      %v2036 = vpop.f32.mrf.mxu0
      %v2037 = vadd.f32 0.0, %v2036
      %2038 = vmatmul.bf16.gmra.mxu0 %v1940
      %v2039 = vpop.f32.mrf.mxu0
      %v2040 = vadd.f32 0.0, %v2039
      %v2041 = vpop.f32.mrf.mxu0
      %v2042 = vadd.f32 0.0, %v2041
      %2043 = vdwg.mxu0
      %v2044 = vadd.f32 %v1808, %v1955
      %v2045 = vadd.f32 %v1809, %v1957
      %v2046 = vadd.f32 %v1810, %v1960
      %v2047 = vadd.f32 %v1811, %v1962
      %v2048 = vadd.f32 %v1812, %v1965
      %v2049 = vadd.f32 %v1813, %v1967
      %v2050 = vadd.f32 %v1814, %v1970
      %v2051 = vadd.f32 %v1815, %v1972
      %v2052 = vadd.f32 %v1816, %v1975
      %v2053 = vadd.f32 %v1817, %v1977
      %v2054 = vadd.f32 %v1818, %v1980
      %v2055 = vadd.f32 %v1819, %v1982
      %v2056 = vadd.f32 %v1820, %v1985
      %v2057 = vadd.f32 %v1821, %v1987
      %v2058 = vadd.f32 %v1822, %v1990
      %v2059 = vadd.f32 %v1823, %v1992
      %v2060 = vadd.f32 %v1824, %v1995
      %v2061 = vadd.f32 %v1825, %v1997
      %v2062 = vadd.f32 %v1826, %v2000
      %v2063 = vadd.f32 %v1827, %v2002
      %v2064 = vadd.f32 %v1828, %v2005
      %v2065 = vadd.f32 %v1829, %v2007
      %v2066 = vadd.f32 %v1830, %v2010
      %v2067 = vadd.f32 %v1831, %v2012
      %v2068 = vadd.f32 %v1832, %v2015
      %v2069 = vadd.f32 %v1833, %v2017
      %v2070 = vadd.f32 %v1834, %v2020
      %v2071 = vadd.f32 %v1835, %v2022
      %v2072 = vadd.f32 %v1836, %v2025
      %v2073 = vadd.f32 %v1837, %v2027
      %v2074 = vadd.f32 %v1838, %v2030
      %v2075 = vadd.f32 %v1839, %v2032
      %v2076 = vadd.f32 %v1840, %v2035
      %v2077 = vadd.f32 %v1841, %v2037
      %v2078 = vadd.f32 %v1842, %v2040
      %v2079 = vadd.f32 %v1843, %v2042
      %v2080 = vld [vmem:[%s253 + $0x10] sm:$0xc]
      %v2081 = vld [vmem:[%s253 + $0x14] sm:$0xf]
      %v2082 = vld [vmem:[%s253 + $0x18] sm:$0xf]
      %v2083 = vld [vmem:[%s253 + $0x1c] sm:$0xf]
      %v2084 = vld [vmem:[%s253 + $0x20] sm:$0xf]
      %v2085 = vld [vmem:[%s253 + $0x24] sm:$0xf]
      %v2086 = vld [vmem:[%s253 + $0x28] sm:$0xf]
      %v2087 = vld [vmem:[%s253 + $0x2c] sm:$0xf]
      %v2088 = vld [vmem:[%s253 + $0x30] sm:$0xf]
      %v2089 = vld [vmem:[%s253 + $0x34] sm:$0xf]
      %v2090 = vld [vmem:[%s253 + $0x38] sm:$0xf]
      %v2091 = vld [vmem:[%s253 + $0x3c] sm:$0xf]
      %v2092 = vld [vmem:[%s253 + $0x40] sm:$0xf]
      %v2093 = vld [vmem:[%s253 + $0x44] sm:$0xf]
      %v2094 = vld [vmem:[%s253 + $0x48] sm:$0xf]
      %v2095 = vld [vmem:[%s253 + $0x4c] sm:$0xf]
      %v2096 = vld [vmem:[%s253 + $0x50] sm:$0xf]
      %v2097 = vld [vmem:[%s253 + $0x54] sm:$0xf]
      %v2098 = vld [vmem:[%s253 + $0x58] sm:$0xf]
      %v2099 = vld [vmem:[%s253 + $0x5c] sm:$0xf]
      %v2100 = vld [vmem:[%s253 + $0x60] sm:$0xf]
      %v2101 = vld [vmem:[%s253 + $0x64] sm:$0xf]
      %v2102 = vld [vmem:[%s253 + $0x68] sm:$0xf]
      %v2103 = vld [vmem:[%s253 + $0x6c] sm:$0xf]
      %v2104 = vld [vmem:[%s253 + $0x70] sm:$0xf]
      %v2105 = vld [vmem:[%s253 + $0x74] sm:$0xf]
      %v2106 = vld [vmem:[%s253 + $0x78] sm:$0xf]
      %v2107 = vld [vmem:[%s253 + $0x7c] sm:$0xf]
      %v2108 = vld [vmem:[%s253 + $0x80] sm:$0xf]
      %v2109 = vld [vmem:[%s253 + $0x84] sm:$0xf]
      %v2110 = vld [vmem:[%s253 + $0x88] sm:$0xf]
      %v2111 = vld [vmem:[%s253 + $0x8c] sm:$0xf]
      %v2112 = vld [vmem:[%s253 + $0x90] sm:$0xf]
      %v2113 = vld [vmem:[%s253 + $0x94] sm:$0xf]
      %v2114 = vld [vmem:[%s253 + $0x98] sm:$0xf]
      %v2115 = vld [vmem:[%s253 + $0x9c] sm:$0xf]
      %v2116 = vld [vmem:[%s253 + $0xa0] sm:$0x3]
      %s2117 = scalar_lea.vmem %s1, 12
      %v2118 = vld [vmem:[%s2117] sm:$0x3]
      %v2156 = vunpack.c.l.b16 %v2080
      %v2157 = vunpack.c.l.b16 %v2081
      %v2158 = vunpack.c.l.b16 %v2082
      %v2159 = vunpack.c.l.b16 %v2083
      %v2160 = vunpack.c.l.b16 %v2084
      %v2161 = vunpack.c.l.b16 %v2085
      %v2162 = vunpack.c.l.b16 %v2086
      %v2163 = vunpack.c.l.b16 %v2087
      %v2164 = vunpack.c.l.b16 %v2088
      %v2165 = vunpack.c.l.b16 %v2089
      %v2166 = vunpack.c.l.b16 %v2090
      %v2167 = vunpack.c.l.b16 %v2091
      %v2168 = vunpack.c.l.b16 %v2092
      %v2169 = vunpack.c.l.b16 %v2093
      %v2170 = vunpack.c.l.b16 %v2094
      %v2171 = vunpack.c.l.b16 %v2095
      %v2172 = vunpack.c.l.b16 %v2096
      %v2173 = vunpack.c.l.b16 %v2097
      %v2174 = vunpack.c.l.b16 %v2098
      %v2175 = vunpack.c.l.b16 %v2099
      %v2176 = vunpack.c.l.b16 %v2100
      %v2177 = vunpack.c.l.b16 %v2101
      %v2178 = vunpack.c.l.b16 %v2102
      %v2179 = vunpack.c.l.b16 %v2103
      %v2180 = vunpack.c.l.b16 %v2104
      %v2181 = vunpack.c.l.b16 %v2105
      %v2182 = vunpack.c.l.b16 %v2106
      %v2183 = vunpack.c.l.b16 %v2107
      %v2184 = vunpack.c.l.b16 %v2108
      %v2185 = vunpack.c.l.b16 %v2109
      %v2186 = vunpack.c.l.b16 %v2110
      %v2187 = vunpack.c.l.b16 %v2111
      %v2188 = vunpack.c.l.b16 %v2112
      %v2189 = vunpack.c.l.b16 %v2113
      %v2190 = vunpack.c.l.b16 %v2114
      %v2191 = vunpack.c.l.b16 %v2115
      %v2192 = vunpack.c.l.b16 %v2116
      %v2193 = vpack.c.b16 %v2157, %v2156
      %v2194 = vpack.c.b16 %v2159, %v2158
      %v2195 = vpack.c.b16 %v2161, %v2160
      %v2196 = vpack.c.b16 %v2163, %v2162
      %v2197 = vpack.c.b16 %v2165, %v2164
      %v2198 = vpack.c.b16 %v2167, %v2166
      %v2199 = vpack.c.b16 %v2169, %v2168
      %v2200 = vpack.c.b16 %v2171, %v2170
      %v2201 = vpack.c.b16 %v2173, %v2172
      %v2202 = vpack.c.b16 %v2175, %v2174
      %v2203 = vpack.c.b16 %v2177, %v2176
      %v2204 = vpack.c.b16 %v2179, %v2178
      %v2205 = vpack.c.b16 %v2181, %v2180
      %v2206 = vpack.c.b16 %v2183, %v2182
      %v2207 = vpack.c.b16 %v2185, %v2184
      %v2208 = vpack.c.b16 %v2187, %v2186
      %v2209 = vpack.c.b16 %v2189, %v2188
      %v2210 = vpack.c.b16 %v2191, %v2190
      %v2211 = vpack.c.b16 %v2192, %v2192
      %v2212 = vrot.slane %v2193, 2
      %v2213 = vrot.slane %v2194, 2
      %v2214 = vsel %vm1850, %v2212, %v2213
      %v2215 = vrot.slane %v2195, 2
      %v2216 = vsel %vm1850, %v2213, %v2215
      %v2217 = vrot.slane %v2196, 2
      %v2218 = vsel %vm1850, %v2215, %v2217
      %v2219 = vrot.slane %v2197, 2
      %v2220 = vsel %vm1850, %v2217, %v2219
      %v2221 = vrot.slane %v2198, 2
      %v2222 = vsel %vm1850, %v2219, %v2221
      %v2223 = vrot.slane %v2199, 2
      %v2224 = vsel %vm1850, %v2221, %v2223
      %v2225 = vrot.slane %v2200, 2
      %v2226 = vsel %vm1850, %v2223, %v2225
      %v2227 = vrot.slane %v2201, 2
      %v2228 = vsel %vm1850, %v2225, %v2227
      %v2229 = vrot.slane %v2202, 2
      %v2230 = vsel %vm1850, %v2227, %v2229
      %v2231 = vrot.slane %v2203, 2
      %v2232 = vsel %vm1850, %v2229, %v2231
      %v2233 = vrot.slane %v2204, 2
      %v2234 = vsel %vm1850, %v2231, %v2233
      %v2235 = vrot.slane %v2205, 2
      %v2236 = vsel %vm1850, %v2233, %v2235
      %v2237 = vrot.slane %v2206, 2
      %v2238 = vsel %vm1850, %v2235, %v2237
      %v2239 = vrot.slane %v2207, 2
      %v2240 = vsel %vm1850, %v2237, %v2239
      %v2241 = vrot.slane %v2208, 2
      %v2242 = vsel %vm1850, %v2239, %v2241
      %v2243 = vrot.slane %v2209, 2
      %v2244 = vsel %vm1850, %v2241, %v2243
      %v2245 = vrot.slane %v2210, 2
      %v2246 = vsel %vm1850, %v2243, %v2245
      %v2247 = vrot.slane %v2211, 2
      %v2248 = vsel %vm1850, %v2245, %v2247
      %v2250 = vsel %vm582, %v2214, 0
      %v2253 = vsel %vm582, %v2216, 0
      %v2256 = vsel %vm582, %v2218, 0
      %v2259 = vsel %vm582, %v2220, 0
      %v2262 = vsel %vm582, %v2222, 0
      %v2265 = vsel %vm582, %v2224, 0
      %v2268 = vsel %vm582, %v2226, 0
      %v2271 = vsel %vm582, %v2228, 0
      %v2274 = vsel %vm582, %v2230, 0
      %v2277 = vsel %vm582, %v2232, 0
      %v2280 = vsel %vm582, %v2234, 0
      %v2283 = vsel %vm582, %v2236, 0
      %v2286 = vsel %vm582, %v2238, 0
      %v2289 = vsel %vm582, %v2240, 0
      %v2292 = vsel %vm582, %v2242, 0
      %v2295 = vsel %vm582, %v2244, 0
      %v2298 = vsel %vm582, %v2246, 0
      %v2301 = vsel %vm582, %v2248, 0
      %v2304 = vsel %vm637, %v2118, 0
      %2306 = vmatpush.bf16.msra.mxu0 0
      %2307 = vmatpush.bf16.msra.mxu0 0
      %2308 = vmatpush.bf16.msra.mxu0 0
      %2309 = vmatpush.bf16.msra.mxu0 0
      %2310 = vmatpush.bf16.msra.mxu0 0
      %2311 = vmatpush.bf16.msra.mxu0 0
      %2312 = vmatpush.bf16.msra.mxu0 0
      %2313 = vmatpush.bf16.msra.mxu0 %v2304
      %2314 = vmatmul.bf16.gmra.mxu0 %v2250
      %v2315 = vpop.f32.mrf.mxu0
      %v2316 = vadd.f32 0.0, %v2315
      %v2317 = vpop.f32.mrf.mxu0
      %v2318 = vadd.f32 0.0, %v2317
      %2319 = vmatmul.bf16.gmra.mxu0 %v2253
      %v2320 = vpop.f32.mrf.mxu0
      %v2321 = vadd.f32 0.0, %v2320
      %v2322 = vpop.f32.mrf.mxu0
      %v2323 = vadd.f32 0.0, %v2322
      %2324 = vmatmul.bf16.gmra.mxu0 %v2256
      %v2325 = vpop.f32.mrf.mxu0
      %v2326 = vadd.f32 0.0, %v2325
      %v2327 = vpop.f32.mrf.mxu0
      %v2328 = vadd.f32 0.0, %v2327
      %2329 = vmatmul.bf16.gmra.mxu0 %v2259
      %v2330 = vpop.f32.mrf.mxu0
      %v2331 = vadd.f32 0.0, %v2330
      %v2332 = vpop.f32.mrf.mxu0
      %v2333 = vadd.f32 0.0, %v2332
      %2334 = vmatmul.bf16.gmra.mxu0 %v2262
      %v2335 = vpop.f32.mrf.mxu0
      %v2336 = vadd.f32 0.0, %v2335
      %v2337 = vpop.f32.mrf.mxu0
      %v2338 = vadd.f32 0.0, %v2337
      %2339 = vmatmul.bf16.gmra.mxu0 %v2265
      %v2340 = vpop.f32.mrf.mxu0
      %v2341 = vadd.f32 0.0, %v2340
      %v2342 = vpop.f32.mrf.mxu0
      %v2343 = vadd.f32 0.0, %v2342
      %2344 = vmatmul.bf16.gmra.mxu0 %v2268
      %v2345 = vpop.f32.mrf.mxu0
      %v2346 = vadd.f32 0.0, %v2345
      %v2347 = vpop.f32.mrf.mxu0
      %v2348 = vadd.f32 0.0, %v2347
      %2349 = vmatmul.bf16.gmra.mxu0 %v2271
      %v2350 = vpop.f32.mrf.mxu0
      %v2351 = vadd.f32 0.0, %v2350
      %v2352 = vpop.f32.mrf.mxu0
      %v2353 = vadd.f32 0.0, %v2352
      %2354 = vmatmul.bf16.gmra.mxu0 %v2274
      %v2355 = vpop.f32.mrf.mxu0
      %v2356 = vadd.f32 0.0, %v2355
      %v2357 = vpop.f32.mrf.mxu0
      %v2358 = vadd.f32 0.0, %v2357
      %2359 = vmatmul.bf16.gmra.mxu0 %v2277
      %v2360 = vpop.f32.mrf.mxu0
      %v2361 = vadd.f32 0.0, %v2360
      %v2362 = vpop.f32.mrf.mxu0
      %v2363 = vadd.f32 0.0, %v2362
      %2364 = vmatmul.bf16.gmra.mxu0 %v2280
      %v2365 = vpop.f32.mrf.mxu0
      %v2366 = vadd.f32 0.0, %v2365
      %v2367 = vpop.f32.mrf.mxu0
      %v2368 = vadd.f32 0.0, %v2367
      %2369 = vmatmul.bf16.gmra.mxu0 %v2283
      %v2370 = vpop.f32.mrf.mxu0
      %v2371 = vadd.f32 0.0, %v2370
      %v2372 = vpop.f32.mrf.mxu0
      %v2373 = vadd.f32 0.0, %v2372
      %2374 = vmatmul.bf16.gmra.mxu0 %v2286
      %v2375 = vpop.f32.mrf.mxu0
      %v2376 = vadd.f32 0.0, %v2375
      %v2377 = vpop.f32.mrf.mxu0
      %v2378 = vadd.f32 0.0, %v2377
      %2379 = vmatmul.bf16.gmra.mxu0 %v2289
      %v2380 = vpop.f32.mrf.mxu0
      %v2381 = vadd.f32 0.0, %v2380
      %v2382 = vpop.f32.mrf.mxu0
      %v2383 = vadd.f32 0.0, %v2382
      %2384 = vmatmul.bf16.gmra.mxu0 %v2292
      %v2385 = vpop.f32.mrf.mxu0
      %v2386 = vadd.f32 0.0, %v2385
      %v2387 = vpop.f32.mrf.mxu0
      %v2388 = vadd.f32 0.0, %v2387
      %2389 = vmatmul.bf16.gmra.mxu0 %v2295
      %v2390 = vpop.f32.mrf.mxu0
      %v2391 = vadd.f32 0.0, %v2390
      %v2392 = vpop.f32.mrf.mxu0
      %v2393 = vadd.f32 0.0, %v2392
      %2394 = vmatmul.bf16.gmra.mxu0 %v2298
      %v2395 = vpop.f32.mrf.mxu0
      %v2396 = vadd.f32 0.0, %v2395
      %v2397 = vpop.f32.mrf.mxu0
      %v2398 = vadd.f32 0.0, %v2397
      %2399 = vmatmul.bf16.gmra.mxu0 %v2301
      %v2400 = vpop.f32.mrf.mxu0
      %v2401 = vadd.f32 0.0, %v2400
      %v2402 = vpop.f32.mrf.mxu0
      %v2403 = vadd.f32 0.0, %v2402
      %2404 = vdwg.mxu0
      %v2405 = vadd.f32 %v2044, %v2316
      %v2406 = vadd.f32 %v2045, %v2318
      %v2407 = vadd.f32 %v2046, %v2321
      %v2408 = vadd.f32 %v2047, %v2323
      %v2409 = vadd.f32 %v2048, %v2326
      %v2410 = vadd.f32 %v2049, %v2328
      %v2411 = vadd.f32 %v2050, %v2331
      %v2412 = vadd.f32 %v2051, %v2333
      %v2413 = vadd.f32 %v2052, %v2336
      %v2414 = vadd.f32 %v2053, %v2338
      %v2415 = vadd.f32 %v2054, %v2341
      %v2416 = vadd.f32 %v2055, %v2343
      %v2417 = vadd.f32 %v2056, %v2346
      %v2418 = vadd.f32 %v2057, %v2348
      %v2419 = vadd.f32 %v2058, %v2351
      %v2420 = vadd.f32 %v2059, %v2353
      %v2421 = vadd.f32 %v2060, %v2356
      %v2422 = vadd.f32 %v2061, %v2358
      %v2423 = vadd.f32 %v2062, %v2361
      %v2424 = vadd.f32 %v2063, %v2363
      %v2425 = vadd.f32 %v2064, %v2366
      %v2426 = vadd.f32 %v2065, %v2368
      %v2427 = vadd.f32 %v2066, %v2371
      %v2428 = vadd.f32 %v2067, %v2373
      %v2429 = vadd.f32 %v2068, %v2376
      %v2430 = vadd.f32 %v2069, %v2378
      %v2431 = vadd.f32 %v2070, %v2381
      %v2432 = vadd.f32 %v2071, %v2383
      %v2433 = vadd.f32 %v2072, %v2386
      %v2434 = vadd.f32 %v2073, %v2388
      %v2435 = vadd.f32 %v2074, %v2391
      %v2436 = vadd.f32 %v2075, %v2393
      %v2437 = vadd.f32 %v2076, %v2396
      %v2438 = vadd.f32 %v2077, %v2398
      %v2439 = vadd.f32 %v2078, %v2401
      %v2440 = vadd.f32 %v2079, %v2403
      %v2441 = vld [vmem:[%s253 + $0xa0] sm:$0x7]
      %s2442 = scalar_lea.vmem %s1, 14
      %v2443 = vld [vmem:[%s2442] sm:$0x3]
      %v2445 = vunpack.c.l.b16 %v2441
      %v2446 = vpack.c.b16 %v2445, %v2445
      %vm2447 = vsmask.f32 5376
      %v2449 = vshrl.u32 %v2193, 16
      %v2451 = vrot.slane %v2449, 2
      %v2452 = vshll.u32 %v2193, 16
      %v2454 = vrot.slane %v2452, 3
      %v2455 = vor.u32 %v2451, %v2454
      %v2457 = vshrl.u32 %v2194, 16
      %v2459 = vrot.slane %v2457, 2
      %v2460 = vshll.u32 %v2194, 16
      %v2462 = vrot.slane %v2460, 3
      %v2463 = vor.u32 %v2459, %v2462
      %v2464 = vsel %vm2447, %v2455, %v2463
      %v2466 = vshrl.u32 %v2195, 16
      %v2468 = vrot.slane %v2466, 2
      %v2469 = vshll.u32 %v2195, 16
      %v2471 = vrot.slane %v2469, 3
      %v2472 = vor.u32 %v2468, %v2471
      %v2473 = vsel %vm2447, %v2463, %v2472
      %v2475 = vshrl.u32 %v2196, 16
      %v2477 = vrot.slane %v2475, 2
      %v2478 = vshll.u32 %v2196, 16
      %v2480 = vrot.slane %v2478, 3
      %v2481 = vor.u32 %v2477, %v2480
      %v2482 = vsel %vm2447, %v2472, %v2481
      %v2484 = vshrl.u32 %v2197, 16
      %v2486 = vrot.slane %v2484, 2
      %v2487 = vshll.u32 %v2197, 16
      %v2489 = vrot.slane %v2487, 3
      %v2490 = vor.u32 %v2486, %v2489
      %v2491 = vsel %vm2447, %v2481, %v2490
      %v2493 = vshrl.u32 %v2198, 16
      %v2495 = vrot.slane %v2493, 2
      %v2496 = vshll.u32 %v2198, 16
      %v2498 = vrot.slane %v2496, 3
      %v2499 = vor.u32 %v2495, %v2498
      %v2500 = vsel %vm2447, %v2490, %v2499
      %v2502 = vshrl.u32 %v2199, 16
      %v2504 = vrot.slane %v2502, 2
      %v2505 = vshll.u32 %v2199, 16
      %v2507 = vrot.slane %v2505, 3
      %v2508 = vor.u32 %v2504, %v2507
      %v2509 = vsel %vm2447, %v2499, %v2508
      %v2511 = vshrl.u32 %v2200, 16
      %v2513 = vrot.slane %v2511, 2
      %v2514 = vshll.u32 %v2200, 16
      %v2516 = vrot.slane %v2514, 3
      %v2517 = vor.u32 %v2513, %v2516
      %v2518 = vsel %vm2447, %v2508, %v2517
      %v2520 = vshrl.u32 %v2201, 16
      %v2522 = vrot.slane %v2520, 2
      %v2523 = vshll.u32 %v2201, 16
      %v2525 = vrot.slane %v2523, 3
      %v2526 = vor.u32 %v2522, %v2525
      %v2527 = vsel %vm2447, %v2517, %v2526
      %v2529 = vshrl.u32 %v2202, 16
      %v2531 = vrot.slane %v2529, 2
      %v2532 = vshll.u32 %v2202, 16
      %v2534 = vrot.slane %v2532, 3
      %v2535 = vor.u32 %v2531, %v2534
      %v2536 = vsel %vm2447, %v2526, %v2535
      %v2538 = vshrl.u32 %v2203, 16
      %v2540 = vrot.slane %v2538, 2
      %v2541 = vshll.u32 %v2203, 16
      %v2543 = vrot.slane %v2541, 3
      %v2544 = vor.u32 %v2540, %v2543
      %v2545 = vsel %vm2447, %v2535, %v2544
      %v2547 = vshrl.u32 %v2204, 16
      %v2549 = vrot.slane %v2547, 2
      %v2550 = vshll.u32 %v2204, 16
      %v2552 = vrot.slane %v2550, 3
      %v2553 = vor.u32 %v2549, %v2552
      %v2554 = vsel %vm2447, %v2544, %v2553
      %v2556 = vshrl.u32 %v2205, 16
      %v2558 = vrot.slane %v2556, 2
      %v2559 = vshll.u32 %v2205, 16
      %v2561 = vrot.slane %v2559, 3
      %v2562 = vor.u32 %v2558, %v2561
      %v2563 = vsel %vm2447, %v2553, %v2562
      %v2565 = vshrl.u32 %v2206, 16
      %v2567 = vrot.slane %v2565, 2
      %v2568 = vshll.u32 %v2206, 16
      %v2570 = vrot.slane %v2568, 3
      %v2571 = vor.u32 %v2567, %v2570
      %v2572 = vsel %vm2447, %v2562, %v2571
      %v2574 = vshrl.u32 %v2207, 16
      %v2576 = vrot.slane %v2574, 2
      %v2577 = vshll.u32 %v2207, 16
      %v2579 = vrot.slane %v2577, 3
      %v2580 = vor.u32 %v2576, %v2579
      %v2581 = vsel %vm2447, %v2571, %v2580
      %v2583 = vshrl.u32 %v2208, 16
      %v2585 = vrot.slane %v2583, 2
      %v2586 = vshll.u32 %v2208, 16
      %v2588 = vrot.slane %v2586, 3
      %v2589 = vor.u32 %v2585, %v2588
      %v2590 = vsel %vm2447, %v2580, %v2589
      %v2592 = vshrl.u32 %v2209, 16
      %v2594 = vrot.slane %v2592, 2
      %v2595 = vshll.u32 %v2209, 16
      %v2597 = vrot.slane %v2595, 3
      %v2598 = vor.u32 %v2594, %v2597
      %v2599 = vsel %vm2447, %v2589, %v2598
      %v2601 = vshrl.u32 %v2210, 16
      %v2603 = vrot.slane %v2601, 2
      %v2604 = vshll.u32 %v2210, 16
      %v2606 = vrot.slane %v2604, 3
      %v2607 = vor.u32 %v2603, %v2606
      %v2608 = vsel %vm2447, %v2598, %v2607
      %v2610 = vshrl.u32 %v2446, 16
      %v2612 = vrot.slane %v2610, 2
      %v2613 = vshll.u32 %v2446, 16
      %v2615 = vrot.slane %v2613, 3
      %v2616 = vor.u32 %v2612, %v2615
      %v2617 = vsel %vm2447, %v2607, %v2616
      %v2619 = vsel %vm582, %v2464, 0
      %v2622 = vsel %vm582, %v2473, 0
      %v2625 = vsel %vm582, %v2482, 0
      %v2628 = vsel %vm582, %v2491, 0
      %v2631 = vsel %vm582, %v2500, 0
      %v2634 = vsel %vm582, %v2509, 0
      %v2637 = vsel %vm582, %v2518, 0
      %v2640 = vsel %vm582, %v2527, 0
      %v2643 = vsel %vm582, %v2536, 0
      %v2646 = vsel %vm582, %v2545, 0
      %v2649 = vsel %vm582, %v2554, 0
      %v2652 = vsel %vm582, %v2563, 0
      %v2655 = vsel %vm582, %v2572, 0
      %v2658 = vsel %vm582, %v2581, 0
      %v2661 = vsel %vm582, %v2590, 0
      %v2664 = vsel %vm582, %v2599, 0
      %v2667 = vsel %vm582, %v2608, 0
      %v2670 = vsel %vm582, %v2617, 0
      %v2673 = vsel %vm637, %v2443, 0
      %2675 = vmatpush.bf16.msra.mxu0 0
      %2676 = vmatpush.bf16.msra.mxu0 0
      %2677 = vmatpush.bf16.msra.mxu0 0
      %2678 = vmatpush.bf16.msra.mxu0 0
      %2679 = vmatpush.bf16.msra.mxu0 0
      %2680 = vmatpush.bf16.msra.mxu0 0
      %2681 = vmatpush.bf16.msra.mxu0 0
      %2682 = vmatpush.bf16.msra.mxu0 %v2673
      %2683 = vmatmul.bf16.gmra.mxu0 %v2619
      %v2684 = vpop.f32.mrf.mxu0
      %v2685 = vadd.f32 0.0, %v2684
      %v2686 = vpop.f32.mrf.mxu0
      %v2687 = vadd.f32 0.0, %v2686
      %2688 = vmatmul.bf16.gmra.mxu0 %v2622
      %v2689 = vpop.f32.mrf.mxu0
      %v2690 = vadd.f32 0.0, %v2689
      %v2691 = vpop.f32.mrf.mxu0
      %v2692 = vadd.f32 0.0, %v2691
      %2693 = vmatmul.bf16.gmra.mxu0 %v2625
      %v2694 = vpop.f32.mrf.mxu0
      %v2695 = vadd.f32 0.0, %v2694
      %v2696 = vpop.f32.mrf.mxu0
      %v2697 = vadd.f32 0.0, %v2696
      %2698 = vmatmul.bf16.gmra.mxu0 %v2628
      %v2699 = vpop.f32.mrf.mxu0
      %v2700 = vadd.f32 0.0, %v2699
      %v2701 = vpop.f32.mrf.mxu0
      %v2702 = vadd.f32 0.0, %v2701
      %2703 = vmatmul.bf16.gmra.mxu0 %v2631
      %v2704 = vpop.f32.mrf.mxu0
      %v2705 = vadd.f32 0.0, %v2704
      %v2706 = vpop.f32.mrf.mxu0
      %v2707 = vadd.f32 0.0, %v2706
      %2708 = vmatmul.bf16.gmra.mxu0 %v2634
      %v2709 = vpop.f32.mrf.mxu0
      %v2710 = vadd.f32 0.0, %v2709
      %v2711 = vpop.f32.mrf.mxu0
      %v2712 = vadd.f32 0.0, %v2711
      %2713 = vmatmul.bf16.gmra.mxu0 %v2637
      %v2714 = vpop.f32.mrf.mxu0
      %v2715 = vadd.f32 0.0, %v2714
      %v2716 = vpop.f32.mrf.mxu0
      %v2717 = vadd.f32 0.0, %v2716
      %2718 = vmatmul.bf16.gmra.mxu0 %v2640
      %v2719 = vpop.f32.mrf.mxu0
      %v2720 = vadd.f32 0.0, %v2719
      %v2721 = vpop.f32.mrf.mxu0
      %v2722 = vadd.f32 0.0, %v2721
      %2723 = vmatmul.bf16.gmra.mxu0 %v2643
      %v2724 = vpop.f32.mrf.mxu0
      %v2725 = vadd.f32 0.0, %v2724
      %v2726 = vpop.f32.mrf.mxu0
      %v2727 = vadd.f32 0.0, %v2726
      %2728 = vmatmul.bf16.gmra.mxu0 %v2646
      %v2729 = vpop.f32.mrf.mxu0
      %v2730 = vadd.f32 0.0, %v2729
      %v2731 = vpop.f32.mrf.mxu0
      %v2732 = vadd.f32 0.0, %v2731
      %2733 = vmatmul.bf16.gmra.mxu0 %v2649
      %v2734 = vpop.f32.mrf.mxu0
      %v2735 = vadd.f32 0.0, %v2734
      %v2736 = vpop.f32.mrf.mxu0
      %v2737 = vadd.f32 0.0, %v2736
      %2738 = vmatmul.bf16.gmra.mxu0 %v2652
      %v2739 = vpop.f32.mrf.mxu0
      %v2740 = vadd.f32 0.0, %v2739
      %v2741 = vpop.f32.mrf.mxu0
      %v2742 = vadd.f32 0.0, %v2741
      %2743 = vmatmul.bf16.gmra.mxu0 %v2655
      %v2744 = vpop.f32.mrf.mxu0
      %v2745 = vadd.f32 0.0, %v2744
      %v2746 = vpop.f32.mrf.mxu0
      %v2747 = vadd.f32 0.0, %v2746
      %2748 = vmatmul.bf16.gmra.mxu0 %v2658
      %v2749 = vpop.f32.mrf.mxu0
      %v2750 = vadd.f32 0.0, %v2749
      %v2751 = vpop.f32.mrf.mxu0
      %v2752 = vadd.f32 0.0, %v2751
      %2753 = vmatmul.bf16.gmra.mxu0 %v2661
      %v2754 = vpop.f32.mrf.mxu0
      %v2755 = vadd.f32 0.0, %v2754
      %v2756 = vpop.f32.mrf.mxu0
      %v2757 = vadd.f32 0.0, %v2756
      %2758 = vmatmul.bf16.gmra.mxu0 %v2664
      %v2759 = vpop.f32.mrf.mxu0
      %v2760 = vadd.f32 0.0, %v2759
      %v2761 = vpop.f32.mrf.mxu0
      %v2762 = vadd.f32 0.0, %v2761
      %2763 = vmatmul.bf16.gmra.mxu0 %v2667
      %v2764 = vpop.f32.mrf.mxu0
      %v2765 = vadd.f32 0.0, %v2764
      %v2766 = vpop.f32.mrf.mxu0
      %v2767 = vadd.f32 0.0, %v2766
      %2768 = vmatmul.bf16.gmra.mxu0 %v2670
      %v2769 = vpop.f32.mrf.mxu0
      %v2770 = vadd.f32 0.0, %v2769
      %v2771 = vpop.f32.mrf.mxu0
      %v2772 = vadd.f32 0.0, %v2771
      %2773 = vdwg.mxu0
      %v2774 = vadd.f32 %v2405, %v2685
      %v2775 = vadd.f32 %v2406, %v2687
      %v2776 = vadd.f32 %v2407, %v2690
      %v2777 = vadd.f32 %v2408, %v2692
      %v2778 = vadd.f32 %v2409, %v2695
      %v2779 = vadd.f32 %v2410, %v2697
      %v2780 = vadd.f32 %v2411, %v2700
      %v2781 = vadd.f32 %v2412, %v2702
      %v2782 = vadd.f32 %v2413, %v2705
      %v2783 = vadd.f32 %v2414, %v2707
      %v2784 = vadd.f32 %v2415, %v2710
      %v2785 = vadd.f32 %v2416, %v2712
      %v2786 = vadd.f32 %v2417, %v2715
      %v2787 = vadd.f32 %v2418, %v2717
      %v2788 = vadd.f32 %v2419, %v2720
      %v2789 = vadd.f32 %v2420, %v2722
      %v2790 = vadd.f32 %v2421, %v2725
      %v2791 = vadd.f32 %v2422, %v2727
      %v2792 = vadd.f32 %v2423, %v2730
      %v2793 = vadd.f32 %v2424, %v2732
      %v2794 = vadd.f32 %v2425, %v2735
      %v2795 = vadd.f32 %v2426, %v2737
      %v2796 = vadd.f32 %v2427, %v2740
      %v2797 = vadd.f32 %v2428, %v2742
      %v2798 = vadd.f32 %v2429, %v2745
      %v2799 = vadd.f32 %v2430, %v2747
      %v2800 = vadd.f32 %v2431, %v2750
      %v2801 = vadd.f32 %v2432, %v2752
      %v2802 = vadd.f32 %v2433, %v2755
      %v2803 = vadd.f32 %v2434, %v2757
      %v2804 = vadd.f32 %v2435, %v2760
      %v2805 = vadd.f32 %v2436, %v2762
      %v2806 = vadd.f32 %v2437, %v2765
      %v2807 = vadd.f32 %v2438, %v2767
      %v2808 = vadd.f32 %v2439, %v2770
      %v2809 = vadd.f32 %v2440, %v2772
      %v2810 = vld [vmem:[%s253 + $0x10] sm:$0x8]
      %s2811 = scalar_lea.vmem %s1, 16
      %v2812 = vld [vmem:[%s2811] sm:$0x3]
      %v2814 = vunpack.c.l.b16 %v2810
      %v2815 = vpack.c.b16 %v2157, %v2814
      %vm2816 = vcmask 1044480
      %v2817 = vrot.slane %v2815, 3
      %v2818 = vrot.slane %v2194, 3
      %v2819 = vsel %vm2816, %v2817, %v2818
      %v2820 = vrot.slane %v2195, 3
      %v2821 = vsel %vm2816, %v2818, %v2820
      %v2822 = vrot.slane %v2196, 3
      %v2823 = vsel %vm2816, %v2820, %v2822
      %v2824 = vrot.slane %v2197, 3
      %v2825 = vsel %vm2816, %v2822, %v2824
      %v2826 = vrot.slane %v2198, 3
      %v2827 = vsel %vm2816, %v2824, %v2826
      %v2828 = vrot.slane %v2199, 3
      %v2829 = vsel %vm2816, %v2826, %v2828
      %v2830 = vrot.slane %v2200, 3
      %v2831 = vsel %vm2816, %v2828, %v2830
      %v2832 = vrot.slane %v2201, 3
      %v2833 = vsel %vm2816, %v2830, %v2832
      %v2834 = vrot.slane %v2202, 3
      %v2835 = vsel %vm2816, %v2832, %v2834
      %v2836 = vrot.slane %v2203, 3
      %v2837 = vsel %vm2816, %v2834, %v2836
      %v2838 = vrot.slane %v2204, 3
      %v2839 = vsel %vm2816, %v2836, %v2838
      %v2840 = vrot.slane %v2205, 3
      %v2841 = vsel %vm2816, %v2838, %v2840
      %v2842 = vrot.slane %v2206, 3
      %v2843 = vsel %vm2816, %v2840, %v2842
      %v2844 = vrot.slane %v2207, 3
      %v2845 = vsel %vm2816, %v2842, %v2844
      %v2846 = vrot.slane %v2208, 3
      %v2847 = vsel %vm2816, %v2844, %v2846
      %v2848 = vrot.slane %v2209, 3
      %v2849 = vsel %vm2816, %v2846, %v2848
      %v2850 = vrot.slane %v2210, 3
      %v2851 = vsel %vm2816, %v2848, %v2850
      %v2852 = vrot.slane %v2446, 3
      %v2853 = vsel %vm2816, %v2850, %v2852
      %v2855 = vsel %vm582, %v2819, 0
      %v2858 = vsel %vm582, %v2821, 0
      %v2861 = vsel %vm582, %v2823, 0
      %v2864 = vsel %vm582, %v2825, 0
      %v2867 = vsel %vm582, %v2827, 0
      %v2870 = vsel %vm582, %v2829, 0
      %v2873 = vsel %vm582, %v2831, 0
      %v2876 = vsel %vm582, %v2833, 0
      %v2879 = vsel %vm582, %v2835, 0
      %v2882 = vsel %vm582, %v2837, 0
      %v2885 = vsel %vm582, %v2839, 0
      %v2888 = vsel %vm582, %v2841, 0
      %v2891 = vsel %vm582, %v2843, 0
      %v2894 = vsel %vm582, %v2845, 0
      %v2897 = vsel %vm582, %v2847, 0
      %v2900 = vsel %vm582, %v2849, 0
      %v2903 = vsel %vm582, %v2851, 0
      %v2906 = vsel %vm582, %v2853, 0
      %v2909 = vsel %vm637, %v2812, 0
      %2911 = vmatpush.bf16.msra.mxu0 0
      %2912 = vmatpush.bf16.msra.mxu0 0
      %2913 = vmatpush.bf16.msra.mxu0 0
      %2914 = vmatpush.bf16.msra.mxu0 0
      %2915 = vmatpush.bf16.msra.mxu0 0
      %2916 = vmatpush.bf16.msra.mxu0 0
      %2917 = vmatpush.bf16.msra.mxu0 0
      %2918 = vmatpush.bf16.msra.mxu0 %v2909
      %2919 = vmatmul.bf16.gmra.mxu0 %v2855
      %v2920 = vpop.f32.mrf.mxu0
      %v2921 = vadd.f32 0.0, %v2920
      %v2922 = vpop.f32.mrf.mxu0
      %v2923 = vadd.f32 0.0, %v2922
      %2924 = vmatmul.bf16.gmra.mxu0 %v2858
      %v2925 = vpop.f32.mrf.mxu0
      %v2926 = vadd.f32 0.0, %v2925
      %v2927 = vpop.f32.mrf.mxu0
      %v2928 = vadd.f32 0.0, %v2927
      %2929 = vmatmul.bf16.gmra.mxu0 %v2861
      %v2930 = vpop.f32.mrf.mxu0
      %v2931 = vadd.f32 0.0, %v2930
      %v2932 = vpop.f32.mrf.mxu0
      %v2933 = vadd.f32 0.0, %v2932
      %2934 = vmatmul.bf16.gmra.mxu0 %v2864
      %v2935 = vpop.f32.mrf.mxu0
      %v2936 = vadd.f32 0.0, %v2935
      %v2937 = vpop.f32.mrf.mxu0
      %v2938 = vadd.f32 0.0, %v2937
      %2939 = vmatmul.bf16.gmra.mxu0 %v2867
      %v2940 = vpop.f32.mrf.mxu0
      %v2941 = vadd.f32 0.0, %v2940
      %v2942 = vpop.f32.mrf.mxu0
      %v2943 = vadd.f32 0.0, %v2942
      %2944 = vmatmul.bf16.gmra.mxu0 %v2870
      %v2945 = vpop.f32.mrf.mxu0
      %v2946 = vadd.f32 0.0, %v2945
      %v2947 = vpop.f32.mrf.mxu0
      %v2948 = vadd.f32 0.0, %v2947
      %2949 = vmatmul.bf16.gmra.mxu0 %v2873
      %v2950 = vpop.f32.mrf.mxu0
      %v2951 = vadd.f32 0.0, %v2950
      %v2952 = vpop.f32.mrf.mxu0
      %v2953 = vadd.f32 0.0, %v2952
      %2954 = vmatmul.bf16.gmra.mxu0 %v2876
      %v2955 = vpop.f32.mrf.mxu0
      %v2956 = vadd.f32 0.0, %v2955
      %v2957 = vpop.f32.mrf.mxu0
      %v2958 = vadd.f32 0.0, %v2957
      %2959 = vmatmul.bf16.gmra.mxu0 %v2879
      %v2960 = vpop.f32.mrf.mxu0
      %v2961 = vadd.f32 0.0, %v2960
      %v2962 = vpop.f32.mrf.mxu0
      %v2963 = vadd.f32 0.0, %v2962
      %2964 = vmatmul.bf16.gmra.mxu0 %v2882
      %v2965 = vpop.f32.mrf.mxu0
      %v2966 = vadd.f32 0.0, %v2965
      %v2967 = vpop.f32.mrf.mxu0
      %v2968 = vadd.f32 0.0, %v2967
      %2969 = vmatmul.bf16.gmra.mxu0 %v2885
      %v2970 = vpop.f32.mrf.mxu0
      %v2971 = vadd.f32 0.0, %v2970
      %v2972 = vpop.f32.mrf.mxu0
      %v2973 = vadd.f32 0.0, %v2972
      %2974 = vmatmul.bf16.gmra.mxu0 %v2888
      %v2975 = vpop.f32.mrf.mxu0
      %v2976 = vadd.f32 0.0, %v2975
      %v2977 = vpop.f32.mrf.mxu0
      %v2978 = vadd.f32 0.0, %v2977
      %2979 = vmatmul.bf16.gmra.mxu0 %v2891
      %v2980 = vpop.f32.mrf.mxu0
      %v2981 = vadd.f32 0.0, %v2980
      %v2982 = vpop.f32.mrf.mxu0
      %v2983 = vadd.f32 0.0, %v2982
      %2984 = vmatmul.bf16.gmra.mxu0 %v2894
      %v2985 = vpop.f32.mrf.mxu0
      %v2986 = vadd.f32 0.0, %v2985
      %v2987 = vpop.f32.mrf.mxu0
      %v2988 = vadd.f32 0.0, %v2987
      %2989 = vmatmul.bf16.gmra.mxu0 %v2897
      %v2990 = vpop.f32.mrf.mxu0
      %v2991 = vadd.f32 0.0, %v2990
      %v2992 = vpop.f32.mrf.mxu0
      %v2993 = vadd.f32 0.0, %v2992
      %2994 = vmatmul.bf16.gmra.mxu0 %v2900
      %v2995 = vpop.f32.mrf.mxu0
      %v2996 = vadd.f32 0.0, %v2995
      %v2997 = vpop.f32.mrf.mxu0
      %v2998 = vadd.f32 0.0, %v2997
      %2999 = vmatmul.bf16.gmra.mxu0 %v2903
      %v3000 = vpop.f32.mrf.mxu0
      %v3001 = vadd.f32 0.0, %v3000
      %v3002 = vpop.f32.mrf.mxu0
      %v3003 = vadd.f32 0.0, %v3002
      %3004 = vmatmul.bf16.gmra.mxu0 %v2906
      %v3005 = vpop.f32.mrf.mxu0
      %v3006 = vadd.f32 0.0, %v3005
      %v3007 = vpop.f32.mrf.mxu0
      %v3008 = vadd.f32 0.0, %v3007
      %3009 = vdwg.mxu0
      %v3010 = vadd.f32 %v2774, %v2921
      %v3011 = vadd.f32 %v2775, %v2923
      %v3012 = vadd.f32 %v2776, %v2926
      %v3013 = vadd.f32 %v2777, %v2928
      %v3014 = vadd.f32 %v2778, %v2931
      %v3015 = vadd.f32 %v2779, %v2933
      %v3016 = vadd.f32 %v2780, %v2936
      %v3017 = vadd.f32 %v2781, %v2938
      %v3018 = vadd.f32 %v2782, %v2941
      %v3019 = vadd.f32 %v2783, %v2943
      %v3020 = vadd.f32 %v2784, %v2946
      %v3021 = vadd.f32 %v2785, %v2948
      %v3022 = vadd.f32 %v2786, %v2951
      %v3023 = vadd.f32 %v2787, %v2953
      %v3024 = vadd.f32 %v2788, %v2956
      %v3025 = vadd.f32 %v2789, %v2958
      %v3026 = vadd.f32 %v2790, %v2961
      %v3027 = vadd.f32 %v2791, %v2963
      %v3028 = vadd.f32 %v2792, %v2966
      %v3029 = vadd.f32 %v2793, %v2968
      %v3030 = vadd.f32 %v2794, %v2971
      %v3031 = vadd.f32 %v2795, %v2973
      %v3032 = vadd.f32 %v2796, %v2976
      %v3033 = vadd.f32 %v2797, %v2978
      %v3034 = vadd.f32 %v2798, %v2981
      %v3035 = vadd.f32 %v2799, %v2983
      %v3036 = vadd.f32 %v2800, %v2986
      %v3037 = vadd.f32 %v2801, %v2988
      %v3038 = vadd.f32 %v2802, %v2991
      %v3039 = vadd.f32 %v2803, %v2993
      %v3040 = vadd.f32 %v2804, %v2996
      %v3041 = vadd.f32 %v2805, %v2998
      %v3042 = vadd.f32 %v2806, %v3001
      %v3043 = vadd.f32 %v2807, %v3003
      %v3044 = vadd.f32 %v2808, %v3006
      %v3045 = vadd.f32 %v2809, %v3008
      %v3046 = vpack.c.bf16 %v3010, %v3010
      %v3047 = vpack.c.bf16 %v3011, %v3011
      %v3048 = vpack.c.bf16 %v3012, %v3012
      %v3049 = vpack.c.bf16 %v3013, %v3013
      %v3050 = vpack.c.bf16 %v3014, %v3014
      %v3051 = vpack.c.bf16 %v3015, %v3015
      %v3052 = vpack.c.bf16 %v3016, %v3016
      %v3053 = vpack.c.bf16 %v3017, %v3017
      %v3054 = vpack.c.bf16 %v3018, %v3018
      %v3055 = vpack.c.bf16 %v3019, %v3019
      %v3056 = vpack.c.bf16 %v3020, %v3020
      %v3057 = vpack.c.bf16 %v3021, %v3021
      %v3058 = vpack.c.bf16 %v3022, %v3022
      %v3059 = vpack.c.bf16 %v3023, %v3023
      %v3060 = vpack.c.bf16 %v3024, %v3024
      %v3061 = vpack.c.bf16 %v3025, %v3025
      %v3062 = vpack.c.bf16 %v3026, %v3026
      %v3063 = vpack.c.bf16 %v3027, %v3027
      %v3064 = vpack.c.bf16 %v3028, %v3028
      %v3065 = vpack.c.bf16 %v3029, %v3029
      %v3066 = vpack.c.bf16 %v3030, %v3030
      %v3067 = vpack.c.bf16 %v3031, %v3031
      %v3068 = vpack.c.bf16 %v3032, %v3032
      %v3069 = vpack.c.bf16 %v3033, %v3033
      %v3070 = vpack.c.bf16 %v3034, %v3034
      %v3071 = vpack.c.bf16 %v3035, %v3035
      %v3072 = vpack.c.bf16 %v3036, %v3036
      %v3073 = vpack.c.bf16 %v3037, %v3037
      %v3074 = vpack.c.bf16 %v3038, %v3038
      %v3075 = vpack.c.bf16 %v3039, %v3039
      %v3076 = vpack.c.bf16 %v3040, %v3040
      %v3077 = vpack.c.bf16 %v3041, %v3041
      %v3078 = vpack.c.bf16 %v3042, %v3042
      %v3079 = vpack.c.bf16 %v3043, %v3043
      %v3080 = vpack.c.bf16 %v3044, %v3044
      %v3081 = vpack.c.bf16 %v3045, %v3045
      %vm3082 = vcmask 27648
      %3083 = vst.msk [vmem:[%s258] sm:$0xf] %vm3082, %v3046
      %3084 = vst.msk [vmem:[%s258 + $0x4] sm:$0xf] %vm3082, %v3047
      %3085 = vst.msk [vmem:[%s258 + $0x8] sm:$0xf] %vm3082, %v3048
      %3086 = vst.msk [vmem:[%s258 + $0xc] sm:$0xf] %vm3082, %v3049
      %3087 = vst.msk [vmem:[%s258 + $0x10] sm:$0xf] %vm3082, %v3050
      %3088 = vst.msk [vmem:[%s258 + $0x14] sm:$0xf] %vm3082, %v3051
      %3089 = vst.msk [vmem:[%s258 + $0x18] sm:$0xf] %vm3082, %v3052
      %3090 = vst.msk [vmem:[%s258 + $0x1c] sm:$0xf] %vm3082, %v3053
      %3091 = vst.msk [vmem:[%s258 + $0x20] sm:$0xf] %vm3082, %v3054
      %3092 = vst.msk [vmem:[%s258 + $0x24] sm:$0xf] %vm3082, %v3055
      %3093 = vst.msk [vmem:[%s258 + $0x28] sm:$0xf] %vm3082, %v3056
      %3094 = vst.msk [vmem:[%s258 + $0x2c] sm:$0xf] %vm3082, %v3057
      %3095 = vst.msk [vmem:[%s258 + $0x30] sm:$0xf] %vm3082, %v3058
      %3096 = vst.msk [vmem:[%s258 + $0x34] sm:$0xf] %vm3082, %v3059
      %3097 = vst.msk [vmem:[%s258 + $0x38] sm:$0xf] %vm3082, %v3060
      %3098 = vst.msk [vmem:[%s258 + $0x3c] sm:$0xf] %vm3082, %v3061
      %3099 = vst.msk [vmem:[%s258 + $0x40] sm:$0xf] %vm3082, %v3062
      %3100 = vst.msk [vmem:[%s258 + $0x44] sm:$0xf] %vm3082, %v3063
      %3101 = vst.msk [vmem:[%s258 + $0x48] sm:$0xf] %vm3082, %v3064
      %3102 = vst.msk [vmem:[%s258 + $0x4c] sm:$0xf] %vm3082, %v3065
      %3103 = vst.msk [vmem:[%s258 + $0x50] sm:$0xf] %vm3082, %v3066
      %3104 = vst.msk [vmem:[%s258 + $0x54] sm:$0xf] %vm3082, %v3067
      %3105 = vst.msk [vmem:[%s258 + $0x58] sm:$0xf] %vm3082, %v3068
      %3106 = vst.msk [vmem:[%s258 + $0x5c] sm:$0xf] %vm3082, %v3069
      %3107 = vst.msk [vmem:[%s258 + $0x60] sm:$0xf] %vm3082, %v3070
      %3108 = vst.msk [vmem:[%s258 + $0x64] sm:$0xf] %vm3082, %v3071
      %3109 = vst.msk [vmem:[%s258 + $0x68] sm:$0xf] %vm3082, %v3072
      %3110 = vst.msk [vmem:[%s258 + $0x6c] sm:$0xf] %vm3082, %v3073
      %3111 = vst.msk [vmem:[%s258 + $0x70] sm:$0xf] %vm3082, %v3074
      %3112 = vst.msk [vmem:[%s258 + $0x74] sm:$0xf] %vm3082, %v3075
      %3113 = vst.msk [vmem:[%s258 + $0x78] sm:$0xf] %vm3082, %v3076
      %3114 = vst.msk [vmem:[%s258 + $0x7c] sm:$0xf] %vm3082, %v3077
      %3115 = vst.msk [vmem:[%s258 + $0x80] sm:$0xf] %vm3082, %v3078
      %3116 = vst.msk [vmem:[%s258 + $0x84] sm:$0xf] %vm3082, %v3079
      %3117 = vst.msk [vmem:[%s258 + $0x88] sm:$0xf] %vm3082, %v3080
      %3118 = vst.msk [vmem:[%s258 + $0x8c] sm:$0xf] %vm3082, %v3081
      %3120 = vset.pattern.permute.xlu0 0
      %3121 = vperm.xlu0 %3120, %v264
      %v3122 = vpop.permute.xlu0 %3121
      %3125 = vset.pattern.permute.xlu0 0
      %3126 = vperm.xlu0 %3125, %v265
      %v3127 = vpop.permute.xlu0 %3126
      %3130 = vset.pattern.permute.xlu0 0
      %3131 = vperm.xlu0 %3130, %v266
      %v3132 = vpop.permute.xlu0 %3131
      %3135 = vset.pattern.permute.xlu0 0
      %3136 = vperm.xlu0 %3135, %v267
      %v3137 = vpop.permute.xlu0 %3136
      %3140 = vset.pattern.permute.xlu0 0
      %3141 = vperm.xlu0 %3140, %v268
      %v3142 = vpop.permute.xlu0 %3141
      %3145 = vset.pattern.permute.xlu0 0
      %3146 = vperm.xlu0 %3145, %v269
      %v3147 = vpop.permute.xlu0 %3146
      %3150 = vset.pattern.permute.xlu0 0
      %3151 = vperm.xlu0 %3150, %v270
      %v3152 = vpop.permute.xlu0 %3151
      %3155 = vset.pattern.permute.xlu0 0
      %3156 = vperm.xlu0 %3155, %v271
      %v3157 = vpop.permute.xlu0 %3156
      %3160 = vset.pattern.permute.xlu0 0
      %3161 = vperm.xlu0 %3160, %v272
      %v3162 = vpop.permute.xlu0 %3161
      %3165 = vset.pattern.permute.xlu0 0
      %3166 = vperm.xlu0 %3165, %v273
      %v3167 = vpop.permute.xlu0 %3166
      %3170 = vset.pattern.permute.xlu0 0
      %3171 = vperm.xlu0 %3170, %v274
      %v3172 = vpop.permute.xlu0 %3171
      %3175 = vset.pattern.permute.xlu0 0
      %3176 = vperm.xlu0 %3175, %v275
      %v3177 = vpop.permute.xlu0 %3176
      %3180 = vset.pattern.permute.xlu0 0
      %3181 = vperm.xlu0 %3180, %v276
      %v3182 = vpop.permute.xlu0 %3181
      %3185 = vset.pattern.permute.xlu0 0
      %3186 = vperm.xlu0 %3185, %v277
      %v3187 = vpop.permute.xlu0 %3186
      %3190 = vset.pattern.permute.xlu0 0
      %3191 = vperm.xlu0 %3190, %v278
      %v3192 = vpop.permute.xlu0 %3191
      %3195 = vset.pattern.permute.xlu0 0
      %3196 = vperm.xlu0 %3195, %v279
      %v3197 = vpop.permute.xlu0 %3196
      %3200 = vset.pattern.permute.xlu0 0
      %3201 = vperm.xlu0 %3200, %v280
      %v3202 = vpop.permute.xlu0 %3201
      %3205 = vset.pattern.permute.xlu0 0
      %3206 = vperm.xlu0 %3205, %v281
      %v3207 = vpop.permute.xlu0 %3206
      %3210 = vset.pattern.permute.xlu0 0
      %3211 = vperm.xlu0 %3210, %v282
      %v3212 = vpop.permute.xlu0 %3211
      %3215 = vset.pattern.permute.xlu0 0
      %3216 = vperm.xlu0 %3215, %v283
      %v3217 = vpop.permute.xlu0 %3216
      %3220 = vset.pattern.permute.xlu0 0
      %3221 = vperm.xlu0 %3220, %v284
      %v3222 = vpop.permute.xlu0 %3221
      %3225 = vset.pattern.permute.xlu0 0
      %3226 = vperm.xlu0 %3225, %v285
      %v3227 = vpop.permute.xlu0 %3226
      %3230 = vset.pattern.permute.xlu0 0
      %3231 = vperm.xlu0 %3230, %v286
      %v3232 = vpop.permute.xlu0 %3231
      %3235 = vset.pattern.permute.xlu0 0
      %3236 = vperm.xlu0 %3235, %v287
      %v3237 = vpop.permute.xlu0 %3236
      %3240 = vset.pattern.permute.xlu0 0
      %3241 = vperm.xlu0 %3240, %v288
      %v3242 = vpop.permute.xlu0 %3241
      %3245 = vset.pattern.permute.xlu0 0
      %3246 = vperm.xlu0 %3245, %v289
      %v3247 = vpop.permute.xlu0 %3246
      %3250 = vset.pattern.permute.xlu0 0
      %3251 = vperm.xlu0 %3250, %v290
      %v3252 = vpop.permute.xlu0 %3251
      %3255 = vset.pattern.permute.xlu0 0
      %3256 = vperm.xlu0 %3255, %v291
      %v3257 = vpop.permute.xlu0 %3256
      %3260 = vset.pattern.permute.xlu0 0
      %3261 = vperm.xlu0 %3260, %v292
      %v3262 = vpop.permute.xlu0 %3261
      %3265 = vset.pattern.permute.xlu0 0
      %3266 = vperm.xlu0 %3265, %v293
      %v3267 = vpop.permute.xlu0 %3266
      %3270 = vset.pattern.permute.xlu0 0
      %3271 = vperm.xlu0 %3270, %v294
      %v3272 = vpop.permute.xlu0 %3271
      %3275 = vset.pattern.permute.xlu0 0
      %3276 = vperm.xlu0 %3275, %v295
      %v3277 = vpop.permute.xlu0 %3276
      %3280 = vset.pattern.permute.xlu0 0
      %3281 = vperm.xlu0 %3280, %v296
      %v3282 = vpop.permute.xlu0 %3281
      %3285 = vset.pattern.permute.xlu0 0
      %3286 = vperm.xlu0 %3285, %v297
      %v3287 = vpop.permute.xlu0 %3286
      %3290 = vset.pattern.permute.xlu0 0
      %3291 = vperm.xlu0 %3290, %v298
      %v3292 = vpop.permute.xlu0 %3291
      %3295 = vset.pattern.permute.xlu0 0
      %3296 = vperm.xlu0 %3295, %v299
      %v3297 = vpop.permute.xlu0 %3296
      %v3299 = vmul.f32 %v3010, %v3122
      %v3300 = vmul.f32 %v3011, %v3127
      %v3301 = vmul.f32 %v3012, %v3132
      %v3302 = vmul.f32 %v3013, %v3137
      %v3303 = vmul.f32 %v3014, %v3142
      %v3304 = vmul.f32 %v3015, %v3147
      %v3305 = vmul.f32 %v3016, %v3152
      %v3306 = vmul.f32 %v3017, %v3157
      %v3307 = vmul.f32 %v3018, %v3162
      %v3308 = vmul.f32 %v3019, %v3167
      %v3309 = vmul.f32 %v3020, %v3172
      %v3310 = vmul.f32 %v3021, %v3177
      %v3311 = vmul.f32 %v3022, %v3182
      %v3312 = vmul.f32 %v3023, %v3187
      %v3313 = vmul.f32 %v3024, %v3192
      %v3314 = vmul.f32 %v3025, %v3197
      %v3315 = vmul.f32 %v3026, %v3202
      %v3316 = vmul.f32 %v3027, %v3207
      %v3317 = vmul.f32 %v3028, %v3212
      %v3318 = vmul.f32 %v3029, %v3217
      %v3319 = vmul.f32 %v3030, %v3222
      %v3320 = vmul.f32 %v3031, %v3227
      %v3321 = vmul.f32 %v3032, %v3232
      %v3322 = vmul.f32 %v3033, %v3237
      %v3323 = vmul.f32 %v3034, %v3242
      %v3324 = vmul.f32 %v3035, %v3247
      %v3325 = vmul.f32 %v3036, %v3252
      %v3326 = vmul.f32 %v3037, %v3257
      %v3327 = vmul.f32 %v3038, %v3262
      %v3328 = vmul.f32 %v3039, %v3267
      %v3329 = vmul.f32 %v3040, %v3272
      %v3330 = vmul.f32 %v3041, %v3277
      %v3331 = vmul.f32 %v3042, %v3282
      %v3332 = vmul.f32 %v3043, %v3287
      %v3333 = vmul.f32 %v3044, %v3292
      %v3334 = vmul.f32 %v3045, %v3297
      %v3335 = vsel %vm582, %v3299, 0.0
      %v3336 = vsel %vm582, %v3300, 0.0
      %v3337 = vadd.f32 %v3335, %v3336
      %v3338 = vsel %vm582, %v3301, 0.0
      %v3339 = vadd.f32 %v3337, %v3338
      %v3340 = vsel %vm582, %v3302, 0.0
      %v3341 = vadd.f32 %v3339, %v3340
      %v3342 = vsel %vm582, %v3303, 0.0
      %v3343 = vadd.f32 %v3341, %v3342
      %v3344 = vsel %vm582, %v3304, 0.0
      %v3345 = vadd.f32 %v3343, %v3344
      %v3346 = vsel %vm582, %v3305, 0.0
      %v3347 = vadd.f32 %v3345, %v3346
      %v3348 = vsel %vm582, %v3306, 0.0
      %v3349 = vadd.f32 %v3347, %v3348
      %v3350 = vsel %vm582, %v3307, 0.0
      %v3351 = vadd.f32 %v3349, %v3350
      %v3352 = vsel %vm582, %v3308, 0.0
      %v3353 = vadd.f32 %v3351, %v3352
      %v3354 = vsel %vm582, %v3309, 0.0
      %v3355 = vadd.f32 %v3353, %v3354
      %v3356 = vsel %vm582, %v3310, 0.0
      %v3357 = vadd.f32 %v3355, %v3356
      %v3358 = vsel %vm582, %v3311, 0.0
      %v3359 = vadd.f32 %v3357, %v3358
      %v3360 = vsel %vm582, %v3312, 0.0
      %v3361 = vadd.f32 %v3359, %v3360
      %v3362 = vsel %vm582, %v3313, 0.0
      %v3363 = vadd.f32 %v3361, %v3362
      %v3364 = vsel %vm582, %v3314, 0.0
      %v3365 = vadd.f32 %v3363, %v3364
      %v3366 = vsel %vm582, %v3315, 0.0
      %v3367 = vadd.f32 %v3365, %v3366
      %v3368 = vsel %vm582, %v3316, 0.0
      %v3369 = vadd.f32 %v3367, %v3368
      %v3370 = vsel %vm582, %v3317, 0.0
      %v3371 = vadd.f32 %v3369, %v3370
      %v3372 = vsel %vm582, %v3318, 0.0
      %v3373 = vadd.f32 %v3371, %v3372
      %v3374 = vsel %vm582, %v3319, 0.0
      %v3375 = vadd.f32 %v3373, %v3374
      %v3376 = vsel %vm582, %v3320, 0.0
      %v3377 = vadd.f32 %v3375, %v3376
      %v3378 = vsel %vm582, %v3321, 0.0
      %v3379 = vadd.f32 %v3377, %v3378
      %v3380 = vsel %vm582, %v3322, 0.0
      %v3381 = vadd.f32 %v3379, %v3380
      %v3382 = vsel %vm582, %v3323, 0.0
      %v3383 = vadd.f32 %v3381, %v3382
      %v3384 = vsel %vm582, %v3324, 0.0
      %v3385 = vadd.f32 %v3383, %v3384
      %v3386 = vsel %vm582, %v3325, 0.0
      %v3387 = vadd.f32 %v3385, %v3386
      %v3388 = vsel %vm582, %v3326, 0.0
      %v3389 = vadd.f32 %v3387, %v3388
      %v3390 = vsel %vm582, %v3327, 0.0
      %v3391 = vadd.f32 %v3389, %v3390
      %v3392 = vsel %vm582, %v3328, 0.0
      %v3393 = vadd.f32 %v3391, %v3392
      %v3394 = vsel %vm582, %v3329, 0.0
      %v3395 = vadd.f32 %v3393, %v3394
      %v3396 = vsel %vm582, %v3330, 0.0
      %v3397 = vadd.f32 %v3395, %v3396
      %v3398 = vsel %vm582, %v3331, 0.0
      %v3399 = vadd.f32 %v3397, %v3398
      %v3400 = vsel %vm582, %v3332, 0.0
      %v3401 = vadd.f32 %v3399, %v3400
      %v3402 = vsel %vm582, %v3333, 0.0
      %v3403 = vadd.f32 %v3401, %v3402
      %v3404 = vsel %vm582, %v3334, 0.0
      %v3405 = vadd.f32 %v3403, %v3404
      %v3406 = vrot.slane %v3405, 4
      %v3407 = vadd.f32 %v3405, %v3406
      %v3408 = vrot.slane %v3407, 2
      %v3409 = vadd.f32 %v3407, %v3408
      %v3410 = vrot.slane %v3409, 1
      %v3411 = vadd.f32 %v3409, %v3410
      %v3412 = vmul.f32 %v3299, %v3299
      %v3413 = vmul.f32 %v3300, %v3300
      %v3414 = vmul.f32 %v3301, %v3301
      %v3415 = vmul.f32 %v3302, %v3302
      %v3416 = vmul.f32 %v3303, %v3303
      %v3417 = vmul.f32 %v3304, %v3304
      %v3418 = vmul.f32 %v3305, %v3305
      %v3419 = vmul.f32 %v3306, %v3306
      %v3420 = vmul.f32 %v3307, %v3307
      %v3421 = vmul.f32 %v3308, %v3308
      %v3422 = vmul.f32 %v3309, %v3309
      %v3423 = vmul.f32 %v3310, %v3310
      %v3424 = vmul.f32 %v3311, %v3311
      %v3425 = vmul.f32 %v3312, %v3312
      %v3426 = vmul.f32 %v3313, %v3313
      %v3427 = vmul.f32 %v3314, %v3314
      %v3428 = vmul.f32 %v3315, %v3315
      %v3429 = vmul.f32 %v3316, %v3316
      %v3430 = vmul.f32 %v3317, %v3317
      %v3431 = vmul.f32 %v3318, %v3318
      %v3432 = vmul.f32 %v3319, %v3319
      %v3433 = vmul.f32 %v3320, %v3320
      %v3434 = vmul.f32 %v3321, %v3321
      %v3435 = vmul.f32 %v3322, %v3322
      %v3436 = vmul.f32 %v3323, %v3323
      %v3437 = vmul.f32 %v3324, %v3324
      %v3438 = vmul.f32 %v3325, %v3325
      %v3439 = vmul.f32 %v3326, %v3326
      %v3440 = vmul.f32 %v3327, %v3327
      %v3441 = vmul.f32 %v3328, %v3328
      %v3442 = vmul.f32 %v3329, %v3329
      %v3443 = vmul.f32 %v3330, %v3330
      %v3444 = vmul.f32 %v3331, %v3331
      %v3445 = vmul.f32 %v3332, %v3332
      %v3446 = vmul.f32 %v3333, %v3333
      %v3447 = vmul.f32 %v3334, %v3334
      %v3448 = vsel %vm582, %v3412, 0.0
      %v3449 = vsel %vm582, %v3413, 0.0
      %v3450 = vadd.f32 %v3448, %v3449
      %v3451 = vsel %vm582, %v3414, 0.0
      %v3452 = vadd.f32 %v3450, %v3451
      %v3453 = vsel %vm582, %v3415, 0.0
      %v3454 = vadd.f32 %v3452, %v3453
      %v3455 = vsel %vm582, %v3416, 0.0
      %v3456 = vadd.f32 %v3454, %v3455
      %v3457 = vsel %vm582, %v3417, 0.0
      %v3458 = vadd.f32 %v3456, %v3457
      %v3459 = vsel %vm582, %v3418, 0.0
      %v3460 = vadd.f32 %v3458, %v3459
      %v3461 = vsel %vm582, %v3419, 0.0
      %v3462 = vadd.f32 %v3460, %v3461
      %v3463 = vsel %vm582, %v3420, 0.0
      %v3464 = vadd.f32 %v3462, %v3463
      %v3465 = vsel %vm582, %v3421, 0.0
      %v3466 = vadd.f32 %v3464, %v3465
      %v3467 = vsel %vm582, %v3422, 0.0
      %v3468 = vadd.f32 %v3466, %v3467
      %v3469 = vsel %vm582, %v3423, 0.0
      %v3470 = vadd.f32 %v3468, %v3469
      %v3471 = vsel %vm582, %v3424, 0.0
      %v3472 = vadd.f32 %v3470, %v3471
      %v3473 = vsel %vm582, %v3425, 0.0
      %v3474 = vadd.f32 %v3472, %v3473
      %v3475 = vsel %vm582, %v3426, 0.0
      %v3476 = vadd.f32 %v3474, %v3475
      %v3477 = vsel %vm582, %v3427, 0.0
      %v3478 = vadd.f32 %v3476, %v3477
      %v3479 = vsel %vm582, %v3428, 0.0
      %v3480 = vadd.f32 %v3478, %v3479
      %v3481 = vsel %vm582, %v3429, 0.0
      %v3482 = vadd.f32 %v3480, %v3481
      %v3483 = vsel %vm582, %v3430, 0.0
      %v3484 = vadd.f32 %v3482, %v3483
      %v3485 = vsel %vm582, %v3431, 0.0
      %v3486 = vadd.f32 %v3484, %v3485
      %v3487 = vsel %vm582, %v3432, 0.0
      %v3488 = vadd.f32 %v3486, %v3487
      %v3489 = vsel %vm582, %v3433, 0.0
      %v3490 = vadd.f32 %v3488, %v3489
      %v3491 = vsel %vm582, %v3434, 0.0
      %v3492 = vadd.f32 %v3490, %v3491
      %v3493 = vsel %vm582, %v3435, 0.0
      %v3494 = vadd.f32 %v3492, %v3493
      %v3495 = vsel %vm582, %v3436, 0.0
      %v3496 = vadd.f32 %v3494, %v3495
      %v3497 = vsel %vm582, %v3437, 0.0
      %v3498 = vadd.f32 %v3496, %v3497
      %v3499 = vsel %vm582, %v3438, 0.0
      %v3500 = vadd.f32 %v3498, %v3499
      %v3501 = vsel %vm582, %v3439, 0.0
      %v3502 = vadd.f32 %v3500, %v3501
      %v3503 = vsel %vm582, %v3440, 0.0
      %v3504 = vadd.f32 %v3502, %v3503
      %v3505 = vsel %vm582, %v3441, 0.0
      %v3506 = vadd.f32 %v3504, %v3505
      %v3507 = vsel %vm582, %v3442, 0.0
      %v3508 = vadd.f32 %v3506, %v3507
      %v3509 = vsel %vm582, %v3443, 0.0
      %v3510 = vadd.f32 %v3508, %v3509
      %v3511 = vsel %vm582, %v3444, 0.0
      %v3512 = vadd.f32 %v3510, %v3511
      %v3513 = vsel %vm582, %v3445, 0.0
      %v3514 = vadd.f32 %v3512, %v3513
      %v3515 = vsel %vm582, %v3446, 0.0
      %v3516 = vadd.f32 %v3514, %v3515
      %v3517 = vsel %vm582, %v3447, 0.0
      %v3518 = vadd.f32 %v3516, %v3517
      %v3519 = vrot.slane %v3518, 4
      %v3520 = vadd.f32 %v3518, %v3519
      %v3521 = vrot.slane %v3520, 2
      %v3522 = vadd.f32 %v3520, %v3521
      %v3523 = vrot.slane %v3522, 1
      %v3524 = vadd.f32 %v3522, %v3523
      %vm3525 = vcmask 1040384
      %v3526 = vsel %vm3525, %v3411, %v3524
      %vm3527 = vcmask 25600
      %3528 = vst.msk [vmem:[%s262] sm:$0x3] %vm3527, %v3526
      %p3529 = scmp.lt.s32.totalorder %s18, 1
      %s3530 = scalar_select %p3529, %s18, 1
      %s3531 = smul.addr %s3530, 36
      %s3532 = smul.addr %s3531, 4
      %s3533 = scalar_lea.vmem %s5, %s3532
      %p3534 = scmp.lt.s32.totalorder %s18, 1
      %s3535 = scalar_select %p3534, %s18, 1
      %s3536 = smul.addr %s3535, 2
      %s3537 = scalar_lea.vmem %s6, %s3536
      // Predicated region
      $region41: #{basic_block_forward.3} parent=39 // pred_check
        %p3538 = pneg %p146
      $region42: #{basic_block_forward.3} parent=39 // pred_check_branch
        %3540 = sbr.rel (%p3538) target = $region44
      $region43: #{basic_block_forward.3} parent=39 // pred_region
        _
      $region44: #{basic_block_forward.3} parent=39 // pred_fallthru
        _
      // Predicated region
      $region45: #{basic_block_forward.3} parent=39 // pred_check
        %p3541 = pneg %p172
      $region46: #{basic_block_forward.3} parent=39 // pred_check_branch
        %3543 = sbr.rel (%p3541) target = $region48
      $region47: #{basic_block_forward.3} parent=39 // pred_region
        _
      $region48: #{basic_block_forward.3} parent=39 // pred_fallthru
        _
    $region40: #{basic_block_forward.3} parent=5 // pred_fallthru
      _
    %p3544 = scmp.le.s32.totalorder 2, %s13
    // Predicated region
    $region49: #{basic_block_forward.3} parent=5 // pred_check
      %p3545 = pneg %p3544
    $region50: #{basic_block_forward.3} parent=5 // pred_check_branch
      %3547 = sbr.rel (%p3545) target = $region52
    $region51: #{basic_block_forward.3} parent=5 // pred_region
      %s3548 = ssub.s32 %s13, 2
      // Predicated region
      $region53: #{basic_block_forward.3} parent=51 // pred_check
        %p3549 = pneg %p152
      $region54: #{basic_block_forward.3} parent=51 // pred_check_branch
        %3551 = sbr.rel (%p3549) target = $region56
      $region55: #{basic_block_forward.3} parent=51 // pred_region
        %p3552 = scmp.lt.s32.totalorder %s19, 1
        %s3553 = scalar_select %p3552, %s19, 1
        %s3554 = smul.addr %s3553, 36
        %s3555 = smul.addr %s3554, 4
        %s3556 = scalar_lea.vmem %s5, %s3555
      $region56: #{basic_block_forward.3} parent=51 // pred_fallthru
        _
      // Predicated region
      $region57: #{basic_block_forward.3} parent=51 // pred_check
        %p3557 = pneg %p178
      $region58: #{basic_block_forward.3} parent=51 // pred_check_branch
        %3559 = sbr.rel (%p3557) target = $region60
      $region59: #{basic_block_forward.3} parent=51 // pred_region
        %p3560 = scmp.lt.s32.totalorder %s19, 1
        %s3561 = scalar_select %p3560, %s19, 1
        %s3562 = smul.addr %s3561, 2
        %s3563 = scalar_lea.vmem %s6, %s3562
      $region60: #{basic_block_forward.3} parent=51 // pred_fallthru
        _
    $region52: #{basic_block_forward.3} parent=5 // pred_fallthru
      _
  $region6: #{basic_block_forward.3} parent=0 // loop_footer
    %s17 = sadd.s32 1, %s13
  $region7: #{basic_block_forward.3} parent=0 // loop_footer_branch
    %12 = sbr.rel target = $region3
  $region8: #{basic_block_forward.3} parent=0 // loop_exit
    _

// kernel: basic_block_forward.4
$region0: #{basic_block_forward.4}
  #allocation0 [shape = 'u32[]', space=smem, size = 0x4, offset = 0x4, fixed_abs, tag = 'smem constant byte address 0x4 - core index']
  #allocation1 [shape = 'u32[72,128]{1,0:T(1,128)}', space=vmem, size = 0x9000, scoped, tag = 'internal scratch']
  #allocation2 [shape = 'bf16[326,4]{1,0:T(8,128)(2,1)}', space=vmem, size = 0x14800, scoped, tag = 'scratch operand']
  %s0 = inlined_call_operand.vmem [shape: bf16[2,288,4], index: 0, kind: input, shape index: {}]
  %s1 = inlined_call_operand.vmem [shape: bf16[9,4,4], index: 1, kind: input, shape index: {}]
  %s2 = inlined_call_operand.vmem [shape: f32[1,4], index: 2, kind: input, shape index: {}]
  %s3 = inlined_call_operand.vmem [shape: f32[1,4], index: 3, kind: input, shape index: {}]
  %s4 = inlined_call_operand.vmem [shape: f32[288,1], index: 4, kind: input, shape index: {}]
  %s5 = inlined_call_operand.vmem [shape: bf16[2,288,4], index: 5, kind: output, shape index: {0}]
  %s6 = inlined_call_operand.vmem [shape: f32[2,2,4], index: 6, kind: output, shape index: {1}]
  %7 = xla_tuple %s5, %s6
  %s8 = sld [smem:[#allocation0]]
  $region61: #{basic_block_forward.4} parent=0
    _
  %s10 = ssub.s32 1, %s8
  %s11 = scalar_select 0, %s10, %s8
  loop: start=0, step=1, limit=4
  $region2: #{basic_block_forward.4} parent=0 // loop_pre_header
    _
  $region3: #{basic_block_forward.4} parent=0 // loop_header
    %s13 = sphi 0, %s17
    %p14 = scmp.ge.s32.totalorder %s13, 4
    %s23 = sphi 0, %s25
    %s26 = sphi 0, %s23
    %s27 = sphi 0, %s26
    %s43 = sphi 0, %s27
    %s47 = sphi 0, %s47
    %s49 = sphi 0, %s47
    %s50 = sphi 0, %s49
    %s64 = sphi 0, %s50
    %s68 = sphi 0, %s68
    %s70 = sphi 0, %s68
    %s71 = sphi 0, %s70
    %s85 = sphi 0, %s71
    %s89 = sphi 0, %s89
    %s91 = sphi 0, %s89
    %s92 = sphi 0, %s91
    %s106 = sphi 0, %s92
    %s110 = sphi 0, %s110
    %s112 = sphi 0, %s110
    %s113 = sphi 0, %s112
    %s127 = sphi 0, %s113
    %s133 = sphi 0, %s135
    %s136 = sphi 0, %s133
    %s137 = sphi 0, %s136
    %s153 = sphi 0, %s137
    %s159 = sphi 0, %s161
    %s162 = sphi 0, %s159
    %s163 = sphi 0, %s162
    %s179 = sphi 0, %s163
  $region4: #{basic_block_forward.4} parent=0 // loop_header_branch
    %16 = sbr.rel (%p14) target = $region8
  $region5: #{basic_block_forward.4} parent=0 // loop_body
    %s18 = ssub.s32 %s13, 1
    %s19 = ssub.s32 %s13, 2
    %s20 = sadd.s32 %s13, 1
    %s21 = ssub.s32 %s13, %s20
    %p22 = scmp.eq.s32.totalorder %s21, 0
    %s24 = sadd.s32 %s23, 1
    %s25 = scalar_select %p22, %s23, %s24
    %p28 = pneg %p22
    %p29 = scmp.eq.s32.totalorder %s13, 1
    %p30 = por %p28, %p29
    %p31 = scmp.ne.s32.totalorder %s23, %s26
    %p32 = scmp.eq.s32.totalorder %s13, 0
    %p33 = por %p31, %p32
    %p34 = scmp.ne.s32.totalorder %s23, %s26
    %p35 = scmp.eq.s32.totalorder %s18, 1
    %p36 = por %p34, %p35
    %p37 = scmp.ne.s32.totalorder %s26, %s27
    %p38 = scmp.eq.s32.totalorder %s18, 0
    %p39 = por %p37, %p38
    %p40 = scmp.ne.s32.totalorder %s26, %s27
    %p41 = scmp.eq.s32.totalorder %s19, 1
    %p42 = por %p40, %p41
    %p44 = scmp.ne.s32.totalorder %s27, %s43
    %p45 = scmp.eq.s32.totalorder %s19, 0
    %p46 = por %p44, %p45
    %s48 = sadd.s32 %s47, 1
    %p51 = scmp.eq.s32.totalorder %s13, 1
    %p52 = scmp.ne.s32.totalorder %s47, %s49
    %p53 = scmp.eq.s32.totalorder %s13, 0
    %p54 = por %p52, %p53
    %p55 = scmp.ne.s32.totalorder %s47, %s49
    %p56 = scmp.eq.s32.totalorder %s18, 1
    %p57 = por %p55, %p56
    %p58 = scmp.ne.s32.totalorder %s49, %s50
    %p59 = scmp.eq.s32.totalorder %s18, 0
    %p60 = por %p58, %p59
    %p61 = scmp.ne.s32.totalorder %s49, %s50
    %p62 = scmp.eq.s32.totalorder %s19, 1
    %p63 = por %p61, %p62
    %p65 = scmp.ne.s32.totalorder %s50, %s64
    %p66 = scmp.eq.s32.totalorder %s19, 0
    %p67 = por %p65, %p66
    %s69 = sadd.s32 %s68, 1
    %p72 = scmp.eq.s32.totalorder %s13, 1
    %p73 = scmp.ne.s32.totalorder %s68, %s70
    %p74 = scmp.eq.s32.totalorder %s13, 0
    %p75 = por %p73, %p74
    %p76 = scmp.ne.s32.totalorder %s68, %s70
    %p77 = scmp.eq.s32.totalorder %s18, 1
    %p78 = por %p76, %p77
    %p79 = scmp.ne.s32.totalorder %s70, %s71
    %p80 = scmp.eq.s32.totalorder %s18, 0
    %p81 = por %p79, %p80
    %p82 = scmp.ne.s32.totalorder %s70, %s71
    %p83 = scmp.eq.s32.totalorder %s19, 1
    %p84 = por %p82, %p83
    %p86 = scmp.ne.s32.totalorder %s71, %s85
    %p87 = scmp.eq.s32.totalorder %s19, 0
    %p88 = por %p86, %p87
    %s90 = sadd.s32 %s89, 1
    %p93 = scmp.eq.s32.totalorder %s13, 1
    %p94 = scmp.ne.s32.totalorder %s89, %s91
    %p95 = scmp.eq.s32.totalorder %s13, 0
    %p96 = por %p94, %p95
    %p97 = scmp.ne.s32.totalorder %s89, %s91
    %p98 = scmp.eq.s32.totalorder %s18, 1
    %p99 = por %p97, %p98
    %p100 = scmp.ne.s32.totalorder %s91, %s92
    %p101 = scmp.eq.s32.totalorder %s18, 0
    %p102 = por %p100, %p101
    %p103 = scmp.ne.s32.totalorder %s91, %s92
    %p104 = scmp.eq.s32.totalorder %s19, 1
    %p105 = por %p103, %p104
    %p107 = scmp.ne.s32.totalorder %s92, %s106
    %p108 = scmp.eq.s32.totalorder %s19, 0
    %p109 = por %p107, %p108
    %s111 = sadd.s32 %s110, 1
    %p114 = scmp.eq.s32.totalorder %s13, 1
    %p115 = scmp.ne.s32.totalorder %s110, %s112
    %p116 = scmp.eq.s32.totalorder %s13, 0
    %p117 = por %p115, %p116
    %p118 = scmp.ne.s32.totalorder %s110, %s112
    %p119 = scmp.eq.s32.totalorder %s18, 1
    %p120 = por %p118, %p119
    %p121 = scmp.ne.s32.totalorder %s112, %s113
    %p122 = scmp.eq.s32.totalorder %s18, 0
    %p123 = por %p121, %p122
    %p124 = scmp.ne.s32.totalorder %s112, %s113
    %p125 = scmp.eq.s32.totalorder %s19, 1
    %p126 = por %p124, %p125
    %p128 = scmp.ne.s32.totalorder %s113, %s127
    %p129 = scmp.eq.s32.totalorder %s19, 0
    %p130 = por %p128, %p129
    %s131 = ssub.s32 %s13, %s20
    %p132 = scmp.eq.s32.totalorder %s131, 0
    %s134 = sadd.s32 %s133, 1
    %s135 = scalar_select %p132, %s133, %s134
    %p138 = pneg %p132
    %p139 = scmp.eq.s32.totalorder %s13, 1
    %p140 = por %p138, %p139
    %p141 = scmp.ne.s32.totalorder %s133, %s136
    %p142 = scmp.eq.s32.totalorder %s13, 0
    %p143 = por %p141, %p142
    %p144 = scmp.ne.s32.totalorder %s133, %s136
    %p145 = scmp.eq.s32.totalorder %s18, 1
    %p146 = por %p144, %p145
    %p147 = scmp.ne.s32.totalorder %s136, %s137
    %p148 = scmp.eq.s32.totalorder %s18, 0
    %p149 = por %p147, %p148
    %p150 = scmp.ne.s32.totalorder %s136, %s137
    %p151 = scmp.eq.s32.totalorder %s19, 1
    %p152 = por %p150, %p151
    %p154 = scmp.ne.s32.totalorder %s137, %s153
    %p155 = scmp.eq.s32.totalorder %s19, 0
    %p156 = por %p154, %p155
    %s157 = ssub.s32 %s13, %s20
    %p158 = scmp.eq.s32.totalorder %s157, 0
    %s160 = sadd.s32 %s159, 1
    %s161 = scalar_select %p158, %s159, %s160
    %p164 = pneg %p158
    %p165 = scmp.eq.s32.totalorder %s13, 1
    %p166 = por %p164, %p165
    %p167 = scmp.ne.s32.totalorder %s159, %s162
    %p168 = scmp.eq.s32.totalorder %s13, 0
    %p169 = por %p167, %p168
    %p170 = scmp.ne.s32.totalorder %s159, %s162
    %p171 = scmp.eq.s32.totalorder %s18, 1
    %p172 = por %p170, %p171
    %p173 = scmp.ne.s32.totalorder %s162, %s163
    %p174 = scmp.eq.s32.totalorder %s18, 0
    %p175 = por %p173, %p174
    %p176 = scmp.ne.s32.totalorder %s162, %s163
    %p177 = scmp.eq.s32.totalorder %s19, 1
    %p178 = por %p176, %p177
    %p180 = scmp.ne.s32.totalorder %s163, %s179
    %p181 = scmp.eq.s32.totalorder %s19, 0
    %p182 = por %p180, %p181
    %p183 = scmp.le.s32.totalorder 1, %s13
    %p184 = scmp.lt.s32.totalorder %s13, 3
    %p185 = pnand %p183, %p184
    %p186 = pneg %p185
    // Predicated region
    $region9: #{basic_block_forward.4} parent=5 // pred_check
      _
    $region10: #{basic_block_forward.4} parent=5 // pred_check_branch
      %188 = sbr.rel (%p185) target = $region12
    $region11: #{basic_block_forward.4} parent=5 // pred_region
      %s189 = ssub.s32 %s13, 1
      // Predicated region
      $region13: #{basic_block_forward.4} parent=11 // pred_check
        %p190 = pneg %p60
      $region14: #{basic_block_forward.4} parent=11 // pred_check_branch
        %192 = sbr.rel (%p190) target = $region16
      $region15: #{basic_block_forward.4} parent=11 // pred_region
        _
      $region16: #{basic_block_forward.4} parent=11 // pred_fallthru
        _
      // Predicated region
      $region17: #{basic_block_forward.4} parent=11 // pred_check
        %p193 = pneg %p81
      $region18: #{basic_block_forward.4} parent=11 // pred_check_branch
        %195 = sbr.rel (%p193) target = $region20
      $region19: #{basic_block_forward.4} parent=11 // pred_region
        _
      $region20: #{basic_block_forward.4} parent=11 // pred_fallthru
        _
      // Predicated region
      $region21: #{basic_block_forward.4} parent=11 // pred_check
        %p196 = pneg %p102
      $region22: #{basic_block_forward.4} parent=11 // pred_check_branch
        %198 = sbr.rel (%p196) target = $region24
      $region23: #{basic_block_forward.4} parent=11 // pred_region
        _
      $region24: #{basic_block_forward.4} parent=11 // pred_fallthru
        _
      // Predicated region
      $region25: #{basic_block_forward.4} parent=11 // pred_check
        %p199 = pneg %p123
      $region26: #{basic_block_forward.4} parent=11 // pred_check_branch
        %201 = sbr.rel (%p199) target = $region28
      $region27: #{basic_block_forward.4} parent=11 // pred_region
        _
      $region28: #{basic_block_forward.4} parent=11 // pred_fallthru
        _
    $region12: #{basic_block_forward.4} parent=5 // pred_fallthru
      _
    %p202 = scmp.lt.s32.totalorder %s13, 2
    // Predicated region
    $region29: #{basic_block_forward.4} parent=5 // pred_check
      %p203 = pneg %p202
    $region30: #{basic_block_forward.4} parent=5 // pred_check_branch
      %205 = sbr.rel (%p203) target = $region32
    $region31: #{basic_block_forward.4} parent=5 // pred_region
      // Predicated region
      $region33: #{basic_block_forward.4} parent=31 // pred_check
        %p206 = pneg %p33
      $region34: #{basic_block_forward.4} parent=31 // pred_check_branch
        %208 = sbr.rel (%p206) target = $region36
      $region35: #{basic_block_forward.4} parent=31 // pred_region
        %p209 = scmp.lt.s32.totalorder %s13, 1
        %s210 = scalar_select %p209, %s13, 1
        %s211 = smul.addr %s210, 36
        %s212 = smul.addr %s211, 4
        %s213 = scalar_lea.vmem %s0, %s212
      $region36: #{basic_block_forward.4} parent=31 // pred_fallthru
        _
    $region32: #{basic_block_forward.4} parent=5 // pred_fallthru
      _
    %p214 = scmp.le.s32.totalorder 1, %s13
    %p215 = scmp.lt.s32.totalorder %s13, 3
    %p216 = pnand %p214, %p215
    %p217 = pneg %p216
    // Predicated region
    $region37: #{basic_block_forward.4} parent=5 // pred_check
      _
    $region38: #{basic_block_forward.4} parent=5 // pred_check_branch
      %219 = sbr.rel (%p216) target = $region40
    $region39: #{basic_block_forward.4} parent=5 // pred_region
      %s220 = ssub.s32 %s13, 1
      %p221 = scmp.lt.s32.totalorder %s18, 1
      %s222 = scalar_select %p221, %s18, 1
      %s223 = smul.addr %s222, 36
      %s224 = smul.addr %s223, 4
      %s225 = scalar_lea.vmem %s0, %s224
      %p226 = pneg %p39
      %p227 = pneg %p36
      %p228 = pneg %p60
      %p229 = pneg %p57
      %p230 = pneg %p81
      %p231 = pneg %p78
      %p232 = pneg %p102
      %p233 = pneg %p99
      %p234 = pneg %p123
      %p235 = pneg %p120
      %p236 = pneg %p149
      %p237 = pneg %p146
      %p238 = scmp.lt.s32.totalorder %s18, 1
      %s239 = scalar_select %p238, %s18, 1
      %s240 = smul.addr %s239, 36
      %s241 = smul.addr %s240, 4
      %s242 = scalar_lea.vmem %s5, %s241
      %p243 = pneg %p175
      %p244 = pneg %p172
      %p245 = scmp.lt.s32.totalorder %s18, 1
      %s246 = scalar_select %p245, %s18, 1
      %s247 = smul.addr %s246, 2
      %s248 = scalar_lea.vmem %s6, %s247
      %p249 = scmp.lt.s32.totalorder %s18, 1
      %s250 = scalar_select %p249, %s18, 1
      %s251 = smul.addr %s250, 36
      %s252 = smul.addr %s251, 4
      %s253 = scalar_lea.vmem %s0, %s252
      %p254 = scmp.lt.s32.totalorder %s18, 1
      %s255 = scalar_select %p254, %s18, 1
      %s256 = smul.addr %s255, 36
      %s257 = smul.addr %s256, 4
      %s258 = scalar_lea.vmem %s5, %s257
      %p259 = scmp.lt.s32.totalorder %s18, 1
      %s260 = scalar_select %p259, %s18, 1
      %s261 = smul.addr %s260, 2
      %s262 = scalar_lea.vmem %s6, %s261
      %v264 = vld [vmem:[%s4] sm:$0xff]
      %v265 = vld [vmem:[%s4 + $0x8] sm:$0xff]
      %v266 = vld [vmem:[%s4 + $0x10] sm:$0xff]
      %v267 = vld [vmem:[%s4 + $0x18] sm:$0xff]
      %v268 = vld [vmem:[%s4 + $0x20] sm:$0xff]
      %v269 = vld [vmem:[%s4 + $0x28] sm:$0xff]
      %v270 = vld [vmem:[%s4 + $0x30] sm:$0xff]
      %v271 = vld [vmem:[%s4 + $0x38] sm:$0xff]
      %v272 = vld [vmem:[%s4 + $0x40] sm:$0xff]
      %v273 = vld [vmem:[%s4 + $0x48] sm:$0xff]
      %v274 = vld [vmem:[%s4 + $0x50] sm:$0xff]
      %v275 = vld [vmem:[%s4 + $0x58] sm:$0xff]
      %v276 = vld [vmem:[%s4 + $0x60] sm:$0xff]
      %v277 = vld [vmem:[%s4 + $0x68] sm:$0xff]
      %v278 = vld [vmem:[%s4 + $0x70] sm:$0xff]
      %v279 = vld [vmem:[%s4 + $0x78] sm:$0xff]
      %v280 = vld [vmem:[%s4 + $0x80] sm:$0xff]
      %v281 = vld [vmem:[%s4 + $0x88] sm:$0xff]
      %v282 = vld [vmem:[%s4 + $0x90] sm:$0xff]
      %v283 = vld [vmem:[%s4 + $0x98] sm:$0xff]
      %v284 = vld [vmem:[%s4 + $0xa0] sm:$0xff]
      %v285 = vld [vmem:[%s4 + $0xa8] sm:$0xff]
      %v286 = vld [vmem:[%s4 + $0xb0] sm:$0xff]
      %v287 = vld [vmem:[%s4 + $0xb8] sm:$0xff]
      %v288 = vld [vmem:[%s4 + $0xc0] sm:$0xff]
      %v289 = vld [vmem:[%s4 + $0xc8] sm:$0xff]
      %v290 = vld [vmem:[%s4 + $0xd0] sm:$0xff]
      %v291 = vld [vmem:[%s4 + $0xd8] sm:$0xff]
      %v292 = vld [vmem:[%s4 + $0xe0] sm:$0xff]
      %v293 = vld [vmem:[%s4 + $0xe8] sm:$0xff]
      %v294 = vld [vmem:[%s4 + $0xf0] sm:$0xff]
      %v295 = vld [vmem:[%s4 + $0xf8] sm:$0xff]
      %v296 = vld [vmem:[%s4 + $0x100] sm:$0xff]
      %v297 = vld [vmem:[%s4 + $0x108] sm:$0xff]
      %v298 = vld [vmem:[%s4 + $0x110] sm:$0xff]
      %v299 = vld [vmem:[%s4 + $0x118] sm:$0xff]
      %v300 = vld [vmem:[%s253] sm:$0xf]
      %v301 = vld [vmem:[%s253 + $0x4] sm:$0xf]
      %v302 = vld [vmem:[%s253 + $0x8] sm:$0xf]
      %v303 = vld [vmem:[%s253 + $0xc] sm:$0xf]
      %v304 = vld [vmem:[%s253 + $0x10] sm:$0xf]
      %v305 = vld [vmem:[%s253 + $0x14] sm:$0xf]
      %v306 = vld [vmem:[%s253 + $0x18] sm:$0xf]
      %v307 = vld [vmem:[%s253 + $0x1c] sm:$0xf]
      %v308 = vld [vmem:[%s253 + $0x20] sm:$0xf]
      %v309 = vld [vmem:[%s253 + $0x24] sm:$0xf]
      %v310 = vld [vmem:[%s253 + $0x28] sm:$0xf]
      %v311 = vld [vmem:[%s253 + $0x2c] sm:$0xf]
      %v312 = vld [vmem:[%s253 + $0x30] sm:$0xf]
      %v313 = vld [vmem:[%s253 + $0x34] sm:$0xf]
      %v314 = vld [vmem:[%s253 + $0x38] sm:$0xf]
      %v315 = vld [vmem:[%s253 + $0x3c] sm:$0xf]
      %v316 = vld [vmem:[%s253 + $0x40] sm:$0xf]
      %v317 = vld [vmem:[%s253 + $0x44] sm:$0xf]
      %v318 = vld [vmem:[%s253 + $0x48] sm:$0xf]
      %v319 = vld [vmem:[%s253 + $0x4c] sm:$0xf]
      %v320 = vld [vmem:[%s253 + $0x50] sm:$0xf]
      %v321 = vld [vmem:[%s253 + $0x54] sm:$0xf]
      %v322 = vld [vmem:[%s253 + $0x58] sm:$0xf]
      %v323 = vld [vmem:[%s253 + $0x5c] sm:$0xf]
      %v324 = vld [vmem:[%s253 + $0x60] sm:$0xf]
      %v325 = vld [vmem:[%s253 + $0x64] sm:$0xf]
      %v326 = vld [vmem:[%s253 + $0x68] sm:$0xf]
      %v327 = vld [vmem:[%s253 + $0x6c] sm:$0xf]
      %v328 = vld [vmem:[%s253 + $0x70] sm:$0xf]
      %v329 = vld [vmem:[%s253 + $0x74] sm:$0xf]
      %v330 = vld [vmem:[%s253 + $0x78] sm:$0xf]
      %v331 = vld [vmem:[%s253 + $0x7c] sm:$0xf]
      %v332 = vld [vmem:[%s253 + $0x80] sm:$0xf]
      %v333 = vld [vmem:[%s253 + $0x84] sm:$0xf]
      %v334 = vld [vmem:[%s253 + $0x88] sm:$0xf]
      %v335 = vld [vmem:[%s253 + $0x8c] sm:$0xf]
      %v336 = vunpack.c.l.bf16 %v300
      %v337 = vunpack.c.l.bf16 %v301
      %v338 = vunpack.c.l.bf16 %v302
      %v339 = vunpack.c.l.bf16 %v303
      %v340 = vunpack.c.l.bf16 %v304
      %v341 = vunpack.c.l.bf16 %v305
      %v342 = vunpack.c.l.bf16 %v306
      %v343 = vunpack.c.l.bf16 %v307
      %v344 = vunpack.c.l.bf16 %v308
      %v345 = vunpack.c.l.bf16 %v309
      %v346 = vunpack.c.l.bf16 %v310
      %v347 = vunpack.c.l.bf16 %v311
      %v348 = vunpack.c.l.bf16 %v312
      %v349 = vunpack.c.l.bf16 %v313
      %v350 = vunpack.c.l.bf16 %v314
      %v351 = vunpack.c.l.bf16 %v315
      %v352 = vunpack.c.l.bf16 %v316
      %v353 = vunpack.c.l.bf16 %v317
      %v354 = vunpack.c.l.bf16 %v318
      %v355 = vunpack.c.l.bf16 %v319
      %v356 = vunpack.c.l.bf16 %v320
      %v357 = vunpack.c.l.bf16 %v321
      %v358 = vunpack.c.l.bf16 %v322
      %v359 = vunpack.c.l.bf16 %v323
      %v360 = vunpack.c.l.bf16 %v324
      %v361 = vunpack.c.l.bf16 %v325
      %v362 = vunpack.c.l.bf16 %v326
      %v363 = vunpack.c.l.bf16 %v327
      %v364 = vunpack.c.l.bf16 %v328
      %v365 = vunpack.c.l.bf16 %v329
      %v366 = vunpack.c.l.bf16 %v330
      %v367 = vunpack.c.l.bf16 %v331
      %v368 = vunpack.c.l.bf16 %v332
      %v369 = vunpack.c.l.bf16 %v333
      %v370 = vunpack.c.l.bf16 %v334
      %v371 = vunpack.c.l.bf16 %v335
      %v372 = vld [vmem:[%s2] sm:$0x1]
      %v374 = vperm.slane %v372, 0
      %v376 = vmul.f32 %v336, %v374
      %v377 = vmul.f32 %v337, %v374
      %v378 = vmul.f32 %v338, %v374
      %v379 = vmul.f32 %v339, %v374
      %v380 = vmul.f32 %v340, %v374
      %v381 = vmul.f32 %v341, %v374
      %v382 = vmul.f32 %v342, %v374
      %v383 = vmul.f32 %v343, %v374
      %v384 = vmul.f32 %v344, %v374
      %v385 = vmul.f32 %v345, %v374
      %v386 = vmul.f32 %v346, %v374
      %v387 = vmul.f32 %v347, %v374
      %v388 = vmul.f32 %v348, %v374
      %v389 = vmul.f32 %v349, %v374
      %v390 = vmul.f32 %v350, %v374
      %v391 = vmul.f32 %v351, %v374
      %v392 = vmul.f32 %v352, %v374
      %v393 = vmul.f32 %v353, %v374
      %v394 = vmul.f32 %v354, %v374
      %v395 = vmul.f32 %v355, %v374
      %v396 = vmul.f32 %v356, %v374
      %v397 = vmul.f32 %v357, %v374
      %v398 = vmul.f32 %v358, %v374
      %v399 = vmul.f32 %v359, %v374
      %v400 = vmul.f32 %v360, %v374
      %v401 = vmul.f32 %v361, %v374
      %v402 = vmul.f32 %v362, %v374
      %v403 = vmul.f32 %v363, %v374
      %v404 = vmul.f32 %v364, %v374
      %v405 = vmul.f32 %v365, %v374
      %v406 = vmul.f32 %v366, %v374
      %v407 = vmul.f32 %v367, %v374
      %v408 = vmul.f32 %v368, %v374
      %v409 = vmul.f32 %v369, %v374
      %v410 = vmul.f32 %v370, %v374
      %v411 = vmul.f32 %v371, %v374
      %v412 = vld [vmem:[%s3] sm:$0x1]
      %v414 = vperm.slane %v412, 0
      %v416 = vadd.f32 %v376, %v414
      %v417 = vadd.f32 %v377, %v414
      %v418 = vadd.f32 %v378, %v414
      %v419 = vadd.f32 %v379, %v414
      %v420 = vadd.f32 %v380, %v414
      %v421 = vadd.f32 %v381, %v414
      %v422 = vadd.f32 %v382, %v414
      %v423 = vadd.f32 %v383, %v414
      %v424 = vadd.f32 %v384, %v414
      %v425 = vadd.f32 %v385, %v414
      %v426 = vadd.f32 %v386, %v414
      %v427 = vadd.f32 %v387, %v414
      %v428 = vadd.f32 %v388, %v414
      %v429 = vadd.f32 %v389, %v414
      %v430 = vadd.f32 %v390, %v414
      %v431 = vadd.f32 %v391, %v414
      %v432 = vadd.f32 %v392, %v414
      %v433 = vadd.f32 %v393, %v414
      %v434 = vadd.f32 %v394, %v414
      %v435 = vadd.f32 %v395, %v414
      %v436 = vadd.f32 %v396, %v414
      %v437 = vadd.f32 %v397, %v414
      %v438 = vadd.f32 %v398, %v414
      %v439 = vadd.f32 %v399, %v414
      %v440 = vadd.f32 %v400, %v414
      %v441 = vadd.f32 %v401, %v414
      %v442 = vadd.f32 %v402, %v414
      %v443 = vadd.f32 %v403, %v414
      %v444 = vadd.f32 %v404, %v414
      %v445 = vadd.f32 %v405, %v414
      %v446 = vadd.f32 %v406, %v414
      %v447 = vadd.f32 %v407, %v414
      %v448 = vadd.f32 %v408, %v414
      %v449 = vadd.f32 %v409, %v414
      %v450 = vadd.f32 %v410, %v414
      %v451 = vadd.f32 %v411, %v414
      %v452 = vmax.f32 %v416, 0.0
      %v453 = vmax.f32 %v417, 0.0
      %v454 = vmax.f32 %v418, 0.0
      %v455 = vmax.f32 %v419, 0.0
      %v456 = vmax.f32 %v420, 0.0
      %v457 = vmax.f32 %v421, 0.0
      %v458 = vmax.f32 %v422, 0.0
      %v459 = vmax.f32 %v423, 0.0
      %v460 = vmax.f32 %v424, 0.0
      %v461 = vmax.f32 %v425, 0.0
      %v462 = vmax.f32 %v426, 0.0
      %v463 = vmax.f32 %v427, 0.0
      %v464 = vmax.f32 %v428, 0.0
      %v465 = vmax.f32 %v429, 0.0
      %v466 = vmax.f32 %v430, 0.0
      %v467 = vmax.f32 %v431, 0.0
      %v468 = vmax.f32 %v432, 0.0
      %v469 = vmax.f32 %v433, 0.0
      %v470 = vmax.f32 %v434, 0.0
      %v471 = vmax.f32 %v435, 0.0
      %v472 = vmax.f32 %v436, 0.0
      %v473 = vmax.f32 %v437, 0.0
      %v474 = vmax.f32 %v438, 0.0
      %v475 = vmax.f32 %v439, 0.0
      %v476 = vmax.f32 %v440, 0.0
      %v477 = vmax.f32 %v441, 0.0
      %v478 = vmax.f32 %v442, 0.0
      %v479 = vmax.f32 %v443, 0.0
      %v480 = vmax.f32 %v444, 0.0
      %v481 = vmax.f32 %v445, 0.0
      %v482 = vmax.f32 %v446, 0.0
      %v483 = vmax.f32 %v447, 0.0
      %v484 = vmax.f32 %v448, 0.0
      %v485 = vmax.f32 %v449, 0.0
      %v486 = vmax.f32 %v450, 0.0
      %v487 = vmax.f32 %v451, 0.0
      %489 = vset.pattern.permute.xlu0 0
      %490 = vperm.xlu0 %489, %v264
      %v491 = vpop.permute.xlu0 %490
      %494 = vset.pattern.permute.xlu0 0
      %495 = vperm.xlu0 %494, %v265
      %v496 = vpop.permute.xlu0 %495
      %499 = vset.pattern.permute.xlu0 0
      %500 = vperm.xlu0 %499, %v266
      %v501 = vpop.permute.xlu0 %500
      %504 = vset.pattern.permute.xlu0 0
      %505 = vperm.xlu0 %504, %v267
      %v506 = vpop.permute.xlu0 %505
      %509 = vset.pattern.permute.xlu0 0
      %510 = vperm.xlu0 %509, %v268
      %v511 = vpop.permute.xlu0 %510
      %514 = vset.pattern.permute.xlu0 0
      %515 = vperm.xlu0 %514, %v269
      %v516 = vpop.permute.xlu0 %515
      %519 = vset.pattern.permute.xlu0 0
      %520 = vperm.xlu0 %519, %v270
      %v521 = vpop.permute.xlu0 %520
      %524 = vset.pattern.permute.xlu0 0
      %525 = vperm.xlu0 %524, %v271
      %v526 = vpop.permute.xlu0 %525
      %529 = vset.pattern.permute.xlu0 0
      %530 = vperm.xlu0 %529, %v272
      %v531 = vpop.permute.xlu0 %530
      %534 = vset.pattern.permute.xlu0 0
      %535 = vperm.xlu0 %534, %v273
      %v536 = vpop.permute.xlu0 %535
      %539 = vset.pattern.permute.xlu0 0
      %540 = vperm.xlu0 %539, %v274
      %v541 = vpop.permute.xlu0 %540
      %544 = vset.pattern.permute.xlu0 0
      %545 = vperm.xlu0 %544, %v275
      %v546 = vpop.permute.xlu0 %545
      %549 = vset.pattern.permute.xlu0 0
      %550 = vperm.xlu0 %549, %v276
      %v551 = vpop.permute.xlu0 %550
      %554 = vset.pattern.permute.xlu0 0
      %555 = vperm.xlu0 %554, %v277
      %v556 = vpop.permute.xlu0 %555
      %559 = vset.pattern.permute.xlu0 0
      %560 = vperm.xlu0 %559, %v278
      %v561 = vpop.permute.xlu0 %560
      %564 = vset.pattern.permute.xlu0 0
      %565 = vperm.xlu0 %564, %v279
      %v566 = vpop.permute.xlu0 %565
      %569 = vset.pattern.permute.xlu0 0
      %570 = vperm.xlu0 %569, %v280
      %v571 = vpop.permute.xlu0 %570
      %574 = vset.pattern.permute.xlu0 0
      %575 = vperm.xlu0 %574, %v281
      %v576 = vpop.permute.xlu0 %575
      %579 = vset.pattern.permute.xlu0 0
      %580 = vperm.xlu0 %579, %v282
      %v581 = vpop.permute.xlu0 %580
      %584 = vset.pattern.permute.xlu0 0
      %585 = vperm.xlu0 %584, %v283
      %v586 = vpop.permute.xlu0 %585
      %589 = vset.pattern.permute.xlu0 0
      %590 = vperm.xlu0 %589, %v284
      %v591 = vpop.permute.xlu0 %590
      %594 = vset.pattern.permute.xlu0 0
      %595 = vperm.xlu0 %594, %v285
      %v596 = vpop.permute.xlu0 %595
      %599 = vset.pattern.permute.xlu0 0
      %600 = vperm.xlu0 %599, %v286
      %v601 = vpop.permute.xlu0 %600
      %604 = vset.pattern.permute.xlu0 0
      %605 = vperm.xlu0 %604, %v287
      %v606 = vpop.permute.xlu0 %605
      %609 = vset.pattern.permute.xlu0 0
      %610 = vperm.xlu0 %609, %v288
      %v611 = vpop.permute.xlu0 %610
      %614 = vset.pattern.permute.xlu0 0
      %615 = vperm.xlu0 %614, %v289
      %v616 = vpop.permute.xlu0 %615
      %619 = vset.pattern.permute.xlu0 0
      %620 = vperm.xlu0 %619, %v290
      %v621 = vpop.permute.xlu0 %620
      %624 = vset.pattern.permute.xlu0 0
      %625 = vperm.xlu0 %624, %v291
      %v626 = vpop.permute.xlu0 %625
      %629 = vset.pattern.permute.xlu0 0
      %630 = vperm.xlu0 %629, %v292
      %v631 = vpop.permute.xlu0 %630
      %634 = vset.pattern.permute.xlu0 0
      %635 = vperm.xlu0 %634, %v293
      %v636 = vpop.permute.xlu0 %635
      %639 = vset.pattern.permute.xlu0 0
      %640 = vperm.xlu0 %639, %v294
      %v641 = vpop.permute.xlu0 %640
      %644 = vset.pattern.permute.xlu0 0
      %645 = vperm.xlu0 %644, %v295
      %v646 = vpop.permute.xlu0 %645
      %649 = vset.pattern.permute.xlu0 0
      %650 = vperm.xlu0 %649, %v296
      %v651 = vpop.permute.xlu0 %650
      %654 = vset.pattern.permute.xlu0 0
      %655 = vperm.xlu0 %654, %v297
      %v656 = vpop.permute.xlu0 %655
      %659 = vset.pattern.permute.xlu0 0
      %660 = vperm.xlu0 %659, %v298
      %v661 = vpop.permute.xlu0 %660
      %664 = vset.pattern.permute.xlu0 0
      %665 = vperm.xlu0 %664, %v299
      %v666 = vpop.permute.xlu0 %665
      %v668 = vmul.f32 %v452, %v491
      %v669 = vmul.f32 %v453, %v496
      %v670 = vmul.f32 %v454, %v501
      %v671 = vmul.f32 %v455, %v506
      %v672 = vmul.f32 %v456, %v511
      %v673 = vmul.f32 %v457, %v516
      %v674 = vmul.f32 %v458, %v521
      %v675 = vmul.f32 %v459, %v526
      %v676 = vmul.f32 %v460, %v531
      %v677 = vmul.f32 %v461, %v536
      %v678 = vmul.f32 %v462, %v541
      %v679 = vmul.f32 %v463, %v546
      %v680 = vmul.f32 %v464, %v551
      %v681 = vmul.f32 %v465, %v556
      %v682 = vmul.f32 %v466, %v561
      %v683 = vmul.f32 %v467, %v566
      %v684 = vmul.f32 %v468, %v571
      %v685 = vmul.f32 %v469, %v576
      %v686 = vmul.f32 %v470, %v581
      %v687 = vmul.f32 %v471, %v586
      %v688 = vmul.f32 %v472, %v591
      %v689 = vmul.f32 %v473, %v596
      %v690 = vmul.f32 %v474, %v601
      %v691 = vmul.f32 %v475, %v606
      %v692 = vmul.f32 %v476, %v611
      %v693 = vmul.f32 %v477, %v616
      %v694 = vmul.f32 %v478, %v621
      %v695 = vmul.f32 %v479, %v626
      %v696 = vmul.f32 %v480, %v631
      %v697 = vmul.f32 %v481, %v636
      %v698 = vmul.f32 %v482, %v641
      %v699 = vmul.f32 %v483, %v646
      %v700 = vmul.f32 %v484, %v651
      %v701 = vmul.f32 %v485, %v656
      %v702 = vmul.f32 %v486, %v661
      %v703 = vmul.f32 %v487, %v666
      %v704 = vpack.c.bf16 %v668, %v668
      %v705 = vpack.c.bf16 %v669, %v669
      %v706 = vpack.c.bf16 %v670, %v670
      %v707 = vpack.c.bf16 %v671, %v671
      %v708 = vpack.c.bf16 %v672, %v672
      %v709 = vpack.c.bf16 %v673, %v673
      %v710 = vpack.c.bf16 %v674, %v674
      %v711 = vpack.c.bf16 %v675, %v675
      %v712 = vpack.c.bf16 %v676, %v676
      %v713 = vpack.c.bf16 %v677, %v677
      %v714 = vpack.c.bf16 %v678, %v678
      %v715 = vpack.c.bf16 %v679, %v679
      %v716 = vpack.c.bf16 %v680, %v680
      %v717 = vpack.c.bf16 %v681, %v681
      %v718 = vpack.c.bf16 %v682, %v682
      %v719 = vpack.c.bf16 %v683, %v683
      %v720 = vpack.c.bf16 %v684, %v684
      %v721 = vpack.c.bf16 %v685, %v685
      %v722 = vpack.c.bf16 %v686, %v686
      %v723 = vpack.c.bf16 %v687, %v687
      %v724 = vpack.c.bf16 %v688, %v688
      %v725 = vpack.c.bf16 %v689, %v689
      %v726 = vpack.c.bf16 %v690, %v690
      %v727 = vpack.c.bf16 %v691, %v691
      %v728 = vpack.c.bf16 %v692, %v692
      %v729 = vpack.c.bf16 %v693, %v693
      %v730 = vpack.c.bf16 %v694, %v694
      %v731 = vpack.c.bf16 %v695, %v695
      %v732 = vpack.c.bf16 %v696, %v696
      %v733 = vpack.c.bf16 %v697, %v697
      %v734 = vpack.c.bf16 %v698, %v698
      %v735 = vpack.c.bf16 %v699, %v699
      %v736 = vpack.c.bf16 %v700, %v700
      %v737 = vpack.c.bf16 %v701, %v701
      %v738 = vpack.c.bf16 %v702, %v702
      %v739 = vpack.c.bf16 %v703, %v703
      %vm740 = vcmask 27648
      %741 = vst.msk [vmem:[#allocation2] sm:$0xf] %vm740, 0
      %742 = vst.msk [vmem:[#allocation2 + $0x4] sm:$0xf] %vm740, 0
      %vm743 = vcmask 25600
      %vm744 = vsmask.f32 1280
      %vm745 = vmand %vm743, %vm744
      %v746 = vld [vmem:[#allocation2 + $0x8] sm:$0x3]
      %v747 = vsel %vm745, 0, %v746
      %748 = vst [vmem:[#allocation2 + $0x8] sm:$0x3] %v747
      %vm749 = vcmask 27649
      %vm750 = vsmask.f32 7942
      %vm751 = vmand %vm749, %vm750
      %v752 = vld [vmem:[#allocation2 + $0x98] sm:$0xe]
      %v753 = vsel %vm751, 0, %v752
      %754 = vst [vmem:[#allocation2 + $0x98] sm:$0xe] %v753
      %755 = vst.msk [vmem:[#allocation2 + $0x9c] sm:$0xf] %vm740, 0
      %vm756 = vcmask 26624
      %757 = vst.msk [vmem:[#allocation2 + $0xa0] sm:$0x7] %vm756, 0
      %vm758 = vsmask.f32 5392
      %vm759 = vmor %vm744, %vm758
      %v761 = vshrl.u32 %v704, 16
      %v763 = vrot.slane %v761, 6
      %v764 = vshll.u32 %v704, 16
      %v766 = vrot.slane %v764, 7
      %v767 = vor.u32 %v763, %v766
      %v768 = vrot.slane %v767, 4
      %v770 = vshrl.u32 %v705, 16
      %v772 = vrot.slane %v770, 6
      %v773 = vshll.u32 %v705, 16
      %v775 = vrot.slane %v773, 7
      %v776 = vor.u32 %v772, %v775
      %v777 = vsel %vm759, %v768, %v776
      %v778 = vrot.slane %v776, 4
      %v780 = vshrl.u32 %v706, 16
      %v782 = vrot.slane %v780, 6
      %v783 = vshll.u32 %v706, 16
      %v785 = vrot.slane %v783, 7
      %v786 = vor.u32 %v782, %v785
      %v787 = vsel %vm759, %v778, %v786
      %v788 = vrot.slane %v786, 4
      %v790 = vshrl.u32 %v707, 16
      %v792 = vrot.slane %v790, 6
      %v793 = vshll.u32 %v707, 16
      %v795 = vrot.slane %v793, 7
      %v796 = vor.u32 %v792, %v795
      %v797 = vsel %vm759, %v788, %v796
      %v798 = vrot.slane %v796, 4
      %v800 = vshrl.u32 %v708, 16
      %v802 = vrot.slane %v800, 6
      %v803 = vshll.u32 %v708, 16
      %v805 = vrot.slane %v803, 7
      %v806 = vor.u32 %v802, %v805
      %v807 = vsel %vm759, %v798, %v806
      %v808 = vrot.slane %v806, 4
      %v810 = vshrl.u32 %v709, 16
      %v812 = vrot.slane %v810, 6
      %v813 = vshll.u32 %v709, 16
      %v815 = vrot.slane %v813, 7
      %v816 = vor.u32 %v812, %v815
      %v817 = vsel %vm759, %v808, %v816
      %v818 = vrot.slane %v816, 4
      %v820 = vshrl.u32 %v710, 16
      %v822 = vrot.slane %v820, 6
      %v823 = vshll.u32 %v710, 16
      %v825 = vrot.slane %v823, 7
      %v826 = vor.u32 %v822, %v825
      %v827 = vsel %vm759, %v818, %v826
      %v828 = vrot.slane %v826, 4
      %v830 = vshrl.u32 %v711, 16
      %v832 = vrot.slane %v830, 6
      %v833 = vshll.u32 %v711, 16
      %v835 = vrot.slane %v833, 7
      %v836 = vor.u32 %v832, %v835
      %v837 = vsel %vm759, %v828, %v836
      %v838 = vrot.slane %v836, 4
      %v840 = vshrl.u32 %v712, 16
      %v842 = vrot.slane %v840, 6
      %v843 = vshll.u32 %v712, 16
      %v845 = vrot.slane %v843, 7
      %v846 = vor.u32 %v842, %v845
      %v847 = vsel %vm759, %v838, %v846
      %v848 = vrot.slane %v846, 4
      %v850 = vshrl.u32 %v713, 16
      %v852 = vrot.slane %v850, 6
      %v853 = vshll.u32 %v713, 16
      %v855 = vrot.slane %v853, 7
      %v856 = vor.u32 %v852, %v855
      %v857 = vsel %vm759, %v848, %v856
      %v858 = vrot.slane %v856, 4
      %v860 = vshrl.u32 %v714, 16
      %v862 = vrot.slane %v860, 6
      %v863 = vshll.u32 %v714, 16
      %v865 = vrot.slane %v863, 7
      %v866 = vor.u32 %v862, %v865
      %v867 = vsel %vm759, %v858, %v866
      %v868 = vrot.slane %v866, 4
      %v870 = vshrl.u32 %v715, 16
      %v872 = vrot.slane %v870, 6
      %v873 = vshll.u32 %v715, 16
      %v875 = vrot.slane %v873, 7
      %v876 = vor.u32 %v872, %v875
      %v877 = vsel %vm759, %v868, %v876
      %v878 = vrot.slane %v876, 4
      %v880 = vshrl.u32 %v716, 16
      %v882 = vrot.slane %v880, 6
      %v883 = vshll.u32 %v716, 16
      %v885 = vrot.slane %v883, 7
      %v886 = vor.u32 %v882, %v885
      %v887 = vsel %vm759, %v878, %v886
      %v888 = vrot.slane %v886, 4
      %v890 = vshrl.u32 %v717, 16
      %v892 = vrot.slane %v890, 6
      %v893 = vshll.u32 %v717, 16
      %v895 = vrot.slane %v893, 7
      %v896 = vor.u32 %v892, %v895
      %v897 = vsel %vm759, %v888, %v896
      %v898 = vrot.slane %v896, 4
      %v900 = vshrl.u32 %v718, 16
      %v902 = vrot.slane %v900, 6
      %v903 = vshll.u32 %v718, 16
      %v905 = vrot.slane %v903, 7
      %v906 = vor.u32 %v902, %v905
      %v907 = vsel %vm759, %v898, %v906
      %v908 = vrot.slane %v906, 4
      %v910 = vshrl.u32 %v719, 16
      %v912 = vrot.slane %v910, 6
      %v913 = vshll.u32 %v719, 16
      %v915 = vrot.slane %v913, 7
      %v916 = vor.u32 %v912, %v915
      %v917 = vsel %vm759, %v908, %v916
      %v918 = vrot.slane %v916, 4
      %v920 = vshrl.u32 %v720, 16
      %v922 = vrot.slane %v920, 6
      %v923 = vshll.u32 %v720, 16
      %v925 = vrot.slane %v923, 7
      %v926 = vor.u32 %v922, %v925
      %v927 = vsel %vm759, %v918, %v926
      %v928 = vrot.slane %v926, 4
      %v930 = vshrl.u32 %v721, 16
      %v932 = vrot.slane %v930, 6
      %v933 = vshll.u32 %v721, 16
      %v935 = vrot.slane %v933, 7
      %v936 = vor.u32 %v932, %v935
      %v937 = vsel %vm759, %v928, %v936
      %v938 = vrot.slane %v936, 4
      %v940 = vshrl.u32 %v722, 16
      %v942 = vrot.slane %v940, 6
      %v943 = vshll.u32 %v722, 16
      %v945 = vrot.slane %v943, 7
      %v946 = vor.u32 %v942, %v945
      %v947 = vsel %vm759, %v938, %v946
      %v948 = vrot.slane %v946, 4
      %v950 = vshrl.u32 %v723, 16
      %v952 = vrot.slane %v950, 6
      %v953 = vshll.u32 %v723, 16
      %v955 = vrot.slane %v953, 7
      %v956 = vor.u32 %v952, %v955
      %v957 = vsel %vm759, %v948, %v956
      %v958 = vrot.slane %v956, 4
      %v960 = vshrl.u32 %v724, 16
      %v962 = vrot.slane %v960, 6
      %v963 = vshll.u32 %v724, 16
      %v965 = vrot.slane %v963, 7
      %v966 = vor.u32 %v962, %v965
      %v967 = vsel %vm759, %v958, %v966
      %v968 = vrot.slane %v966, 4
      %v970 = vshrl.u32 %v725, 16
      %v972 = vrot.slane %v970, 6
      %v973 = vshll.u32 %v725, 16
      %v975 = vrot.slane %v973, 7
      %v976 = vor.u32 %v972, %v975
      %v977 = vsel %vm759, %v968, %v976
      %v978 = vrot.slane %v976, 4
      %v980 = vshrl.u32 %v726, 16
      %v982 = vrot.slane %v980, 6
      %v983 = vshll.u32 %v726, 16
      %v985 = vrot.slane %v983, 7
      %v986 = vor.u32 %v982, %v985
      %v987 = vsel %vm759, %v978, %v986
      %v988 = vrot.slane %v986, 4
      %v990 = vshrl.u32 %v727, 16
      %v992 = vrot.slane %v990, 6
      %v993 = vshll.u32 %v727, 16
      %v995 = vrot.slane %v993, 7
      %v996 = vor.u32 %v992, %v995
      %v997 = vsel %vm759, %v988, %v996
      %v998 = vrot.slane %v996, 4
      %v1000 = vshrl.u32 %v728, 16
      %v1002 = vrot.slane %v1000, 6
      %v1003 = vshll.u32 %v728, 16
      %v1005 = vrot.slane %v1003, 7
      %v1006 = vor.u32 %v1002, %v1005
      %v1007 = vsel %vm759, %v998, %v1006
      %v1008 = vrot.slane %v1006, 4
      %v1010 = vshrl.u32 %v729, 16
      %v1012 = vrot.slane %v1010, 6
      %v1013 = vshll.u32 %v729, 16
      %v1015 = vrot.slane %v1013, 7
      %v1016 = vor.u32 %v1012, %v1015
      %v1017 = vsel %vm759, %v1008, %v1016
      %v1018 = vrot.slane %v1016, 4
      %v1020 = vshrl.u32 %v730, 16
      %v1022 = vrot.slane %v1020, 6
      %v1023 = vshll.u32 %v730, 16
      %v1025 = vrot.slane %v1023, 7
      %v1026 = vor.u32 %v1022, %v1025
      %v1027 = vsel %vm759, %v1018, %v1026
      %v1028 = vrot.slane %v1026, 4
      %v1030 = vshrl.u32 %v731, 16
      %v1032 = vrot.slane %v1030, 6
      %v1033 = vshll.u32 %v731, 16
      %v1035 = vrot.slane %v1033, 7
      %v1036 = vor.u32 %v1032, %v1035
      %v1037 = vsel %vm759, %v1028, %v1036
      %v1038 = vrot.slane %v1036, 4
      %v1040 = vshrl.u32 %v732, 16
      %v1042 = vrot.slane %v1040, 6
      %v1043 = vshll.u32 %v732, 16
      %v1045 = vrot.slane %v1043, 7
      %v1046 = vor.u32 %v1042, %v1045
      %v1047 = vsel %vm759, %v1038, %v1046
      %v1048 = vrot.slane %v1046, 4
      %v1050 = vshrl.u32 %v733, 16
      %v1052 = vrot.slane %v1050, 6
      %v1053 = vshll.u32 %v733, 16
      %v1055 = vrot.slane %v1053, 7
      %v1056 = vor.u32 %v1052, %v1055
      %v1057 = vsel %vm759, %v1048, %v1056
      %v1058 = vrot.slane %v1056, 4
      %v1060 = vshrl.u32 %v734, 16
      %v1062 = vrot.slane %v1060, 6
      %v1063 = vshll.u32 %v734, 16
      %v1065 = vrot.slane %v1063, 7
      %v1066 = vor.u32 %v1062, %v1065
      %v1067 = vsel %vm759, %v1058, %v1066
      %v1068 = vrot.slane %v1066, 4
      %v1070 = vshrl.u32 %v735, 16
      %v1072 = vrot.slane %v1070, 6
      %v1073 = vshll.u32 %v735, 16
      %v1075 = vrot.slane %v1073, 7
      %v1076 = vor.u32 %v1072, %v1075
      %v1077 = vsel %vm759, %v1068, %v1076
      %v1078 = vrot.slane %v1076, 4
      %v1080 = vshrl.u32 %v736, 16
      %v1082 = vrot.slane %v1080, 6
      %v1083 = vshll.u32 %v736, 16
      %v1085 = vrot.slane %v1083, 7
      %v1086 = vor.u32 %v1082, %v1085
      %v1087 = vsel %vm759, %v1078, %v1086
      %v1088 = vrot.slane %v1086, 4
      %v1090 = vshrl.u32 %v737, 16
      %v1092 = vrot.slane %v1090, 6
      %v1093 = vshll.u32 %v737, 16
      %v1095 = vrot.slane %v1093, 7
      %v1096 = vor.u32 %v1092, %v1095
      %v1097 = vsel %vm759, %v1088, %v1096
      %v1098 = vrot.slane %v1096, 4
      %v1100 = vshrl.u32 %v738, 16
      %v1102 = vrot.slane %v1100, 6
      %v1103 = vshll.u32 %v738, 16
      %v1105 = vrot.slane %v1103, 7
      %v1106 = vor.u32 %v1102, %v1105
      %v1107 = vsel %vm759, %v1098, %v1106
      %v1108 = vrot.slane %v1106, 4
      %v1110 = vshrl.u32 %v739, 16
      %v1112 = vrot.slane %v1110, 6
      %v1113 = vshll.u32 %v739, 16
      %v1115 = vrot.slane %v1113, 7
      %v1116 = vor.u32 %v1112, %v1115
      %v1117 = vsel %vm759, %v1108, %v1116
      %v1118 = vrot.slane %v1116, 4
      %v1156 = vld [vmem:[#allocation2 + $0x8] sm:$0xe]
      %v1157 = vsel %vm751, %v767, %v1156
      %1158 = vst [vmem:[#allocation2 + $0x8] sm:$0xe] %v1157
      %1159 = vst.msk [vmem:[#allocation2 + $0xc] sm:$0xf] %vm740, %v777
      %1160 = vst.msk [vmem:[#allocation2 + $0x10] sm:$0xf] %vm740, %v787
      %1161 = vst.msk [vmem:[#allocation2 + $0x14] sm:$0xf] %vm740, %v797
      %1162 = vst.msk [vmem:[#allocation2 + $0x18] sm:$0xf] %vm740, %v807
      %1163 = vst.msk [vmem:[#allocation2 + $0x1c] sm:$0xf] %vm740, %v817
      %1164 = vst.msk [vmem:[#allocation2 + $0x20] sm:$0xf] %vm740, %v827
      %1165 = vst.msk [vmem:[#allocation2 + $0x24] sm:$0xf] %vm740, %v837
      %1166 = vst.msk [vmem:[#allocation2 + $0x28] sm:$0xf] %vm740, %v847
      %1167 = vst.msk [vmem:[#allocation2 + $0x2c] sm:$0xf] %vm740, %v857
      %1168 = vst.msk [vmem:[#allocation2 + $0x30] sm:$0xf] %vm740, %v867
      %1169 = vst.msk [vmem:[#allocation2 + $0x34] sm:$0xf] %vm740, %v877
      %1170 = vst.msk [vmem:[#allocation2 + $0x38] sm:$0xf] %vm740, %v887
      %1171 = vst.msk [vmem:[#allocation2 + $0x3c] sm:$0xf] %vm740, %v897
      %1172 = vst.msk [vmem:[#allocation2 + $0x40] sm:$0xf] %vm740, %v907
      %1173 = vst.msk [vmem:[#allocation2 + $0x44] sm:$0xf] %vm740, %v917
      %1174 = vst.msk [vmem:[#allocation2 + $0x48] sm:$0xf] %vm740, %v927
      %1175 = vst.msk [vmem:[#allocation2 + $0x4c] sm:$0xf] %vm740, %v937
      %1176 = vst.msk [vmem:[#allocation2 + $0x50] sm:$0xf] %vm740, %v947
      %1177 = vst.msk [vmem:[#allocation2 + $0x54] sm:$0xf] %vm740, %v957
      %1178 = vst.msk [vmem:[#allocation2 + $0x58] sm:$0xf] %vm740, %v967
      %1179 = vst.msk [vmem:[#allocation2 + $0x5c] sm:$0xf] %vm740, %v977
      %1180 = vst.msk [vmem:[#allocation2 + $0x60] sm:$0xf] %vm740, %v987
      %1181 = vst.msk [vmem:[#allocation2 + $0x64] sm:$0xf] %vm740, %v997
      %1182 = vst.msk [vmem:[#allocation2 + $0x68] sm:$0xf] %vm740, %v1007
      %1183 = vst.msk [vmem:[#allocation2 + $0x6c] sm:$0xf] %vm740, %v1017
      %1184 = vst.msk [vmem:[#allocation2 + $0x70] sm:$0xf] %vm740, %v1027
      %1185 = vst.msk [vmem:[#allocation2 + $0x74] sm:$0xf] %vm740, %v1037
      %1186 = vst.msk [vmem:[#allocation2 + $0x78] sm:$0xf] %vm740, %v1047
      %1187 = vst.msk [vmem:[#allocation2 + $0x7c] sm:$0xf] %vm740, %v1057
      %1188 = vst.msk [vmem:[#allocation2 + $0x80] sm:$0xf] %vm740, %v1067
      %1189 = vst.msk [vmem:[#allocation2 + $0x84] sm:$0xf] %vm740, %v1077
      %1190 = vst.msk [vmem:[#allocation2 + $0x88] sm:$0xf] %vm740, %v1087
      %1191 = vst.msk [vmem:[#allocation2 + $0x8c] sm:$0xf] %vm740, %v1097
      %1192 = vst.msk [vmem:[#allocation2 + $0x90] sm:$0xf] %vm740, %v1107
      %1193 = vst.msk [vmem:[#allocation2 + $0x94] sm:$0xf] %vm740, %v1117
      %v1194 = vld [vmem:[#allocation2 + $0x98] sm:$0x3]
      %v1195 = vsel %vm745, %v1118, %v1194
      %1196 = vst [vmem:[#allocation2 + $0x98] sm:$0x3] %v1195
      %v1197 = vld [vmem:[#allocation2] sm:$0xf]
      %v1198 = vld [vmem:[#allocation2 + $0x4] sm:$0xf]
      %v1199 = vld [vmem:[#allocation2 + $0x8] sm:$0xf]
      %v1200 = vld [vmem:[#allocation2 + $0xc] sm:$0xf]
      %v1201 = vld [vmem:[#allocation2 + $0x10] sm:$0xf]
      %v1202 = vld [vmem:[#allocation2 + $0x14] sm:$0xf]
      %v1203 = vld [vmem:[#allocation2 + $0x18] sm:$0xf]
      %v1204 = vld [vmem:[#allocation2 + $0x1c] sm:$0xf]
      %v1205 = vld [vmem:[#allocation2 + $0x20] sm:$0xf]
      %v1206 = vld [vmem:[#allocation2 + $0x24] sm:$0xf]
      %v1207 = vld [vmem:[#allocation2 + $0x28] sm:$0xf]
      %v1208 = vld [vmem:[#allocation2 + $0x2c] sm:$0xf]
      %v1209 = vld [vmem:[#allocation2 + $0x30] sm:$0xf]
      %v1210 = vld [vmem:[#allocation2 + $0x34] sm:$0xf]
      %v1211 = vld [vmem:[#allocation2 + $0x38] sm:$0xf]
      %v1212 = vld [vmem:[#allocation2 + $0x3c] sm:$0xf]
      %v1213 = vld [vmem:[#allocation2 + $0x40] sm:$0xf]
      %v1214 = vld [vmem:[#allocation2 + $0x44] sm:$0xf]
      %v1215 = vld [vmem:[#allocation2 + $0x48] sm:$0xf]
      %v1216 = vld [vmem:[#allocation2 + $0x4c] sm:$0xf]
      %v1217 = vld [vmem:[#allocation2 + $0x50] sm:$0xf]
      %v1218 = vld [vmem:[#allocation2 + $0x54] sm:$0xf]
      %v1219 = vld [vmem:[#allocation2 + $0x58] sm:$0xf]
      %v1220 = vld [vmem:[#allocation2 + $0x5c] sm:$0xf]
      %v1221 = vld [vmem:[#allocation2 + $0x60] sm:$0xf]
      %v1222 = vld [vmem:[#allocation2 + $0x64] sm:$0xf]
      %v1223 = vld [vmem:[#allocation2 + $0x68] sm:$0xf]
      %v1224 = vld [vmem:[#allocation2 + $0x6c] sm:$0xf]
      %v1225 = vld [vmem:[#allocation2 + $0x70] sm:$0xf]
      %v1226 = vld [vmem:[#allocation2 + $0x74] sm:$0xf]
      %v1227 = vld [vmem:[#allocation2 + $0x78] sm:$0xf]
      %v1228 = vld [vmem:[#allocation2 + $0x7c] sm:$0xf]
      %v1229 = vld [vmem:[#allocation2 + $0x80] sm:$0xf]
      %v1230 = vld [vmem:[#allocation2 + $0x84] sm:$0xf]
      %v1231 = vld [vmem:[#allocation2 + $0x88] sm:$0xf]
      %v1232 = vld [vmem:[#allocation2 + $0x8c] sm:$0xf]
      %v1233 = vld [vmem:[%s1] sm:$0x3]
      %v1234 = vld [vmem:[#allocation2 + $0x90] sm:$0x1]
      %s1235 = scalar_lea.vmem %s1, 2
      %v1236 = vld [vmem:[%s1235] sm:$0x3]
      %v1274 = vunpack.c.l.b16 %v1197
      %v1275 = vunpack.c.l.b16 %v1198
      %v1276 = vunpack.c.l.b16 %v1199
      %v1277 = vunpack.c.l.b16 %v1200
      %v1278 = vunpack.c.l.b16 %v1201
      %v1279 = vunpack.c.l.b16 %v1202
      %v1280 = vunpack.c.l.b16 %v1203
      %v1281 = vunpack.c.l.b16 %v1204
      %v1282 = vunpack.c.l.b16 %v1205
      %v1283 = vunpack.c.l.b16 %v1206
      %v1284 = vunpack.c.l.b16 %v1207
      %v1285 = vunpack.c.l.b16 %v1208
      %v1286 = vunpack.c.l.b16 %v1209
      %v1287 = vunpack.c.l.b16 %v1210
      %v1288 = vunpack.c.l.b16 %v1211
      %v1289 = vunpack.c.l.b16 %v1212
      %v1290 = vunpack.c.l.b16 %v1213
      %v1291 = vunpack.c.l.b16 %v1214
      %v1292 = vunpack.c.l.b16 %v1215
      %v1293 = vunpack.c.l.b16 %v1216
      %v1294 = vunpack.c.l.b16 %v1217
      %v1295 = vunpack.c.l.b16 %v1218
      %v1296 = vunpack.c.l.b16 %v1219
      %v1297 = vunpack.c.l.b16 %v1220
      %v1298 = vunpack.c.l.b16 %v1221
      %v1299 = vunpack.c.l.b16 %v1222
      %v1300 = vunpack.c.l.b16 %v1223
      %v1301 = vunpack.c.l.b16 %v1224
      %v1302 = vunpack.c.l.b16 %v1225
      %v1303 = vunpack.c.l.b16 %v1226
      %v1304 = vunpack.c.l.b16 %v1227
      %v1305 = vunpack.c.l.b16 %v1228
      %v1306 = vunpack.c.l.b16 %v1229
      %v1307 = vunpack.c.l.b16 %v1230
      %v1308 = vunpack.c.l.b16 %v1231
      %v1309 = vunpack.c.l.b16 %v1232
      %v1310 = vunpack.c.l.b16 %v1234
      %v1311 = vpack.c.b16 %v1275, %v1274
      %v1312 = vpack.c.b16 %v1277, %v1276
      %v1313 = vpack.c.b16 %v1279, %v1278
      %v1314 = vpack.c.b16 %v1281, %v1280
      %v1315 = vpack.c.b16 %v1283, %v1282
      %v1316 = vpack.c.b16 %v1285, %v1284
      %v1317 = vpack.c.b16 %v1287, %v1286
      %v1318 = vpack.c.b16 %v1289, %v1288
      %v1319 = vpack.c.b16 %v1291, %v1290
      %v1320 = vpack.c.b16 %v1293, %v1292
      %v1321 = vpack.c.b16 %v1295, %v1294
      %v1322 = vpack.c.b16 %v1297, %v1296
      %v1323 = vpack.c.b16 %v1299, %v1298
      %v1324 = vpack.c.b16 %v1301, %v1300
      %v1325 = vpack.c.b16 %v1303, %v1302
      %v1326 = vpack.c.b16 %v1305, %v1304
      %v1327 = vpack.c.b16 %v1307, %v1306
      %v1328 = vpack.c.b16 %v1309, %v1308
      %v1329 = vpack.c.b16 %v1310, %v1310
      %vm1330 = vsmask.f32 7424
      %v1332 = vshrl.u32 %v1311, 16
      %v1334 = vshll.u32 %v1311, 16
      %v1336 = vrot.slane %v1334, 1
      %v1337 = vor.u32 %v1332, %v1336
      %v1339 = vshll.u32 %v1312, 16
      %v1341 = vrot.slane %v1339, 1
      %v1342 = vsel %vm1330, %v1337, %v1341
      %v1343 = vshrl.u32 %v1312, 16
      %v1345 = vor.u32 %v1343, %v1341
      %v1347 = vshll.u32 %v1313, 16
      %v1349 = vrot.slane %v1347, 1
      %v1350 = vsel %vm1330, %v1345, %v1349
      %v1351 = vshrl.u32 %v1313, 16
      %v1353 = vor.u32 %v1351, %v1349
      %v1355 = vshll.u32 %v1314, 16
      %v1357 = vrot.slane %v1355, 1
      %v1358 = vsel %vm1330, %v1353, %v1357
      %v1359 = vshrl.u32 %v1314, 16
      %v1361 = vor.u32 %v1359, %v1357
      %v1363 = vshll.u32 %v1315, 16
      %v1365 = vrot.slane %v1363, 1
      %v1366 = vsel %vm1330, %v1361, %v1365
      %v1367 = vshrl.u32 %v1315, 16
      %v1369 = vor.u32 %v1367, %v1365
      %v1371 = vshll.u32 %v1316, 16
      %v1373 = vrot.slane %v1371, 1
      %v1374 = vsel %vm1330, %v1369, %v1373
      %v1375 = vshrl.u32 %v1316, 16
      %v1377 = vor.u32 %v1375, %v1373
      %v1379 = vshll.u32 %v1317, 16
      %v1381 = vrot.slane %v1379, 1
      %v1382 = vsel %vm1330, %v1377, %v1381
      %v1383 = vshrl.u32 %v1317, 16
      %v1385 = vor.u32 %v1383, %v1381
      %v1387 = vshll.u32 %v1318, 16
      %v1389 = vrot.slane %v1387, 1
      %v1390 = vsel %vm1330, %v1385, %v1389
      %v1391 = vshrl.u32 %v1318, 16
      %v1393 = vor.u32 %v1391, %v1389
      %v1395 = vshll.u32 %v1319, 16
      %v1397 = vrot.slane %v1395, 1
      %v1398 = vsel %vm1330, %v1393, %v1397
      %v1399 = vshrl.u32 %v1319, 16
      %v1401 = vor.u32 %v1399, %v1397
      %v1403 = vshll.u32 %v1320, 16
      %v1405 = vrot.slane %v1403, 1
      %v1406 = vsel %vm1330, %v1401, %v1405
      %v1407 = vshrl.u32 %v1320, 16
      %v1409 = vor.u32 %v1407, %v1405
      %v1411 = vshll.u32 %v1321, 16
      %v1413 = vrot.slane %v1411, 1
      %v1414 = vsel %vm1330, %v1409, %v1413
      %v1415 = vshrl.u32 %v1321, 16
      %v1417 = vor.u32 %v1415, %v1413
      %v1419 = vshll.u32 %v1322, 16
      %v1421 = vrot.slane %v1419, 1
      %v1422 = vsel %vm1330, %v1417, %v1421
      %v1423 = vshrl.u32 %v1322, 16
      %v1425 = vor.u32 %v1423, %v1421
      %v1427 = vshll.u32 %v1323, 16
      %v1429 = vrot.slane %v1427, 1
      %v1430 = vsel %vm1330, %v1425, %v1429
      %v1431 = vshrl.u32 %v1323, 16
      %v1433 = vor.u32 %v1431, %v1429
      %v1435 = vshll.u32 %v1324, 16
      %v1437 = vrot.slane %v1435, 1
      %v1438 = vsel %vm1330, %v1433, %v1437
      %v1439 = vshrl.u32 %v1324, 16
      %v1441 = vor.u32 %v1439, %v1437
      %v1443 = vshll.u32 %v1325, 16
      %v1445 = vrot.slane %v1443, 1
      %v1446 = vsel %vm1330, %v1441, %v1445
      %v1447 = vshrl.u32 %v1325, 16
      %v1449 = vor.u32 %v1447, %v1445
      %v1451 = vshll.u32 %v1326, 16
      %v1453 = vrot.slane %v1451, 1
      %v1454 = vsel %vm1330, %v1449, %v1453
      %v1455 = vshrl.u32 %v1326, 16
      %v1457 = vor.u32 %v1455, %v1453
      %v1459 = vshll.u32 %v1327, 16
      %v1461 = vrot.slane %v1459, 1
      %v1462 = vsel %vm1330, %v1457, %v1461
      %v1463 = vshrl.u32 %v1327, 16
      %v1465 = vor.u32 %v1463, %v1461
      %v1467 = vshll.u32 %v1328, 16
      %v1469 = vrot.slane %v1467, 1
      %v1470 = vsel %vm1330, %v1465, %v1469
      %v1471 = vshrl.u32 %v1328, 16
      %v1473 = vor.u32 %v1471, %v1469
      %v1475 = vshll.u32 %v1329, 16
      %v1477 = vrot.slane %v1475, 1
      %v1478 = vsel %vm1330, %v1473, %v1477
      %vm1479 = vcmask 31744
      %v1481 = vsel %vm1479, %v1342, 0
      %v1484 = vsel %vm1479, %v1350, 0
      %v1487 = vsel %vm1479, %v1358, 0
      %v1490 = vsel %vm1479, %v1366, 0
      %v1493 = vsel %vm1479, %v1374, 0
      %v1496 = vsel %vm1479, %v1382, 0
      %v1499 = vsel %vm1479, %v1390, 0
      %v1502 = vsel %vm1479, %v1398, 0
      %v1505 = vsel %vm1479, %v1406, 0
      %v1508 = vsel %vm1479, %v1414, 0
      %v1511 = vsel %vm1479, %v1422, 0
      %v1514 = vsel %vm1479, %v1430, 0
      %v1517 = vsel %vm1479, %v1438, 0
      %v1520 = vsel %vm1479, %v1446, 0
      %v1523 = vsel %vm1479, %v1454, 0
      %v1526 = vsel %vm1479, %v1462, 0
      %v1529 = vsel %vm1479, %v1470, 0
      %v1532 = vsel %vm1479, %v1478, 0
      %vm1534 = vcmask 1041408
      %v1536 = vsel %vm1534, %v1236, 0
      %1538 = vmatpush.bf16.msra.mxu0 0
      %1539 = vmatpush.bf16.msra.mxu0 0
      %1540 = vmatpush.bf16.msra.mxu0 0
      %1541 = vmatpush.bf16.msra.mxu0 0
      %1542 = vmatpush.bf16.msra.mxu0 0
      %1543 = vmatpush.bf16.msra.mxu0 0
      %1544 = vmatpush.bf16.msra.mxu0 0
      %1545 = vmatpush.bf16.msra.mxu0 %v1536
      %1546 = vmatmul.bf16.gmra.mxu0 %v1481
      %v1547 = vpop.f32.mrf.mxu0
      %v1548 = vadd.f32 0.0, %v1547
      %v1549 = vpop.f32.mrf.mxu0
      %v1550 = vadd.f32 0.0, %v1549
      %1551 = vmatmul.bf16.gmra.mxu0 %v1484
      %v1552 = vpop.f32.mrf.mxu0
      %v1553 = vadd.f32 0.0, %v1552
      %v1554 = vpop.f32.mrf.mxu0
      %v1555 = vadd.f32 0.0, %v1554
      %1556 = vmatmul.bf16.gmra.mxu0 %v1487
      %v1557 = vpop.f32.mrf.mxu0
      %v1558 = vadd.f32 0.0, %v1557
      %v1559 = vpop.f32.mrf.mxu0
      %v1560 = vadd.f32 0.0, %v1559
      %1561 = vmatmul.bf16.gmra.mxu0 %v1490
      %v1562 = vpop.f32.mrf.mxu0
      %v1563 = vadd.f32 0.0, %v1562
      %v1564 = vpop.f32.mrf.mxu0
      %v1565 = vadd.f32 0.0, %v1564
      %1566 = vmatmul.bf16.gmra.mxu0 %v1493
      %v1567 = vpop.f32.mrf.mxu0
      %v1568 = vadd.f32 0.0, %v1567
      %v1569 = vpop.f32.mrf.mxu0
      %v1570 = vadd.f32 0.0, %v1569
      %1571 = vmatmul.bf16.gmra.mxu0 %v1496
      %v1572 = vpop.f32.mrf.mxu0
      %v1573 = vadd.f32 0.0, %v1572
      %v1574 = vpop.f32.mrf.mxu0
      %v1575 = vadd.f32 0.0, %v1574
      %1576 = vmatmul.bf16.gmra.mxu0 %v1499
      %v1577 = vpop.f32.mrf.mxu0
      %v1578 = vadd.f32 0.0, %v1577
      %v1579 = vpop.f32.mrf.mxu0
      %v1580 = vadd.f32 0.0, %v1579
      %1581 = vmatmul.bf16.gmra.mxu0 %v1502
      %v1582 = vpop.f32.mrf.mxu0
      %v1583 = vadd.f32 0.0, %v1582
      %v1584 = vpop.f32.mrf.mxu0
      %v1585 = vadd.f32 0.0, %v1584
      %1586 = vmatmul.bf16.gmra.mxu0 %v1505
      %v1587 = vpop.f32.mrf.mxu0
      %v1588 = vadd.f32 0.0, %v1587
      %v1589 = vpop.f32.mrf.mxu0
      %v1590 = vadd.f32 0.0, %v1589
      %1591 = vmatmul.bf16.gmra.mxu0 %v1508
      %v1592 = vpop.f32.mrf.mxu0
      %v1593 = vadd.f32 0.0, %v1592
      %v1594 = vpop.f32.mrf.mxu0
      %v1595 = vadd.f32 0.0, %v1594
      %1596 = vmatmul.bf16.gmra.mxu0 %v1511
      %v1597 = vpop.f32.mrf.mxu0
      %v1598 = vadd.f32 0.0, %v1597
      %v1599 = vpop.f32.mrf.mxu0
      %v1600 = vadd.f32 0.0, %v1599
      %1601 = vmatmul.bf16.gmra.mxu0 %v1514
      %v1602 = vpop.f32.mrf.mxu0
      %v1603 = vadd.f32 0.0, %v1602
      %v1604 = vpop.f32.mrf.mxu0
      %v1605 = vadd.f32 0.0, %v1604
      %1606 = vmatmul.bf16.gmra.mxu0 %v1517
      %v1607 = vpop.f32.mrf.mxu0
      %v1608 = vadd.f32 0.0, %v1607
      %v1609 = vpop.f32.mrf.mxu0
      %v1610 = vadd.f32 0.0, %v1609
      %1611 = vmatmul.bf16.gmra.mxu0 %v1520
      %v1612 = vpop.f32.mrf.mxu0
      %v1613 = vadd.f32 0.0, %v1612
      %v1614 = vpop.f32.mrf.mxu0
      %v1615 = vadd.f32 0.0, %v1614
      %1616 = vmatmul.bf16.gmra.mxu0 %v1523
      %v1617 = vpop.f32.mrf.mxu0
      %v1618 = vadd.f32 0.0, %v1617
      %v1619 = vpop.f32.mrf.mxu0
      %v1620 = vadd.f32 0.0, %v1619
      %1621 = vmatmul.bf16.gmra.mxu0 %v1526
      %v1622 = vpop.f32.mrf.mxu0
      %v1623 = vadd.f32 0.0, %v1622
      %v1624 = vpop.f32.mrf.mxu0
      %v1625 = vadd.f32 0.0, %v1624
      %1626 = vmatmul.bf16.gmra.mxu0 %v1529
      %v1627 = vpop.f32.mrf.mxu0
      %v1628 = vadd.f32 0.0, %v1627
      %v1629 = vpop.f32.mrf.mxu0
      %v1630 = vadd.f32 0.0, %v1629
      %1631 = vmatmul.bf16.gmra.mxu0 %v1532
      %v1632 = vpop.f32.mrf.mxu0
      %v1633 = vadd.f32 0.0, %v1632
      %v1634 = vpop.f32.mrf.mxu0
      %v1635 = vadd.f32 0.0, %v1634
      %1636 = vdwg.mxu0
      %v1637 = vsel %vm1479, %v1311, 0
      %v1639 = vsel %vm1479, %v1312, 0
      %v1641 = vsel %vm1479, %v1313, 0
      %v1643 = vsel %vm1479, %v1314, 0
      %v1645 = vsel %vm1479, %v1315, 0
      %v1647 = vsel %vm1479, %v1316, 0
      %v1649 = vsel %vm1479, %v1317, 0
      %v1651 = vsel %vm1479, %v1318, 0
      %v1653 = vsel %vm1479, %v1319, 0
      %v1655 = vsel %vm1479, %v1320, 0
      %v1657 = vsel %vm1479, %v1321, 0
      %v1659 = vsel %vm1479, %v1322, 0
      %v1661 = vsel %vm1479, %v1323, 0
      %v1663 = vsel %vm1479, %v1324, 0
      %v1665 = vsel %vm1479, %v1325, 0
      %v1667 = vsel %vm1479, %v1326, 0
      %v1669 = vsel %vm1479, %v1327, 0
      %v1671 = vsel %vm1479, %v1328, 0
      %v1674 = vsel %vm1534, %v1233, 0
      %1676 = vmatpush.bf16.msra.mxu0 0
      %1677 = vmatpush.bf16.msra.mxu0 0
      %1678 = vmatpush.bf16.msra.mxu0 0
      %1679 = vmatpush.bf16.msra.mxu0 0
      %1680 = vmatpush.bf16.msra.mxu0 0
      %1681 = vmatpush.bf16.msra.mxu0 0
      %1682 = vmatpush.bf16.msra.mxu0 0
      %1683 = vmatpush.bf16.msra.mxu0 %v1674
      %1684 = vmatmul.bf16.gmra.mxu0 %v1637
      %v1685 = vpop.f32.mrf.mxu0
      %v1686 = vadd.f32 %v1548, %v1685
      %v1687 = vpop.f32.mrf.mxu0
      %v1688 = vadd.f32 %v1550, %v1687
      %1689 = vmatmul.bf16.gmra.mxu0 %v1639
      %v1690 = vpop.f32.mrf.mxu0
      %v1691 = vadd.f32 %v1553, %v1690
      %v1692 = vpop.f32.mrf.mxu0
      %v1693 = vadd.f32 %v1555, %v1692
      %1694 = vmatmul.bf16.gmra.mxu0 %v1641
      %v1695 = vpop.f32.mrf.mxu0
      %v1696 = vadd.f32 %v1558, %v1695
      %v1697 = vpop.f32.mrf.mxu0
      %v1698 = vadd.f32 %v1560, %v1697
      %1699 = vmatmul.bf16.gmra.mxu0 %v1643
      %v1700 = vpop.f32.mrf.mxu0
      %v1701 = vadd.f32 %v1563, %v1700
      %v1702 = vpop.f32.mrf.mxu0
      %v1703 = vadd.f32 %v1565, %v1702
      %1704 = vmatmul.bf16.gmra.mxu0 %v1645
      %v1705 = vpop.f32.mrf.mxu0
      %v1706 = vadd.f32 %v1568, %v1705
      %v1707 = vpop.f32.mrf.mxu0
      %v1708 = vadd.f32 %v1570, %v1707
      %1709 = vmatmul.bf16.gmra.mxu0 %v1647
      %v1710 = vpop.f32.mrf.mxu0
      %v1711 = vadd.f32 %v1573, %v1710
      %v1712 = vpop.f32.mrf.mxu0
      %v1713 = vadd.f32 %v1575, %v1712
      %1714 = vmatmul.bf16.gmra.mxu0 %v1649
      %v1715 = vpop.f32.mrf.mxu0
      %v1716 = vadd.f32 %v1578, %v1715
      %v1717 = vpop.f32.mrf.mxu0
      %v1718 = vadd.f32 %v1580, %v1717
      %1719 = vmatmul.bf16.gmra.mxu0 %v1651
      %v1720 = vpop.f32.mrf.mxu0
      %v1721 = vadd.f32 %v1583, %v1720
      %v1722 = vpop.f32.mrf.mxu0
      %v1723 = vadd.f32 %v1585, %v1722
      %1724 = vmatmul.bf16.gmra.mxu0 %v1653
      %v1725 = vpop.f32.mrf.mxu0
      %v1726 = vadd.f32 %v1588, %v1725
      %v1727 = vpop.f32.mrf.mxu0
      %v1728 = vadd.f32 %v1590, %v1727
      %1729 = vmatmul.bf16.gmra.mxu0 %v1655
      %v1730 = vpop.f32.mrf.mxu0
      %v1731 = vadd.f32 %v1593, %v1730
      %v1732 = vpop.f32.mrf.mxu0
      %v1733 = vadd.f32 %v1595, %v1732
      %1734 = vmatmul.bf16.gmra.mxu0 %v1657
      %v1735 = vpop.f32.mrf.mxu0
      %v1736 = vadd.f32 %v1598, %v1735
      %v1737 = vpop.f32.mrf.mxu0
      %v1738 = vadd.f32 %v1600, %v1737
      %1739 = vmatmul.bf16.gmra.mxu0 %v1659
      %v1740 = vpop.f32.mrf.mxu0
      %v1741 = vadd.f32 %v1603, %v1740
      %v1742 = vpop.f32.mrf.mxu0
      %v1743 = vadd.f32 %v1605, %v1742
      %1744 = vmatmul.bf16.gmra.mxu0 %v1661
      %v1745 = vpop.f32.mrf.mxu0
      %v1746 = vadd.f32 %v1608, %v1745
      %v1747 = vpop.f32.mrf.mxu0
      %v1748 = vadd.f32 %v1610, %v1747
      %1749 = vmatmul.bf16.gmra.mxu0 %v1663
      %v1750 = vpop.f32.mrf.mxu0
      %v1751 = vadd.f32 %v1613, %v1750
      %v1752 = vpop.f32.mrf.mxu0
      %v1753 = vadd.f32 %v1615, %v1752
      %1754 = vmatmul.bf16.gmra.mxu0 %v1665
      %v1755 = vpop.f32.mrf.mxu0
      %v1756 = vadd.f32 %v1618, %v1755
      %v1757 = vpop.f32.mrf.mxu0
      %v1758 = vadd.f32 %v1620, %v1757
      %1759 = vmatmul.bf16.gmra.mxu0 %v1667
      %v1760 = vpop.f32.mrf.mxu0
      %v1761 = vadd.f32 %v1623, %v1760
      %v1762 = vpop.f32.mrf.mxu0
      %v1763 = vadd.f32 %v1625, %v1762
      %1764 = vmatmul.bf16.gmra.mxu0 %v1669
      %v1765 = vpop.f32.mrf.mxu0
      %v1766 = vadd.f32 %v1628, %v1765
      %v1767 = vpop.f32.mrf.mxu0
      %v1768 = vadd.f32 %v1630, %v1767
      %1769 = vmatmul.bf16.gmra.mxu0 %v1671
      %v1770 = vpop.f32.mrf.mxu0
      %v1771 = vadd.f32 %v1633, %v1770
      %v1772 = vpop.f32.mrf.mxu0
      %v1773 = vadd.f32 %v1635, %v1772
      %1774 = vdwg.mxu0
      %v1775 = vld [vmem:[#allocation2] sm:$0xe]
      %s1776 = scalar_lea.vmem %s1, 4
      %v1777 = vld [vmem:[%s1776] sm:$0x3]
      %v1779 = vunpack.c.l.b16 %v1775
      %v1780 = vpack.c.b16 %v1275, %v1779
      %vm1781 = vcmask 1046528
      %v1782 = vrot.slane %v1780, 1
      %v1783 = vrot.slane %v1312, 1
      %v1784 = vsel %vm1781, %v1782, %v1783
      %v1785 = vrot.slane %v1313, 1
      %v1786 = vsel %vm1781, %v1783, %v1785
      %v1787 = vrot.slane %v1314, 1
      %v1788 = vsel %vm1781, %v1785, %v1787
      %v1789 = vrot.slane %v1315, 1
      %v1790 = vsel %vm1781, %v1787, %v1789
      %v1791 = vrot.slane %v1316, 1
      %v1792 = vsel %vm1781, %v1789, %v1791
      %v1793 = vrot.slane %v1317, 1
      %v1794 = vsel %vm1781, %v1791, %v1793
      %v1795 = vrot.slane %v1318, 1
      %v1796 = vsel %vm1781, %v1793, %v1795
      %v1797 = vrot.slane %v1319, 1
      %v1798 = vsel %vm1781, %v1795, %v1797
      %v1799 = vrot.slane %v1320, 1
      %v1800 = vsel %vm1781, %v1797, %v1799
      %v1801 = vrot.slane %v1321, 1
      %v1802 = vsel %vm1781, %v1799, %v1801
      %v1803 = vrot.slane %v1322, 1
      %v1804 = vsel %vm1781, %v1801, %v1803
      %v1805 = vrot.slane %v1323, 1
      %v1806 = vsel %vm1781, %v1803, %v1805
      %v1807 = vrot.slane %v1324, 1
      %v1808 = vsel %vm1781, %v1805, %v1807
      %v1809 = vrot.slane %v1325, 1
      %v1810 = vsel %vm1781, %v1807, %v1809
      %v1811 = vrot.slane %v1326, 1
      %v1812 = vsel %vm1781, %v1809, %v1811
      %v1813 = vrot.slane %v1327, 1
      %v1814 = vsel %vm1781, %v1811, %v1813
      %v1815 = vrot.slane %v1328, 1
      %v1816 = vsel %vm1781, %v1813, %v1815
      %v1817 = vrot.slane %v1329, 1
      %v1818 = vsel %vm1781, %v1815, %v1817
      %v1820 = vsel %vm1479, %v1784, 0
      %v1823 = vsel %vm1479, %v1786, 0
      %v1826 = vsel %vm1479, %v1788, 0
      %v1829 = vsel %vm1479, %v1790, 0
      %v1832 = vsel %vm1479, %v1792, 0
      %v1835 = vsel %vm1479, %v1794, 0
      %v1838 = vsel %vm1479, %v1796, 0
      %v1841 = vsel %vm1479, %v1798, 0
      %v1844 = vsel %vm1479, %v1800, 0
      %v1847 = vsel %vm1479, %v1802, 0
      %v1850 = vsel %vm1479, %v1804, 0
      %v1853 = vsel %vm1479, %v1806, 0
      %v1856 = vsel %vm1479, %v1808, 0
      %v1859 = vsel %vm1479, %v1810, 0
      %v1862 = vsel %vm1479, %v1812, 0
      %v1865 = vsel %vm1479, %v1814, 0
      %v1868 = vsel %vm1479, %v1816, 0
      %v1871 = vsel %vm1479, %v1818, 0
      %v1874 = vsel %vm1534, %v1777, 0
      %1876 = vmatpush.bf16.msra.mxu0 0
      %1877 = vmatpush.bf16.msra.mxu0 0
      %1878 = vmatpush.bf16.msra.mxu0 0
      %1879 = vmatpush.bf16.msra.mxu0 0
      %1880 = vmatpush.bf16.msra.mxu0 0
      %1881 = vmatpush.bf16.msra.mxu0 0
      %1882 = vmatpush.bf16.msra.mxu0 0
      %1883 = vmatpush.bf16.msra.mxu0 %v1874
      %1884 = vmatmul.bf16.gmra.mxu0 %v1820
      %v1885 = vpop.f32.mrf.mxu0
      %v1886 = vadd.f32 0.0, %v1885
      %v1887 = vpop.f32.mrf.mxu0
      %v1888 = vadd.f32 0.0, %v1887
      %1889 = vmatmul.bf16.gmra.mxu0 %v1823
      %v1890 = vpop.f32.mrf.mxu0
      %v1891 = vadd.f32 0.0, %v1890
      %v1892 = vpop.f32.mrf.mxu0
      %v1893 = vadd.f32 0.0, %v1892
      %1894 = vmatmul.bf16.gmra.mxu0 %v1826
      %v1895 = vpop.f32.mrf.mxu0
      %v1896 = vadd.f32 0.0, %v1895
      %v1897 = vpop.f32.mrf.mxu0
      %v1898 = vadd.f32 0.0, %v1897
      %1899 = vmatmul.bf16.gmra.mxu0 %v1829
      %v1900 = vpop.f32.mrf.mxu0
      %v1901 = vadd.f32 0.0, %v1900
      %v1902 = vpop.f32.mrf.mxu0
      %v1903 = vadd.f32 0.0, %v1902
      %1904 = vmatmul.bf16.gmra.mxu0 %v1832
      %v1905 = vpop.f32.mrf.mxu0
      %v1906 = vadd.f32 0.0, %v1905
      %v1907 = vpop.f32.mrf.mxu0
      %v1908 = vadd.f32 0.0, %v1907
      %1909 = vmatmul.bf16.gmra.mxu0 %v1835
      %v1910 = vpop.f32.mrf.mxu0
      %v1911 = vadd.f32 0.0, %v1910
      %v1912 = vpop.f32.mrf.mxu0
      %v1913 = vadd.f32 0.0, %v1912
      %1914 = vmatmul.bf16.gmra.mxu0 %v1838
      %v1915 = vpop.f32.mrf.mxu0
      %v1916 = vadd.f32 0.0, %v1915
      %v1917 = vpop.f32.mrf.mxu0
      %v1918 = vadd.f32 0.0, %v1917
      %1919 = vmatmul.bf16.gmra.mxu0 %v1841
      %v1920 = vpop.f32.mrf.mxu0
      %v1921 = vadd.f32 0.0, %v1920
      %v1922 = vpop.f32.mrf.mxu0
      %v1923 = vadd.f32 0.0, %v1922
      %1924 = vmatmul.bf16.gmra.mxu0 %v1844
      %v1925 = vpop.f32.mrf.mxu0
      %v1926 = vadd.f32 0.0, %v1925
      %v1927 = vpop.f32.mrf.mxu0
      %v1928 = vadd.f32 0.0, %v1927
      %1929 = vmatmul.bf16.gmra.mxu0 %v1847
      %v1930 = vpop.f32.mrf.mxu0
      %v1931 = vadd.f32 0.0, %v1930
      %v1932 = vpop.f32.mrf.mxu0
      %v1933 = vadd.f32 0.0, %v1932
      %1934 = vmatmul.bf16.gmra.mxu0 %v1850
      %v1935 = vpop.f32.mrf.mxu0
      %v1936 = vadd.f32 0.0, %v1935
      %v1937 = vpop.f32.mrf.mxu0
      %v1938 = vadd.f32 0.0, %v1937
      %1939 = vmatmul.bf16.gmra.mxu0 %v1853
      %v1940 = vpop.f32.mrf.mxu0
      %v1941 = vadd.f32 0.0, %v1940
      %v1942 = vpop.f32.mrf.mxu0
      %v1943 = vadd.f32 0.0, %v1942
      %1944 = vmatmul.bf16.gmra.mxu0 %v1856
      %v1945 = vpop.f32.mrf.mxu0
      %v1946 = vadd.f32 0.0, %v1945
      %v1947 = vpop.f32.mrf.mxu0
      %v1948 = vadd.f32 0.0, %v1947
      %1949 = vmatmul.bf16.gmra.mxu0 %v1859
      %v1950 = vpop.f32.mrf.mxu0
      %v1951 = vadd.f32 0.0, %v1950
      %v1952 = vpop.f32.mrf.mxu0
      %v1953 = vadd.f32 0.0, %v1952
      %1954 = vmatmul.bf16.gmra.mxu0 %v1862
      %v1955 = vpop.f32.mrf.mxu0
      %v1956 = vadd.f32 0.0, %v1955
      %v1957 = vpop.f32.mrf.mxu0
      %v1958 = vadd.f32 0.0, %v1957
      %1959 = vmatmul.bf16.gmra.mxu0 %v1865
      %v1960 = vpop.f32.mrf.mxu0
      %v1961 = vadd.f32 0.0, %v1960
      %v1962 = vpop.f32.mrf.mxu0
      %v1963 = vadd.f32 0.0, %v1962
      %1964 = vmatmul.bf16.gmra.mxu0 %v1868
      %v1965 = vpop.f32.mrf.mxu0
      %v1966 = vadd.f32 0.0, %v1965
      %v1967 = vpop.f32.mrf.mxu0
      %v1968 = vadd.f32 0.0, %v1967
      %1969 = vmatmul.bf16.gmra.mxu0 %v1871
      %v1970 = vpop.f32.mrf.mxu0
      %v1971 = vadd.f32 0.0, %v1970
      %v1972 = vpop.f32.mrf.mxu0
      %v1973 = vadd.f32 0.0, %v1972
      %1974 = vdwg.mxu0
      %v1975 = vadd.f32 %v1686, %v1886
      %v1976 = vadd.f32 %v1688, %v1888
      %v1977 = vadd.f32 %v1691, %v1891
      %v1978 = vadd.f32 %v1693, %v1893
      %v1979 = vadd.f32 %v1696, %v1896
      %v1980 = vadd.f32 %v1698, %v1898
      %v1981 = vadd.f32 %v1701, %v1901
      %v1982 = vadd.f32 %v1703, %v1903
      %v1983 = vadd.f32 %v1706, %v1906
      %v1984 = vadd.f32 %v1708, %v1908
      %v1985 = vadd.f32 %v1711, %v1911
      %v1986 = vadd.f32 %v1713, %v1913
      %v1987 = vadd.f32 %v1716, %v1916
      %v1988 = vadd.f32 %v1718, %v1918
      %v1989 = vadd.f32 %v1721, %v1921
      %v1990 = vadd.f32 %v1723, %v1923
      %v1991 = vadd.f32 %v1726, %v1926
      %v1992 = vadd.f32 %v1728, %v1928
      %v1993 = vadd.f32 %v1731, %v1931
      %v1994 = vadd.f32 %v1733, %v1933
      %v1995 = vadd.f32 %v1736, %v1936
      %v1996 = vadd.f32 %v1738, %v1938
      %v1997 = vadd.f32 %v1741, %v1941
      %v1998 = vadd.f32 %v1743, %v1943
      %v1999 = vadd.f32 %v1746, %v1946
      %v2000 = vadd.f32 %v1748, %v1948
      %v2001 = vadd.f32 %v1751, %v1951
      %v2002 = vadd.f32 %v1753, %v1953
      %v2003 = vadd.f32 %v1756, %v1956
      %v2004 = vadd.f32 %v1758, %v1958
      %v2005 = vadd.f32 %v1761, %v1961
      %v2006 = vadd.f32 %v1763, %v1963
      %v2007 = vadd.f32 %v1766, %v1966
      %v2008 = vadd.f32 %v1768, %v1968
      %v2009 = vadd.f32 %v1771, %v1971
      %v2010 = vadd.f32 %v1773, %v1973
      %v2011 = vld [vmem:[#allocation2 + $0x8] sm:$0xe]
      %v2012 = vld [vmem:[#allocation2 + $0xc] sm:$0xf]
      %v2013 = vld [vmem:[#allocation2 + $0x10] sm:$0xf]
      %v2014 = vld [vmem:[#allocation2 + $0x14] sm:$0xf]
      %v2015 = vld [vmem:[#allocation2 + $0x18] sm:$0xf]
      %v2016 = vld [vmem:[#allocation2 + $0x1c] sm:$0xf]
      %v2017 = vld [vmem:[#allocation2 + $0x20] sm:$0xf]
      %v2018 = vld [vmem:[#allocation2 + $0x24] sm:$0xf]
      %v2019 = vld [vmem:[#allocation2 + $0x28] sm:$0xf]
      %v2020 = vld [vmem:[#allocation2 + $0x2c] sm:$0xf]
      %v2021 = vld [vmem:[#allocation2 + $0x30] sm:$0xf]
      %v2022 = vld [vmem:[#allocation2 + $0x34] sm:$0xf]
      %v2023 = vld [vmem:[#allocation2 + $0x38] sm:$0xf]
      %v2024 = vld [vmem:[#allocation2 + $0x3c] sm:$0xf]
      %v2025 = vld [vmem:[#allocation2 + $0x40] sm:$0xf]
      %v2026 = vld [vmem:[#allocation2 + $0x44] sm:$0xf]
      %v2027 = vld [vmem:[#allocation2 + $0x48] sm:$0xf]
      %v2028 = vld [vmem:[#allocation2 + $0x4c] sm:$0xf]
      %v2029 = vld [vmem:[#allocation2 + $0x50] sm:$0xf]
      %v2030 = vld [vmem:[#allocation2 + $0x54] sm:$0xf]
      %v2031 = vld [vmem:[#allocation2 + $0x58] sm:$0xf]
      %v2032 = vld [vmem:[#allocation2 + $0x5c] sm:$0xf]
      %v2033 = vld [vmem:[#allocation2 + $0x60] sm:$0xf]
      %v2034 = vld [vmem:[#allocation2 + $0x64] sm:$0xf]
      %v2035 = vld [vmem:[#allocation2 + $0x68] sm:$0xf]
      %v2036 = vld [vmem:[#allocation2 + $0x6c] sm:$0xf]
      %v2037 = vld [vmem:[#allocation2 + $0x70] sm:$0xf]
      %v2038 = vld [vmem:[#allocation2 + $0x74] sm:$0xf]
      %v2039 = vld [vmem:[#allocation2 + $0x78] sm:$0xf]
      %v2040 = vld [vmem:[#allocation2 + $0x7c] sm:$0xf]
      %v2041 = vld [vmem:[#allocation2 + $0x80] sm:$0xf]
      %v2042 = vld [vmem:[#allocation2 + $0x84] sm:$0xf]
      %v2043 = vld [vmem:[#allocation2 + $0x88] sm:$0xf]
      %v2044 = vld [vmem:[#allocation2 + $0x8c] sm:$0xf]
      %v2045 = vld [vmem:[#allocation2 + $0x90] sm:$0xf]
      %v2046 = vld [vmem:[#allocation2 + $0x94] sm:$0xf]
      %v2047 = vld [vmem:[#allocation2 + $0x98] sm:$0x1]
      %s2048 = scalar_lea.vmem %s1, 6
      %v2049 = vld [vmem:[%s2048] sm:$0x3]
      %v2087 = vunpack.c.l.b16 %v2011
      %v2088 = vunpack.c.l.b16 %v2012
      %v2089 = vunpack.c.l.b16 %v2013
      %v2090 = vunpack.c.l.b16 %v2014
      %v2091 = vunpack.c.l.b16 %v2015
      %v2092 = vunpack.c.l.b16 %v2016
      %v2093 = vunpack.c.l.b16 %v2017
      %v2094 = vunpack.c.l.b16 %v2018
      %v2095 = vunpack.c.l.b16 %v2019
      %v2096 = vunpack.c.l.b16 %v2020
      %v2097 = vunpack.c.l.b16 %v2021
      %v2098 = vunpack.c.l.b16 %v2022
      %v2099 = vunpack.c.l.b16 %v2023
      %v2100 = vunpack.c.l.b16 %v2024
      %v2101 = vunpack.c.l.b16 %v2025
      %v2102 = vunpack.c.l.b16 %v2026
      %v2103 = vunpack.c.l.b16 %v2027
      %v2104 = vunpack.c.l.b16 %v2028
      %v2105 = vunpack.c.l.b16 %v2029
      %v2106 = vunpack.c.l.b16 %v2030
      %v2107 = vunpack.c.l.b16 %v2031
      %v2108 = vunpack.c.l.b16 %v2032
      %v2109 = vunpack.c.l.b16 %v2033
      %v2110 = vunpack.c.l.b16 %v2034
      %v2111 = vunpack.c.l.b16 %v2035
      %v2112 = vunpack.c.l.b16 %v2036
      %v2113 = vunpack.c.l.b16 %v2037
      %v2114 = vunpack.c.l.b16 %v2038
      %v2115 = vunpack.c.l.b16 %v2039
      %v2116 = vunpack.c.l.b16 %v2040
      %v2117 = vunpack.c.l.b16 %v2041
      %v2118 = vunpack.c.l.b16 %v2042
      %v2119 = vunpack.c.l.b16 %v2043
      %v2120 = vunpack.c.l.b16 %v2044
      %v2121 = vunpack.c.l.b16 %v2045
      %v2122 = vunpack.c.l.b16 %v2046
      %v2123 = vunpack.c.l.b16 %v2047
      %v2124 = vpack.c.b16 %v2088, %v2087
      %v2125 = vpack.c.b16 %v2090, %v2089
      %v2126 = vpack.c.b16 %v2092, %v2091
      %v2127 = vpack.c.b16 %v2094, %v2093
      %v2128 = vpack.c.b16 %v2096, %v2095
      %v2129 = vpack.c.b16 %v2098, %v2097
      %v2130 = vpack.c.b16 %v2100, %v2099
      %v2131 = vpack.c.b16 %v2102, %v2101
      %v2132 = vpack.c.b16 %v2104, %v2103
      %v2133 = vpack.c.b16 %v2106, %v2105
      %v2134 = vpack.c.b16 %v2108, %v2107
      %v2135 = vpack.c.b16 %v2110, %v2109
      %v2136 = vpack.c.b16 %v2112, %v2111
      %v2137 = vpack.c.b16 %v2114, %v2113
      %v2138 = vpack.c.b16 %v2116, %v2115
      %v2139 = vpack.c.b16 %v2118, %v2117
      %v2140 = vpack.c.b16 %v2120, %v2119
      %v2141 = vpack.c.b16 %v2122, %v2121
      %v2142 = vpack.c.b16 %v2123, %v2123
      %v2143 = vrot.slane %v2124, 1
      %v2144 = vrot.slane %v2125, 1
      %v2145 = vsel %vm1781, %v2143, %v2144
      %v2146 = vrot.slane %v2126, 1
      %v2147 = vsel %vm1781, %v2144, %v2146
      %v2148 = vrot.slane %v2127, 1
      %v2149 = vsel %vm1781, %v2146, %v2148
      %v2150 = vrot.slane %v2128, 1
      %v2151 = vsel %vm1781, %v2148, %v2150
      %v2152 = vrot.slane %v2129, 1
      %v2153 = vsel %vm1781, %v2150, %v2152
      %v2154 = vrot.slane %v2130, 1
      %v2155 = vsel %vm1781, %v2152, %v2154
      %v2156 = vrot.slane %v2131, 1
      %v2157 = vsel %vm1781, %v2154, %v2156
      %v2158 = vrot.slane %v2132, 1
      %v2159 = vsel %vm1781, %v2156, %v2158
      %v2160 = vrot.slane %v2133, 1
      %v2161 = vsel %vm1781, %v2158, %v2160
      %v2162 = vrot.slane %v2134, 1
      %v2163 = vsel %vm1781, %v2160, %v2162
      %v2164 = vrot.slane %v2135, 1
      %v2165 = vsel %vm1781, %v2162, %v2164
      %v2166 = vrot.slane %v2136, 1
      %v2167 = vsel %vm1781, %v2164, %v2166
      %v2168 = vrot.slane %v2137, 1
      %v2169 = vsel %vm1781, %v2166, %v2168
      %v2170 = vrot.slane %v2138, 1
      %v2171 = vsel %vm1781, %v2168, %v2170
      %v2172 = vrot.slane %v2139, 1
      %v2173 = vsel %vm1781, %v2170, %v2172
      %v2174 = vrot.slane %v2140, 1
      %v2175 = vsel %vm1781, %v2172, %v2174
      %v2176 = vrot.slane %v2141, 1
      %v2177 = vsel %vm1781, %v2174, %v2176
      %v2178 = vrot.slane %v2142, 1
      %v2179 = vsel %vm1781, %v2176, %v2178
      %v2181 = vsel %vm1479, %v2145, 0
      %v2184 = vsel %vm1479, %v2147, 0
      %v2187 = vsel %vm1479, %v2149, 0
      %v2190 = vsel %vm1479, %v2151, 0
      %v2193 = vsel %vm1479, %v2153, 0
      %v2196 = vsel %vm1479, %v2155, 0
      %v2199 = vsel %vm1479, %v2157, 0
      %v2202 = vsel %vm1479, %v2159, 0
      %v2205 = vsel %vm1479, %v2161, 0
      %v2208 = vsel %vm1479, %v2163, 0
      %v2211 = vsel %vm1479, %v2165, 0
      %v2214 = vsel %vm1479, %v2167, 0
      %v2217 = vsel %vm1479, %v2169, 0
      %v2220 = vsel %vm1479, %v2171, 0
      %v2223 = vsel %vm1479, %v2173, 0
      %v2226 = vsel %vm1479, %v2175, 0
      %v2229 = vsel %vm1479, %v2177, 0
      %v2232 = vsel %vm1479, %v2179, 0
      %v2235 = vsel %vm1534, %v2049, 0
      %2237 = vmatpush.bf16.msra.mxu0 0
      %2238 = vmatpush.bf16.msra.mxu0 0
      %2239 = vmatpush.bf16.msra.mxu0 0
      %2240 = vmatpush.bf16.msra.mxu0 0
      %2241 = vmatpush.bf16.msra.mxu0 0
      %2242 = vmatpush.bf16.msra.mxu0 0
      %2243 = vmatpush.bf16.msra.mxu0 0
      %2244 = vmatpush.bf16.msra.mxu0 %v2235
      %2245 = vmatmul.bf16.gmra.mxu0 %v2181
      %v2246 = vpop.f32.mrf.mxu0
      %v2247 = vadd.f32 0.0, %v2246
      %v2248 = vpop.f32.mrf.mxu0
      %v2249 = vadd.f32 0.0, %v2248
      %2250 = vmatmul.bf16.gmra.mxu0 %v2184
      %v2251 = vpop.f32.mrf.mxu0
      %v2252 = vadd.f32 0.0, %v2251
      %v2253 = vpop.f32.mrf.mxu0
      %v2254 = vadd.f32 0.0, %v2253
      %2255 = vmatmul.bf16.gmra.mxu0 %v2187
      %v2256 = vpop.f32.mrf.mxu0
      %v2257 = vadd.f32 0.0, %v2256
      %v2258 = vpop.f32.mrf.mxu0
      %v2259 = vadd.f32 0.0, %v2258
      %2260 = vmatmul.bf16.gmra.mxu0 %v2190
      %v2261 = vpop.f32.mrf.mxu0
      %v2262 = vadd.f32 0.0, %v2261
      %v2263 = vpop.f32.mrf.mxu0
      %v2264 = vadd.f32 0.0, %v2263
      %2265 = vmatmul.bf16.gmra.mxu0 %v2193
      %v2266 = vpop.f32.mrf.mxu0
      %v2267 = vadd.f32 0.0, %v2266
      %v2268 = vpop.f32.mrf.mxu0
      %v2269 = vadd.f32 0.0, %v2268
      %2270 = vmatmul.bf16.gmra.mxu0 %v2196
      %v2271 = vpop.f32.mrf.mxu0
      %v2272 = vadd.f32 0.0, %v2271
      %v2273 = vpop.f32.mrf.mxu0
      %v2274 = vadd.f32 0.0, %v2273
      %2275 = vmatmul.bf16.gmra.mxu0 %v2199
      %v2276 = vpop.f32.mrf.mxu0
      %v2277 = vadd.f32 0.0, %v2276
      %v2278 = vpop.f32.mrf.mxu0
      %v2279 = vadd.f32 0.0, %v2278
      %2280 = vmatmul.bf16.gmra.mxu0 %v2202
      %v2281 = vpop.f32.mrf.mxu0
      %v2282 = vadd.f32 0.0, %v2281
      %v2283 = vpop.f32.mrf.mxu0
      %v2284 = vadd.f32 0.0, %v2283
      %2285 = vmatmul.bf16.gmra.mxu0 %v2205
      %v2286 = vpop.f32.mrf.mxu0
      %v2287 = vadd.f32 0.0, %v2286
      %v2288 = vpop.f32.mrf.mxu0
      %v2289 = vadd.f32 0.0, %v2288
      %2290 = vmatmul.bf16.gmra.mxu0 %v2208
      %v2291 = vpop.f32.mrf.mxu0
      %v2292 = vadd.f32 0.0, %v2291
      %v2293 = vpop.f32.mrf.mxu0
      %v2294 = vadd.f32 0.0, %v2293
      %2295 = vmatmul.bf16.gmra.mxu0 %v2211
      %v2296 = vpop.f32.mrf.mxu0
      %v2297 = vadd.f32 0.0, %v2296
      %v2298 = vpop.f32.mrf.mxu0
      %v2299 = vadd.f32 0.0, %v2298
      %2300 = vmatmul.bf16.gmra.mxu0 %v2214
      %v2301 = vpop.f32.mrf.mxu0
      %v2302 = vadd.f32 0.0, %v2301
      %v2303 = vpop.f32.mrf.mxu0
      %v2304 = vadd.f32 0.0, %v2303
      %2305 = vmatmul.bf16.gmra.mxu0 %v2217
      %v2306 = vpop.f32.mrf.mxu0
      %v2307 = vadd.f32 0.0, %v2306
      %v2308 = vpop.f32.mrf.mxu0
      %v2309 = vadd.f32 0.0, %v2308
      %2310 = vmatmul.bf16.gmra.mxu0 %v2220
      %v2311 = vpop.f32.mrf.mxu0
      %v2312 = vadd.f32 0.0, %v2311
      %v2313 = vpop.f32.mrf.mxu0
      %v2314 = vadd.f32 0.0, %v2313
      %2315 = vmatmul.bf16.gmra.mxu0 %v2223
      %v2316 = vpop.f32.mrf.mxu0
      %v2317 = vadd.f32 0.0, %v2316
      %v2318 = vpop.f32.mrf.mxu0
      %v2319 = vadd.f32 0.0, %v2318
      %2320 = vmatmul.bf16.gmra.mxu0 %v2226
      %v2321 = vpop.f32.mrf.mxu0
      %v2322 = vadd.f32 0.0, %v2321
      %v2323 = vpop.f32.mrf.mxu0
      %v2324 = vadd.f32 0.0, %v2323
      %2325 = vmatmul.bf16.gmra.mxu0 %v2229
      %v2326 = vpop.f32.mrf.mxu0
      %v2327 = vadd.f32 0.0, %v2326
      %v2328 = vpop.f32.mrf.mxu0
      %v2329 = vadd.f32 0.0, %v2328
      %2330 = vmatmul.bf16.gmra.mxu0 %v2232
      %v2331 = vpop.f32.mrf.mxu0
      %v2332 = vadd.f32 0.0, %v2331
      %v2333 = vpop.f32.mrf.mxu0
      %v2334 = vadd.f32 0.0, %v2333
      %2335 = vdwg.mxu0
      %v2336 = vadd.f32 %v1975, %v2247
      %v2337 = vadd.f32 %v1976, %v2249
      %v2338 = vadd.f32 %v1977, %v2252
      %v2339 = vadd.f32 %v1978, %v2254
      %v2340 = vadd.f32 %v1979, %v2257
      %v2341 = vadd.f32 %v1980, %v2259
      %v2342 = vadd.f32 %v1981, %v2262
      %v2343 = vadd.f32 %v1982, %v2264
      %v2344 = vadd.f32 %v1983, %v2267
      %v2345 = vadd.f32 %v1984, %v2269
      %v2346 = vadd.f32 %v1985, %v2272
      %v2347 = vadd.f32 %v1986, %v2274
      %v2348 = vadd.f32 %v1987, %v2277
      %v2349 = vadd.f32 %v1988, %v2279
      %v2350 = vadd.f32 %v1989, %v2282
      %v2351 = vadd.f32 %v1990, %v2284
      %v2352 = vadd.f32 %v1991, %v2287
      %v2353 = vadd.f32 %v1992, %v2289
      %v2354 = vadd.f32 %v1993, %v2292
      %v2355 = vadd.f32 %v1994, %v2294
      %v2356 = vadd.f32 %v1995, %v2297
      %v2357 = vadd.f32 %v1996, %v2299
      %v2358 = vadd.f32 %v1997, %v2302
      %v2359 = vadd.f32 %v1998, %v2304
      %v2360 = vadd.f32 %v1999, %v2307
      %v2361 = vadd.f32 %v2000, %v2309
      %v2362 = vadd.f32 %v2001, %v2312
      %v2363 = vadd.f32 %v2002, %v2314
      %v2364 = vadd.f32 %v2003, %v2317
      %v2365 = vadd.f32 %v2004, %v2319
      %v2366 = vadd.f32 %v2005, %v2322
      %v2367 = vadd.f32 %v2006, %v2324
      %v2368 = vadd.f32 %v2007, %v2327
      %v2369 = vadd.f32 %v2008, %v2329
      %v2370 = vadd.f32 %v2009, %v2332
      %v2371 = vadd.f32 %v2010, %v2334
      %v2372 = vld [vmem:[#allocation2 + $0x98] sm:$0x3]
      %s2373 = scalar_lea.vmem %s1, 8
      %v2374 = vld [vmem:[%s2373] sm:$0x3]
      %v2376 = vunpack.c.l.b16 %v2372
      %v2377 = vpack.c.b16 %v2376, %v2376
      %vm2378 = vsmask.f32 6400
      %v2380 = vshrl.u32 %v2124, 16
      %v2382 = vrot.slane %v2380, 1
      %v2383 = vshll.u32 %v2124, 16
      %v2385 = vrot.slane %v2383, 2
      %v2386 = vor.u32 %v2382, %v2385
      %v2388 = vshrl.u32 %v2125, 16
      %v2390 = vrot.slane %v2388, 1
      %v2391 = vshll.u32 %v2125, 16
      %v2393 = vrot.slane %v2391, 2
      %v2394 = vor.u32 %v2390, %v2393
      %v2395 = vsel %vm2378, %v2386, %v2394
      %v2397 = vshrl.u32 %v2126, 16
      %v2399 = vrot.slane %v2397, 1
      %v2400 = vshll.u32 %v2126, 16
      %v2402 = vrot.slane %v2400, 2
      %v2403 = vor.u32 %v2399, %v2402
      %v2404 = vsel %vm2378, %v2394, %v2403
      %v2406 = vshrl.u32 %v2127, 16
      %v2408 = vrot.slane %v2406, 1
      %v2409 = vshll.u32 %v2127, 16
      %v2411 = vrot.slane %v2409, 2
      %v2412 = vor.u32 %v2408, %v2411
      %v2413 = vsel %vm2378, %v2403, %v2412
      %v2415 = vshrl.u32 %v2128, 16
      %v2417 = vrot.slane %v2415, 1
      %v2418 = vshll.u32 %v2128, 16
      %v2420 = vrot.slane %v2418, 2
      %v2421 = vor.u32 %v2417, %v2420
      %v2422 = vsel %vm2378, %v2412, %v2421
      %v2424 = vshrl.u32 %v2129, 16
      %v2426 = vrot.slane %v2424, 1
      %v2427 = vshll.u32 %v2129, 16
      %v2429 = vrot.slane %v2427, 2
      %v2430 = vor.u32 %v2426, %v2429
      %v2431 = vsel %vm2378, %v2421, %v2430
      %v2433 = vshrl.u32 %v2130, 16
      %v2435 = vrot.slane %v2433, 1
      %v2436 = vshll.u32 %v2130, 16
      %v2438 = vrot.slane %v2436, 2
      %v2439 = vor.u32 %v2435, %v2438
      %v2440 = vsel %vm2378, %v2430, %v2439
      %v2442 = vshrl.u32 %v2131, 16
      %v2444 = vrot.slane %v2442, 1
      %v2445 = vshll.u32 %v2131, 16
      %v2447 = vrot.slane %v2445, 2
      %v2448 = vor.u32 %v2444, %v2447
      %v2449 = vsel %vm2378, %v2439, %v2448
      %v2451 = vshrl.u32 %v2132, 16
      %v2453 = vrot.slane %v2451, 1
      %v2454 = vshll.u32 %v2132, 16
      %v2456 = vrot.slane %v2454, 2
      %v2457 = vor.u32 %v2453, %v2456
      %v2458 = vsel %vm2378, %v2448, %v2457
      %v2460 = vshrl.u32 %v2133, 16
      %v2462 = vrot.slane %v2460, 1
      %v2463 = vshll.u32 %v2133, 16
      %v2465 = vrot.slane %v2463, 2
      %v2466 = vor.u32 %v2462, %v2465
      %v2467 = vsel %vm2378, %v2457, %v2466
      %v2469 = vshrl.u32 %v2134, 16
      %v2471 = vrot.slane %v2469, 1
      %v2472 = vshll.u32 %v2134, 16
      %v2474 = vrot.slane %v2472, 2
      %v2475 = vor.u32 %v2471, %v2474
      %v2476 = vsel %vm2378, %v2466, %v2475
      %v2478 = vshrl.u32 %v2135, 16
      %v2480 = vrot.slane %v2478, 1
      %v2481 = vshll.u32 %v2135, 16
      %v2483 = vrot.slane %v2481, 2
      %v2484 = vor.u32 %v2480, %v2483
      %v2485 = vsel %vm2378, %v2475, %v2484
      %v2487 = vshrl.u32 %v2136, 16
      %v2489 = vrot.slane %v2487, 1
      %v2490 = vshll.u32 %v2136, 16
      %v2492 = vrot.slane %v2490, 2
      %v2493 = vor.u32 %v2489, %v2492
      %v2494 = vsel %vm2378, %v2484, %v2493
      %v2496 = vshrl.u32 %v2137, 16
      %v2498 = vrot.slane %v2496, 1
      %v2499 = vshll.u32 %v2137, 16
      %v2501 = vrot.slane %v2499, 2
      %v2502 = vor.u32 %v2498, %v2501
      %v2503 = vsel %vm2378, %v2493, %v2502
      %v2505 = vshrl.u32 %v2138, 16
      %v2507 = vrot.slane %v2505, 1
      %v2508 = vshll.u32 %v2138, 16
      %v2510 = vrot.slane %v2508, 2
      %v2511 = vor.u32 %v2507, %v2510
      %v2512 = vsel %vm2378, %v2502, %v2511
      %v2514 = vshrl.u32 %v2139, 16
      %v2516 = vrot.slane %v2514, 1
      %v2517 = vshll.u32 %v2139, 16
      %v2519 = vrot.slane %v2517, 2
      %v2520 = vor.u32 %v2516, %v2519
      %v2521 = vsel %vm2378, %v2511, %v2520
      %v2523 = vshrl.u32 %v2140, 16
      %v2525 = vrot.slane %v2523, 1
      %v2526 = vshll.u32 %v2140, 16
      %v2528 = vrot.slane %v2526, 2
      %v2529 = vor.u32 %v2525, %v2528
      %v2530 = vsel %vm2378, %v2520, %v2529
      %v2532 = vshrl.u32 %v2141, 16
      %v2534 = vrot.slane %v2532, 1
      %v2535 = vshll.u32 %v2141, 16
      %v2537 = vrot.slane %v2535, 2
      %v2538 = vor.u32 %v2534, %v2537
      %v2539 = vsel %vm2378, %v2529, %v2538
      %v2541 = vshrl.u32 %v2377, 16
      %v2543 = vrot.slane %v2541, 1
      %v2544 = vshll.u32 %v2377, 16
      %v2546 = vrot.slane %v2544, 2
      %v2547 = vor.u32 %v2543, %v2546
      %v2548 = vsel %vm2378, %v2538, %v2547
      %v2550 = vsel %vm1479, %v2395, 0
      %v2553 = vsel %vm1479, %v2404, 0
      %v2556 = vsel %vm1479, %v2413, 0
      %v2559 = vsel %vm1479, %v2422, 0
      %v2562 = vsel %vm1479, %v2431, 0
      %v2565 = vsel %vm1479, %v2440, 0
      %v2568 = vsel %vm1479, %v2449, 0
      %v2571 = vsel %vm1479, %v2458, 0
      %v2574 = vsel %vm1479, %v2467, 0
      %v2577 = vsel %vm1479, %v2476, 0
      %v2580 = vsel %vm1479, %v2485, 0
      %v2583 = vsel %vm1479, %v2494, 0
      %v2586 = vsel %vm1479, %v2503, 0
      %v2589 = vsel %vm1479, %v2512, 0
      %v2592 = vsel %vm1479, %v2521, 0
      %v2595 = vsel %vm1479, %v2530, 0
      %v2598 = vsel %vm1479, %v2539, 0
      %v2601 = vsel %vm1479, %v2548, 0
      %v2604 = vsel %vm1534, %v2374, 0
      %2606 = vmatpush.bf16.msra.mxu0 0
      %2607 = vmatpush.bf16.msra.mxu0 0
      %2608 = vmatpush.bf16.msra.mxu0 0
      %2609 = vmatpush.bf16.msra.mxu0 0
      %2610 = vmatpush.bf16.msra.mxu0 0
      %2611 = vmatpush.bf16.msra.mxu0 0
      %2612 = vmatpush.bf16.msra.mxu0 0
      %2613 = vmatpush.bf16.msra.mxu0 %v2604
      %2614 = vmatmul.bf16.gmra.mxu0 %v2550
      %v2615 = vpop.f32.mrf.mxu0
      %v2616 = vadd.f32 0.0, %v2615
      %v2617 = vpop.f32.mrf.mxu0
      %v2618 = vadd.f32 0.0, %v2617
      %2619 = vmatmul.bf16.gmra.mxu0 %v2553
      %v2620 = vpop.f32.mrf.mxu0
      %v2621 = vadd.f32 0.0, %v2620
      %v2622 = vpop.f32.mrf.mxu0
      %v2623 = vadd.f32 0.0, %v2622
      %2624 = vmatmul.bf16.gmra.mxu0 %v2556
      %v2625 = vpop.f32.mrf.mxu0
      %v2626 = vadd.f32 0.0, %v2625
      %v2627 = vpop.f32.mrf.mxu0
      %v2628 = vadd.f32 0.0, %v2627
      %2629 = vmatmul.bf16.gmra.mxu0 %v2559
      %v2630 = vpop.f32.mrf.mxu0
      %v2631 = vadd.f32 0.0, %v2630
      %v2632 = vpop.f32.mrf.mxu0
      %v2633 = vadd.f32 0.0, %v2632
      %2634 = vmatmul.bf16.gmra.mxu0 %v2562
      %v2635 = vpop.f32.mrf.mxu0
      %v2636 = vadd.f32 0.0, %v2635
      %v2637 = vpop.f32.mrf.mxu0
      %v2638 = vadd.f32 0.0, %v2637
      %2639 = vmatmul.bf16.gmra.mxu0 %v2565
      %v2640 = vpop.f32.mrf.mxu0
      %v2641 = vadd.f32 0.0, %v2640
      %v2642 = vpop.f32.mrf.mxu0
      %v2643 = vadd.f32 0.0, %v2642
      %2644 = vmatmul.bf16.gmra.mxu0 %v2568
      %v2645 = vpop.f32.mrf.mxu0
      %v2646 = vadd.f32 0.0, %v2645
      %v2647 = vpop.f32.mrf.mxu0
      %v2648 = vadd.f32 0.0, %v2647
      %2649 = vmatmul.bf16.gmra.mxu0 %v2571
      %v2650 = vpop.f32.mrf.mxu0
      %v2651 = vadd.f32 0.0, %v2650
      %v2652 = vpop.f32.mrf.mxu0
      %v2653 = vadd.f32 0.0, %v2652
      %2654 = vmatmul.bf16.gmra.mxu0 %v2574
      %v2655 = vpop.f32.mrf.mxu0
      %v2656 = vadd.f32 0.0, %v2655
      %v2657 = vpop.f32.mrf.mxu0
      %v2658 = vadd.f32 0.0, %v2657
      %2659 = vmatmul.bf16.gmra.mxu0 %v2577
      %v2660 = vpop.f32.mrf.mxu0
      %v2661 = vadd.f32 0.0, %v2660
      %v2662 = vpop.f32.mrf.mxu0
      %v2663 = vadd.f32 0.0, %v2662
      %2664 = vmatmul.bf16.gmra.mxu0 %v2580
      %v2665 = vpop.f32.mrf.mxu0
      %v2666 = vadd.f32 0.0, %v2665
      %v2667 = vpop.f32.mrf.mxu0
      %v2668 = vadd.f32 0.0, %v2667
      %2669 = vmatmul.bf16.gmra.mxu0 %v2583
      %v2670 = vpop.f32.mrf.mxu0
      %v2671 = vadd.f32 0.0, %v2670
      %v2672 = vpop.f32.mrf.mxu0
      %v2673 = vadd.f32 0.0, %v2672
      %2674 = vmatmul.bf16.gmra.mxu0 %v2586
      %v2675 = vpop.f32.mrf.mxu0
      %v2676 = vadd.f32 0.0, %v2675
      %v2677 = vpop.f32.mrf.mxu0
      %v2678 = vadd.f32 0.0, %v2677
      %2679 = vmatmul.bf16.gmra.mxu0 %v2589
      %v2680 = vpop.f32.mrf.mxu0
      %v2681 = vadd.f32 0.0, %v2680
      %v2682 = vpop.f32.mrf.mxu0
      %v2683 = vadd.f32 0.0, %v2682
      %2684 = vmatmul.bf16.gmra.mxu0 %v2592
      %v2685 = vpop.f32.mrf.mxu0
      %v2686 = vadd.f32 0.0, %v2685
      %v2687 = vpop.f32.mrf.mxu0
      %v2688 = vadd.f32 0.0, %v2687
      %2689 = vmatmul.bf16.gmra.mxu0 %v2595
      %v2690 = vpop.f32.mrf.mxu0
      %v2691 = vadd.f32 0.0, %v2690
      %v2692 = vpop.f32.mrf.mxu0
      %v2693 = vadd.f32 0.0, %v2692
      %2694 = vmatmul.bf16.gmra.mxu0 %v2598
      %v2695 = vpop.f32.mrf.mxu0
      %v2696 = vadd.f32 0.0, %v2695
      %v2697 = vpop.f32.mrf.mxu0
      %v2698 = vadd.f32 0.0, %v2697
      %2699 = vmatmul.bf16.gmra.mxu0 %v2601
      %v2700 = vpop.f32.mrf.mxu0
      %v2701 = vadd.f32 0.0, %v2700
      %v2702 = vpop.f32.mrf.mxu0
      %v2703 = vadd.f32 0.0, %v2702
      %2704 = vdwg.mxu0
      %v2705 = vadd.f32 %v2336, %v2616
      %v2706 = vadd.f32 %v2337, %v2618
      %v2707 = vadd.f32 %v2338, %v2621
      %v2708 = vadd.f32 %v2339, %v2623
      %v2709 = vadd.f32 %v2340, %v2626
      %v2710 = vadd.f32 %v2341, %v2628
      %v2711 = vadd.f32 %v2342, %v2631
      %v2712 = vadd.f32 %v2343, %v2633
      %v2713 = vadd.f32 %v2344, %v2636
      %v2714 = vadd.f32 %v2345, %v2638
      %v2715 = vadd.f32 %v2346, %v2641
      %v2716 = vadd.f32 %v2347, %v2643
      %v2717 = vadd.f32 %v2348, %v2646
      %v2718 = vadd.f32 %v2349, %v2648
      %v2719 = vadd.f32 %v2350, %v2651
      %v2720 = vadd.f32 %v2351, %v2653
      %v2721 = vadd.f32 %v2352, %v2656
      %v2722 = vadd.f32 %v2353, %v2658
      %v2723 = vadd.f32 %v2354, %v2661
      %v2724 = vadd.f32 %v2355, %v2663
      %v2725 = vadd.f32 %v2356, %v2666
      %v2726 = vadd.f32 %v2357, %v2668
      %v2727 = vadd.f32 %v2358, %v2671
      %v2728 = vadd.f32 %v2359, %v2673
      %v2729 = vadd.f32 %v2360, %v2676
      %v2730 = vadd.f32 %v2361, %v2678
      %v2731 = vadd.f32 %v2362, %v2681
      %v2732 = vadd.f32 %v2363, %v2683
      %v2733 = vadd.f32 %v2364, %v2686
      %v2734 = vadd.f32 %v2365, %v2688
      %v2735 = vadd.f32 %v2366, %v2691
      %v2736 = vadd.f32 %v2367, %v2693
      %v2737 = vadd.f32 %v2368, %v2696
      %v2738 = vadd.f32 %v2369, %v2698
      %v2739 = vadd.f32 %v2370, %v2701
      %v2740 = vadd.f32 %v2371, %v2703
      %v2741 = vld [vmem:[#allocation2 + $0x8] sm:$0xc]
      %s2742 = scalar_lea.vmem %s1, 10
      %v2743 = vld [vmem:[%s2742] sm:$0x3]
      %v2745 = vunpack.c.l.b16 %v2741
      %v2746 = vpack.c.b16 %v2088, %v2745
      %vm2747 = vcmask 1045504
      %v2748 = vrot.slane %v2746, 2
      %v2749 = vrot.slane %v2125, 2
      %v2750 = vsel %vm2747, %v2748, %v2749
      %v2751 = vrot.slane %v2126, 2
      %v2752 = vsel %vm2747, %v2749, %v2751
      %v2753 = vrot.slane %v2127, 2
      %v2754 = vsel %vm2747, %v2751, %v2753
      %v2755 = vrot.slane %v2128, 2
      %v2756 = vsel %vm2747, %v2753, %v2755
      %v2757 = vrot.slane %v2129, 2
      %v2758 = vsel %vm2747, %v2755, %v2757
      %v2759 = vrot.slane %v2130, 2
      %v2760 = vsel %vm2747, %v2757, %v2759
      %v2761 = vrot.slane %v2131, 2
      %v2762 = vsel %vm2747, %v2759, %v2761
      %v2763 = vrot.slane %v2132, 2
      %v2764 = vsel %vm2747, %v2761, %v2763
      %v2765 = vrot.slane %v2133, 2
      %v2766 = vsel %vm2747, %v2763, %v2765
      %v2767 = vrot.slane %v2134, 2
      %v2768 = vsel %vm2747, %v2765, %v2767
      %v2769 = vrot.slane %v2135, 2
      %v2770 = vsel %vm2747, %v2767, %v2769
      %v2771 = vrot.slane %v2136, 2
      %v2772 = vsel %vm2747, %v2769, %v2771
      %v2773 = vrot.slane %v2137, 2
      %v2774 = vsel %vm2747, %v2771, %v2773
      %v2775 = vrot.slane %v2138, 2
      %v2776 = vsel %vm2747, %v2773, %v2775
      %v2777 = vrot.slane %v2139, 2
      %v2778 = vsel %vm2747, %v2775, %v2777
      %v2779 = vrot.slane %v2140, 2
      %v2780 = vsel %vm2747, %v2777, %v2779
      %v2781 = vrot.slane %v2141, 2
      %v2782 = vsel %vm2747, %v2779, %v2781
      %v2783 = vrot.slane %v2377, 2
      %v2784 = vsel %vm2747, %v2781, %v2783
      %v2786 = vsel %vm1479, %v2750, 0
      %v2789 = vsel %vm1479, %v2752, 0
      %v2792 = vsel %vm1479, %v2754, 0
      %v2795 = vsel %vm1479, %v2756, 0
      %v2798 = vsel %vm1479, %v2758, 0
      %v2801 = vsel %vm1479, %v2760, 0
      %v2804 = vsel %vm1479, %v2762, 0
      %v2807 = vsel %vm1479, %v2764, 0
      %v2810 = vsel %vm1479, %v2766, 0
      %v2813 = vsel %vm1479, %v2768, 0
      %v2816 = vsel %vm1479, %v2770, 0
      %v2819 = vsel %vm1479, %v2772, 0
      %v2822 = vsel %vm1479, %v2774, 0
      %v2825 = vsel %vm1479, %v2776, 0
      %v2828 = vsel %vm1479, %v2778, 0
      %v2831 = vsel %vm1479, %v2780, 0
      %v2834 = vsel %vm1479, %v2782, 0
      %v2837 = vsel %vm1479, %v2784, 0
      %v2840 = vsel %vm1534, %v2743, 0
      %2842 = vmatpush.bf16.msra.mxu0 0
      %2843 = vmatpush.bf16.msra.mxu0 0
      %2844 = vmatpush.bf16.msra.mxu0 0
      %2845 = vmatpush.bf16.msra.mxu0 0
      %2846 = vmatpush.bf16.msra.mxu0 0
      %2847 = vmatpush.bf16.msra.mxu0 0
      %2848 = vmatpush.bf16.msra.mxu0 0
      %2849 = vmatpush.bf16.msra.mxu0 %v2840
      %2850 = vmatmul.bf16.gmra.mxu0 %v2786
      %v2851 = vpop.f32.mrf.mxu0
      %v2852 = vadd.f32 0.0, %v2851
      %v2853 = vpop.f32.mrf.mxu0
      %v2854 = vadd.f32 0.0, %v2853
      %2855 = vmatmul.bf16.gmra.mxu0 %v2789
      %v2856 = vpop.f32.mrf.mxu0
      %v2857 = vadd.f32 0.0, %v2856
      %v2858 = vpop.f32.mrf.mxu0
      %v2859 = vadd.f32 0.0, %v2858
      %2860 = vmatmul.bf16.gmra.mxu0 %v2792
      %v2861 = vpop.f32.mrf.mxu0
      %v2862 = vadd.f32 0.0, %v2861
      %v2863 = vpop.f32.mrf.mxu0
      %v2864 = vadd.f32 0.0, %v2863
      %2865 = vmatmul.bf16.gmra.mxu0 %v2795
      %v2866 = vpop.f32.mrf.mxu0
      %v2867 = vadd.f32 0.0, %v2866
      %v2868 = vpop.f32.mrf.mxu0
      %v2869 = vadd.f32 0.0, %v2868
      %2870 = vmatmul.bf16.gmra.mxu0 %v2798
      %v2871 = vpop.f32.mrf.mxu0
      %v2872 = vadd.f32 0.0, %v2871
      %v2873 = vpop.f32.mrf.mxu0
      %v2874 = vadd.f32 0.0, %v2873
      %2875 = vmatmul.bf16.gmra.mxu0 %v2801
      %v2876 = vpop.f32.mrf.mxu0
      %v2877 = vadd.f32 0.0, %v2876
      %v2878 = vpop.f32.mrf.mxu0
      %v2879 = vadd.f32 0.0, %v2878
      %2880 = vmatmul.bf16.gmra.mxu0 %v2804
      %v2881 = vpop.f32.mrf.mxu0
      %v2882 = vadd.f32 0.0, %v2881
      %v2883 = vpop.f32.mrf.mxu0
      %v2884 = vadd.f32 0.0, %v2883
      %2885 = vmatmul.bf16.gmra.mxu0 %v2807
      %v2886 = vpop.f32.mrf.mxu0
      %v2887 = vadd.f32 0.0, %v2886
      %v2888 = vpop.f32.mrf.mxu0
      %v2889 = vadd.f32 0.0, %v2888
      %2890 = vmatmul.bf16.gmra.mxu0 %v2810
      %v2891 = vpop.f32.mrf.mxu0
      %v2892 = vadd.f32 0.0, %v2891
      %v2893 = vpop.f32.mrf.mxu0
      %v2894 = vadd.f32 0.0, %v2893
      %2895 = vmatmul.bf16.gmra.mxu0 %v2813
      %v2896 = vpop.f32.mrf.mxu0
      %v2897 = vadd.f32 0.0, %v2896
      %v2898 = vpop.f32.mrf.mxu0
      %v2899 = vadd.f32 0.0, %v2898
      %2900 = vmatmul.bf16.gmra.mxu0 %v2816
      %v2901 = vpop.f32.mrf.mxu0
      %v2902 = vadd.f32 0.0, %v2901
      %v2903 = vpop.f32.mrf.mxu0
      %v2904 = vadd.f32 0.0, %v2903
      %2905 = vmatmul.bf16.gmra.mxu0 %v2819
      %v2906 = vpop.f32.mrf.mxu0
      %v2907 = vadd.f32 0.0, %v2906
      %v2908 = vpop.f32.mrf.mxu0
      %v2909 = vadd.f32 0.0, %v2908
      %2910 = vmatmul.bf16.gmra.mxu0 %v2822
      %v2911 = vpop.f32.mrf.mxu0
      %v2912 = vadd.f32 0.0, %v2911
      %v2913 = vpop.f32.mrf.mxu0
      %v2914 = vadd.f32 0.0, %v2913
      %2915 = vmatmul.bf16.gmra.mxu0 %v2825
      %v2916 = vpop.f32.mrf.mxu0
      %v2917 = vadd.f32 0.0, %v2916
      %v2918 = vpop.f32.mrf.mxu0
      %v2919 = vadd.f32 0.0, %v2918
      %2920 = vmatmul.bf16.gmra.mxu0 %v2828
      %v2921 = vpop.f32.mrf.mxu0
      %v2922 = vadd.f32 0.0, %v2921
      %v2923 = vpop.f32.mrf.mxu0
      %v2924 = vadd.f32 0.0, %v2923
      %2925 = vmatmul.bf16.gmra.mxu0 %v2831
      %v2926 = vpop.f32.mrf.mxu0
      %v2927 = vadd.f32 0.0, %v2926
      %v2928 = vpop.f32.mrf.mxu0
      %v2929 = vadd.f32 0.0, %v2928
      %2930 = vmatmul.bf16.gmra.mxu0 %v2834
      %v2931 = vpop.f32.mrf.mxu0
      %v2932 = vadd.f32 0.0, %v2931
      %v2933 = vpop.f32.mrf.mxu0
      %v2934 = vadd.f32 0.0, %v2933
      %2935 = vmatmul.bf16.gmra.mxu0 %v2837
      %v2936 = vpop.f32.mrf.mxu0
      %v2937 = vadd.f32 0.0, %v2936
      %v2938 = vpop.f32.mrf.mxu0
      %v2939 = vadd.f32 0.0, %v2938
      %2940 = vdwg.mxu0
      %v2941 = vadd.f32 %v2705, %v2852
      %v2942 = vadd.f32 %v2706, %v2854
      %v2943 = vadd.f32 %v2707, %v2857
      %v2944 = vadd.f32 %v2708, %v2859
      %v2945 = vadd.f32 %v2709, %v2862
      %v2946 = vadd.f32 %v2710, %v2864
      %v2947 = vadd.f32 %v2711, %v2867
      %v2948 = vadd.f32 %v2712, %v2869
      %v2949 = vadd.f32 %v2713, %v2872
      %v2950 = vadd.f32 %v2714, %v2874
      %v2951 = vadd.f32 %v2715, %v2877
      %v2952 = vadd.f32 %v2716, %v2879
      %v2953 = vadd.f32 %v2717, %v2882
      %v2954 = vadd.f32 %v2718, %v2884
      %v2955 = vadd.f32 %v2719, %v2887
      %v2956 = vadd.f32 %v2720, %v2889
      %v2957 = vadd.f32 %v2721, %v2892
      %v2958 = vadd.f32 %v2722, %v2894
      %v2959 = vadd.f32 %v2723, %v2897
      %v2960 = vadd.f32 %v2724, %v2899
      %v2961 = vadd.f32 %v2725, %v2902
      %v2962 = vadd.f32 %v2726, %v2904
      %v2963 = vadd.f32 %v2727, %v2907
      %v2964 = vadd.f32 %v2728, %v2909
      %v2965 = vadd.f32 %v2729, %v2912
      %v2966 = vadd.f32 %v2730, %v2914
      %v2967 = vadd.f32 %v2731, %v2917
      %v2968 = vadd.f32 %v2732, %v2919
      %v2969 = vadd.f32 %v2733, %v2922
      %v2970 = vadd.f32 %v2734, %v2924
      %v2971 = vadd.f32 %v2735, %v2927
      %v2972 = vadd.f32 %v2736, %v2929
      %v2973 = vadd.f32 %v2737, %v2932
      %v2974 = vadd.f32 %v2738, %v2934
      %v2975 = vadd.f32 %v2739, %v2937
      %v2976 = vadd.f32 %v2740, %v2939
      %v2977 = vld [vmem:[#allocation2 + $0x10] sm:$0xc]
      %v2978 = vld [vmem:[#allocation2 + $0x14] sm:$0xf]
      %v2979 = vld [vmem:[#allocation2 + $0x18] sm:$0xf]
      %v2980 = vld [vmem:[#allocation2 + $0x1c] sm:$0xf]
      %v2981 = vld [vmem:[#allocation2 + $0x20] sm:$0xf]
      %v2982 = vld [vmem:[#allocation2 + $0x24] sm:$0xf]
      %v2983 = vld [vmem:[#allocation2 + $0x28] sm:$0xf]
      %v2984 = vld [vmem:[#allocation2 + $0x2c] sm:$0xf]
      %v2985 = vld [vmem:[#allocation2 + $0x30] sm:$0xf]
      %v2986 = vld [vmem:[#allocation2 + $0x34] sm:$0xf]
      %v2987 = vld [vmem:[#allocation2 + $0x38] sm:$0xf]
      %v2988 = vld [vmem:[#allocation2 + $0x3c] sm:$0xf]
      %v2989 = vld [vmem:[#allocation2 + $0x40] sm:$0xf]
      %v2990 = vld [vmem:[#allocation2 + $0x44] sm:$0xf]
      %v2991 = vld [vmem:[#allocation2 + $0x48] sm:$0xf]
      %v2992 = vld [vmem:[#allocation2 + $0x4c] sm:$0xf]
      %v2993 = vld [vmem:[#allocation2 + $0x50] sm:$0xf]
      %v2994 = vld [vmem:[#allocation2 + $0x54] sm:$0xf]
      %v2995 = vld [vmem:[#allocation2 + $0x58] sm:$0xf]
      %v2996 = vld [vmem:[#allocation2 + $0x5c] sm:$0xf]
      %v2997 = vld [vmem:[#allocation2 + $0x60] sm:$0xf]
      %v2998 = vld [vmem:[#allocation2 + $0x64] sm:$0xf]
      %v2999 = vld [vmem:[#allocation2 + $0x68] sm:$0xf]
      %v3000 = vld [vmem:[#allocation2 + $0x6c] sm:$0xf]
      %v3001 = vld [vmem:[#allocation2 + $0x70] sm:$0xf]
      %v3002 = vld [vmem:[#allocation2 + $0x74] sm:$0xf]
      %v3003 = vld [vmem:[#allocation2 + $0x78] sm:$0xf]
      %v3004 = vld [vmem:[#allocation2 + $0x7c] sm:$0xf]
      %v3005 = vld [vmem:[#allocation2 + $0x80] sm:$0xf]
      %v3006 = vld [vmem:[#allocation2 + $0x84] sm:$0xf]
      %v3007 = vld [vmem:[#allocation2 + $0x88] sm:$0xf]
      %v3008 = vld [vmem:[#allocation2 + $0x8c] sm:$0xf]
      %v3009 = vld [vmem:[#allocation2 + $0x90] sm:$0xf]
      %v3010 = vld [vmem:[#allocation2 + $0x94] sm:$0xf]
      %v3011 = vld [vmem:[#allocation2 + $0x98] sm:$0xf]
      %v3012 = vld [vmem:[#allocation2 + $0x9c] sm:$0xf]
      %v3013 = vld [vmem:[#allocation2 + $0xa0] sm:$0x3]
      %s3014 = scalar_lea.vmem %s1, 12
      %v3015 = vld [vmem:[%s3014] sm:$0x3]
      %v3053 = vunpack.c.l.b16 %v2977
      %v3054 = vunpack.c.l.b16 %v2978
      %v3055 = vunpack.c.l.b16 %v2979
      %v3056 = vunpack.c.l.b16 %v2980
      %v3057 = vunpack.c.l.b16 %v2981
      %v3058 = vunpack.c.l.b16 %v2982
      %v3059 = vunpack.c.l.b16 %v2983
      %v3060 = vunpack.c.l.b16 %v2984
      %v3061 = vunpack.c.l.b16 %v2985
      %v3062 = vunpack.c.l.b16 %v2986
      %v3063 = vunpack.c.l.b16 %v2987
      %v3064 = vunpack.c.l.b16 %v2988
      %v3065 = vunpack.c.l.b16 %v2989
      %v3066 = vunpack.c.l.b16 %v2990
      %v3067 = vunpack.c.l.b16 %v2991
      %v3068 = vunpack.c.l.b16 %v2992
      %v3069 = vunpack.c.l.b16 %v2993
      %v3070 = vunpack.c.l.b16 %v2994
      %v3071 = vunpack.c.l.b16 %v2995
      %v3072 = vunpack.c.l.b16 %v2996
      %v3073 = vunpack.c.l.b16 %v2997
      %v3074 = vunpack.c.l.b16 %v2998
      %v3075 = vunpack.c.l.b16 %v2999
      %v3076 = vunpack.c.l.b16 %v3000
      %v3077 = vunpack.c.l.b16 %v3001
      %v3078 = vunpack.c.l.b16 %v3002
      %v3079 = vunpack.c.l.b16 %v3003
      %v3080 = vunpack.c.l.b16 %v3004
      %v3081 = vunpack.c.l.b16 %v3005
      %v3082 = vunpack.c.l.b16 %v3006
      %v3083 = vunpack.c.l.b16 %v3007
      %v3084 = vunpack.c.l.b16 %v3008
      %v3085 = vunpack.c.l.b16 %v3009
      %v3086 = vunpack.c.l.b16 %v3010
      %v3087 = vunpack.c.l.b16 %v3011
      %v3088 = vunpack.c.l.b16 %v3012
      %v3089 = vunpack.c.l.b16 %v3013
      %v3090 = vpack.c.b16 %v3054, %v3053
      %v3091 = vpack.c.b16 %v3056, %v3055
      %v3092 = vpack.c.b16 %v3058, %v3057
      %v3093 = vpack.c.b16 %v3060, %v3059
      %v3094 = vpack.c.b16 %v3062, %v3061
      %v3095 = vpack.c.b16 %v3064, %v3063
      %v3096 = vpack.c.b16 %v3066, %v3065
      %v3097 = vpack.c.b16 %v3068, %v3067
      %v3098 = vpack.c.b16 %v3070, %v3069
      %v3099 = vpack.c.b16 %v3072, %v3071
      %v3100 = vpack.c.b16 %v3074, %v3073
      %v3101 = vpack.c.b16 %v3076, %v3075
      %v3102 = vpack.c.b16 %v3078, %v3077
      %v3103 = vpack.c.b16 %v3080, %v3079
      %v3104 = vpack.c.b16 %v3082, %v3081
      %v3105 = vpack.c.b16 %v3084, %v3083
      %v3106 = vpack.c.b16 %v3086, %v3085
      %v3107 = vpack.c.b16 %v3088, %v3087
      %v3108 = vpack.c.b16 %v3089, %v3089
      %v3109 = vrot.slane %v3090, 2
      %v3110 = vrot.slane %v3091, 2
      %v3111 = vsel %vm2747, %v3109, %v3110
      %v3112 = vrot.slane %v3092, 2
      %v3113 = vsel %vm2747, %v3110, %v3112
      %v3114 = vrot.slane %v3093, 2
      %v3115 = vsel %vm2747, %v3112, %v3114
      %v3116 = vrot.slane %v3094, 2
      %v3117 = vsel %vm2747, %v3114, %v3116
      %v3118 = vrot.slane %v3095, 2
      %v3119 = vsel %vm2747, %v3116, %v3118
      %v3120 = vrot.slane %v3096, 2
      %v3121 = vsel %vm2747, %v3118, %v3120
      %v3122 = vrot.slane %v3097, 2
      %v3123 = vsel %vm2747, %v3120, %v3122
      %v3124 = vrot.slane %v3098, 2
      %v3125 = vsel %vm2747, %v3122, %v3124
      %v3126 = vrot.slane %v3099, 2
      %v3127 = vsel %vm2747, %v3124, %v3126
      %v3128 = vrot.slane %v3100, 2
      %v3129 = vsel %vm2747, %v3126, %v3128
      %v3130 = vrot.slane %v3101, 2
      %v3131 = vsel %vm2747, %v3128, %v3130
      %v3132 = vrot.slane %v3102, 2
      %v3133 = vsel %vm2747, %v3130, %v3132
      %v3134 = vrot.slane %v3103, 2
      %v3135 = vsel %vm2747, %v3132, %v3134
      %v3136 = vrot.slane %v3104, 2
      %v3137 = vsel %vm2747, %v3134, %v3136
      %v3138 = vrot.slane %v3105, 2
      %v3139 = vsel %vm2747, %v3136, %v3138
      %v3140 = vrot.slane %v3106, 2
      %v3141 = vsel %vm2747, %v3138, %v3140
      %v3142 = vrot.slane %v3107, 2
      %v3143 = vsel %vm2747, %v3140, %v3142
      %v3144 = vrot.slane %v3108, 2
      %v3145 = vsel %vm2747, %v3142, %v3144
      %v3147 = vsel %vm1479, %v3111, 0
      %v3150 = vsel %vm1479, %v3113, 0
      %v3153 = vsel %vm1479, %v3115, 0
      %v3156 = vsel %vm1479, %v3117, 0
      %v3159 = vsel %vm1479, %v3119, 0
      %v3162 = vsel %vm1479, %v3121, 0
      %v3165 = vsel %vm1479, %v3123, 0
      %v3168 = vsel %vm1479, %v3125, 0
      %v3171 = vsel %vm1479, %v3127, 0
      %v3174 = vsel %vm1479, %v3129, 0
      %v3177 = vsel %vm1479, %v3131, 0
      %v3180 = vsel %vm1479, %v3133, 0
      %v3183 = vsel %vm1479, %v3135, 0
      %v3186 = vsel %vm1479, %v3137, 0
      %v3189 = vsel %vm1479, %v3139, 0
      %v3192 = vsel %vm1479, %v3141, 0
      %v3195 = vsel %vm1479, %v3143, 0
      %v3198 = vsel %vm1479, %v3145, 0
      %v3201 = vsel %vm1534, %v3015, 0
      %3203 = vmatpush.bf16.msra.mxu0 0
      %3204 = vmatpush.bf16.msra.mxu0 0
      %3205 = vmatpush.bf16.msra.mxu0 0
      %3206 = vmatpush.bf16.msra.mxu0 0
      %3207 = vmatpush.bf16.msra.mxu0 0
      %3208 = vmatpush.bf16.msra.mxu0 0
      %3209 = vmatpush.bf16.msra.mxu0 0
      %3210 = vmatpush.bf16.msra.mxu0 %v3201
      %3211 = vmatmul.bf16.gmra.mxu0 %v3147
      %v3212 = vpop.f32.mrf.mxu0
      %v3213 = vadd.f32 0.0, %v3212
      %v3214 = vpop.f32.mrf.mxu0
      %v3215 = vadd.f32 0.0, %v3214
      %3216 = vmatmul.bf16.gmra.mxu0 %v3150
      %v3217 = vpop.f32.mrf.mxu0
      %v3218 = vadd.f32 0.0, %v3217
      %v3219 = vpop.f32.mrf.mxu0
      %v3220 = vadd.f32 0.0, %v3219
      %3221 = vmatmul.bf16.gmra.mxu0 %v3153
      %v3222 = vpop.f32.mrf.mxu0
      %v3223 = vadd.f32 0.0, %v3222
      %v3224 = vpop.f32.mrf.mxu0
      %v3225 = vadd.f32 0.0, %v3224
      %3226 = vmatmul.bf16.gmra.mxu0 %v3156
      %v3227 = vpop.f32.mrf.mxu0
      %v3228 = vadd.f32 0.0, %v3227
      %v3229 = vpop.f32.mrf.mxu0
      %v3230 = vadd.f32 0.0, %v3229
      %3231 = vmatmul.bf16.gmra.mxu0 %v3159
      %v3232 = vpop.f32.mrf.mxu0
      %v3233 = vadd.f32 0.0, %v3232
      %v3234 = vpop.f32.mrf.mxu0
      %v3235 = vadd.f32 0.0, %v3234
      %3236 = vmatmul.bf16.gmra.mxu0 %v3162
      %v3237 = vpop.f32.mrf.mxu0
      %v3238 = vadd.f32 0.0, %v3237
      %v3239 = vpop.f32.mrf.mxu0
      %v3240 = vadd.f32 0.0, %v3239
      %3241 = vmatmul.bf16.gmra.mxu0 %v3165
      %v3242 = vpop.f32.mrf.mxu0
      %v3243 = vadd.f32 0.0, %v3242
      %v3244 = vpop.f32.mrf.mxu0
      %v3245 = vadd.f32 0.0, %v3244
      %3246 = vmatmul.bf16.gmra.mxu0 %v3168
      %v3247 = vpop.f32.mrf.mxu0
      %v3248 = vadd.f32 0.0, %v3247
      %v3249 = vpop.f32.mrf.mxu0
      %v3250 = vadd.f32 0.0, %v3249
      %3251 = vmatmul.bf16.gmra.mxu0 %v3171
      %v3252 = vpop.f32.mrf.mxu0
      %v3253 = vadd.f32 0.0, %v3252
      %v3254 = vpop.f32.mrf.mxu0
      %v3255 = vadd.f32 0.0, %v3254
      %3256 = vmatmul.bf16.gmra.mxu0 %v3174
      %v3257 = vpop.f32.mrf.mxu0
      %v3258 = vadd.f32 0.0, %v3257
      %v3259 = vpop.f32.mrf.mxu0
      %v3260 = vadd.f32 0.0, %v3259
      %3261 = vmatmul.bf16.gmra.mxu0 %v3177
      %v3262 = vpop.f32.mrf.mxu0
      %v3263 = vadd.f32 0.0, %v3262
      %v3264 = vpop.f32.mrf.mxu0
      %v3265 = vadd.f32 0.0, %v3264
      %3266 = vmatmul.bf16.gmra.mxu0 %v3180
      %v3267 = vpop.f32.mrf.mxu0
      %v3268 = vadd.f32 0.0, %v3267
      %v3269 = vpop.f32.mrf.mxu0
      %v3270 = vadd.f32 0.0, %v3269
      %3271 = vmatmul.bf16.gmra.mxu0 %v3183
      %v3272 = vpop.f32.mrf.mxu0
      %v3273 = vadd.f32 0.0, %v3272
      %v3274 = vpop.f32.mrf.mxu0
      %v3275 = vadd.f32 0.0, %v3274
      %3276 = vmatmul.bf16.gmra.mxu0 %v3186
      %v3277 = vpop.f32.mrf.mxu0
      %v3278 = vadd.f32 0.0, %v3277
      %v3279 = vpop.f32.mrf.mxu0
      %v3280 = vadd.f32 0.0, %v3279
      %3281 = vmatmul.bf16.gmra.mxu0 %v3189
      %v3282 = vpop.f32.mrf.mxu0
      %v3283 = vadd.f32 0.0, %v3282
      %v3284 = vpop.f32.mrf.mxu0
      %v3285 = vadd.f32 0.0, %v3284
      %3286 = vmatmul.bf16.gmra.mxu0 %v3192
      %v3287 = vpop.f32.mrf.mxu0
      %v3288 = vadd.f32 0.0, %v3287
      %v3289 = vpop.f32.mrf.mxu0
      %v3290 = vadd.f32 0.0, %v3289
      %3291 = vmatmul.bf16.gmra.mxu0 %v3195
      %v3292 = vpop.f32.mrf.mxu0
      %v3293 = vadd.f32 0.0, %v3292
      %v3294 = vpop.f32.mrf.mxu0
      %v3295 = vadd.f32 0.0, %v3294
      %3296 = vmatmul.bf16.gmra.mxu0 %v3198
      %v3297 = vpop.f32.mrf.mxu0
      %v3298 = vadd.f32 0.0, %v3297
      %v3299 = vpop.f32.mrf.mxu0
      %v3300 = vadd.f32 0.0, %v3299
      %3301 = vdwg.mxu0
      %v3302 = vadd.f32 %v2941, %v3213
      %v3303 = vadd.f32 %v2942, %v3215
      %v3304 = vadd.f32 %v2943, %v3218
      %v3305 = vadd.f32 %v2944, %v3220
      %v3306 = vadd.f32 %v2945, %v3223
      %v3307 = vadd.f32 %v2946, %v3225
      %v3308 = vadd.f32 %v2947, %v3228
      %v3309 = vadd.f32 %v2948, %v3230
      %v3310 = vadd.f32 %v2949, %v3233
      %v3311 = vadd.f32 %v2950, %v3235
      %v3312 = vadd.f32 %v2951, %v3238
      %v3313 = vadd.f32 %v2952, %v3240
      %v3314 = vadd.f32 %v2953, %v3243
      %v3315 = vadd.f32 %v2954, %v3245
      %v3316 = vadd.f32 %v2955, %v3248
      %v3317 = vadd.f32 %v2956, %v3250
      %v3318 = vadd.f32 %v2957, %v3253
      %v3319 = vadd.f32 %v2958, %v3255
      %v3320 = vadd.f32 %v2959, %v3258
      %v3321 = vadd.f32 %v2960, %v3260
      %v3322 = vadd.f32 %v2961, %v3263
      %v3323 = vadd.f32 %v2962, %v3265
      %v3324 = vadd.f32 %v2963, %v3268
      %v3325 = vadd.f32 %v2964, %v3270
      %v3326 = vadd.f32 %v2965, %v3273
      %v3327 = vadd.f32 %v2966, %v3275
      %v3328 = vadd.f32 %v2967, %v3278
      %v3329 = vadd.f32 %v2968, %v3280
      %v3330 = vadd.f32 %v2969, %v3283
      %v3331 = vadd.f32 %v2970, %v3285
      %v3332 = vadd.f32 %v2971, %v3288
      %v3333 = vadd.f32 %v2972, %v3290
      %v3334 = vadd.f32 %v2973, %v3293
      %v3335 = vadd.f32 %v2974, %v3295
      %v3336 = vadd.f32 %v2975, %v3298
      %v3337 = vadd.f32 %v2976, %v3300
      %v3338 = vld [vmem:[#allocation2 + $0xa0] sm:$0x7]
      %s3339 = scalar_lea.vmem %s1, 14
      %v3340 = vld [vmem:[%s3339] sm:$0x3]
      %v3342 = vunpack.c.l.b16 %v3338
      %v3343 = vpack.c.b16 %v3342, %v3342
      %vm3344 = vsmask.f32 5376
      %v3346 = vshrl.u32 %v3090, 16
      %v3348 = vrot.slane %v3346, 2
      %v3349 = vshll.u32 %v3090, 16
      %v3351 = vrot.slane %v3349, 3
      %v3352 = vor.u32 %v3348, %v3351
      %v3354 = vshrl.u32 %v3091, 16
      %v3356 = vrot.slane %v3354, 2
      %v3357 = vshll.u32 %v3091, 16
      %v3359 = vrot.slane %v3357, 3
      %v3360 = vor.u32 %v3356, %v3359
      %v3361 = vsel %vm3344, %v3352, %v3360
      %v3363 = vshrl.u32 %v3092, 16
      %v3365 = vrot.slane %v3363, 2
      %v3366 = vshll.u32 %v3092, 16
      %v3368 = vrot.slane %v3366, 3
      %v3369 = vor.u32 %v3365, %v3368
      %v3370 = vsel %vm3344, %v3360, %v3369
      %v3372 = vshrl.u32 %v3093, 16
      %v3374 = vrot.slane %v3372, 2
      %v3375 = vshll.u32 %v3093, 16
      %v3377 = vrot.slane %v3375, 3
      %v3378 = vor.u32 %v3374, %v3377
      %v3379 = vsel %vm3344, %v3369, %v3378
      %v3381 = vshrl.u32 %v3094, 16
      %v3383 = vrot.slane %v3381, 2
      %v3384 = vshll.u32 %v3094, 16
      %v3386 = vrot.slane %v3384, 3
      %v3387 = vor.u32 %v3383, %v3386
      %v3388 = vsel %vm3344, %v3378, %v3387
      %v3390 = vshrl.u32 %v3095, 16
      %v3392 = vrot.slane %v3390, 2
      %v3393 = vshll.u32 %v3095, 16
      %v3395 = vrot.slane %v3393, 3
      %v3396 = vor.u32 %v3392, %v3395
      %v3397 = vsel %vm3344, %v3387, %v3396
      %v3399 = vshrl.u32 %v3096, 16
      %v3401 = vrot.slane %v3399, 2
      %v3402 = vshll.u32 %v3096, 16
      %v3404 = vrot.slane %v3402, 3
      %v3405 = vor.u32 %v3401, %v3404
      %v3406 = vsel %vm3344, %v3396, %v3405
      %v3408 = vshrl.u32 %v3097, 16
      %v3410 = vrot.slane %v3408, 2
      %v3411 = vshll.u32 %v3097, 16
      %v3413 = vrot.slane %v3411, 3
      %v3414 = vor.u32 %v3410, %v3413
      %v3415 = vsel %vm3344, %v3405, %v3414
      %v3417 = vshrl.u32 %v3098, 16
      %v3419 = vrot.slane %v3417, 2
      %v3420 = vshll.u32 %v3098, 16
      %v3422 = vrot.slane %v3420, 3
      %v3423 = vor.u32 %v3419, %v3422
      %v3424 = vsel %vm3344, %v3414, %v3423
      %v3426 = vshrl.u32 %v3099, 16
      %v3428 = vrot.slane %v3426, 2
      %v3429 = vshll.u32 %v3099, 16
      %v3431 = vrot.slane %v3429, 3
      %v3432 = vor.u32 %v3428, %v3431
      %v3433 = vsel %vm3344, %v3423, %v3432
      %v3435 = vshrl.u32 %v3100, 16
      %v3437 = vrot.slane %v3435, 2
      %v3438 = vshll.u32 %v3100, 16
      %v3440 = vrot.slane %v3438, 3
      %v3441 = vor.u32 %v3437, %v3440
      %v3442 = vsel %vm3344, %v3432, %v3441
      %v3444 = vshrl.u32 %v3101, 16
      %v3446 = vrot.slane %v3444, 2
      %v3447 = vshll.u32 %v3101, 16
      %v3449 = vrot.slane %v3447, 3
      %v3450 = vor.u32 %v3446, %v3449
      %v3451 = vsel %vm3344, %v3441, %v3450
      %v3453 = vshrl.u32 %v3102, 16
      %v3455 = vrot.slane %v3453, 2
      %v3456 = vshll.u32 %v3102, 16
      %v3458 = vrot.slane %v3456, 3
      %v3459 = vor.u32 %v3455, %v3458
      %v3460 = vsel %vm3344, %v3450, %v3459
      %v3462 = vshrl.u32 %v3103, 16
      %v3464 = vrot.slane %v3462, 2
      %v3465 = vshll.u32 %v3103, 16
      %v3467 = vrot.slane %v3465, 3
      %v3468 = vor.u32 %v3464, %v3467
      %v3469 = vsel %vm3344, %v3459, %v3468
      %v3471 = vshrl.u32 %v3104, 16
      %v3473 = vrot.slane %v3471, 2
      %v3474 = vshll.u32 %v3104, 16
      %v3476 = vrot.slane %v3474, 3
      %v3477 = vor.u32 %v3473, %v3476
      %v3478 = vsel %vm3344, %v3468, %v3477
      %v3480 = vshrl.u32 %v3105, 16
      %v3482 = vrot.slane %v3480, 2
      %v3483 = vshll.u32 %v3105, 16
      %v3485 = vrot.slane %v3483, 3
      %v3486 = vor.u32 %v3482, %v3485
      %v3487 = vsel %vm3344, %v3477, %v3486
      %v3489 = vshrl.u32 %v3106, 16
      %v3491 = vrot.slane %v3489, 2
      %v3492 = vshll.u32 %v3106, 16
      %v3494 = vrot.slane %v3492, 3
      %v3495 = vor.u32 %v3491, %v3494
      %v3496 = vsel %vm3344, %v3486, %v3495
      %v3498 = vshrl.u32 %v3107, 16
      %v3500 = vrot.slane %v3498, 2
      %v3501 = vshll.u32 %v3107, 16
      %v3503 = vrot.slane %v3501, 3
      %v3504 = vor.u32 %v3500, %v3503
      %v3505 = vsel %vm3344, %v3495, %v3504
      %v3507 = vshrl.u32 %v3343, 16
      %v3509 = vrot.slane %v3507, 2
      %v3510 = vshll.u32 %v3343, 16
      %v3512 = vrot.slane %v3510, 3
      %v3513 = vor.u32 %v3509, %v3512
      %v3514 = vsel %vm3344, %v3504, %v3513
      %v3516 = vsel %vm1479, %v3361, 0
      %v3519 = vsel %vm1479, %v3370, 0
      %v3522 = vsel %vm1479, %v3379, 0
      %v3525 = vsel %vm1479, %v3388, 0
      %v3528 = vsel %vm1479, %v3397, 0
      %v3531 = vsel %vm1479, %v3406, 0
      %v3534 = vsel %vm1479, %v3415, 0
      %v3537 = vsel %vm1479, %v3424, 0
      %v3540 = vsel %vm1479, %v3433, 0
      %v3543 = vsel %vm1479, %v3442, 0
      %v3546 = vsel %vm1479, %v3451, 0
      %v3549 = vsel %vm1479, %v3460, 0
      %v3552 = vsel %vm1479, %v3469, 0
      %v3555 = vsel %vm1479, %v3478, 0
      %v3558 = vsel %vm1479, %v3487, 0
      %v3561 = vsel %vm1479, %v3496, 0
      %v3564 = vsel %vm1479, %v3505, 0
      %v3567 = vsel %vm1479, %v3514, 0
      %v3570 = vsel %vm1534, %v3340, 0
      %3572 = vmatpush.bf16.msra.mxu0 0
      %3573 = vmatpush.bf16.msra.mxu0 0
      %3574 = vmatpush.bf16.msra.mxu0 0
      %3575 = vmatpush.bf16.msra.mxu0 0
      %3576 = vmatpush.bf16.msra.mxu0 0
      %3577 = vmatpush.bf16.msra.mxu0 0
      %3578 = vmatpush.bf16.msra.mxu0 0
      %3579 = vmatpush.bf16.msra.mxu0 %v3570
      %3580 = vmatmul.bf16.gmra.mxu0 %v3516
      %v3581 = vpop.f32.mrf.mxu0
      %v3582 = vadd.f32 0.0, %v3581
      %v3583 = vpop.f32.mrf.mxu0
      %v3584 = vadd.f32 0.0, %v3583
      %3585 = vmatmul.bf16.gmra.mxu0 %v3519
      %v3586 = vpop.f32.mrf.mxu0
      %v3587 = vadd.f32 0.0, %v3586
      %v3588 = vpop.f32.mrf.mxu0
      %v3589 = vadd.f32 0.0, %v3588
      %3590 = vmatmul.bf16.gmra.mxu0 %v3522
      %v3591 = vpop.f32.mrf.mxu0
      %v3592 = vadd.f32 0.0, %v3591
      %v3593 = vpop.f32.mrf.mxu0
      %v3594 = vadd.f32 0.0, %v3593
      %3595 = vmatmul.bf16.gmra.mxu0 %v3525
      %v3596 = vpop.f32.mrf.mxu0
      %v3597 = vadd.f32 0.0, %v3596
      %v3598 = vpop.f32.mrf.mxu0
      %v3599 = vadd.f32 0.0, %v3598
      %3600 = vmatmul.bf16.gmra.mxu0 %v3528
      %v3601 = vpop.f32.mrf.mxu0
      %v3602 = vadd.f32 0.0, %v3601
      %v3603 = vpop.f32.mrf.mxu0
      %v3604 = vadd.f32 0.0, %v3603
      %3605 = vmatmul.bf16.gmra.mxu0 %v3531
      %v3606 = vpop.f32.mrf.mxu0
      %v3607 = vadd.f32 0.0, %v3606
      %v3608 = vpop.f32.mrf.mxu0
      %v3609 = vadd.f32 0.0, %v3608
      %3610 = vmatmul.bf16.gmra.mxu0 %v3534
      %v3611 = vpop.f32.mrf.mxu0
      %v3612 = vadd.f32 0.0, %v3611
      %v3613 = vpop.f32.mrf.mxu0
      %v3614 = vadd.f32 0.0, %v3613
      %3615 = vmatmul.bf16.gmra.mxu0 %v3537
      %v3616 = vpop.f32.mrf.mxu0
      %v3617 = vadd.f32 0.0, %v3616
      %v3618 = vpop.f32.mrf.mxu0
      %v3619 = vadd.f32 0.0, %v3618
      %3620 = vmatmul.bf16.gmra.mxu0 %v3540
      %v3621 = vpop.f32.mrf.mxu0
      %v3622 = vadd.f32 0.0, %v3621
      %v3623 = vpop.f32.mrf.mxu0
      %v3624 = vadd.f32 0.0, %v3623
      %3625 = vmatmul.bf16.gmra.mxu0 %v3543
      %v3626 = vpop.f32.mrf.mxu0
      %v3627 = vadd.f32 0.0, %v3626
      %v3628 = vpop.f32.mrf.mxu0
      %v3629 = vadd.f32 0.0, %v3628
      %3630 = vmatmul.bf16.gmra.mxu0 %v3546
      %v3631 = vpop.f32.mrf.mxu0
      %v3632 = vadd.f32 0.0, %v3631
      %v3633 = vpop.f32.mrf.mxu0
      %v3634 = vadd.f32 0.0, %v3633
      %3635 = vmatmul.bf16.gmra.mxu0 %v3549
      %v3636 = vpop.f32.mrf.mxu0
      %v3637 = vadd.f32 0.0, %v3636
      %v3638 = vpop.f32.mrf.mxu0
      %v3639 = vadd.f32 0.0, %v3638
      %3640 = vmatmul.bf16.gmra.mxu0 %v3552
      %v3641 = vpop.f32.mrf.mxu0
      %v3642 = vadd.f32 0.0, %v3641
      %v3643 = vpop.f32.mrf.mxu0
      %v3644 = vadd.f32 0.0, %v3643
      %3645 = vmatmul.bf16.gmra.mxu0 %v3555
      %v3646 = vpop.f32.mrf.mxu0
      %v3647 = vadd.f32 0.0, %v3646
      %v3648 = vpop.f32.mrf.mxu0
      %v3649 = vadd.f32 0.0, %v3648
      %3650 = vmatmul.bf16.gmra.mxu0 %v3558
      %v3651 = vpop.f32.mrf.mxu0
      %v3652 = vadd.f32 0.0, %v3651
      %v3653 = vpop.f32.mrf.mxu0
      %v3654 = vadd.f32 0.0, %v3653
      %3655 = vmatmul.bf16.gmra.mxu0 %v3561
      %v3656 = vpop.f32.mrf.mxu0
      %v3657 = vadd.f32 0.0, %v3656
      %v3658 = vpop.f32.mrf.mxu0
      %v3659 = vadd.f32 0.0, %v3658
      %3660 = vmatmul.bf16.gmra.mxu0 %v3564
      %v3661 = vpop.f32.mrf.mxu0
      %v3662 = vadd.f32 0.0, %v3661
      %v3663 = vpop.f32.mrf.mxu0
      %v3664 = vadd.f32 0.0, %v3663
      %3665 = vmatmul.bf16.gmra.mxu0 %v3567
      %v3666 = vpop.f32.mrf.mxu0
      %v3667 = vadd.f32 0.0, %v3666
      %v3668 = vpop.f32.mrf.mxu0
      %v3669 = vadd.f32 0.0, %v3668
      %3670 = vdwg.mxu0
      %v3671 = vadd.f32 %v3302, %v3582
      %v3672 = vadd.f32 %v3303, %v3584
      %v3673 = vadd.f32 %v3304, %v3587
      %v3674 = vadd.f32 %v3305, %v3589
      %v3675 = vadd.f32 %v3306, %v3592
      %v3676 = vadd.f32 %v3307, %v3594
      %v3677 = vadd.f32 %v3308, %v3597
      %v3678 = vadd.f32 %v3309, %v3599
      %v3679 = vadd.f32 %v3310, %v3602
      %v3680 = vadd.f32 %v3311, %v3604
      %v3681 = vadd.f32 %v3312, %v3607
      %v3682 = vadd.f32 %v3313, %v3609
      %v3683 = vadd.f32 %v3314, %v3612
      %v3684 = vadd.f32 %v3315, %v3614
      %v3685 = vadd.f32 %v3316, %v3617
      %v3686 = vadd.f32 %v3317, %v3619
      %v3687 = vadd.f32 %v3318, %v3622
      %v3688 = vadd.f32 %v3319, %v3624
      %v3689 = vadd.f32 %v3320, %v3627
      %v3690 = vadd.f32 %v3321, %v3629
      %v3691 = vadd.f32 %v3322, %v3632
      %v3692 = vadd.f32 %v3323, %v3634
      %v3693 = vadd.f32 %v3324, %v3637
      %v3694 = vadd.f32 %v3325, %v3639
      %v3695 = vadd.f32 %v3326, %v3642
      %v3696 = vadd.f32 %v3327, %v3644
      %v3697 = vadd.f32 %v3328, %v3647
      %v3698 = vadd.f32 %v3329, %v3649
      %v3699 = vadd.f32 %v3330, %v3652
      %v3700 = vadd.f32 %v3331, %v3654
      %v3701 = vadd.f32 %v3332, %v3657
      %v3702 = vadd.f32 %v3333, %v3659
      %v3703 = vadd.f32 %v3334, %v3662
      %v3704 = vadd.f32 %v3335, %v3664
      %v3705 = vadd.f32 %v3336, %v3667
      %v3706 = vadd.f32 %v3337, %v3669
      %v3707 = vld [vmem:[#allocation2 + $0x10] sm:$0x8]
      %s3708 = scalar_lea.vmem %s1, 16
      %v3709 = vld [vmem:[%s3708] sm:$0x3]
      %v3711 = vunpack.c.l.b16 %v3707
      %v3712 = vpack.c.b16 %v3054, %v3711
      %vm3713 = vcmask 1044480
      %v3714 = vrot.slane %v3712, 3
      %v3715 = vrot.slane %v3091, 3
      %v3716 = vsel %vm3713, %v3714, %v3715
      %v3717 = vrot.slane %v3092, 3
      %v3718 = vsel %vm3713, %v3715, %v3717
      %v3719 = vrot.slane %v3093, 3
      %v3720 = vsel %vm3713, %v3717, %v3719
      %v3721 = vrot.slane %v3094, 3
      %v3722 = vsel %vm3713, %v3719, %v3721
      %v3723 = vrot.slane %v3095, 3
      %v3724 = vsel %vm3713, %v3721, %v3723
      %v3725 = vrot.slane %v3096, 3
      %v3726 = vsel %vm3713, %v3723, %v3725
      %v3727 = vrot.slane %v3097, 3
      %v3728 = vsel %vm3713, %v3725, %v3727
      %v3729 = vrot.slane %v3098, 3
      %v3730 = vsel %vm3713, %v3727, %v3729
      %v3731 = vrot.slane %v3099, 3
      %v3732 = vsel %vm3713, %v3729, %v3731
      %v3733 = vrot.slane %v3100, 3
      %v3734 = vsel %vm3713, %v3731, %v3733
      %v3735 = vrot.slane %v3101, 3
      %v3736 = vsel %vm3713, %v3733, %v3735
      %v3737 = vrot.slane %v3102, 3
      %v3738 = vsel %vm3713, %v3735, %v3737
      %v3739 = vrot.slane %v3103, 3
      %v3740 = vsel %vm3713, %v3737, %v3739
      %v3741 = vrot.slane %v3104, 3
      %v3742 = vsel %vm3713, %v3739, %v3741
      %v3743 = vrot.slane %v3105, 3
      %v3744 = vsel %vm3713, %v3741, %v3743
      %v3745 = vrot.slane %v3106, 3
      %v3746 = vsel %vm3713, %v3743, %v3745
      %v3747 = vrot.slane %v3107, 3
      %v3748 = vsel %vm3713, %v3745, %v3747
      %v3749 = vrot.slane %v3343, 3
      %v3750 = vsel %vm3713, %v3747, %v3749
      %v3752 = vsel %vm1479, %v3716, 0
      %v3755 = vsel %vm1479, %v3718, 0
      %v3758 = vsel %vm1479, %v3720, 0
      %v3761 = vsel %vm1479, %v3722, 0
      %v3764 = vsel %vm1479, %v3724, 0
      %v3767 = vsel %vm1479, %v3726, 0
      %v3770 = vsel %vm1479, %v3728, 0
      %v3773 = vsel %vm1479, %v3730, 0
      %v3776 = vsel %vm1479, %v3732, 0
      %v3779 = vsel %vm1479, %v3734, 0
      %v3782 = vsel %vm1479, %v3736, 0
      %v3785 = vsel %vm1479, %v3738, 0
      %v3788 = vsel %vm1479, %v3740, 0
      %v3791 = vsel %vm1479, %v3742, 0
      %v3794 = vsel %vm1479, %v3744, 0
      %v3797 = vsel %vm1479, %v3746, 0
      %v3800 = vsel %vm1479, %v3748, 0
      %v3803 = vsel %vm1479, %v3750, 0
      %v3806 = vsel %vm1534, %v3709, 0
      %3808 = vmatpush.bf16.msra.mxu0 0
      %3809 = vmatpush.bf16.msra.mxu0 0
      %3810 = vmatpush.bf16.msra.mxu0 0
      %3811 = vmatpush.bf16.msra.mxu0 0
      %3812 = vmatpush.bf16.msra.mxu0 0
      %3813 = vmatpush.bf16.msra.mxu0 0
      %3814 = vmatpush.bf16.msra.mxu0 0
      %3815 = vmatpush.bf16.msra.mxu0 %v3806
      %3816 = vmatmul.bf16.gmra.mxu0 %v3752
      %v3817 = vpop.f32.mrf.mxu0
      %v3818 = vadd.f32 0.0, %v3817
      %v3819 = vpop.f32.mrf.mxu0
      %v3820 = vadd.f32 0.0, %v3819
      %3821 = vmatmul.bf16.gmra.mxu0 %v3755
      %v3822 = vpop.f32.mrf.mxu0
      %v3823 = vadd.f32 0.0, %v3822
      %v3824 = vpop.f32.mrf.mxu0
      %v3825 = vadd.f32 0.0, %v3824
      %3826 = vmatmul.bf16.gmra.mxu0 %v3758
      %v3827 = vpop.f32.mrf.mxu0
      %v3828 = vadd.f32 0.0, %v3827
      %v3829 = vpop.f32.mrf.mxu0
      %v3830 = vadd.f32 0.0, %v3829
      %3831 = vmatmul.bf16.gmra.mxu0 %v3761
      %v3832 = vpop.f32.mrf.mxu0
      %v3833 = vadd.f32 0.0, %v3832
      %v3834 = vpop.f32.mrf.mxu0
      %v3835 = vadd.f32 0.0, %v3834
      %3836 = vmatmul.bf16.gmra.mxu0 %v3764
      %v3837 = vpop.f32.mrf.mxu0
      %v3838 = vadd.f32 0.0, %v3837
      %v3839 = vpop.f32.mrf.mxu0
      %v3840 = vadd.f32 0.0, %v3839
      %3841 = vmatmul.bf16.gmra.mxu0 %v3767
      %v3842 = vpop.f32.mrf.mxu0
      %v3843 = vadd.f32 0.0, %v3842
      %v3844 = vpop.f32.mrf.mxu0
      %v3845 = vadd.f32 0.0, %v3844
      %3846 = vmatmul.bf16.gmra.mxu0 %v3770
      %v3847 = vpop.f32.mrf.mxu0
      %v3848 = vadd.f32 0.0, %v3847
      %v3849 = vpop.f32.mrf.mxu0
      %v3850 = vadd.f32 0.0, %v3849
      %3851 = vmatmul.bf16.gmra.mxu0 %v3773
      %v3852 = vpop.f32.mrf.mxu0
      %v3853 = vadd.f32 0.0, %v3852
      %v3854 = vpop.f32.mrf.mxu0
      %v3855 = vadd.f32 0.0, %v3854
      %3856 = vmatmul.bf16.gmra.mxu0 %v3776
      %v3857 = vpop.f32.mrf.mxu0
      %v3858 = vadd.f32 0.0, %v3857
      %v3859 = vpop.f32.mrf.mxu0
      %v3860 = vadd.f32 0.0, %v3859
      %3861 = vmatmul.bf16.gmra.mxu0 %v3779
      %v3862 = vpop.f32.mrf.mxu0
      %v3863 = vadd.f32 0.0, %v3862
      %v3864 = vpop.f32.mrf.mxu0
      %v3865 = vadd.f32 0.0, %v3864
      %3866 = vmatmul.bf16.gmra.mxu0 %v3782
      %v3867 = vpop.f32.mrf.mxu0
      %v3868 = vadd.f32 0.0, %v3867
      %v3869 = vpop.f32.mrf.mxu0
      %v3870 = vadd.f32 0.0, %v3869
      %3871 = vmatmul.bf16.gmra.mxu0 %v3785
      %v3872 = vpop.f32.mrf.mxu0
      %v3873 = vadd.f32 0.0, %v3872
      %v3874 = vpop.f32.mrf.mxu0
      %v3875 = vadd.f32 0.0, %v3874
      %3876 = vmatmul.bf16.gmra.mxu0 %v3788
      %v3877 = vpop.f32.mrf.mxu0
      %v3878 = vadd.f32 0.0, %v3877
      %v3879 = vpop.f32.mrf.mxu0
      %v3880 = vadd.f32 0.0, %v3879
      %3881 = vmatmul.bf16.gmra.mxu0 %v3791
      %v3882 = vpop.f32.mrf.mxu0
      %v3883 = vadd.f32 0.0, %v3882
      %v3884 = vpop.f32.mrf.mxu0
      %v3885 = vadd.f32 0.0, %v3884
      %3886 = vmatmul.bf16.gmra.mxu0 %v3794
      %v3887 = vpop.f32.mrf.mxu0
      %v3888 = vadd.f32 0.0, %v3887
      %v3889 = vpop.f32.mrf.mxu0
      %v3890 = vadd.f32 0.0, %v3889
      %3891 = vmatmul.bf16.gmra.mxu0 %v3797
      %v3892 = vpop.f32.mrf.mxu0
      %v3893 = vadd.f32 0.0, %v3892
      %v3894 = vpop.f32.mrf.mxu0
      %v3895 = vadd.f32 0.0, %v3894
      %3896 = vmatmul.bf16.gmra.mxu0 %v3800
      %v3897 = vpop.f32.mrf.mxu0
      %v3898 = vadd.f32 0.0, %v3897
      %v3899 = vpop.f32.mrf.mxu0
      %v3900 = vadd.f32 0.0, %v3899
      %3901 = vmatmul.bf16.gmra.mxu0 %v3803
      %v3902 = vpop.f32.mrf.mxu0
      %v3903 = vadd.f32 0.0, %v3902
      %v3904 = vpop.f32.mrf.mxu0
      %v3905 = vadd.f32 0.0, %v3904
      %3906 = vdwg.mxu0
      %v3907 = vadd.f32 %v3671, %v3818
      %v3908 = vadd.f32 %v3672, %v3820
      %v3909 = vadd.f32 %v3673, %v3823
      %v3910 = vadd.f32 %v3674, %v3825
      %v3911 = vadd.f32 %v3675, %v3828
      %v3912 = vadd.f32 %v3676, %v3830
      %v3913 = vadd.f32 %v3677, %v3833
      %v3914 = vadd.f32 %v3678, %v3835
      %v3915 = vadd.f32 %v3679, %v3838
      %v3916 = vadd.f32 %v3680, %v3840
      %v3917 = vadd.f32 %v3681, %v3843
      %v3918 = vadd.f32 %v3682, %v3845
      %v3919 = vadd.f32 %v3683, %v3848
      %v3920 = vadd.f32 %v3684, %v3850
      %v3921 = vadd.f32 %v3685, %v3853
      %v3922 = vadd.f32 %v3686, %v3855
      %v3923 = vadd.f32 %v3687, %v3858
      %v3924 = vadd.f32 %v3688, %v3860
      %v3925 = vadd.f32 %v3689, %v3863
      %v3926 = vadd.f32 %v3690, %v3865
      %v3927 = vadd.f32 %v3691, %v3868
      %v3928 = vadd.f32 %v3692, %v3870
      %v3929 = vadd.f32 %v3693, %v3873
      %v3930 = vadd.f32 %v3694, %v3875
      %v3931 = vadd.f32 %v3695, %v3878
      %v3932 = vadd.f32 %v3696, %v3880
      %v3933 = vadd.f32 %v3697, %v3883
      %v3934 = vadd.f32 %v3698, %v3885
      %v3935 = vadd.f32 %v3699, %v3888
      %v3936 = vadd.f32 %v3700, %v3890
      %v3937 = vadd.f32 %v3701, %v3893
      %v3938 = vadd.f32 %v3702, %v3895
      %v3939 = vadd.f32 %v3703, %v3898
      %v3940 = vadd.f32 %v3704, %v3900
      %v3941 = vadd.f32 %v3705, %v3903
      %v3942 = vadd.f32 %v3706, %v3905
      %v3943 = vpack.c.bf16 %v3907, %v3907
      %v3944 = vpack.c.bf16 %v3908, %v3908
      %v3945 = vpack.c.bf16 %v3909, %v3909
      %v3946 = vpack.c.bf16 %v3910, %v3910
      %v3947 = vpack.c.bf16 %v3911, %v3911
      %v3948 = vpack.c.bf16 %v3912, %v3912
      %v3949 = vpack.c.bf16 %v3913, %v3913
      %v3950 = vpack.c.bf16 %v3914, %v3914
      %v3951 = vpack.c.bf16 %v3915, %v3915
      %v3952 = vpack.c.bf16 %v3916, %v3916
      %v3953 = vpack.c.bf16 %v3917, %v3917
      %v3954 = vpack.c.bf16 %v3918, %v3918
      %v3955 = vpack.c.bf16 %v3919, %v3919
      %v3956 = vpack.c.bf16 %v3920, %v3920
      %v3957 = vpack.c.bf16 %v3921, %v3921
      %v3958 = vpack.c.bf16 %v3922, %v3922
      %v3959 = vpack.c.bf16 %v3923, %v3923
      %v3960 = vpack.c.bf16 %v3924, %v3924
      %v3961 = vpack.c.bf16 %v3925, %v3925
      %v3962 = vpack.c.bf16 %v3926, %v3926
      %v3963 = vpack.c.bf16 %v3927, %v3927
      %v3964 = vpack.c.bf16 %v3928, %v3928
      %v3965 = vpack.c.bf16 %v3929, %v3929
      %v3966 = vpack.c.bf16 %v3930, %v3930
      %v3967 = vpack.c.bf16 %v3931, %v3931
      %v3968 = vpack.c.bf16 %v3932, %v3932
      %v3969 = vpack.c.bf16 %v3933, %v3933
      %v3970 = vpack.c.bf16 %v3934, %v3934
      %v3971 = vpack.c.bf16 %v3935, %v3935
      %v3972 = vpack.c.bf16 %v3936, %v3936
      %v3973 = vpack.c.bf16 %v3937, %v3937
      %v3974 = vpack.c.bf16 %v3938, %v3938
      %v3975 = vpack.c.bf16 %v3939, %v3939
      %v3976 = vpack.c.bf16 %v3940, %v3940
      %v3977 = vpack.c.bf16 %v3941, %v3941
      %v3978 = vpack.c.bf16 %v3942, %v3942
      %3979 = vst.msk [vmem:[%s258] sm:$0xf] %vm740, %v3943
      %3980 = vst.msk [vmem:[%s258 + $0x4] sm:$0xf] %vm740, %v3944
      %3981 = vst.msk [vmem:[%s258 + $0x8] sm:$0xf] %vm740, %v3945
      %3982 = vst.msk [vmem:[%s258 + $0xc] sm:$0xf] %vm740, %v3946
      %3983 = vst.msk [vmem:[%s258 + $0x10] sm:$0xf] %vm740, %v3947
      %3984 = vst.msk [vmem:[%s258 + $0x14] sm:$0xf] %vm740, %v3948
      %3985 = vst.msk [vmem:[%s258 + $0x18] sm:$0xf] %vm740, %v3949
      %3986 = vst.msk [vmem:[%s258 + $0x1c] sm:$0xf] %vm740, %v3950
      %3987 = vst.msk [vmem:[%s258 + $0x20] sm:$0xf] %vm740, %v3951
      %3988 = vst.msk [vmem:[%s258 + $0x24] sm:$0xf] %vm740, %v3952
      %3989 = vst.msk [vmem:[%s258 + $0x28] sm:$0xf] %vm740, %v3953
      %3990 = vst.msk [vmem:[%s258 + $0x2c] sm:$0xf] %vm740, %v3954
      %3991 = vst.msk [vmem:[%s258 + $0x30] sm:$0xf] %vm740, %v3955
      %3992 = vst.msk [vmem:[%s258 + $0x34] sm:$0xf] %vm740, %v3956
      %3993 = vst.msk [vmem:[%s258 + $0x38] sm:$0xf] %vm740, %v3957
      %3994 = vst.msk [vmem:[%s258 + $0x3c] sm:$0xf] %vm740, %v3958
      %3995 = vst.msk [vmem:[%s258 + $0x40] sm:$0xf] %vm740, %v3959
      %3996 = vst.msk [vmem:[%s258 + $0x44] sm:$0xf] %vm740, %v3960
      %3997 = vst.msk [vmem:[%s258 + $0x48] sm:$0xf] %vm740, %v3961
      %3998 = vst.msk [vmem:[%s258 + $0x4c] sm:$0xf] %vm740, %v3962
      %3999 = vst.msk [vmem:[%s258 + $0x50] sm:$0xf] %vm740, %v3963
      %4000 = vst.msk [vmem:[%s258 + $0x54] sm:$0xf] %vm740, %v3964
      %4001 = vst.msk [vmem:[%s258 + $0x58] sm:$0xf] %vm740, %v3965
      %4002 = vst.msk [vmem:[%s258 + $0x5c] sm:$0xf] %vm740, %v3966
      %4003 = vst.msk [vmem:[%s258 + $0x60] sm:$0xf] %vm740, %v3967
      %4004 = vst.msk [vmem:[%s258 + $0x64] sm:$0xf] %vm740, %v3968
      %4005 = vst.msk [vmem:[%s258 + $0x68] sm:$0xf] %vm740, %v3969
      %4006 = vst.msk [vmem:[%s258 + $0x6c] sm:$0xf] %vm740, %v3970
      %4007 = vst.msk [vmem:[%s258 + $0x70] sm:$0xf] %vm740, %v3971
      %4008 = vst.msk [vmem:[%s258 + $0x74] sm:$0xf] %vm740, %v3972
      %4009 = vst.msk [vmem:[%s258 + $0x78] sm:$0xf] %vm740, %v3973
      %4010 = vst.msk [vmem:[%s258 + $0x7c] sm:$0xf] %vm740, %v3974
      %4011 = vst.msk [vmem:[%s258 + $0x80] sm:$0xf] %vm740, %v3975
      %4012 = vst.msk [vmem:[%s258 + $0x84] sm:$0xf] %vm740, %v3976
      %4013 = vst.msk [vmem:[%s258 + $0x88] sm:$0xf] %vm740, %v3977
      %4014 = vst.msk [vmem:[%s258 + $0x8c] sm:$0xf] %vm740, %v3978
      %v4015 = vmul.f32 %v3907, %v491
      %v4016 = vmul.f32 %v3908, %v496
      %v4017 = vmul.f32 %v3909, %v501
      %v4018 = vmul.f32 %v3910, %v506
      %v4019 = vmul.f32 %v3911, %v511
      %v4020 = vmul.f32 %v3912, %v516
      %v4021 = vmul.f32 %v3913, %v521
      %v4022 = vmul.f32 %v3914, %v526
      %v4023 = vmul.f32 %v3915, %v531
      %v4024 = vmul.f32 %v3916, %v536
      %v4025 = vmul.f32 %v3917, %v541
      %v4026 = vmul.f32 %v3918, %v546
      %v4027 = vmul.f32 %v3919, %v551
      %v4028 = vmul.f32 %v3920, %v556
      %v4029 = vmul.f32 %v3921, %v561
      %v4030 = vmul.f32 %v3922, %v566
      %v4031 = vmul.f32 %v3923, %v571
      %v4032 = vmul.f32 %v3924, %v576
      %v4033 = vmul.f32 %v3925, %v581
      %v4034 = vmul.f32 %v3926, %v586
      %v4035 = vmul.f32 %v3927, %v591
      %v4036 = vmul.f32 %v3928, %v596
      %v4037 = vmul.f32 %v3929, %v601
      %v4038 = vmul.f32 %v3930, %v606
      %v4039 = vmul.f32 %v3931, %v611
      %v4040 = vmul.f32 %v3932, %v616
      %v4041 = vmul.f32 %v3933, %v621
      %v4042 = vmul.f32 %v3934, %v626
      %v4043 = vmul.f32 %v3935, %v631
      %v4044 = vmul.f32 %v3936, %v636
      %v4045 = vmul.f32 %v3937, %v641
      %v4046 = vmul.f32 %v3938, %v646
      %v4047 = vmul.f32 %v3939, %v651
      %v4048 = vmul.f32 %v3940, %v656
      %v4049 = vmul.f32 %v3941, %v661
      %v4050 = vmul.f32 %v3942, %v666
      %v4051 = vsel %vm1479, %v4015, 0.0
      %v4052 = vsel %vm1479, %v4016, 0.0
      %v4053 = vadd.f32 %v4051, %v4052
      %v4054 = vsel %vm1479, %v4017, 0.0
      %v4055 = vadd.f32 %v4053, %v4054
      %v4056 = vsel %vm1479, %v4018, 0.0
      %v4057 = vadd.f32 %v4055, %v4056
      %v4058 = vsel %vm1479, %v4019, 0.0
      %v4059 = vadd.f32 %v4057, %v4058
      %v4060 = vsel %vm1479, %v4020, 0.0
      %v4061 = vadd.f32 %v4059, %v4060
      %v4062 = vsel %vm1479, %v4021, 0.0
      %v4063 = vadd.f32 %v4061, %v4062
      %v4064 = vsel %vm1479, %v4022, 0.0
      %v4065 = vadd.f32 %v4063, %v4064
      %v4066 = vsel %vm1479, %v4023, 0.0
      %v4067 = vadd.f32 %v4065, %v4066
      %v4068 = vsel %vm1479, %v4024, 0.0
      %v4069 = vadd.f32 %v4067, %v4068
      %v4070 = vsel %vm1479, %v4025, 0.0
      %v4071 = vadd.f32 %v4069, %v4070
      %v4072 = vsel %vm1479, %v4026, 0.0
      %v4073 = vadd.f32 %v4071, %v4072
      %v4074 = vsel %vm1479, %v4027, 0.0
      %v4075 = vadd.f32 %v4073, %v4074
      %v4076 = vsel %vm1479, %v4028, 0.0
      %v4077 = vadd.f32 %v4075, %v4076
      %v4078 = vsel %vm1479, %v4029, 0.0
      %v4079 = vadd.f32 %v4077, %v4078
      %v4080 = vsel %vm1479, %v4030, 0.0
      %v4081 = vadd.f32 %v4079, %v4080
      %v4082 = vsel %vm1479, %v4031, 0.0
      %v4083 = vadd.f32 %v4081, %v4082
      %v4084 = vsel %vm1479, %v4032, 0.0
      %v4085 = vadd.f32 %v4083, %v4084
      %v4086 = vsel %vm1479, %v4033, 0.0
      %v4087 = vadd.f32 %v4085, %v4086
      %v4088 = vsel %vm1479, %v4034, 0.0
      %v4089 = vadd.f32 %v4087, %v4088
      %v4090 = vsel %vm1479, %v4035, 0.0
      %v4091 = vadd.f32 %v4089, %v4090
      %v4092 = vsel %vm1479, %v4036, 0.0
      %v4093 = vadd.f32 %v4091, %v4092
      %v4094 = vsel %vm1479, %v4037, 0.0
      %v4095 = vadd.f32 %v4093, %v4094
      %v4096 = vsel %vm1479, %v4038, 0.0
      %v4097 = vadd.f32 %v4095, %v4096
      %v4098 = vsel %vm1479, %v4039, 0.0
      %v4099 = vadd.f32 %v4097, %v4098
      %v4100 = vsel %vm1479, %v4040, 0.0
      %v4101 = vadd.f32 %v4099, %v4100
      %v4102 = vsel %vm1479, %v4041, 0.0
      %v4103 = vadd.f32 %v4101, %v4102
      %v4104 = vsel %vm1479, %v4042, 0.0
      %v4105 = vadd.f32 %v4103, %v4104
      %v4106 = vsel %vm1479, %v4043, 0.0
      %v4107 = vadd.f32 %v4105, %v4106
      %v4108 = vsel %vm1479, %v4044, 0.0
      %v4109 = vadd.f32 %v4107, %v4108
      %v4110 = vsel %vm1479, %v4045, 0.0
      %v4111 = vadd.f32 %v4109, %v4110
      %v4112 = vsel %vm1479, %v4046, 0.0
      %v4113 = vadd.f32 %v4111, %v4112
      %v4114 = vsel %vm1479, %v4047, 0.0
      %v4115 = vadd.f32 %v4113, %v4114
      %v4116 = vsel %vm1479, %v4048, 0.0
      %v4117 = vadd.f32 %v4115, %v4116
      %v4118 = vsel %vm1479, %v4049, 0.0
      %v4119 = vadd.f32 %v4117, %v4118
      %v4120 = vsel %vm1479, %v4050, 0.0
      %v4121 = vadd.f32 %v4119, %v4120
      %v4122 = vrot.slane %v4121, 4
      %v4123 = vadd.f32 %v4121, %v4122
      %v4124 = vrot.slane %v4123, 2
      %v4125 = vadd.f32 %v4123, %v4124
      %v4126 = vrot.slane %v4125, 1
      %v4127 = vadd.f32 %v4125, %v4126
      %v4128 = vmul.f32 %v4015, %v4015
      %v4129 = vmul.f32 %v4016, %v4016
      %v4130 = vmul.f32 %v4017, %v4017
      %v4131 = vmul.f32 %v4018, %v4018
      %v4132 = vmul.f32 %v4019, %v4019
      %v4133 = vmul.f32 %v4020, %v4020
      %v4134 = vmul.f32 %v4021, %v4021
      %v4135 = vmul.f32 %v4022, %v4022
      %v4136 = vmul.f32 %v4023, %v4023
      %v4137 = vmul.f32 %v4024, %v4024
      %v4138 = vmul.f32 %v4025, %v4025
      %v4139 = vmul.f32 %v4026, %v4026
      %v4140 = vmul.f32 %v4027, %v4027
      %v4141 = vmul.f32 %v4028, %v4028
      %v4142 = vmul.f32 %v4029, %v4029
      %v4143 = vmul.f32 %v4030, %v4030
      %v4144 = vmul.f32 %v4031, %v4031
      %v4145 = vmul.f32 %v4032, %v4032
      %v4146 = vmul.f32 %v4033, %v4033
      %v4147 = vmul.f32 %v4034, %v4034
      %v4148 = vmul.f32 %v4035, %v4035
      %v4149 = vmul.f32 %v4036, %v4036
      %v4150 = vmul.f32 %v4037, %v4037
      %v4151 = vmul.f32 %v4038, %v4038
      %v4152 = vmul.f32 %v4039, %v4039
      %v4153 = vmul.f32 %v4040, %v4040
      %v4154 = vmul.f32 %v4041, %v4041
      %v4155 = vmul.f32 %v4042, %v4042
      %v4156 = vmul.f32 %v4043, %v4043
      %v4157 = vmul.f32 %v4044, %v4044
      %v4158 = vmul.f32 %v4045, %v4045
      %v4159 = vmul.f32 %v4046, %v4046
      %v4160 = vmul.f32 %v4047, %v4047
      %v4161 = vmul.f32 %v4048, %v4048
      %v4162 = vmul.f32 %v4049, %v4049
      %v4163 = vmul.f32 %v4050, %v4050
      %v4164 = vsel %vm1479, %v4128, 0.0
      %v4165 = vsel %vm1479, %v4129, 0.0
      %v4166 = vadd.f32 %v4164, %v4165
      %v4167 = vsel %vm1479, %v4130, 0.0
      %v4168 = vadd.f32 %v4166, %v4167
      %v4169 = vsel %vm1479, %v4131, 0.0
      %v4170 = vadd.f32 %v4168, %v4169
      %v4171 = vsel %vm1479, %v4132, 0.0
      %v4172 = vadd.f32 %v4170, %v4171
      %v4173 = vsel %vm1479, %v4133, 0.0
      %v4174 = vadd.f32 %v4172, %v4173
      %v4175 = vsel %vm1479, %v4134, 0.0
      %v4176 = vadd.f32 %v4174, %v4175
      %v4177 = vsel %vm1479, %v4135, 0.0
      %v4178 = vadd.f32 %v4176, %v4177
      %v4179 = vsel %vm1479, %v4136, 0.0
      %v4180 = vadd.f32 %v4178, %v4179
      %v4181 = vsel %vm1479, %v4137, 0.0
      %v4182 = vadd.f32 %v4180, %v4181
      %v4183 = vsel %vm1479, %v4138, 0.0
      %v4184 = vadd.f32 %v4182, %v4183
      %v4185 = vsel %vm1479, %v4139, 0.0
      %v4186 = vadd.f32 %v4184, %v4185
      %v4187 = vsel %vm1479, %v4140, 0.0
      %v4188 = vadd.f32 %v4186, %v4187
      %v4189 = vsel %vm1479, %v4141, 0.0
      %v4190 = vadd.f32 %v4188, %v4189
      %v4191 = vsel %vm1479, %v4142, 0.0
      %v4192 = vadd.f32 %v4190, %v4191
      %v4193 = vsel %vm1479, %v4143, 0.0
      %v4194 = vadd.f32 %v4192, %v4193
      %v4195 = vsel %vm1479, %v4144, 0.0
      %v4196 = vadd.f32 %v4194, %v4195
      %v4197 = vsel %vm1479, %v4145, 0.0
      %v4198 = vadd.f32 %v4196, %v4197
      %v4199 = vsel %vm1479, %v4146, 0.0
      %v4200 = vadd.f32 %v4198, %v4199
      %v4201 = vsel %vm1479, %v4147, 0.0
      %v4202 = vadd.f32 %v4200, %v4201
      %v4203 = vsel %vm1479, %v4148, 0.0
      %v4204 = vadd.f32 %v4202, %v4203
      %v4205 = vsel %vm1479, %v4149, 0.0
      %v4206 = vadd.f32 %v4204, %v4205
      %v4207 = vsel %vm1479, %v4150, 0.0
      %v4208 = vadd.f32 %v4206, %v4207
      %v4209 = vsel %vm1479, %v4151, 0.0
      %v4210 = vadd.f32 %v4208, %v4209
      %v4211 = vsel %vm1479, %v4152, 0.0
      %v4212 = vadd.f32 %v4210, %v4211
      %v4213 = vsel %vm1479, %v4153, 0.0
      %v4214 = vadd.f32 %v4212, %v4213
      %v4215 = vsel %vm1479, %v4154, 0.0
      %v4216 = vadd.f32 %v4214, %v4215
      %v4217 = vsel %vm1479, %v4155, 0.0
      %v4218 = vadd.f32 %v4216, %v4217
      %v4219 = vsel %vm1479, %v4156, 0.0
      %v4220 = vadd.f32 %v4218, %v4219
      %v4221 = vsel %vm1479, %v4157, 0.0
      %v4222 = vadd.f32 %v4220, %v4221
      %v4223 = vsel %vm1479, %v4158, 0.0
      %v4224 = vadd.f32 %v4222, %v4223
      %v4225 = vsel %vm1479, %v4159, 0.0
      %v4226 = vadd.f32 %v4224, %v4225
      %v4227 = vsel %vm1479, %v4160, 0.0
      %v4228 = vadd.f32 %v4226, %v4227
      %v4229 = vsel %vm1479, %v4161, 0.0
      %v4230 = vadd.f32 %v4228, %v4229
      %v4231 = vsel %vm1479, %v4162, 0.0
      %v4232 = vadd.f32 %v4230, %v4231
      %v4233 = vsel %vm1479, %v4163, 0.0
      %v4234 = vadd.f32 %v4232, %v4233
      %v4235 = vrot.slane %v4234, 4
      %v4236 = vadd.f32 %v4234, %v4235
      %v4237 = vrot.slane %v4236, 2
      %v4238 = vadd.f32 %v4236, %v4237
      %v4239 = vrot.slane %v4238, 1
      %v4240 = vadd.f32 %v4238, %v4239
      %vm4241 = vcmask 1040384
      %v4242 = vsel %vm4241, %v4127, %v4240
      %vm4243 = vcmask 25600
      %4244 = vst.msk [vmem:[%s262] sm:$0x3] %vm4243, %v4242
      %p4245 = scmp.lt.s32.totalorder %s18, 1
      %s4246 = scalar_select %p4245, %s18, 1
      %s4247 = smul.addr %s4246, 36
      %s4248 = smul.addr %s4247, 4
      %s4249 = scalar_lea.vmem %s5, %s4248
      %p4250 = scmp.lt.s32.totalorder %s18, 1
      %s4251 = scalar_select %p4250, %s18, 1
      %s4252 = smul.addr %s4251, 2
      %s4253 = scalar_lea.vmem %s6, %s4252
      // Predicated region
      $region41: #{basic_block_forward.4} parent=39 // pred_check
        %p4254 = pneg %p146
      $region42: #{basic_block_forward.4} parent=39 // pred_check_branch
        %4256 = sbr.rel (%p4254) target = $region44
      $region43: #{basic_block_forward.4} parent=39 // pred_region
        _
      $region44: #{basic_block_forward.4} parent=39 // pred_fallthru
        _
      // Predicated region
      $region45: #{basic_block_forward.4} parent=39 // pred_check
        %p4257 = pneg %p172
      $region46: #{basic_block_forward.4} parent=39 // pred_check_branch
        %4259 = sbr.rel (%p4257) target = $region48
      $region47: #{basic_block_forward.4} parent=39 // pred_region
        _
      $region48: #{basic_block_forward.4} parent=39 // pred_fallthru
        _
    $region40: #{basic_block_forward.4} parent=5 // pred_fallthru
      _
    %p4260 = scmp.le.s32.totalorder 2, %s13
    // Predicated region
    $region49: #{basic_block_forward.4} parent=5 // pred_check
      %p4261 = pneg %p4260
    $region50: #{basic_block_forward.4} parent=5 // pred_check_branch
      %4263 = sbr.rel (%p4261) target = $region52
    $region51: #{basic_block_forward.4} parent=5 // pred_region
      %s4264 = ssub.s32 %s13, 2
      // Predicated region
      $region53: #{basic_block_forward.4} parent=51 // pred_check
        %p4265 = pneg %p152
      $region54: #{basic_block_forward.4} parent=51 // pred_check_branch
        %4267 = sbr.rel (%p4265) target = $region56
      $region55: #{basic_block_forward.4} parent=51 // pred_region
        %p4268 = scmp.lt.s32.totalorder %s19, 1
        %s4269 = scalar_select %p4268, %s19, 1
        %s4270 = smul.addr %s4269, 36
        %s4271 = smul.addr %s4270, 4
        %s4272 = scalar_lea.vmem %s5, %s4271
      $region56: #{basic_block_forward.4} parent=51 // pred_fallthru
        _
      // Predicated region
      $region57: #{basic_block_forward.4} parent=51 // pred_check
        %p4273 = pneg %p178
      $region58: #{basic_block_forward.4} parent=51 // pred_check_branch
        %4275 = sbr.rel (%p4273) target = $region60
      $region59: #{basic_block_forward.4} parent=51 // pred_region
        %p4276 = scmp.lt.s32.totalorder %s19, 1
        %s4277 = scalar_select %p4276, %s19, 1
        %s4278 = smul.addr %s4277, 2
        %s4279 = scalar_lea.vmem %s6, %s4278
      $region60: #{basic_block_forward.4} parent=51 // pred_fallthru
        _
    $region52: #{basic_block_forward.4} parent=5 // pred_fallthru
      _
  $region6: #{basic_block_forward.4} parent=0 // loop_footer
    %s17 = sadd.s32 1, %s13
  $region7: #{basic_block_forward.4} parent=0 // loop_footer_branch
    %12 = sbr.rel target = $region3
  $region8: #{basic_block_forward.4} parent=0 // loop_exit
    _

</llo_original>
